<compile_context>
chip_gen: v5e
topology: v5e:2x2
jax: 0.10.0
libtpu: 0.0.40
codegen_flags: <defaults>
</compile_context>

<pallas_src>
import functools
import math

import jax
import jax.numpy as jnp
from jax.experimental import pallas as pl
from jax.experimental.pallas import tpu as pltpu


# ----------------------------- config (small, lane-dense) -----------------------------
VOCAB = 128
TYPE_VOCAB = 2
MAX_POS = 128
HIDDEN = 256          # stands in for 768 (multiple of 128 -> lane-dense)
N_HEADS = 2
HEAD_DIM = HIDDEN // N_HEADS   # 128 -> lane-dense attention
INTERMEDIATE = 512    # stands in for 3072
N_LAYERS = 2          # stands in for 12
BATCH = 2
SEQ = 128
LN_EPS = 1e-12

VMEM_LIMIT = 32 * 1024 * 1024          # <= v7x's 64 MiB VMEM with headroom
_GELU_C = math.sqrt(2.0 / math.pi)


def _cparams(*sem):
    return pltpu.CompilerParams(dimension_semantics=sem,
                                vmem_limit_bytes=VMEM_LIMIT)


def _ln(y, g, b):
    """LayerNorm epilogue in f32 over the last axis."""
    mean = jnp.mean(y, axis=-1, keepdims=True)
    var = jnp.mean(jnp.square(y - mean), axis=-1, keepdims=True)
    return (y - mean) * jax.lax.rsqrt(var + LN_EPS) * g + b


# ----------------------------- Pallas kernels -----------------------------
def _dense_kernel(x_ref, w_ref, b_ref, o_ref):
    """Single-K-step GEMM + bias (no accumulator scratch needed)."""
    y = jnp.dot(x_ref[...], w_ref[...], preferred_element_type=jnp.float32)
    o_ref[...] = (y + b_ref[...].astype(jnp.float32)).astype(o_ref.dtype)


def dense(x, w, b, tm=128):
    """x:[M,K](bf16) @ w:[K,N](bf16) + b:[1,N](f32) -> [M,N] bf16.

    Single K step, full N per step: grid (M/tm,) -> 2 fat steps, both TCs busy
    on v7x, bias/weight tiles fetched with constant block indices.
    """
    M, K = x.shape
    N = w.shape[1]
    tm = min(tm, M)
    assert M % tm == 0
    return pl.pallas_call(
        _dense_kernel,
        out_shape=jax.ShapeDtypeStruct((M, N), jnp.bfloat16),
        grid=(M // tm,),
        in_specs=[
            pl.BlockSpec((tm, K), lambda i: (i, 0)),
            pl.BlockSpec((K, N), lambda i: (0, 0)),
            pl.BlockSpec((1, N), lambda i: (0, 0)),
        ],
        out_specs=pl.BlockSpec((tm, N), lambda i: (i, 0)),
        compiler_params=_cparams("parallel"),
        cost_estimate=pl.CostEstimate(
            flops=2 * M * N * K,
            transcendentals=0,
            bytes_accessed=2 * (M * K + K * N + M * N) + 4 * N),
    )(x, w, b)


def _dense_res_ln_kernel(x_ref, w_ref, b_ref, r_ref, g_ref, bt_ref, o_ref):
    """GEMM + bias + residual-add + LayerNorm, single K step, no scratch."""
    y = (jnp.dot(x_ref[...], w_ref[...], preferred_element_type=jnp.float32)
         + b_ref[...].astype(jnp.float32)
         + r_ref[...].astype(jnp.float32))
    o_ref[...] = _ln(y, g_ref[...].astype(jnp.float32),
                     bt_ref[...].astype(jnp.float32)).astype(o_ref.dtype)


def dense_res_ln(x, w, b, residual, gamma, beta, tm=128):
    """LayerNorm(x @ w + b + residual); LN needs the full N axis per tile."""
    M, K = x.shape
    N = w.shape[1]
    tm = min(tm, M)
    assert M % tm == 0
    return pl.pallas_call(
        _dense_res_ln_kernel,
        out_shape=jax.ShapeDtypeStruct((M, N), jnp.bfloat16),
        grid=(M // tm,),
        in_specs=[
            pl.BlockSpec((tm, K), lambda i: (i, 0)),
            pl.BlockSpec((K, N), lambda i: (0, 0)),
            pl.BlockSpec((1, N), lambda i: (0, 0)),
            pl.BlockSpec((tm, N), lambda i: (i, 0)),
            pl.BlockSpec((1, N), lambda i: (0, 0)),
            pl.BlockSpec((1, N), lambda i: (0, 0)),
        ],
        out_specs=pl.BlockSpec((tm, N), lambda i: (i, 0)),
        compiler_params=_cparams("parallel"),
        cost_estimate=pl.CostEstimate(
            flops=2 * M * N * K + 10 * M * N,
            transcendentals=M,
            bytes_accessed=2 * (M * K + K * N + 2 * M * N) + 12 * N),
    )(x, w, b, residual, gamma, beta)


def _ffn_kernel(x_ref, w1_ref, b1_ref, w2_ref, b2_ref, g_ref, bt_ref, o_ref):
    """Fused FFN: GELU(x@W1+b1)@W2+b2 + residual(x) + LayerNorm.

    Whole intermediate per step (single reduction step -> no accumulator
    scratch); the [tm, I] GELU activation tile never leaves VMEM.  The
    residual is the kernel input x itself (same block, no extra DMA).
    """
    x = x_ref[...]
    h = (jnp.dot(x, w1_ref[...], preferred_element_type=jnp.float32)
         + b1_ref[...].astype(jnp.float32))
    # tanh-approx GELU: tanh goes to the EUP slot (VALU erf polynomial was the
    # binding slot).  Slight deviation (<~1e-3) from HF's exact-erf GELU.
    h = 0.5 * h * (1.0 + jnp.tanh(_GELU_C * (h + 0.044715 * h * h * h)))
    y = (jnp.dot(h.astype(jnp.bfloat16), w2_ref[...],
                 preferred_element_type=jnp.float32)
         + b2_ref[...].astype(jnp.float32)
         + x.astype(jnp.float32))                       # residual = input x
    o_ref[...] = _ln(y, g_ref[...].astype(jnp.float32),
                     bt_ref[...].astype(jnp.float32)).astype(o_ref.dtype)


def ffn_res_ln(x, w1, b1, w2, b2, gamma, beta, tm=128):
    M, H = x.shape
    I = w1.shape[1]
    tm = min(tm, M)
    assert M % tm == 0
    # TODO(synk): at real BERT dims (H=768, I=3072) split I into <=512 tiles
    # with a reduction grid axis + pl.Buffered weight specs to respect v7x's
    # 64 MiB VMEM; at these toy dims whole-I per step is well within budget.
    return pl.pallas_call(
        _ffn_kernel,
        out_shape=jax.ShapeDtypeStruct((M, H), jnp.bfloat16),
        grid=(M // tm,),
        in_specs=[
            pl.BlockSpec((tm, H), lambda i: (i, 0)),
            pl.BlockSpec((H, I), lambda i: (0, 0)),
            pl.BlockSpec((1, I), lambda i: (0, 0)),
            pl.BlockSpec((I, H), lambda i: (0, 0)),
            pl.BlockSpec((1, H), lambda i: (0, 0)),
            pl.BlockSpec((1, H), lambda i: (0, 0)),
            pl.BlockSpec((1, H), lambda i: (0, 0)),
        ],
        out_specs=pl.BlockSpec((tm, H), lambda i: (i, 0)),
        compiler_params=_cparams("parallel"),
        cost_estimate=pl.CostEstimate(
            flops=4 * M * I * H + 10 * M * H,
            transcendentals=M * I,
            bytes_accessed=2 * (2 * M * H + 2 * H * I) + 4 * (I + 3 * H)),
    )(x, w1, b1, w2, b2, gamma, beta)


def _ln_kernel(x_ref, g_ref, b_ref, o_ref):
    """LayerNorm over the last axis (no residual -> no zero-array DMA)."""
    x = x_ref[...].astype(jnp.float32)
    o_ref[...] = _ln(x, g_ref[...], b_ref[...]).astype(o_ref.dtype)


def layernorm(x, gamma, beta, tm=128):
    M, H = x.shape
    tm = min(tm, M)
    assert M % tm == 0
    return pl.pallas_call(
        _ln_kernel,
        out_shape=jax.ShapeDtypeStruct((M, H), jnp.bfloat16),
        grid=(M // tm,),
        in_specs=[
            pl.BlockSpec((tm, H), lambda i: (i, 0)),
            pl.BlockSpec((1, H), lambda i: (0, 0)),
            pl.BlockSpec((1, H), lambda i: (0, 0)),
        ],
        out_specs=pl.BlockSpec((tm, H), lambda i: (i, 0)),
        compiler_params=_cparams("parallel"),
    )(x, gamma, beta)


def _attention_kernel(qkv_ref, m_ref, o_ref, *, n_heads, head_dim):
    """All heads of one batch element per grid step.

    qkv_ref is the (S, 3H) slab of the fused QKV projection for this batch
    element; Q/K/V per head are static lane-aligned column slices (no JAX-side
    split/merge transposes).  1/sqrt(D) is folded into the Q weights/bias.
    Head outputs are written to lane-aligned column blocks of the (S, H)
    context tile, matching the standard head-merge layout.
    """
    m = m_ref[0].astype(jnp.float32)                    # [1, S] mask bias
    for hd in range(n_heads):
        q = qkv_ref[:, hd * head_dim:(hd + 1) * head_dim]              # [S, D]
        k = qkv_ref[:, (n_heads + hd) * head_dim:
                    (n_heads + hd + 1) * head_dim]                     # [S, D]
        v = qkv_ref[:, (2 * n_heads + hd) * head_dim:
                    (2 * n_heads + hd + 1) * head_dim]                 # [S, D]
        s = jax.lax.dot_general(q, k, (((1,), (1,)), ((), ())),
                                preferred_element_type=jnp.float32)    # [S, S]
        s = s + m
        mx = jnp.max(s, axis=-1, keepdims=True)
        p = jnp.exp(s - mx)
        p = p * pl.reciprocal(jnp.sum(p, axis=-1, keepdims=True), approx=True)
        o_ref[:, hd * head_dim:(hd + 1) * head_dim] = jnp.dot(
            p.astype(v.dtype), v,
            preferred_element_type=jnp.float32).astype(o_ref.dtype)


def attention(qkv, bias, *, n_heads, head_dim):
    """qkv:[M,3H] bf16 (fused projection); bias:[B,1,S] f32 -> ctx [M,H] bf16."""
    M, threeH = qkv.shape
    H = threeH // 3
    B, _, S = bias.shape
    assert M == B * S and H == n_heads * head_dim
    return pl.pallas_call(
        functools.partial(_attention_kernel, n_heads=n_heads, head_dim=head_dim),
        out_shape=jax.ShapeDtypeStruct((M, H), jnp.bfloat16),
        grid=(B,),
        in_specs=[
            pl.BlockSpec((S, threeH), lambda b: (b, 0)),
            pl.BlockSpec((1, 1, S), lambda b: (b, 0, 0)),
        ],
        out_specs=pl.BlockSpec((S, H), lambda b: (b, 0)),
        compiler_params=_cparams("parallel"),
        cost_estimate=pl.CostEstimate(
            flops=4 * B * n_heads * S * S * head_dim,
            transcendentals=B * n_heads * S * S,
            bytes_accessed=2 * (M * threeH + M * H) + 4 * B * S),
    )(qkv, bias)


def _pooler_head_kernel(cls_ref, pw_ref, pb_ref, ow_ref, ob_ref, o_ref):
    """Fused pooler (dense+tanh on [CLS]) + Linear(H,1) as a VPU row-reduce.

    Output padded to 128 lanes (lane-dense store); caller slices column 0.
    """
    pooled = jnp.tanh(
        jnp.dot(cls_ref[...], pw_ref[...], preferred_element_type=jnp.float32)
        + pb_ref[...].astype(jnp.float32))
    # TODO(synk): Dropout(0.3) is identity in eval mode; training-mode
    #             stochastic masking (pltpu.prng_*) intentionally not emulated.
    logit = (jnp.sum(pooled * ow_ref[...].astype(jnp.float32),
                     axis=-1, keepdims=True)
             + ob_ref[...].astype(jnp.float32))
    o_ref[...] = jnp.broadcast_to(logit, o_ref.shape).astype(o_ref.dtype)


def pooler_head(cls, pw, pb, ow, ob):
    B, H = cls.shape
    return pl.pallas_call(
        _pooler_head_kernel,
        out_shape=jax.ShapeDtypeStruct((B, 128), jnp.float32),
        grid=(1,),
        in_specs=[
            pl.BlockSpec((B, H), lambda i: (0, 0)),
            pl.BlockSpec((H, H), lambda i: (0, 0)),
            pl.BlockSpec((1, H), lambda i: (0, 0)),
            pl.BlockSpec((1, H), lambda i: (0, 0)),
            pl.BlockSpec((1, 1), lambda i: (0, 0)),
        ],
        out_specs=pl.BlockSpec((B, 128), lambda i: (0, 0)),
        compiler_params=_cparams("arbitrary"),
    )(cls, pw, pb, ow, ob)


# ----------------------------- parameter init -----------------------------
def init_params(key):
    def normal(k, shape):
        return 0.02 * jax.random.normal(k, shape, dtype=jnp.float32)

    keys = jax.random.split(key, 5 + N_LAYERS)
    H, I = HIDDEN, INTERMEDIATE
    scale = 1.0 / math.sqrt(HEAD_DIM)

    p = {
        "word_emb": normal(keys[0], (VOCAB, H)),
        "pos_emb": normal(keys[1], (MAX_POS, H)),
        "type_emb": normal(keys[2], (TYPE_VOCAB, H)),
        "emb_ln_g": jnp.ones((1, H), jnp.float32),
        "emb_ln_b": jnp.zeros((1, H), jnp.float32),
        "pooler_w": normal(keys[3], (H, H)).astype(jnp.bfloat16),
        "pooler_b": jnp.zeros((1, H), jnp.float32),
        "out_w": normal(keys[4], (1, H)),          # Linear(H, 1) weight (row layout)
        "out_b": jnp.zeros((1, 1), jnp.float32),
    }

    # Per-layer dicts (Python-unrolled layer loop -> no scan-slice weight copies).
    layers = []
    for l in range(N_LAYERS):
        lk = jax.random.split(keys[5 + l], 6)
        qw, kw, vw = (normal(lk[0], (H, H)), normal(lk[1], (H, H)),
                      normal(lk[2], (H, H)))
        qb, kb, vb = (jnp.zeros((1, H), jnp.float32),) * 3
        layers.append({
            # fold 1/sqrt(head_dim) into Q projection weights AND bias
            "qkv_w": jnp.concatenate([qw * scale, kw, vw], axis=1).astype(jnp.bfloat16),
            "qkv_b": jnp.concatenate([qb * scale, kb, vb], axis=1),
            "ao_w": normal(lk[3], (H, H)).astype(jnp.bfloat16),
            "ao_b": jnp.zeros((1, H), jnp.float32),
            "attn_ln_g": jnp.ones((1, H), jnp.float32),
            "attn_ln_b": jnp.zeros((1, H), jnp.float32),
            "ffn1_w": normal(lk[4], (H, I)).astype(jnp.bfloat16),
            "ffn1_b": jnp.zeros((1, I), jnp.float32),
            "ffn2_w": normal(lk[5], (I, H)).astype(jnp.bfloat16),
            "ffn2_b": jnp.zeros((1, H), jnp.float32),
            "ffn_ln_g": jnp.ones((1, H), jnp.float32),
            "ffn_ln_b": jnp.zeros((1, H), jnp.float32),
        })
    p["layers"] = layers
    return p


# ----------------------------- forward (glue) -----------------------------
def bert_base_uncased_forward(params, ids, mask, token_type_ids):
    B, S = ids.shape
    H = HIDDEN
    M = B * S

    # --- embeddings: gather in JAX, LayerNorm (no residual) in Pallas ---
    positions = jnp.arange(S, dtype=jnp.int32)
    emb = (jnp.take(params["word_emb"], ids, axis=0)
           + jnp.take(params["pos_emb"], positions, axis=0)[None, :, :]
           + jnp.take(params["type_emb"], token_type_ids, axis=0))     # [B,S,H] f32
    x = layernorm(emb.reshape(M, H), params["emb_ln_g"], params["emb_ln_b"])

    # additive attention-mask bias shared across heads, broadcast in-kernel
    bias = ((1.0 - mask.astype(jnp.float32)) * -10000.0).reshape(B, 1, S)

    for lw in params["layers"]:
        # fused QKV projection: one [H, 3H] GEMM, grid (M/tm,)
        qkv = dense(x, lw["qkv_w"], lw["qkv_b"])                       # [M, 3H] bf16
        # attention reads Q/K/V straight from the [M,3H] buffer via BlockSpec
        # column blocks and writes the merged [M,H] context (no transposes).
        ctx = attention(qkv, bias, n_heads=N_HEADS, head_dim=HEAD_DIM)  # [M, H]
        # attention output projection + residual + LayerNorm (fused)
        x = dense_res_ln(ctx, lw["ao_w"], lw["ao_b"], x,
                         lw["attn_ln_g"], lw["attn_ln_b"])
        # FFN1 + GELU + FFN2 + residual + LayerNorm (fused, intermediate in VMEM)
        x = ffn_res_ln(x, lw["ffn1_w"], lw["ffn1_b"],
                       lw["ffn2_w"], lw["ffn2_b"],
                       lw["ffn_ln_g"], lw["ffn_ln_b"])

    # --- pooler (dense+tanh on [CLS]) + Dropout(identity) + Linear(H,1) ---
    cls = x.reshape(B, S, H)[:, 0, :]                                  # [B, H] bf16
    logits_padded = pooler_head(cls, params["pooler_w"], params["pooler_b"],
                                params["out_w"], params["out_b"])      # [B, 128]
    return logits_padded[:, :1]                                        # [B, 1] f32


# ----------------------------- main -----------------------------
if __name__ == "__main__":
    key = jax.random.PRNGKey(0)
    pkey, ikey = jax.random.split(key)

    params = init_params(pkey)

    ids = jax.random.randint(ikey, (BATCH, SEQ), 0, VOCAB, dtype=jnp.int32)
    mask = jnp.ones((BATCH, SEQ), dtype=jnp.int32).at[1, SEQ - 16:].set(0)
    token_type_ids = jnp.zeros((BATCH, SEQ), dtype=jnp.int32).at[:, SEQ // 2:].set(1)

    fwd = jax.jit(bert_base_uncased_forward)
    out = fwd(params, ids, mask, token_type_ids)
    out = jax.block_until_ready(out)
    assert out.shape == (BATCH, 1) and out.dtype == jnp.float32
    print("KERNEL_OK")
</pallas_src>

<mosaic_0001>
module attributes {stable_mosaic.version = 11 : i64} {
  func.func @_ln_kernel(%arg0: i32, %arg1: memref<128x256xf32, #tpu.memory_space<vmem>>, %arg2: memref<1x256xf32, #tpu.memory_space<vmem>>, %arg3: memref<1x256xf32, #tpu.memory_space<vmem>>, %arg4: memref<128x256xbf16, #tpu.memory_space<vmem>>) attributes {dimension_semantics = [#tpu.dimension_semantics<parallel>], iteration_bounds = array<i64: 2>, scalar_prefetch = 0 : i64, scratch_operands = 0 : i64, tpu.core_type = #tpu.core_type<tc>, window_params = [{transform_indices = @transform_0, window_bounds = array<i64: 128, 256>}, {pipeline_mode = #tpu.pipeline_mode<synchronous>, transform_indices = @transform_1, window_bounds = array<i64: 1, 256>}, {pipeline_mode = #tpu.pipeline_mode<synchronous>, transform_indices = @transform_2, window_bounds = array<i64: 1, 256>}, {transform_indices = @transform_3, window_bounds = array<i64: 128, 256>}]} {
    %c0 = arith.constant 0 : index
    %c0_0 = arith.constant 0 : index
    %0 = vector.load %arg1[%c0, %c0_0] : memref<128x256xf32, #tpu.memory_space<vmem>>, vector<128x256xf32>
    %c0_1 = arith.constant 0 : index
    %c0_2 = arith.constant 0 : index
    %1 = vector.load %arg2[%c0_1, %c0_2] : memref<1x256xf32, #tpu.memory_space<vmem>>, vector<1x256xf32>
    %c0_3 = arith.constant 0 : index
    %c0_4 = arith.constant 0 : index
    %2 = vector.load %arg3[%c0_3, %c0_4] : memref<1x256xf32, #tpu.memory_space<vmem>>, vector<1x256xf32>
    %cst = arith.constant dense<0.000000e+00> : vector<128xf32>
    %3 = vector.multi_reduction <add>, %0, %cst [1] : vector<128x256xf32> to vector<128xf32>
    %4 = vector.shape_cast %3 : vector<128xf32> to vector<128x1xf32>
    %cst_5 = arith.constant 2.560000e+02 : f32
    %5 = vector.broadcast %cst_5 : f32 to vector<128x1xf32>
    %6 = arith.divf %4, %5 : vector<128x1xf32>
    %7 = vector.broadcast %6 : vector<128x1xf32> to vector<128x256xf32>
    %8 = arith.subf %0, %7 : vector<128x256xf32>
    %9 = arith.mulf %8, %8 : vector<128x256xf32>
    %cst_6 = arith.constant dense<0.000000e+00> : vector<128xf32>
    %10 = vector.multi_reduction <add>, %9, %cst_6 [1] : vector<128x256xf32> to vector<128xf32>
    %11 = vector.shape_cast %10 : vector<128xf32> to vector<128x1xf32>
    %cst_7 = arith.constant 2.560000e+02 : f32
    %12 = vector.broadcast %cst_7 : f32 to vector<128x1xf32>
    %13 = arith.divf %11, %12 : vector<128x1xf32>
    %14 = vector.broadcast %6 : vector<128x1xf32> to vector<128x256xf32>
    %15 = arith.subf %0, %14 : vector<128x256xf32>
    %cst_8 = arith.constant 9.99999996E-13 : f32
    %16 = vector.broadcast %cst_8 : f32 to vector<128x1xf32>
    %17 = arith.addf %13, %16 : vector<128x1xf32>
    %18 = math.rsqrt %17 : vector<128x1xf32>
    %19 = vector.broadcast %18 : vector<128x1xf32> to vector<128x256xf32>
    %20 = arith.mulf %15, %19 : vector<128x256xf32>
    %21 = vector.broadcast %1 : vector<1x256xf32> to vector<128x256xf32>
    %22 = arith.mulf %20, %21 : vector<128x256xf32>
    %23 = vector.broadcast %2 : vector<1x256xf32> to vector<128x256xf32>
    %24 = arith.addf %22, %23 : vector<128x256xf32>
    %25 = arith.truncf %24 : vector<128x256xf32> to vector<128x256xbf16>
    %c0_9 = arith.constant 0 : index
    %c0_10 = arith.constant 0 : index
    %26 = vector.load %arg4[%c0_9, %c0_10] : memref<128x256xbf16, #tpu.memory_space<vmem>>, vector<128x256xbf16>
    tpu.vector_store %arg4[%c0_9, %c0_10], %25 {strides = array<i32>} : memref<128x256xbf16, #tpu.memory_space<vmem>>, vector<128x256xbf16>,
    return
  }
  func.func @transform_0(%arg0: i32) -> (i32, i32) {
    %c0_i32 = arith.constant 0 : i32
    %c0_i32_0 = arith.constant 0 : i32
    return %arg0, %c0_i32 : i32, i32
  }
  func.func @transform_1(%arg0: i32) -> (i32, i32) {
    %c0_i32 = arith.constant 0 : i32
    %c0_i32_0 = arith.constant 0 : i32
    %c0_i32_1 = arith.constant 0 : i32
    return %c0_i32, %c0_i32_0 : i32, i32
  }
  func.func @transform_2(%arg0: i32) -> (i32, i32) {
    %c0_i32 = arith.constant 0 : i32
    %c0_i32_0 = arith.constant 0 : i32
    %c0_i32_1 = arith.constant 0 : i32
    return %c0_i32, %c0_i32_0 : i32, i32
  }
  func.func @transform_3(%arg0: i32) -> (i32, i32) {
    %c0_i32 = arith.constant 0 : i32
    %c0_i32_0 = arith.constant 0 : i32
    return %arg0, %c0_i32 : i32, i32
  }
}

module attributes {stable_mosaic.version = 11 : i64} {
  func.func @_dense_kernel(%arg0: i32, %arg1: memref<128x256xbf16, #tpu.memory_space<vmem>>, %arg2: memref<256x768xbf16, #tpu.memory_space<vmem>>, %arg3: memref<1x768xf32, #tpu.memory_space<vmem>>, %arg4: memref<128x768xbf16, #tpu.memory_space<vmem>>) attributes {dimension_semantics = [#tpu.dimension_semantics<parallel>], iteration_bounds = array<i64: 2>, scalar_prefetch = 0 : i64, scratch_operands = 0 : i64, tpu.core_type = #tpu.core_type<tc>, window_params = [{transform_indices = @transform_0, window_bounds = array<i64: 128, 256>}, {pipeline_mode = #tpu.pipeline_mode<synchronous>, transform_indices = @transform_1, window_bounds = array<i64: 256, 768>}, {pipeline_mode = #tpu.pipeline_mode<synchronous>, transform_indices = @transform_2, window_bounds = array<i64: 1, 768>}, {transform_indices = @transform_3, window_bounds = array<i64: 128, 768>}]} {
    %c0 = arith.constant 0 : index
    %c0_0 = arith.constant 0 : index
    %0 = vector.load %arg1[%c0, %c0_0] : memref<128x256xbf16, #tpu.memory_space<vmem>>, vector<128x256xbf16>
    %c0_1 = arith.constant 0 : index
    %c0_2 = arith.constant 0 : index
    %1 = vector.load %arg2[%c0_1, %c0_2] : memref<256x768xbf16, #tpu.memory_space<vmem>>, vector<256x768xbf16>
    %cst = arith.constant dense<0.000000e+00> : vector<128x768xf32>
    %2 = tpu.matmul %0, %1, %cst {dimension_numbers = #tpu.dot_dimension_numbers<[1], [0], [0], [1], [0, 0, 1, 1], [], []>} : vector<128x256xbf16>, vector<256x768xbf16>, vector<128x768xf32> -> vector<128x768xf32>
    %c0_3 = arith.constant 0 : index
    %c0_4 = arith.constant 0 : index
    %3 = vector.load %arg3[%c0_3, %c0_4] : memref<1x768xf32, #tpu.memory_space<vmem>>, vector<1x768xf32>
    %4 = vector.broadcast %3 : vector<1x768xf32> to vector<128x768xf32>
    %5 = arith.addf %2, %4 : vector<128x768xf32>
    %6 = arith.truncf %5 : vector<128x768xf32> to vector<128x768xbf16>
    %c0_5 = arith.constant 0 : index
    %c0_6 = arith.constant 0 : index
    %7 = vector.load %arg4[%c0_5, %c0_6] : memref<128x768xbf16, #tpu.memory_space<vmem>>, vector<128x768xbf16>
    tpu.vector_store %arg4[%c0_5, %c0_6], %6 {strides = array<i32>} : memref<128x768xbf16, #tpu.memory_space<vmem>>, vector<128x768xbf16>,
    return
  }
  func.func @transform_0(%arg0: i32) -> (i32, i32) {
    %c0_i32 = arith.constant 0 : i32
    %c0_i32_0 = arith.constant 0 : i32
    return %arg0, %c0_i32 : i32, i32
  }
  func.func @transform_1(%arg0: i32) -> (i32, i32) {
    %c0_i32 = arith.constant 0 : i32
    %c0_i32_0 = arith.constant 0 : i32
    %c0_i32_1 = arith.constant 0 : i32
    return %c0_i32, %c0_i32_0 : i32, i32
  }
  func.func @transform_2(%arg0: i32) -> (i32, i32) {
    %c0_i32 = arith.constant 0 : i32
    %c0_i32_0 = arith.constant 0 : i32
    %c0_i32_1 = arith.constant 0 : i32
    return %c0_i32, %c0_i32_0 : i32, i32
  }
  func.func @transform_3(%arg0: i32) -> (i32, i32) {
    %c0_i32 = arith.constant 0 : i32
    %c0_i32_0 = arith.constant 0 : i32
    return %arg0, %c0_i32 : i32, i32
  }
}

module attributes {stable_mosaic.version = 11 : i64} {
  func.func @_attention_kernel(%arg0: i32, %arg1: memref<128x768xbf16, #tpu.memory_space<vmem>>, %arg2: memref<1x1x128xf32, #tpu.memory_space<vmem>>, %arg3: memref<128x256xbf16, #tpu.memory_space<vmem>>) attributes {dimension_semantics = [#tpu.dimension_semantics<parallel>], iteration_bounds = array<i64: 2>, scalar_prefetch = 0 : i64, scratch_operands = 0 : i64, tpu.core_type = #tpu.core_type<tc>, window_params = [{transform_indices = @transform_0, window_bounds = array<i64: 128, 768>}, {transform_indices = @transform_1, window_bounds = array<i64: 1, 1, 128>}, {transform_indices = @transform_2, window_bounds = array<i64: 128, 256>}]} {
    %c0 = arith.constant 0 : index
    %c0_0 = arith.constant 0 : index
    %c0_1 = arith.constant 0 : index
    %0 = vector.load %arg2[%c0, %c0_0, %c0_1] : memref<1x1x128xf32, #tpu.memory_space<vmem>>, vector<1x1x128xf32>
    %1 = vector.shape_cast %0 : vector<1x1x128xf32> to vector<1x128xf32>
    %c0_2 = arith.constant 0 : index
    %c0_3 = arith.constant 0 : index
    %2 = vector.load %arg1[%c0_2, %c0_3] : memref<128x768xbf16, #tpu.memory_space<vmem>>, vector<128x128xbf16>
    %c0_4 = arith.constant 0 : index
    %c256 = arith.constant 256 : index
    %3 = vector.load %arg1[%c0_4, %c256] : memref<128x768xbf16, #tpu.memory_space<vmem>>, vector<128x128xbf16>
    %c0_5 = arith.constant 0 : index
    %c512 = arith.constant 512 : index
    %4 = vector.load %arg1[%c0_5, %c512] : memref<128x768xbf16, #tpu.memory_space<vmem>>, vector<128x128xbf16>
    %cst = arith.constant dense<0.000000e+00> : vector<128x128xf32>
    %5 = tpu.matmul %2, %3, %cst {dimension_numbers = #tpu.dot_dimension_numbers<[1], [1], [0], [0], [0, 0, 1, 0], [], []>} : vector<128x128xbf16>, vector<128x128xbf16>, vector<128x128xf32> -> vector<128x128xf32>
    %6 = vector.broadcast %1 : vector<1x128xf32> to vector<128x128xf32>
    %7 = arith.addf %5, %6 : vector<128x128xf32>
    %cst_6 = arith.constant dense<0xFF800000> : vector<128xf32>
    %8 = vector.multi_reduction <maximumf>, %7, %cst_6 [1] : vector<128x128xf32> to vector<128xf32>
    %9 = vector.shape_cast %8 : vector<128xf32> to vector<128x1xf32>
    %10 = vector.broadcast %9 : vector<128x1xf32> to vector<128x128xf32>
    %11 = arith.subf %7, %10 : vector<128x128xf32>
    %12 = math.exp %11 : vector<128x128xf32>
    %cst_7 = arith.constant dense<0.000000e+00> : vector<128xf32>
    %13 = vector.multi_reduction <add>, %12, %cst_7 [1] : vector<128x128xf32> to vector<128xf32>
    %14 = vector.shape_cast %13 : vector<128xf32> to vector<128x1xf32>
    %15 = tpu.reciprocal %14 {approx = true} : vector<128x1xf32> -> vector<128x1xf32>
    %16 = vector.broadcast %15 : vector<128x1xf32> to vector<128x128xf32>
    %17 = arith.mulf %12, %16 : vector<128x128xf32>
    %18 = arith.truncf %17 : vector<128x128xf32> to vector<128x128xbf16>
    %cst_8 = arith.constant dense<0.000000e+00> : vector<128x128xf32>
    %19 = tpu.matmul %18, %4, %cst_8 {dimension_numbers = #tpu.dot_dimension_numbers<[1], [0], [0], [1], [0, 0, 1, 1], [], []>} : vector<128x128xbf16>, vector<128x128xbf16>, vector<128x128xf32> -> vector<128x128xf32>
    %20 = arith.truncf %19 : vector<128x128xf32> to vector<128x128xbf16>
    %c0_9 = arith.constant 0 : index
    %c0_10 = arith.constant 0 : index
    %21 = vector.load %arg3[%c0_9, %c0_10] : memref<128x256xbf16, #tpu.memory_space<vmem>>, vector<128x128xbf16>
    tpu.vector_store %arg3[%c0_9, %c0_10], %20 {strides = array<i32>} : memref<128x256xbf16, #tpu.memory_space<vmem>>, vector<128x128xbf16>,
    %c0_11 = arith.constant 0 : index
    %c128 = arith.constant 128 : index
    %22 = vector.load %arg1[%c0_11, %c128] : memref<128x768xbf16, #tpu.memory_space<vmem>>, vector<128x128xbf16>
    %c0_12 = arith.constant 0 : index
    %c384 = arith.constant 384 : index
    %23 = vector.load %arg1[%c0_12, %c384] : memref<128x768xbf16, #tpu.memory_space<vmem>>, vector<128x128xbf16>
    %c0_13 = arith.constant 0 : index
    %c640 = arith.constant 640 : index
    %24 = vector.load %arg1[%c0_13, %c640] : memref<128x768xbf16, #tpu.memory_space<vmem>>, vector<128x128xbf16>
    %cst_14 = arith.constant dense<0.000000e+00> : vector<128x128xf32>
    %25 = tpu.matmul %22, %23, %cst_14 {dimension_numbers = #tpu.dot_dimension_numbers<[1], [1], [0], [0], [0, 0, 1, 0], [], []>} : vector<128x128xbf16>, vector<128x128xbf16>, vector<128x128xf32> -> vector<128x128xf32>
    %26 = vector.broadcast %1 : vector<1x128xf32> to vector<128x128xf32>
    %27 = arith.addf %25, %26 : vector<128x128xf32>
    %cst_15 = arith.constant dense<0xFF800000> : vector<128xf32>
    %28 = vector.multi_reduction <maximumf>, %27, %cst_15 [1] : vector<128x128xf32> to vector<128xf32>
    %29 = vector.shape_cast %28 : vector<128xf32> to vector<128x1xf32>
    %30 = vector.broadcast %29 : vector<128x1xf32> to vector<128x128xf32>
    %31 = arith.subf %27, %30 : vector<128x128xf32>
    %32 = math.exp %31 : vector<128x128xf32>
    %cst_16 = arith.constant dense<0.000000e+00> : vector<128xf32>
    %33 = vector.multi_reduction <add>, %32, %cst_16 [1] : vector<128x128xf32> to vector<128xf32>
    %34 = vector.shape_cast %33 : vector<128xf32> to vector<128x1xf32>
    %35 = tpu.reciprocal %34 {approx = true} : vector<128x1xf32> -> vector<128x1xf32>
    %36 = vector.broadcast %35 : vector<128x1xf32> to vector<128x128xf32>
    %37 = arith.mulf %32, %36 : vector<128x128xf32>
    %38 = arith.truncf %37 : vector<128x128xf32> to vector<128x128xbf16>
    %cst_17 = arith.constant dense<0.000000e+00> : vector<128x128xf32>
    %39 = tpu.matmul %38, %24, %cst_17 {dimension_numbers = #tpu.dot_dimension_numbers<[1], [0], [0], [1], [0, 0, 1, 1], [], []>} : vector<128x128xbf16>, vector<128x128xbf16>, vector<128x128xf32> -> vector<128x128xf32>
    %40 = arith.truncf %39 : vector<128x128xf32> to vector<128x128xbf16>
    %c0_18 = arith.constant 0 : index
    %c128_19 = arith.constant 128 : index
    %41 = vector.load %arg3[%c0_18, %c128_19] : memref<128x256xbf16, #tpu.memory_space<vmem>>, vector<128x128xbf16>
    tpu.vector_store %arg3[%c0_18, %c128_19], %40 {strides = array<i32>} : memref<128x256xbf16, #tpu.memory_space<vmem>>, vector<128x128xbf16>,
    return
  }
  func.func @transform_0(%arg0: i32) -> (i32, i32) {
    %c0_i32 = arith.constant 0 : i32
    %c0_i32_0 = arith.constant 0 : i32
    return %arg0, %c0_i32 : i32, i32
  }
  func.func @transform_1(%arg0: i32) -> (i32, i32, i32) {
    %c0_i32 = arith.constant 0 : i32
    %c0_i32_0 = arith.constant 0 : i32
    %c0_i32_1 = arith.constant 0 : i32
    return %arg0, %c0_i32, %c0_i32_0 : i32, i32, i32
  }
  func.func @transform_2(%arg0: i32) -> (i32, i32) {
    %c0_i32 = arith.constant 0 : i32
    %c0_i32_0 = arith.constant 0 : i32
    return %arg0, %c0_i32 : i32, i32
  }
}

module attributes {stable_mosaic.version = 11 : i64} {
  func.func @_dense_res_ln_kernel(%arg0: i32, %arg1: memref<128x256xbf16, #tpu.memory_space<vmem>>, %arg2: memref<256x256xbf16, #tpu.memory_space<vmem>>, %arg3: memref<1x256xf32, #tpu.memory_space<vmem>>, %arg4: memref<128x256xbf16, #tpu.memory_space<vmem>>, %arg5: memref<1x256xf32, #tpu.memory_space<vmem>>, %arg6: memref<1x256xf32, #tpu.memory_space<vmem>>, %arg7: memref<128x256xbf16, #tpu.memory_space<vmem>>) attributes {dimension_semantics = [#tpu.dimension_semantics<parallel>], iteration_bounds = array<i64: 2>, scalar_prefetch = 0 : i64, scratch_operands = 0 : i64, tpu.core_type = #tpu.core_type<tc>, window_params = [{transform_indices = @transform_0, window_bounds = array<i64: 128, 256>}, {pipeline_mode = #tpu.pipeline_mode<synchronous>, transform_indices = @transform_1, window_bounds = array<i64: 256, 256>}, {pipeline_mode = #tpu.pipeline_mode<synchronous>, transform_indices = @transform_2, window_bounds = array<i64: 1, 256>}, {transform_indices = @transform_3, window_bounds = array<i64: 128, 256>}, {pipeline_mode = #tpu.pipeline_mode<synchronous>, transform_indices = @transform_4, window_bounds = array<i64: 1, 256>}, {pipeline_mode = #tpu.pipeline_mode<synchronous>, transform_indices = @transform_5, window_bounds = array<i64: 1, 256>}, {transform_indices = @transform_6, window_bounds = array<i64: 128, 256>}]} {
    %c0 = arith.constant 0 : index
    %c0_0 = arith.constant 0 : index
    %0 = vector.load %arg1[%c0, %c0_0] : memref<128x256xbf16, #tpu.memory_space<vmem>>, vector<128x256xbf16>
    %c0_1 = arith.constant 0 : index
    %c0_2 = arith.constant 0 : index
    %1 = vector.load %arg2[%c0_1, %c0_2] : memref<256x256xbf16, #tpu.memory_space<vmem>>, vector<256x256xbf16>
    %cst = arith.constant dense<0.000000e+00> : vector<128x256xf32>
    %2 = tpu.matmul %0, %1, %cst {dimension_numbers = #tpu.dot_dimension_numbers<[1], [0], [0], [1], [0, 0, 1, 1], [], []>} : vector<128x256xbf16>, vector<256x256xbf16>, vector<128x256xf32> -> vector<128x256xf32>
    %c0_3 = arith.constant 0 : index
    %c0_4 = arith.constant 0 : index
    %3 = vector.load %arg3[%c0_3, %c0_4] : memref<1x256xf32, #tpu.memory_space<vmem>>, vector<1x256xf32>
    %4 = vector.broadcast %3 : vector<1x256xf32> to vector<128x256xf32>
    %5 = arith.addf %2, %4 : vector<128x256xf32>
    %c0_5 = arith.constant 0 : index
    %c0_6 = arith.constant 0 : index
    %6 = vector.load %arg4[%c0_5, %c0_6] : memref<128x256xbf16, #tpu.memory_space<vmem>>, vector<128x256xbf16>
    %7 = arith.extf %6 : vector<128x256xbf16> to vector<128x256xf32>
    %8 = arith.addf %5, %7 : vector<128x256xf32>
    %c0_7 = arith.constant 0 : index
    %c0_8 = arith.constant 0 : index
    %9 = vector.load %arg5[%c0_7, %c0_8] : memref<1x256xf32, #tpu.memory_space<vmem>>, vector<1x256xf32>
    %c0_9 = arith.constant 0 : index
    %c0_10 = arith.constant 0 : index
    %10 = vector.load %arg6[%c0_9, %c0_10] : memref<1x256xf32, #tpu.memory_space<vmem>>, vector<1x256xf32>
    %cst_11 = arith.constant dense<0.000000e+00> : vector<128xf32>
    %11 = vector.multi_reduction <add>, %8, %cst_11 [1] : vector<128x256xf32> to vector<128xf32>
    %12 = vector.shape_cast %11 : vector<128xf32> to vector<128x1xf32>
    %cst_12 = arith.constant 2.560000e+02 : f32
    %13 = vector.broadcast %cst_12 : f32 to vector<128x1xf32>
    %14 = arith.divf %12, %13 : vector<128x1xf32>
    %15 = vector.broadcast %14 : vector<128x1xf32> to vector<128x256xf32>
    %16 = arith.subf %8, %15 : vector<128x256xf32>
    %17 = arith.mulf %16, %16 : vector<128x256xf32>
    %cst_13 = arith.constant dense<0.000000e+00> : vector<128xf32>
    %18 = vector.multi_reduction <add>, %17, %cst_13 [1] : vector<128x256xf32> to vector<128xf32>
    %19 = vector.shape_cast %18 : vector<128xf32> to vector<128x1xf32>
    %cst_14 = arith.constant 2.560000e+02 : f32
    %20 = vector.broadcast %cst_14 : f32 to vector<128x1xf32>
    %21 = arith.divf %19, %20 : vector<128x1xf32>
    %22 = vector.broadcast %14 : vector<128x1xf32> to vector<128x256xf32>
    %23 = arith.subf %8, %22 : vector<128x256xf32>
    %cst_15 = arith.constant 9.99999996E-13 : f32
    %24 = vector.broadcast %cst_15 : f32 to vector<128x1xf32>
    %25 = arith.addf %21, %24 : vector<128x1xf32>
    %26 = math.rsqrt %25 : vector<128x1xf32>
    %27 = vector.broadcast %26 : vector<128x1xf32> to vector<128x256xf32>
    %28 = arith.mulf %23, %27 : vector<128x256xf32>
    %29 = vector.broadcast %9 : vector<1x256xf32> to vector<128x256xf32>
    %30 = arith.mulf %28, %29 : vector<128x256xf32>
    %31 = vector.broadcast %10 : vector<1x256xf32> to vector<128x256xf32>
    %32 = arith.addf %30, %31 : vector<128x256xf32>
    %33 = arith.truncf %32 : vector<128x256xf32> to vector<128x256xbf16>
    %c0_16 = arith.constant 0 : index
    %c0_17 = arith.constant 0 : index
    %34 = vector.load %arg7[%c0_16, %c0_17] : memref<128x256xbf16, #tpu.memory_space<vmem>>, vector<128x256xbf16>
    tpu.vector_store %arg7[%c0_16, %c0_17], %33 {strides = array<i32>} : memref<128x256xbf16, #tpu.memory_space<vmem>>, vector<128x256xbf16>,
    return
  }
  func.func @transform_0(%arg0: i32) -> (i32, i32) {
    %c0_i32 = arith.constant 0 : i32
    %c0_i32_0 = arith.constant 0 : i32
    return %arg0, %c0_i32 : i32, i32
  }
  func.func @transform_1(%arg0: i32) -> (i32, i32) {
    %c0_i32 = arith.constant 0 : i32
    %c0_i32_0 = arith.constant 0 : i32
    %c0_i32_1 = arith.constant 0 : i32
    return %c0_i32, %c0_i32_0 : i32, i32
  }
  func.func @transform_2(%arg0: i32) -> (i32, i32) {
    %c0_i32 = arith.constant 0 : i32
    %c0_i32_0 = arith.constant 0 : i32
    %c0_i32_1 = arith.constant 0 : i32
    return %c0_i32, %c0_i32_0 : i32, i32
  }
  func.func @transform_3(%arg0: i32) -> (i32, i32) {
    %c0_i32 = arith.constant 0 : i32
    %c0_i32_0 = arith.constant 0 : i32
    return %arg0, %c0_i32 : i32, i32
  }
  func.func @transform_4(%arg0: i32) -> (i32, i32) {
    %c0_i32 = arith.constant 0 : i32
    %c0_i32_0 = arith.constant 0 : i32
    %c0_i32_1 = arith.constant 0 : i32
    return %c0_i32, %c0_i32_0 : i32, i32
  }
  func.func @transform_5(%arg0: i32) -> (i32, i32) {
    %c0_i32 = arith.constant 0 : i32
    %c0_i32_0 = arith.constant 0 : i32
    %c0_i32_1 = arith.constant 0 : i32
    return %c0_i32, %c0_i32_0 : i32, i32
  }
  func.func @transform_6(%arg0: i32) -> (i32, i32) {
    %c0_i32 = arith.constant 0 : i32
    %c0_i32_0 = arith.constant 0 : i32
    return %arg0, %c0_i32 : i32, i32
  }
}

module attributes {stable_mosaic.version = 11 : i64} {
  func.func @_ffn_kernel(%arg0: i32, %arg1: memref<128x256xbf16, #tpu.memory_space<vmem>>, %arg2: memref<256x512xbf16, #tpu.memory_space<vmem>>, %arg3: memref<1x512xf32, #tpu.memory_space<vmem>>, %arg4: memref<512x256xbf16, #tpu.memory_space<vmem>>, %arg5: memref<1x256xf32, #tpu.memory_space<vmem>>, %arg6: memref<1x256xf32, #tpu.memory_space<vmem>>, %arg7: memref<1x256xf32, #tpu.memory_space<vmem>>, %arg8: memref<128x256xbf16, #tpu.memory_space<vmem>>) attributes {dimension_semantics = [#tpu.dimension_semantics<parallel>], iteration_bounds = array<i64: 2>, scalar_prefetch = 0 : i64, scratch_operands = 0 : i64, tpu.core_type = #tpu.core_type<tc>, window_params = [{transform_indices = @transform_0, window_bounds = array<i64: 128, 256>}, {pipeline_mode = #tpu.pipeline_mode<synchronous>, transform_indices = @transform_1, window_bounds = array<i64: 256, 512>}, {pipeline_mode = #tpu.pipeline_mode<synchronous>, transform_indices = @transform_2, window_bounds = array<i64: 1, 512>}, {pipeline_mode = #tpu.pipeline_mode<synchronous>, transform_indices = @transform_3, window_bounds = array<i64: 512, 256>}, {pipeline_mode = #tpu.pipeline_mode<synchronous>, transform_indices = @transform_4, window_bounds = array<i64: 1, 256>}, {pipeline_mode = #tpu.pipeline_mode<synchronous>, transform_indices = @transform_5, window_bounds = array<i64: 1, 256>}, {pipeline_mode = #tpu.pipeline_mode<synchronous>, transform_indices = @transform_6, window_bounds = array<i64: 1, 256>}, {transform_indices = @transform_7, window_bounds = array<i64: 128, 256>}]} {
    %c0 = arith.constant 0 : index
    %c0_0 = arith.constant 0 : index
    %0 = vector.load %arg1[%c0, %c0_0] : memref<128x256xbf16, #tpu.memory_space<vmem>>, vector<128x256xbf16>
    %c0_1 = arith.constant 0 : index
    %c0_2 = arith.constant 0 : index
    %1 = vector.load %arg2[%c0_1, %c0_2] : memref<256x512xbf16, #tpu.memory_space<vmem>>, vector<256x512xbf16>
    %cst = arith.constant dense<0.000000e+00> : vector<128x512xf32>
    %2 = tpu.matmul %0, %1, %cst {dimension_numbers = #tpu.dot_dimension_numbers<[1], [0], [0], [1], [0, 0, 1, 1], [], []>} : vector<128x256xbf16>, vector<256x512xbf16>, vector<128x512xf32> -> vector<128x512xf32>
    %c0_3 = arith.constant 0 : index
    %c0_4 = arith.constant 0 : index
    %3 = vector.load %arg3[%c0_3, %c0_4] : memref<1x512xf32, #tpu.memory_space<vmem>>, vector<1x512xf32>
    %4 = vector.broadcast %3 : vector<1x512xf32> to vector<128x512xf32>
    %5 = arith.addf %2, %4 : vector<128x512xf32>
    %cst_5 = arith.constant 5.000000e-01 : f32
    %6 = vector.broadcast %cst_5 : f32 to vector<128x512xf32>
    %7 = arith.mulf %6, %5 : vector<128x512xf32>
    %cst_6 = arith.constant 4.471500e-02 : f32
    %8 = vector.broadcast %cst_6 : f32 to vector<128x512xf32>
    %9 = arith.mulf %8, %5 : vector<128x512xf32>
    %10 = arith.mulf %9, %5 : vector<128x512xf32>
    %11 = arith.mulf %10, %5 : vector<128x512xf32>
    %12 = arith.addf %5, %11 : vector<128x512xf32>
    %cst_7 = arith.constant 0.797884583 : f32
    %13 = vector.broadcast %cst_7 : f32 to vector<128x512xf32>
    %14 = arith.mulf %13, %12 : vector<128x512xf32>
    %15 = math.tanh %14 : vector<128x512xf32>
    %cst_8 = arith.constant 1.000000e+00 : f32
    %16 = vector.broadcast %cst_8 : f32 to vector<128x512xf32>
    %17 = arith.addf %16, %15 : vector<128x512xf32>
    %18 = arith.mulf %7, %17 : vector<128x512xf32>
    %19 = arith.truncf %18 : vector<128x512xf32> to vector<128x512xbf16>
    %c0_9 = arith.constant 0 : index
    %c0_10 = arith.constant 0 : index
    %20 = vector.load %arg4[%c0_9, %c0_10] : memref<512x256xbf16, #tpu.memory_space<vmem>>, vector<512x256xbf16>
    %cst_11 = arith.constant dense<0.000000e+00> : vector<128x256xf32>
    %21 = tpu.matmul %19, %20, %cst_11 {dimension_numbers = #tpu.dot_dimension_numbers<[1], [0], [0], [1], [0, 0, 1, 1], [], []>} : vector<128x512xbf16>, vector<512x256xbf16>, vector<128x256xf32> -> vector<128x256xf32>
    %c0_12 = arith.constant 0 : index
    %c0_13 = arith.constant 0 : index
    %22 = vector.load %arg5[%c0_12, %c0_13] : memref<1x256xf32, #tpu.memory_space<vmem>>, vector<1x256xf32>
    %23 = vector.broadcast %22 : vector<1x256xf32> to vector<128x256xf32>
    %24 = arith.addf %21, %23 : vector<128x256xf32>
    %25 = arith.extf %0 : vector<128x256xbf16> to vector<128x256xf32>
    %26 = arith.addf %24, %25 : vector<128x256xf32>
    %c0_14 = arith.constant 0 : index
    %c0_15 = arith.constant 0 : index
    %27 = vector.load %arg6[%c0_14, %c0_15] : memref<1x256xf32, #tpu.memory_space<vmem>>, vector<1x256xf32>
    %c0_16 = arith.constant 0 : index
    %c0_17 = arith.constant 0 : index
    %28 = vector.load %arg7[%c0_16, %c0_17] : memref<1x256xf32, #tpu.memory_space<vmem>>, vector<1x256xf32>
    %cst_18 = arith.constant dense<0.000000e+00> : vector<128xf32>
    %29 = vector.multi_reduction <add>, %26, %cst_18 [1] : vector<128x256xf32> to vector<128xf32>
    %30 = vector.shape_cast %29 : vector<128xf32> to vector<128x1xf32>
    %cst_19 = arith.constant 2.560000e+02 : f32
    %31 = vector.broadcast %cst_19 : f32 to vector<128x1xf32>
    %32 = arith.divf %30, %31 : vector<128x1xf32>
    %33 = vector.broadcast %32 : vector<128x1xf32> to vector<128x256xf32>
    %34 = arith.subf %26, %33 : vector<128x256xf32>
    %35 = arith.mulf %34, %34 : vector<128x256xf32>
    %cst_20 = arith.constant dense<0.000000e+00> : vector<128xf32>
    %36 = vector.multi_reduction <add>, %35, %cst_20 [1] : vector<128x256xf32> to vector<128xf32>
    %37 = vector.shape_cast %36 : vector<128xf32> to vector<128x1xf32>
    %cst_21 = arith.constant 2.560000e+02 : f32
    %38 = vector.broadcast %cst_21 : f32 to vector<128x1xf32>
    %39 = arith.divf %37, %38 : vector<128x1xf32>
    %40 = vector.broadcast %32 : vector<128x1xf32> to vector<128x256xf32>
    %41 = arith.subf %26, %40 : vector<128x256xf32>
    %cst_22 = arith.constant 9.99999996E-13 : f32
    %42 = vector.broadcast %cst_22 : f32 to vector<128x1xf32>
    %43 = arith.addf %39, %42 : vector<128x1xf32>
    %44 = math.rsqrt %43 : vector<128x1xf32>
    %45 = vector.broadcast %44 : vector<128x1xf32> to vector<128x256xf32>
    %46 = arith.mulf %41, %45 : vector<128x256xf32>
    %47 = vector.broadcast %27 : vector<1x256xf32> to vector<128x256xf32>
    %48 = arith.mulf %46, %47 : vector<128x256xf32>
    %49 = vector.broadcast %28 : vector<1x256xf32> to vector<128x256xf32>
    %50 = arith.addf %48, %49 : vector<128x256xf32>
    %51 = arith.truncf %50 : vector<128x256xf32> to vector<128x256xbf16>
    %c0_23 = arith.constant 0 : index
    %c0_24 = arith.constant 0 : index
    %52 = vector.load %arg8[%c0_23, %c0_24] : memref<128x256xbf16, #tpu.memory_space<vmem>>, vector<128x256xbf16>
    tpu.vector_store %arg8[%c0_23, %c0_24], %51 {strides = array<i32>} : memref<128x256xbf16, #tpu.memory_space<vmem>>, vector<128x256xbf16>,
    return
  }
  func.func @transform_0(%arg0: i32) -> (i32, i32) {
    %c0_i32 = arith.constant 0 : i32
    %c0_i32_0 = arith.constant 0 : i32
    return %arg0, %c0_i32 : i32, i32
  }
  func.func @transform_1(%arg0: i32) -> (i32, i32) {
    %c0_i32 = arith.constant 0 : i32
    %c0_i32_0 = arith.constant 0 : i32
    %c0_i32_1 = arith.constant 0 : i32
    return %c0_i32, %c0_i32_0 : i32, i32
  }
  func.func @transform_2(%arg0: i32) -> (i32, i32) {
    %c0_i32 = arith.constant 0 : i32
    %c0_i32_0 = arith.constant 0 : i32
    %c0_i32_1 = arith.constant 0 : i32
    return %c0_i32, %c0_i32_0 : i32, i32
  }
  func.func @transform_3(%arg0: i32) -> (i32, i32) {
    %c0_i32 = arith.constant 0 : i32
    %c0_i32_0 = arith.constant 0 : i32
    %c0_i32_1 = arith.constant 0 : i32
    return %c0_i32, %c0_i32_0 : i32, i32
  }
  func.func @transform_4(%arg0: i32) -> (i32, i32) {
    %c0_i32 = arith.constant 0 : i32
    %c0_i32_0 = arith.constant 0 : i32
    %c0_i32_1 = arith.constant 0 : i32
    return %c0_i32, %c0_i32_0 : i32, i32
  }
  func.func @transform_5(%arg0: i32) -> (i32, i32) {
    %c0_i32 = arith.constant 0 : i32
    %c0_i32_0 = arith.constant 0 : i32
    %c0_i32_1 = arith.constant 0 : i32
    return %c0_i32, %c0_i32_0 : i32, i32
  }
  func.func @transform_6(%arg0: i32) -> (i32, i32) {
    %c0_i32 = arith.constant 0 : i32
    %c0_i32_0 = arith.constant 0 : i32
    %c0_i32_1 = arith.constant 0 : i32
    return %c0_i32, %c0_i32_0 : i32, i32
  }
  func.func @transform_7(%arg0: i32) -> (i32, i32) {
    %c0_i32 = arith.constant 0 : i32
    %c0_i32_0 = arith.constant 0 : i32
    return %arg0, %c0_i32 : i32, i32
  }
}

module attributes {stable_mosaic.version = 11 : i64} {
  func.func @_pooler_head_kernel(%arg0: i32, %arg1: memref<2x256xbf16, #tpu.memory_space<vmem>>, %arg2: memref<256x256xbf16, #tpu.memory_space<vmem>>, %arg3: memref<1x256xf32, #tpu.memory_space<vmem>>, %arg4: memref<1x256xf32, #tpu.memory_space<vmem>>, %arg5: memref<1x1xf32, #tpu.memory_space<vmem>>, %arg6: memref<2x128xf32, #tpu.memory_space<vmem>>) attributes {dimension_semantics = [#tpu.dimension_semantics<arbitrary>], iteration_bounds = array<i64: 1>, scalar_prefetch = 0 : i64, scratch_operands = 0 : i64, tpu.core_type = #tpu.core_type<tc>, window_params = [{pipeline_mode = #tpu.pipeline_mode<synchronous>, transform_indices = @transform_0, window_bounds = array<i64: 2, 256>}, {pipeline_mode = #tpu.pipeline_mode<synchronous>, transform_indices = @transform_1, window_bounds = array<i64: 256, 256>}, {pipeline_mode = #tpu.pipeline_mode<synchronous>, transform_indices = @transform_2, window_bounds = array<i64: 1, 256>}, {pipeline_mode = #tpu.pipeline_mode<synchronous>, transform_indices = @transform_3, window_bounds = array<i64: 1, 256>}, {pipeline_mode = #tpu.pipeline_mode<synchronous>, transform_indices = @transform_4, window_bounds = array<i64: 1, 1>}, {pipeline_mode = #tpu.pipeline_mode<synchronous>, transform_indices = @transform_5, window_bounds = array<i64: 2, 128>}]} {
    %c0 = arith.constant 0 : index
    %c0_0 = arith.constant 0 : index
    %0 = vector.load %arg1[%c0, %c0_0] : memref<2x256xbf16, #tpu.memory_space<vmem>>, vector<2x256xbf16>
    %c0_1 = arith.constant 0 : index
    %c0_2 = arith.constant 0 : index
    %1 = vector.load %arg2[%c0_1, %c0_2] : memref<256x256xbf16, #tpu.memory_space<vmem>>, vector<256x256xbf16>
    %cst = arith.constant dense<0.000000e+00> : vector<2x256xf32>
    %2 = tpu.matmul %0, %1, %cst {dimension_numbers = #tpu.dot_dimension_numbers<[1], [0], [0], [1], [0, 0, 1, 1], [], []>} : vector<2x256xbf16>, vector<256x256xbf16>, vector<2x256xf32> -> vector<2x256xf32>
    %c0_3 = arith.constant 0 : index
    %c0_4 = arith.constant 0 : index
    %3 = vector.load %arg3[%c0_3, %c0_4] : memref<1x256xf32, #tpu.memory_space<vmem>>, vector<1x256xf32>
    %4 = vector.broadcast %3 : vector<1x256xf32> to vector<2x256xf32>
    %5 = arith.addf %2, %4 : vector<2x256xf32>
    %6 = math.tanh %5 : vector<2x256xf32>
    %c0_5 = arith.constant 0 : index
    %c0_6 = arith.constant 0 : index
    %7 = vector.load %arg4[%c0_5, %c0_6] : memref<1x256xf32, #tpu.memory_space<vmem>>, vector<1x256xf32>
    %8 = vector.broadcast %7 : vector<1x256xf32> to vector<2x256xf32>
    %9 = arith.mulf %6, %8 : vector<2x256xf32>
    %cst_7 = arith.constant dense<0.000000e+00> : vector<2xf32>
    %10 = vector.multi_reduction <add>, %9, %cst_7 [1] : vector<2x256xf32> to vector<2xf32>
    %11 = vector.shape_cast %10 : vector<2xf32> to vector<2x1xf32>
    %c0_8 = arith.constant 0 : index
    %c0_9 = arith.constant 0 : index
    %12 = vector.load %arg5[%c0_8, %c0_9] : memref<1x1xf32, #tpu.memory_space<vmem>>, vector<1x1xf32>
    %13 = vector.broadcast %12 : vector<1x1xf32> to vector<2x1xf32>
    %14 = arith.addf %11, %13 : vector<2x1xf32>
    %15 = vector.shape_cast %14 : vector<2x1xf32> to vector<2x1xf32>
    %16 = vector.broadcast %15 : vector<2x1xf32> to vector<2x128xf32>
    %c0_10 = arith.constant 0 : index
    %c0_11 = arith.constant 0 : index
    %17 = vector.load %arg6[%c0_10, %c0_11] : memref<2x128xf32, #tpu.memory_space<vmem>>, vector<2x128xf32>
    tpu.vector_store %arg6[%c0_10, %c0_11], %16 {strides = array<i32>} : memref<2x128xf32, #tpu.memory_space<vmem>>, vector<2x128xf32>,
    return
  }
  func.func @transform_0(%arg0: i32) -> (i32, i32) {
    %c0_i32 = arith.constant 0 : i32
    %c0_i32_0 = arith.constant 0 : i32
    %c0_i32_1 = arith.constant 0 : i32
    return %c0_i32, %c0_i32_0 : i32, i32
  }
  func.func @transform_1(%arg0: i32) -> (i32, i32) {
    %c0_i32 = arith.constant 0 : i32
    %c0_i32_0 = arith.constant 0 : i32
    %c0_i32_1 = arith.constant 0 : i32
    return %c0_i32, %c0_i32_0 : i32, i32
  }
  func.func @transform_2(%arg0: i32) -> (i32, i32) {
    %c0_i32 = arith.constant 0 : i32
    %c0_i32_0 = arith.constant 0 : i32
    %c0_i32_1 = arith.constant 0 : i32
    return %c0_i32, %c0_i32_0 : i32, i32
  }
  func.func @transform_3(%arg0: i32) -> (i32, i32) {
    %c0_i32 = arith.constant 0 : i32
    %c0_i32_0 = arith.constant 0 : i32
    %c0_i32_1 = arith.constant 0 : i32
    return %c0_i32, %c0_i32_0 : i32, i32
  }
  func.func @transform_4(%arg0: i32) -> (i32, i32) {
    %c0_i32 = arith.constant 0 : i32
    %c0_i32_0 = arith.constant 0 : i32
    %c0_i32_1 = arith.constant 0 : i32
    return %c0_i32, %c0_i32_0 : i32, i32
  }
  func.func @transform_5(%arg0: i32) -> (i32, i32) {
    %c0_i32 = arith.constant 0 : i32
    %c0_i32_0 = arith.constant 0 : i32
    %c0_i32_1 = arith.constant 0 : i32
    return %c0_i32, %c0_i32_0 : i32, i32
  }
}

</mosaic_0001>

<llo_original>
// kernel: bert_base_uncased_forward.10
$region0: #{bert_base_uncased_forward.10}
  #allocation0 [shape = 'u32[]', space=smem, size = 0x4, offset = 0x4, fixed_abs, tag = 'smem constant byte address 0x4 - core index']
  #allocation1 [shape = 'u32[72,128]{1,0:T(1,128)}', space=vmem, size = 0x9000, scoped, tag = 'internal scratch']
  %s0 = inlined_call_operand.vmem [shape: f32[256,256], index: 0, kind: input, shape index: {}]
  %s1 = inlined_call_operand.vmem [shape: f32[1,256], index: 1, kind: input, shape index: {}]
  %s2 = inlined_call_operand.vmem [shape: f32[1,256], index: 2, kind: input, shape index: {}]
  %s3 = inlined_call_operand.vmem [shape: bf16[256,256], index: 3, kind: output, shape index: {}]
  %s4 = sld [smem:[#allocation0]]
  $region45: #{bert_base_uncased_forward.10} parent=0
    _
  %s6 = ssub.s32 1, %s4
  %s7 = scalar_select 0, %s6, %s4
  loop: start=0, step=1, limit=4
  $region2: #{bert_base_uncased_forward.10} parent=0 // loop_pre_header
    _
  $region3: #{bert_base_uncased_forward.10} parent=0 // loop_header
    %s9 = sphi 0, %s13
    %p10 = scmp.ge.s32.totalorder %s9, 4
    %s19 = sphi 0, %s21
    %s22 = sphi 0, %s19
    %s23 = sphi 0, %s22
    %s39 = sphi 0, %s23
    %s43 = sphi 0, %s43
    %s45 = sphi 0, %s43
    %s46 = sphi 0, %s45
    %s60 = sphi 0, %s46
    %s64 = sphi 0, %s64
    %s66 = sphi 0, %s64
    %s67 = sphi 0, %s66
    %s81 = sphi 0, %s67
    %s87 = sphi 0, %s89
    %s90 = sphi 0, %s87
    %s91 = sphi 0, %s90
    %s107 = sphi 0, %s91
  $region4: #{bert_base_uncased_forward.10} parent=0 // loop_header_branch
    %12 = sbr.rel (%p10) target = $region8
  $region5: #{bert_base_uncased_forward.10} parent=0 // loop_body
    %s14 = ssub.s32 %s9, 1
    %s15 = ssub.s32 %s9, 2
    %s16 = sadd.s32 %s9, 1
    %s17 = ssub.s32 %s9, %s16
    %p18 = scmp.eq.s32.totalorder %s17, 0
    %s20 = sadd.s32 %s19, 1
    %s21 = scalar_select %p18, %s19, %s20
    %p24 = pneg %p18
    %p25 = scmp.eq.s32.totalorder %s9, 1
    %p26 = por %p24, %p25
    %p27 = scmp.ne.s32.totalorder %s19, %s22
    %p28 = scmp.eq.s32.totalorder %s9, 0
    %p29 = por %p27, %p28
    %p30 = scmp.ne.s32.totalorder %s19, %s22
    %p31 = scmp.eq.s32.totalorder %s14, 1
    %p32 = por %p30, %p31
    %p33 = scmp.ne.s32.totalorder %s22, %s23
    %p34 = scmp.eq.s32.totalorder %s14, 0
    %p35 = por %p33, %p34
    %p36 = scmp.ne.s32.totalorder %s22, %s23
    %p37 = scmp.eq.s32.totalorder %s15, 1
    %p38 = por %p36, %p37
    %p40 = scmp.ne.s32.totalorder %s23, %s39
    %p41 = scmp.eq.s32.totalorder %s15, 0
    %p42 = por %p40, %p41
    %s44 = sadd.s32 %s43, 1
    %p47 = scmp.eq.s32.totalorder %s9, 1
    %p48 = scmp.ne.s32.totalorder %s43, %s45
    %p49 = scmp.eq.s32.totalorder %s9, 0
    %p50 = por %p48, %p49
    %p51 = scmp.ne.s32.totalorder %s43, %s45
    %p52 = scmp.eq.s32.totalorder %s14, 1
    %p53 = por %p51, %p52
    %p54 = scmp.ne.s32.totalorder %s45, %s46
    %p55 = scmp.eq.s32.totalorder %s14, 0
    %p56 = por %p54, %p55
    %p57 = scmp.ne.s32.totalorder %s45, %s46
    %p58 = scmp.eq.s32.totalorder %s15, 1
    %p59 = por %p57, %p58
    %p61 = scmp.ne.s32.totalorder %s46, %s60
    %p62 = scmp.eq.s32.totalorder %s15, 0
    %p63 = por %p61, %p62
    %s65 = sadd.s32 %s64, 1
    %p68 = scmp.eq.s32.totalorder %s9, 1
    %p69 = scmp.ne.s32.totalorder %s64, %s66
    %p70 = scmp.eq.s32.totalorder %s9, 0
    %p71 = por %p69, %p70
    %p72 = scmp.ne.s32.totalorder %s64, %s66
    %p73 = scmp.eq.s32.totalorder %s14, 1
    %p74 = por %p72, %p73
    %p75 = scmp.ne.s32.totalorder %s66, %s67
    %p76 = scmp.eq.s32.totalorder %s14, 0
    %p77 = por %p75, %p76
    %p78 = scmp.ne.s32.totalorder %s66, %s67
    %p79 = scmp.eq.s32.totalorder %s15, 1
    %p80 = por %p78, %p79
    %p82 = scmp.ne.s32.totalorder %s67, %s81
    %p83 = scmp.eq.s32.totalorder %s15, 0
    %p84 = por %p82, %p83
    %s85 = ssub.s32 %s9, %s16
    %p86 = scmp.eq.s32.totalorder %s85, 0
    %s88 = sadd.s32 %s87, 1
    %s89 = scalar_select %p86, %s87, %s88
    %p92 = pneg %p86
    %p93 = scmp.eq.s32.totalorder %s9, 1
    %p94 = por %p92, %p93
    %p95 = scmp.ne.s32.totalorder %s87, %s90
    %p96 = scmp.eq.s32.totalorder %s9, 0
    %p97 = por %p95, %p96
    %p98 = scmp.ne.s32.totalorder %s87, %s90
    %p99 = scmp.eq.s32.totalorder %s14, 1
    %p100 = por %p98, %p99
    %p101 = scmp.ne.s32.totalorder %s90, %s91
    %p102 = scmp.eq.s32.totalorder %s14, 0
    %p103 = por %p101, %p102
    %p104 = scmp.ne.s32.totalorder %s90, %s91
    %p105 = scmp.eq.s32.totalorder %s15, 1
    %p106 = por %p104, %p105
    %p108 = scmp.ne.s32.totalorder %s91, %s107
    %p109 = scmp.eq.s32.totalorder %s15, 0
    %p110 = por %p108, %p109
    %p111 = scmp.le.s32.totalorder 1, %s9
    %p112 = scmp.lt.s32.totalorder %s9, 3
    %p113 = pnand %p111, %p112
    %p114 = pneg %p113
    // Predicated region
    $region9: #{bert_base_uncased_forward.10} parent=5 // pred_check
      _
    $region10: #{bert_base_uncased_forward.10} parent=5 // pred_check_branch
      %116 = sbr.rel (%p113) target = $region12
    $region11: #{bert_base_uncased_forward.10} parent=5 // pred_region
      %s117 = ssub.s32 %s9, 1
      // Predicated region
      $region13: #{bert_base_uncased_forward.10} parent=11 // pred_check
        %p118 = pneg %p56
      $region14: #{bert_base_uncased_forward.10} parent=11 // pred_check_branch
        %120 = sbr.rel (%p118) target = $region16
      $region15: #{bert_base_uncased_forward.10} parent=11 // pred_region
        _
      $region16: #{bert_base_uncased_forward.10} parent=11 // pred_fallthru
        _
      // Predicated region
      $region17: #{bert_base_uncased_forward.10} parent=11 // pred_check
        %p121 = pneg %p77
      $region18: #{bert_base_uncased_forward.10} parent=11 // pred_check_branch
        %123 = sbr.rel (%p121) target = $region20
      $region19: #{bert_base_uncased_forward.10} parent=11 // pred_region
        _
      $region20: #{bert_base_uncased_forward.10} parent=11 // pred_fallthru
        _
    $region12: #{bert_base_uncased_forward.10} parent=5 // pred_fallthru
      _
    %p124 = scmp.lt.s32.totalorder %s9, 2
    // Predicated region
    $region21: #{bert_base_uncased_forward.10} parent=5 // pred_check
      %p125 = pneg %p124
    $region22: #{bert_base_uncased_forward.10} parent=5 // pred_check_branch
      %127 = sbr.rel (%p125) target = $region24
    $region23: #{bert_base_uncased_forward.10} parent=5 // pred_region
      // Predicated region
      $region25: #{bert_base_uncased_forward.10} parent=23 // pred_check
        %p128 = pneg %p29
      $region26: #{bert_base_uncased_forward.10} parent=23 // pred_check_branch
        %130 = sbr.rel (%p128) target = $region28
      $region27: #{bert_base_uncased_forward.10} parent=23 // pred_region
        %s131 = smul.u32 16, %s9
        %p132 = scmp.lt.s32.totalorder %s131, 31
        %s133 = scalar_select %p132, %s131, 31
        %s134 = smul.addr %s133, 2
        %s135 = smul.addr %s134, 8
        %s136 = scalar_lea.vmem %s0, %s135
        %s137 = smul.u32 16, %s9
      $region28: #{bert_base_uncased_forward.10} parent=23 // pred_fallthru
        _
    $region24: #{bert_base_uncased_forward.10} parent=5 // pred_fallthru
      _
    %p138 = scmp.le.s32.totalorder 1, %s9
    %p139 = scmp.lt.s32.totalorder %s9, 3
    %p140 = pnand %p138, %p139
    %p141 = pneg %p140
    // Predicated region
    $region29: #{bert_base_uncased_forward.10} parent=5 // pred_check
      _
    $region30: #{bert_base_uncased_forward.10} parent=5 // pred_check_branch
      %143 = sbr.rel (%p140) target = $region32
    $region31: #{bert_base_uncased_forward.10} parent=5 // pred_region
      %s144 = ssub.s32 %s9, 1
      %s145 = smul.u32 16, %s14
      %p146 = scmp.lt.s32.totalorder %s145, 31
      %s147 = scalar_select %p146, %s145, 31
      %s148 = smul.addr %s147, 2
      %s149 = smul.addr %s148, 8
      %s150 = scalar_lea.vmem %s0, %s149
      %p151 = pneg %p35
      %p152 = pneg %p32
      %p153 = pneg %p56
      %p154 = pneg %p53
      %p155 = pneg %p77
      %p156 = pneg %p74
      %p157 = pneg %p103
      %p158 = pneg %p100
      %s159 = smul.u32 16, %s14
      %p160 = scmp.lt.s32.totalorder %s159, 31
      %s161 = scalar_select %p160, %s159, 31
      %s162 = smul.addr %s161, 2
      %s163 = smul.addr %s162, 4
      %s164 = scalar_lea.vmem %s3, %s163
      %s165 = smul.u32 16, %s14
      %p166 = scmp.lt.s32.totalorder %s165, 31
      %s167 = scalar_select %p166, %s165, 31
      %s168 = smul.addr %s167, 2
      %s169 = smul.addr %s168, 8
      %s170 = scalar_lea.vmem %s0, %s169
      %s171 = smul.u32 16, %s14
      %s172 = smul.u32 16, %s14
      %p173 = scmp.lt.s32.totalorder %s172, 31
      %s174 = scalar_select %p173, %s172, 31
      %s175 = smul.addr %s174, 2
      %s176 = smul.addr %s175, 4
      %s177 = scalar_lea.vmem %s3, %s176
      %s178 = smul.u32 16, %s14
      %v179 = vld [vmem:[%s170] sm:$0xff]
      %v180 = vld [vmem:[%s170 + $0x8] sm:$0xff]
      %v181 = vld [vmem:[%s170 + $0x10] sm:$0xff]
      %v182 = vld [vmem:[%s170 + $0x18] sm:$0xff]
      %v183 = vld [vmem:[%s170 + $0x20] sm:$0xff]
      %v184 = vld [vmem:[%s170 + $0x28] sm:$0xff]
      %v185 = vld [vmem:[%s170 + $0x30] sm:$0xff]
      %v186 = vld [vmem:[%s170 + $0x38] sm:$0xff]
      %v187 = vld [vmem:[%s170 + $0x40] sm:$0xff]
      %v188 = vld [vmem:[%s170 + $0x48] sm:$0xff]
      %v189 = vld [vmem:[%s170 + $0x50] sm:$0xff]
      %v190 = vld [vmem:[%s170 + $0x58] sm:$0xff]
      %v191 = vld [vmem:[%s170 + $0x60] sm:$0xff]
      %v192 = vld [vmem:[%s170 + $0x68] sm:$0xff]
      %v193 = vld [vmem:[%s170 + $0x70] sm:$0xff]
      %v194 = vld [vmem:[%s170 + $0x78] sm:$0xff]
      %v195 = vld [vmem:[%s170 + $0x80] sm:$0xff]
      %v196 = vld [vmem:[%s170 + $0x88] sm:$0xff]
      %v197 = vld [vmem:[%s170 + $0x90] sm:$0xff]
      %v198 = vld [vmem:[%s170 + $0x98] sm:$0xff]
      %v199 = vld [vmem:[%s170 + $0xa0] sm:$0xff]
      %v200 = vld [vmem:[%s170 + $0xa8] sm:$0xff]
      %v201 = vld [vmem:[%s170 + $0xb0] sm:$0xff]
      %v202 = vld [vmem:[%s170 + $0xb8] sm:$0xff]
      %v203 = vld [vmem:[%s170 + $0xc0] sm:$0xff]
      %v204 = vld [vmem:[%s170 + $0xc8] sm:$0xff]
      %v205 = vld [vmem:[%s170 + $0xd0] sm:$0xff]
      %v206 = vld [vmem:[%s170 + $0xd8] sm:$0xff]
      %v207 = vld [vmem:[%s170 + $0xe0] sm:$0xff]
      %v208 = vld [vmem:[%s170 + $0xe8] sm:$0xff]
      %v209 = vld [vmem:[%s170 + $0xf0] sm:$0xff]
      %v210 = vld [vmem:[%s170 + $0xf8] sm:$0xff]
      %v211 = vld [vmem:[%s1] sm:$0x3]
      %v212 = vld [vmem:[%s2] sm:$0x3]
      %v213 = vadd.f32 %v179, %v180
      %214 = vadd.xlane.f32.xlu0 %v213
      %v215 = vpop.xlane.xlu0 %214
      %v216 = vadd.f32 %v181, %v182
      %217 = vadd.xlane.f32.xlu0 %v216
      %v218 = vpop.xlane.xlu0 %217
      %v219 = vadd.f32 %v183, %v184
      %220 = vadd.xlane.f32.xlu0 %v219
      %v221 = vpop.xlane.xlu0 %220
      %v222 = vadd.f32 %v185, %v186
      %223 = vadd.xlane.f32.xlu0 %v222
      %v224 = vpop.xlane.xlu0 %223
      %v225 = vadd.f32 %v187, %v188
      %226 = vadd.xlane.f32.xlu0 %v225
      %v227 = vpop.xlane.xlu0 %226
      %v228 = vadd.f32 %v189, %v190
      %229 = vadd.xlane.f32.xlu0 %v228
      %v230 = vpop.xlane.xlu0 %229
      %v231 = vadd.f32 %v191, %v192
      %232 = vadd.xlane.f32.xlu0 %v231
      %v233 = vpop.xlane.xlu0 %232
      %v234 = vadd.f32 %v193, %v194
      %235 = vadd.xlane.f32.xlu0 %v234
      %v236 = vpop.xlane.xlu0 %235
      %v237 = vadd.f32 %v195, %v196
      %238 = vadd.xlane.f32.xlu0 %v237
      %v239 = vpop.xlane.xlu0 %238
      %v240 = vadd.f32 %v197, %v198
      %241 = vadd.xlane.f32.xlu0 %v240
      %v242 = vpop.xlane.xlu0 %241
      %v243 = vadd.f32 %v199, %v200
      %244 = vadd.xlane.f32.xlu0 %v243
      %v245 = vpop.xlane.xlu0 %244
      %v246 = vadd.f32 %v201, %v202
      %247 = vadd.xlane.f32.xlu0 %v246
      %v248 = vpop.xlane.xlu0 %247
      %v249 = vadd.f32 %v203, %v204
      %250 = vadd.xlane.f32.xlu0 %v249
      %v251 = vpop.xlane.xlu0 %250
      %v252 = vadd.f32 %v205, %v206
      %253 = vadd.xlane.f32.xlu0 %v252
      %v254 = vpop.xlane.xlu0 %253
      %v255 = vadd.f32 %v207, %v208
      %256 = vadd.xlane.f32.xlu0 %v255
      %v257 = vpop.xlane.xlu0 %256
      %v258 = vadd.f32 %v209, %v210
      %259 = vadd.xlane.f32.xlu0 %v258
      %v260 = vpop.xlane.xlu0 %259
      %v261 = vrcp.pop 256.0
      %v262 = vmul.f32 256.0, %v261
      %v263 = vsub.f32 1.0, %v262
      %v264 = vmul.f32 %v261, %v263
      %v265 = vadd.f32 %v261, %v264
      %vm266 = vweird.f32 %v261
      %v267 = vsel %vm266, %v261, %v265
      %v268 = vmul.f32 %v215, %v267
      %v269 = vmul.f32 %v218, %v267
      %v270 = vmul.f32 %v221, %v267
      %v271 = vmul.f32 %v224, %v267
      %v272 = vmul.f32 %v227, %v267
      %v273 = vmul.f32 %v230, %v267
      %v274 = vmul.f32 %v233, %v267
      %v275 = vmul.f32 %v236, %v267
      %v276 = vmul.f32 %v239, %v267
      %v277 = vmul.f32 %v242, %v267
      %v278 = vmul.f32 %v245, %v267
      %v279 = vmul.f32 %v248, %v267
      %v280 = vmul.f32 %v251, %v267
      %v281 = vmul.f32 %v254, %v267
      %v282 = vmul.f32 %v257, %v267
      %v283 = vmul.f32 %v260, %v267
      %v284 = vsub.f32 %v179, %v268
      %v285 = vsub.f32 %v180, %v268
      %v286 = vsub.f32 %v181, %v269
      %v287 = vsub.f32 %v182, %v269
      %v288 = vsub.f32 %v183, %v270
      %v289 = vsub.f32 %v184, %v270
      %v290 = vsub.f32 %v185, %v271
      %v291 = vsub.f32 %v186, %v271
      %v292 = vsub.f32 %v187, %v272
      %v293 = vsub.f32 %v188, %v272
      %v294 = vsub.f32 %v189, %v273
      %v295 = vsub.f32 %v190, %v273
      %v296 = vsub.f32 %v191, %v274
      %v297 = vsub.f32 %v192, %v274
      %v298 = vsub.f32 %v193, %v275
      %v299 = vsub.f32 %v194, %v275
      %v300 = vsub.f32 %v195, %v276
      %v301 = vsub.f32 %v196, %v276
      %v302 = vsub.f32 %v197, %v277
      %v303 = vsub.f32 %v198, %v277
      %v304 = vsub.f32 %v199, %v278
      %v305 = vsub.f32 %v200, %v278
      %v306 = vsub.f32 %v201, %v279
      %v307 = vsub.f32 %v202, %v279
      %v308 = vsub.f32 %v203, %v280
      %v309 = vsub.f32 %v204, %v280
      %v310 = vsub.f32 %v205, %v281
      %v311 = vsub.f32 %v206, %v281
      %v312 = vsub.f32 %v207, %v282
      %v313 = vsub.f32 %v208, %v282
      %v314 = vsub.f32 %v209, %v283
      %v315 = vsub.f32 %v210, %v283
      %v316 = vmul.f32 %v284, %v284
      %v317 = vmul.f32 %v285, %v285
      %v318 = vmul.f32 %v286, %v286
      %v319 = vmul.f32 %v287, %v287
      %v320 = vmul.f32 %v288, %v288
      %v321 = vmul.f32 %v289, %v289
      %v322 = vmul.f32 %v290, %v290
      %v323 = vmul.f32 %v291, %v291
      %v324 = vmul.f32 %v292, %v292
      %v325 = vmul.f32 %v293, %v293
      %v326 = vmul.f32 %v294, %v294
      %v327 = vmul.f32 %v295, %v295
      %v328 = vmul.f32 %v296, %v296
      %v329 = vmul.f32 %v297, %v297
      %v330 = vmul.f32 %v298, %v298
      %v331 = vmul.f32 %v299, %v299
      %v332 = vmul.f32 %v300, %v300
      %v333 = vmul.f32 %v301, %v301
      %v334 = vmul.f32 %v302, %v302
      %v335 = vmul.f32 %v303, %v303
      %v336 = vmul.f32 %v304, %v304
      %v337 = vmul.f32 %v305, %v305
      %v338 = vmul.f32 %v306, %v306
      %v339 = vmul.f32 %v307, %v307
      %v340 = vmul.f32 %v308, %v308
      %v341 = vmul.f32 %v309, %v309
      %v342 = vmul.f32 %v310, %v310
      %v343 = vmul.f32 %v311, %v311
      %v344 = vmul.f32 %v312, %v312
      %v345 = vmul.f32 %v313, %v313
      %v346 = vmul.f32 %v314, %v314
      %v347 = vmul.f32 %v315, %v315
      %v348 = vadd.f32 %v316, %v317
      %349 = vadd.xlane.f32.xlu0 %v348
      %v350 = vpop.xlane.xlu0 %349
      %v351 = vadd.f32 %v318, %v319
      %352 = vadd.xlane.f32.xlu0 %v351
      %v353 = vpop.xlane.xlu0 %352
      %v354 = vadd.f32 %v320, %v321
      %355 = vadd.xlane.f32.xlu0 %v354
      %v356 = vpop.xlane.xlu0 %355
      %v357 = vadd.f32 %v322, %v323
      %358 = vadd.xlane.f32.xlu0 %v357
      %v359 = vpop.xlane.xlu0 %358
      %v360 = vadd.f32 %v324, %v325
      %361 = vadd.xlane.f32.xlu0 %v360
      %v362 = vpop.xlane.xlu0 %361
      %v363 = vadd.f32 %v326, %v327
      %364 = vadd.xlane.f32.xlu0 %v363
      %v365 = vpop.xlane.xlu0 %364
      %v366 = vadd.f32 %v328, %v329
      %367 = vadd.xlane.f32.xlu0 %v366
      %v368 = vpop.xlane.xlu0 %367
      %v369 = vadd.f32 %v330, %v331
      %370 = vadd.xlane.f32.xlu0 %v369
      %v371 = vpop.xlane.xlu0 %370
      %v372 = vadd.f32 %v332, %v333
      %373 = vadd.xlane.f32.xlu0 %v372
      %v374 = vpop.xlane.xlu0 %373
      %v375 = vadd.f32 %v334, %v335
      %376 = vadd.xlane.f32.xlu0 %v375
      %v377 = vpop.xlane.xlu0 %376
      %v378 = vadd.f32 %v336, %v337
      %379 = vadd.xlane.f32.xlu0 %v378
      %v380 = vpop.xlane.xlu0 %379
      %v381 = vadd.f32 %v338, %v339
      %382 = vadd.xlane.f32.xlu0 %v381
      %v383 = vpop.xlane.xlu0 %382
      %v384 = vadd.f32 %v340, %v341
      %385 = vadd.xlane.f32.xlu0 %v384
      %v386 = vpop.xlane.xlu0 %385
      %v387 = vadd.f32 %v342, %v343
      %388 = vadd.xlane.f32.xlu0 %v387
      %v389 = vpop.xlane.xlu0 %388
      %v390 = vadd.f32 %v344, %v345
      %391 = vadd.xlane.f32.xlu0 %v390
      %v392 = vpop.xlane.xlu0 %391
      %v393 = vadd.f32 %v346, %v347
      %394 = vadd.xlane.f32.xlu0 %v393
      %v395 = vpop.xlane.xlu0 %394
      %v396 = vmul.f32 %v350, %v267
      %v397 = vmul.f32 %v353, %v267
      %v398 = vmul.f32 %v356, %v267
      %v399 = vmul.f32 %v359, %v267
      %v400 = vmul.f32 %v362, %v267
      %v401 = vmul.f32 %v365, %v267
      %v402 = vmul.f32 %v368, %v267
      %v403 = vmul.f32 %v371, %v267
      %v404 = vmul.f32 %v374, %v267
      %v405 = vmul.f32 %v377, %v267
      %v406 = vmul.f32 %v380, %v267
      %v407 = vmul.f32 %v383, %v267
      %v408 = vmul.f32 %v386, %v267
      %v409 = vmul.f32 %v389, %v267
      %v410 = vmul.f32 %v392, %v267
      %v411 = vmul.f32 %v395, %v267
      %v412 = vadd.f32 %v396, 1e-12
      %v413 = vadd.f32 %v397, 1e-12
      %v414 = vadd.f32 %v398, 1e-12
      %v415 = vadd.f32 %v399, 1e-12
      %v416 = vadd.f32 %v400, 1e-12
      %v417 = vadd.f32 %v401, 1e-12
      %v418 = vadd.f32 %v402, 1e-12
      %v419 = vadd.f32 %v403, 1e-12
      %v420 = vadd.f32 %v404, 1e-12
      %v421 = vadd.f32 %v405, 1e-12
      %v422 = vadd.f32 %v406, 1e-12
      %v423 = vadd.f32 %v407, 1e-12
      %v424 = vadd.f32 %v408, 1e-12
      %v425 = vadd.f32 %v409, 1e-12
      %v426 = vadd.f32 %v410, 1e-12
      %v427 = vadd.f32 %v411, 1e-12
      %v428 = vrsqrt.pop %v412
      %v429 = vmul.f32 %v428, %v412
      %v430 = vmul.f32 %v429, %v428
      %v431 = vmul.f32 0.5, %v430
      %v432 = vsub.f32 1.5, %v431
      %v433 = vmul.f32 %v428, %v432
      %vm434 = vweird.f32 %v412
      %vm435 = vweird.f32 %v428
      %vm436 = vmor %vm434, %vm435
      %v437 = vsel %vm436, %v428, %v433
      %v438 = vrsqrt.pop %v413
      %v439 = vmul.f32 %v438, %v413
      %v440 = vmul.f32 %v439, %v438
      %v441 = vmul.f32 0.5, %v440
      %v442 = vsub.f32 1.5, %v441
      %v443 = vmul.f32 %v438, %v442
      %vm444 = vweird.f32 %v413
      %vm445 = vweird.f32 %v438
      %vm446 = vmor %vm444, %vm445
      %v447 = vsel %vm446, %v438, %v443
      %v448 = vrsqrt.pop %v414
      %v449 = vmul.f32 %v448, %v414
      %v450 = vmul.f32 %v449, %v448
      %v451 = vmul.f32 0.5, %v450
      %v452 = vsub.f32 1.5, %v451
      %v453 = vmul.f32 %v448, %v452
      %vm454 = vweird.f32 %v414
      %vm455 = vweird.f32 %v448
      %vm456 = vmor %vm454, %vm455
      %v457 = vsel %vm456, %v448, %v453
      %v458 = vrsqrt.pop %v415
      %v459 = vmul.f32 %v458, %v415
      %v460 = vmul.f32 %v459, %v458
      %v461 = vmul.f32 0.5, %v460
      %v462 = vsub.f32 1.5, %v461
      %v463 = vmul.f32 %v458, %v462
      %vm464 = vweird.f32 %v415
      %vm465 = vweird.f32 %v458
      %vm466 = vmor %vm464, %vm465
      %v467 = vsel %vm466, %v458, %v463
      %v468 = vrsqrt.pop %v416
      %v469 = vmul.f32 %v468, %v416
      %v470 = vmul.f32 %v469, %v468
      %v471 = vmul.f32 0.5, %v470
      %v472 = vsub.f32 1.5, %v471
      %v473 = vmul.f32 %v468, %v472
      %vm474 = vweird.f32 %v416
      %vm475 = vweird.f32 %v468
      %vm476 = vmor %vm474, %vm475
      %v477 = vsel %vm476, %v468, %v473
      %v478 = vrsqrt.pop %v417
      %v479 = vmul.f32 %v478, %v417
      %v480 = vmul.f32 %v479, %v478
      %v481 = vmul.f32 0.5, %v480
      %v482 = vsub.f32 1.5, %v481
      %v483 = vmul.f32 %v478, %v482
      %vm484 = vweird.f32 %v417
      %vm485 = vweird.f32 %v478
      %vm486 = vmor %vm484, %vm485
      %v487 = vsel %vm486, %v478, %v483
      %v488 = vrsqrt.pop %v418
      %v489 = vmul.f32 %v488, %v418
      %v490 = vmul.f32 %v489, %v488
      %v491 = vmul.f32 0.5, %v490
      %v492 = vsub.f32 1.5, %v491
      %v493 = vmul.f32 %v488, %v492
      %vm494 = vweird.f32 %v418
      %vm495 = vweird.f32 %v488
      %vm496 = vmor %vm494, %vm495
      %v497 = vsel %vm496, %v488, %v493
      %v498 = vrsqrt.pop %v419
      %v499 = vmul.f32 %v498, %v419
      %v500 = vmul.f32 %v499, %v498
      %v501 = vmul.f32 0.5, %v500
      %v502 = vsub.f32 1.5, %v501
      %v503 = vmul.f32 %v498, %v502
      %vm504 = vweird.f32 %v419
      %vm505 = vweird.f32 %v498
      %vm506 = vmor %vm504, %vm505
      %v507 = vsel %vm506, %v498, %v503
      %v508 = vrsqrt.pop %v420
      %v509 = vmul.f32 %v508, %v420
      %v510 = vmul.f32 %v509, %v508
      %v511 = vmul.f32 0.5, %v510
      %v512 = vsub.f32 1.5, %v511
      %v513 = vmul.f32 %v508, %v512
      %vm514 = vweird.f32 %v420
      %vm515 = vweird.f32 %v508
      %vm516 = vmor %vm514, %vm515
      %v517 = vsel %vm516, %v508, %v513
      %v518 = vrsqrt.pop %v421
      %v519 = vmul.f32 %v518, %v421
      %v520 = vmul.f32 %v519, %v518
      %v521 = vmul.f32 0.5, %v520
      %v522 = vsub.f32 1.5, %v521
      %v523 = vmul.f32 %v518, %v522
      %vm524 = vweird.f32 %v421
      %vm525 = vweird.f32 %v518
      %vm526 = vmor %vm524, %vm525
      %v527 = vsel %vm526, %v518, %v523
      %v528 = vrsqrt.pop %v422
      %v529 = vmul.f32 %v528, %v422
      %v530 = vmul.f32 %v529, %v528
      %v531 = vmul.f32 0.5, %v530
      %v532 = vsub.f32 1.5, %v531
      %v533 = vmul.f32 %v528, %v532
      %vm534 = vweird.f32 %v422
      %vm535 = vweird.f32 %v528
      %vm536 = vmor %vm534, %vm535
      %v537 = vsel %vm536, %v528, %v533
      %v538 = vrsqrt.pop %v423
      %v539 = vmul.f32 %v538, %v423
      %v540 = vmul.f32 %v539, %v538
      %v541 = vmul.f32 0.5, %v540
      %v542 = vsub.f32 1.5, %v541
      %v543 = vmul.f32 %v538, %v542
      %vm544 = vweird.f32 %v423
      %vm545 = vweird.f32 %v538
      %vm546 = vmor %vm544, %vm545
      %v547 = vsel %vm546, %v538, %v543
      %v548 = vrsqrt.pop %v424
      %v549 = vmul.f32 %v548, %v424
      %v550 = vmul.f32 %v549, %v548
      %v551 = vmul.f32 0.5, %v550
      %v552 = vsub.f32 1.5, %v551
      %v553 = vmul.f32 %v548, %v552
      %vm554 = vweird.f32 %v424
      %vm555 = vweird.f32 %v548
      %vm556 = vmor %vm554, %vm555
      %v557 = vsel %vm556, %v548, %v553
      %v558 = vrsqrt.pop %v425
      %v559 = vmul.f32 %v558, %v425
      %v560 = vmul.f32 %v559, %v558
      %v561 = vmul.f32 0.5, %v560
      %v562 = vsub.f32 1.5, %v561
      %v563 = vmul.f32 %v558, %v562
      %vm564 = vweird.f32 %v425
      %vm565 = vweird.f32 %v558
      %vm566 = vmor %vm564, %vm565
      %v567 = vsel %vm566, %v558, %v563
      %v568 = vrsqrt.pop %v426
      %v569 = vmul.f32 %v568, %v426
      %v570 = vmul.f32 %v569, %v568
      %v571 = vmul.f32 0.5, %v570
      %v572 = vsub.f32 1.5, %v571
      %v573 = vmul.f32 %v568, %v572
      %vm574 = vweird.f32 %v426
      %vm575 = vweird.f32 %v568
      %vm576 = vmor %vm574, %vm575
      %v577 = vsel %vm576, %v568, %v573
      %v578 = vrsqrt.pop %v427
      %v579 = vmul.f32 %v578, %v427
      %v580 = vmul.f32 %v579, %v578
      %v581 = vmul.f32 0.5, %v580
      %v582 = vsub.f32 1.5, %v581
      %v583 = vmul.f32 %v578, %v582
      %vm584 = vweird.f32 %v427
      %vm585 = vweird.f32 %v578
      %vm586 = vmor %vm584, %vm585
      %v587 = vsel %vm586, %v578, %v583
      %v588 = vmul.f32 %v284, %v437
      %v589 = vmul.f32 %v285, %v437
      %v590 = vmul.f32 %v286, %v447
      %v591 = vmul.f32 %v287, %v447
      %v592 = vmul.f32 %v288, %v457
      %v593 = vmul.f32 %v289, %v457
      %v594 = vmul.f32 %v290, %v467
      %v595 = vmul.f32 %v291, %v467
      %v596 = vmul.f32 %v292, %v477
      %v597 = vmul.f32 %v293, %v477
      %v598 = vmul.f32 %v294, %v487
      %v599 = vmul.f32 %v295, %v487
      %v600 = vmul.f32 %v296, %v497
      %v601 = vmul.f32 %v297, %v497
      %v602 = vmul.f32 %v298, %v507
      %v603 = vmul.f32 %v299, %v507
      %v604 = vmul.f32 %v300, %v517
      %v605 = vmul.f32 %v301, %v517
      %v606 = vmul.f32 %v302, %v527
      %v607 = vmul.f32 %v303, %v527
      %v608 = vmul.f32 %v304, %v537
      %v609 = vmul.f32 %v305, %v537
      %v610 = vmul.f32 %v306, %v547
      %v611 = vmul.f32 %v307, %v547
      %v612 = vmul.f32 %v308, %v557
      %v613 = vmul.f32 %v309, %v557
      %v614 = vmul.f32 %v310, %v567
      %v615 = vmul.f32 %v311, %v567
      %v616 = vmul.f32 %v312, %v577
      %v617 = vmul.f32 %v313, %v577
      %v618 = vmul.f32 %v314, %v587
      %v619 = vmul.f32 %v315, %v587
      %v621 = vperm.slane %v211, 0
      %v622 = vperm.slane %v211, 1
      %v625 = vmul.f32 %v588, %v621
      %v626 = vmul.f32 %v589, %v622
      %v627 = vmul.f32 %v590, %v621
      %v628 = vmul.f32 %v591, %v622
      %v629 = vmul.f32 %v592, %v621
      %v630 = vmul.f32 %v593, %v622
      %v631 = vmul.f32 %v594, %v621
      %v632 = vmul.f32 %v595, %v622
      %v633 = vmul.f32 %v596, %v621
      %v634 = vmul.f32 %v597, %v622
      %v635 = vmul.f32 %v598, %v621
      %v636 = vmul.f32 %v599, %v622
      %v637 = vmul.f32 %v600, %v621
      %v638 = vmul.f32 %v601, %v622
      %v639 = vmul.f32 %v602, %v621
      %v640 = vmul.f32 %v603, %v622
      %v641 = vmul.f32 %v604, %v621
      %v642 = vmul.f32 %v605, %v622
      %v643 = vmul.f32 %v606, %v621
      %v644 = vmul.f32 %v607, %v622
      %v645 = vmul.f32 %v608, %v621
      %v646 = vmul.f32 %v609, %v622
      %v647 = vmul.f32 %v610, %v621
      %v648 = vmul.f32 %v611, %v622
      %v649 = vmul.f32 %v612, %v621
      %v650 = vmul.f32 %v613, %v622
      %v651 = vmul.f32 %v614, %v621
      %v652 = vmul.f32 %v615, %v622
      %v653 = vmul.f32 %v616, %v621
      %v654 = vmul.f32 %v617, %v622
      %v655 = vmul.f32 %v618, %v621
      %v656 = vmul.f32 %v619, %v622
      %v658 = vperm.slane %v212, 0
      %v659 = vperm.slane %v212, 1
      %v662 = vadd.f32 %v625, %v658
      %v663 = vadd.f32 %v626, %v659
      %v664 = vadd.f32 %v627, %v658
      %v665 = vadd.f32 %v628, %v659
      %v666 = vadd.f32 %v629, %v658
      %v667 = vadd.f32 %v630, %v659
      %v668 = vadd.f32 %v631, %v658
      %v669 = vadd.f32 %v632, %v659
      %v670 = vadd.f32 %v633, %v658
      %v671 = vadd.f32 %v634, %v659
      %v672 = vadd.f32 %v635, %v658
      %v673 = vadd.f32 %v636, %v659
      %v674 = vadd.f32 %v637, %v658
      %v675 = vadd.f32 %v638, %v659
      %v676 = vadd.f32 %v639, %v658
      %v677 = vadd.f32 %v640, %v659
      %v678 = vadd.f32 %v641, %v658
      %v679 = vadd.f32 %v642, %v659
      %v680 = vadd.f32 %v643, %v658
      %v681 = vadd.f32 %v644, %v659
      %v682 = vadd.f32 %v645, %v658
      %v683 = vadd.f32 %v646, %v659
      %v684 = vadd.f32 %v647, %v658
      %v685 = vadd.f32 %v648, %v659
      %v686 = vadd.f32 %v649, %v658
      %v687 = vadd.f32 %v650, %v659
      %v688 = vadd.f32 %v651, %v658
      %v689 = vadd.f32 %v652, %v659
      %v690 = vadd.f32 %v653, %v658
      %v691 = vadd.f32 %v654, %v659
      %v692 = vadd.f32 %v655, %v658
      %v693 = vadd.f32 %v656, %v659
      %v694 = vpack.c.bf16 %v663, %v662
      %v695 = vpack.c.bf16 %v665, %v664
      %v696 = vpack.c.bf16 %v667, %v666
      %v697 = vpack.c.bf16 %v669, %v668
      %v698 = vpack.c.bf16 %v671, %v670
      %v699 = vpack.c.bf16 %v673, %v672
      %v700 = vpack.c.bf16 %v675, %v674
      %v701 = vpack.c.bf16 %v677, %v676
      %v702 = vpack.c.bf16 %v679, %v678
      %v703 = vpack.c.bf16 %v681, %v680
      %v704 = vpack.c.bf16 %v683, %v682
      %v705 = vpack.c.bf16 %v685, %v684
      %v706 = vpack.c.bf16 %v687, %v686
      %v707 = vpack.c.bf16 %v689, %v688
      %v708 = vpack.c.bf16 %v691, %v690
      %v709 = vpack.c.bf16 %v693, %v692
      %710 = vst [vmem:[%s177] sm:$0xff] %v694
      %711 = vst [vmem:[%s177 + $0x8] sm:$0xff] %v695
      %712 = vst [vmem:[%s177 + $0x10] sm:$0xff] %v696
      %713 = vst [vmem:[%s177 + $0x18] sm:$0xff] %v697
      %714 = vst [vmem:[%s177 + $0x20] sm:$0xff] %v698
      %715 = vst [vmem:[%s177 + $0x28] sm:$0xff] %v699
      %716 = vst [vmem:[%s177 + $0x30] sm:$0xff] %v700
      %717 = vst [vmem:[%s177 + $0x38] sm:$0xff] %v701
      %718 = vst [vmem:[%s177 + $0x40] sm:$0xff] %v702
      %719 = vst [vmem:[%s177 + $0x48] sm:$0xff] %v703
      %720 = vst [vmem:[%s177 + $0x50] sm:$0xff] %v704
      %721 = vst [vmem:[%s177 + $0x58] sm:$0xff] %v705
      %722 = vst [vmem:[%s177 + $0x60] sm:$0xff] %v706
      %723 = vst [vmem:[%s177 + $0x68] sm:$0xff] %v707
      %724 = vst [vmem:[%s177 + $0x70] sm:$0xff] %v708
      %725 = vst [vmem:[%s177 + $0x78] sm:$0xff] %v709
      %s726 = smul.u32 16, %s14
      %p727 = scmp.lt.s32.totalorder %s726, 31
      %s728 = scalar_select %p727, %s726, 31
      %s729 = smul.addr %s728, 2
      %s730 = smul.addr %s729, 4
      %s731 = scalar_lea.vmem %s3, %s730
      // Predicated region
      $region33: #{bert_base_uncased_forward.10} parent=31 // pred_check
        %p732 = pneg %p100
      $region34: #{bert_base_uncased_forward.10} parent=31 // pred_check_branch
        %734 = sbr.rel (%p732) target = $region36
      $region35: #{bert_base_uncased_forward.10} parent=31 // pred_region
        %s735 = smul.u32 16, %s14
      $region36: #{bert_base_uncased_forward.10} parent=31 // pred_fallthru
        _
    $region32: #{bert_base_uncased_forward.10} parent=5 // pred_fallthru
      _
    %p736 = scmp.le.s32.totalorder 2, %s9
    // Predicated region
    $region37: #{bert_base_uncased_forward.10} parent=5 // pred_check
      %p737 = pneg %p736
    $region38: #{bert_base_uncased_forward.10} parent=5 // pred_check_branch
      %739 = sbr.rel (%p737) target = $region40
    $region39: #{bert_base_uncased_forward.10} parent=5 // pred_region
      %s740 = ssub.s32 %s9, 2
      // Predicated region
      $region41: #{bert_base_uncased_forward.10} parent=39 // pred_check
        %p741 = pneg %p106
      $region42: #{bert_base_uncased_forward.10} parent=39 // pred_check_branch
        %743 = sbr.rel (%p741) target = $region44
      $region43: #{bert_base_uncased_forward.10} parent=39 // pred_region
        %s744 = smul.u32 16, %s15
        %p745 = scmp.lt.s32.totalorder %s744, 31
        %s746 = scalar_select %p745, %s744, 31
        %s747 = smul.addr %s746, 2
        %s748 = smul.addr %s747, 4
        %s749 = scalar_lea.vmem %s3, %s748
      $region44: #{bert_base_uncased_forward.10} parent=39 // pred_fallthru
        _
    $region40: #{bert_base_uncased_forward.10} parent=5 // pred_fallthru
      _
  $region6: #{bert_base_uncased_forward.10} parent=0 // loop_footer
    %s13 = sadd.s32 1, %s9
  $region7: #{bert_base_uncased_forward.10} parent=0 // loop_footer_branch
    %8 = sbr.rel target = $region3
  $region8: #{bert_base_uncased_forward.10} parent=0 // loop_exit
    _

// kernel: bert_base_uncased_forward.12
$region0: #{bert_base_uncased_forward.12}
  #allocation0 [shape = 'u32[]', space=smem, size = 0x4, offset = 0x4, fixed_abs, tag = 'smem constant byte address 0x4 - core index']
  #allocation1 [shape = 'u32[72,128]{1,0:T(1,128)}', space=vmem, size = 0x9000, scoped, tag = 'internal scratch']
  %s0 = inlined_call_operand.vmem [shape: bf16[256,768], index: 0, kind: input, shape index: {}]
  %s1 = inlined_call_operand.vmem [shape: f32[2,1,128], index: 1, kind: input, shape index: {}]
  %s2 = inlined_call_operand.vmem [shape: bf16[256,256], index: 2, kind: output, shape index: {}]
  %s3 = sld [smem:[#allocation0]]
  $region41: #{bert_base_uncased_forward.12} parent=0
    _
  %s5 = ssub.s32 1, %s3
  %s6 = scalar_select 0, %s5, %s3
  loop: start=0, step=1, limit=4
  $region2: #{bert_base_uncased_forward.12} parent=0 // loop_pre_header
    _
  $region3: #{bert_base_uncased_forward.12} parent=0 // loop_header
    %s8 = sphi 0, %s12
    %p9 = scmp.ge.s32.totalorder %s8, 4
    %s18 = sphi 0, %s20
    %s21 = sphi 0, %s18
    %s22 = sphi 0, %s21
    %s38 = sphi 0, %s22
    %s44 = sphi 0, %s46
    %s47 = sphi 0, %s44
    %s48 = sphi 0, %s47
    %s64 = sphi 0, %s48
    %s70 = sphi 0, %s72
    %s73 = sphi 0, %s70
    %s74 = sphi 0, %s73
    %s90 = sphi 0, %s74
  $region4: #{bert_base_uncased_forward.12} parent=0 // loop_header_branch
    %11 = sbr.rel (%p9) target = $region8
  $region5: #{bert_base_uncased_forward.12} parent=0 // loop_body
    %s13 = ssub.s32 %s8, 1
    %s14 = ssub.s32 %s8, 2
    %s15 = sadd.s32 %s8, 1
    %s16 = ssub.s32 %s8, %s15
    %p17 = scmp.eq.s32.totalorder %s16, 0
    %s19 = sadd.s32 %s18, 1
    %s20 = scalar_select %p17, %s18, %s19
    %p23 = pneg %p17
    %p24 = scmp.eq.s32.totalorder %s8, 1
    %p25 = por %p23, %p24
    %p26 = scmp.ne.s32.totalorder %s18, %s21
    %p27 = scmp.eq.s32.totalorder %s8, 0
    %p28 = por %p26, %p27
    %p29 = scmp.ne.s32.totalorder %s18, %s21
    %p30 = scmp.eq.s32.totalorder %s13, 1
    %p31 = por %p29, %p30
    %p32 = scmp.ne.s32.totalorder %s21, %s22
    %p33 = scmp.eq.s32.totalorder %s13, 0
    %p34 = por %p32, %p33
    %p35 = scmp.ne.s32.totalorder %s21, %s22
    %p36 = scmp.eq.s32.totalorder %s14, 1
    %p37 = por %p35, %p36
    %p39 = scmp.ne.s32.totalorder %s22, %s38
    %p40 = scmp.eq.s32.totalorder %s14, 0
    %p41 = por %p39, %p40
    %s42 = ssub.s32 %s8, %s15
    %p43 = scmp.eq.s32.totalorder %s42, 0
    %s45 = sadd.s32 %s44, 1
    %s46 = scalar_select %p43, %s44, %s45
    %p49 = pneg %p43
    %p50 = scmp.eq.s32.totalorder %s8, 1
    %p51 = por %p49, %p50
    %p52 = scmp.ne.s32.totalorder %s44, %s47
    %p53 = scmp.eq.s32.totalorder %s8, 0
    %p54 = por %p52, %p53
    %p55 = scmp.ne.s32.totalorder %s44, %s47
    %p56 = scmp.eq.s32.totalorder %s13, 1
    %p57 = por %p55, %p56
    %p58 = scmp.ne.s32.totalorder %s47, %s48
    %p59 = scmp.eq.s32.totalorder %s13, 0
    %p60 = por %p58, %p59
    %p61 = scmp.ne.s32.totalorder %s47, %s48
    %p62 = scmp.eq.s32.totalorder %s14, 1
    %p63 = por %p61, %p62
    %p65 = scmp.ne.s32.totalorder %s48, %s64
    %p66 = scmp.eq.s32.totalorder %s14, 0
    %p67 = por %p65, %p66
    %s68 = ssub.s32 %s8, %s15
    %p69 = scmp.eq.s32.totalorder %s68, 0
    %s71 = sadd.s32 %s70, 1
    %s72 = scalar_select %p69, %s70, %s71
    %p75 = pneg %p69
    %p76 = scmp.eq.s32.totalorder %s8, 1
    %p77 = por %p75, %p76
    %p78 = scmp.ne.s32.totalorder %s70, %s73
    %p79 = scmp.eq.s32.totalorder %s8, 0
    %p80 = por %p78, %p79
    %p81 = scmp.ne.s32.totalorder %s70, %s73
    %p82 = scmp.eq.s32.totalorder %s13, 1
    %p83 = por %p81, %p82
    %p84 = scmp.ne.s32.totalorder %s73, %s74
    %p85 = scmp.eq.s32.totalorder %s13, 0
    %p86 = por %p84, %p85
    %p87 = scmp.ne.s32.totalorder %s73, %s74
    %p88 = scmp.eq.s32.totalorder %s14, 1
    %p89 = por %p87, %p88
    %p91 = scmp.ne.s32.totalorder %s74, %s90
    %p92 = scmp.eq.s32.totalorder %s14, 0
    %p93 = por %p91, %p92
    %p94 = scmp.le.s32.totalorder 1, %s8
    %p95 = scmp.lt.s32.totalorder %s8, 3
    %p96 = pnand %p94, %p95
    %p97 = pneg %p96
    // Predicated region
    $region9: #{bert_base_uncased_forward.12} parent=5 // pred_check
      _
    $region10: #{bert_base_uncased_forward.12} parent=5 // pred_check_branch
      %99 = sbr.rel (%p96) target = $region12
    $region11: #{bert_base_uncased_forward.12} parent=5 // pred_region
      %s100 = ssub.s32 %s8, 1
    $region12: #{bert_base_uncased_forward.12} parent=5 // pred_fallthru
      _
    %p101 = scmp.lt.s32.totalorder %s8, 2
    // Predicated region
    $region13: #{bert_base_uncased_forward.12} parent=5 // pred_check
      %p102 = pneg %p101
    $region14: #{bert_base_uncased_forward.12} parent=5 // pred_check_branch
      %104 = sbr.rel (%p102) target = $region16
    $region15: #{bert_base_uncased_forward.12} parent=5 // pred_region
      // Predicated region
      $region17: #{bert_base_uncased_forward.12} parent=15 // pred_check
        %p105 = pneg %p28
      $region18: #{bert_base_uncased_forward.12} parent=15 // pred_check_branch
        %107 = sbr.rel (%p105) target = $region20
      $region19: #{bert_base_uncased_forward.12} parent=15 // pred_region
        %s108 = smul.u32 16, %s8
        %p109 = scmp.lt.s32.totalorder %s108, 31
        %s110 = scalar_select %p109, %s108, 31
        %s111 = smul.addr %s110, 6
        %s112 = smul.addr %s111, 4
        %s113 = scalar_lea.vmem %s0, %s112
        %s114 = smul.u32 16, %s8
      $region20: #{bert_base_uncased_forward.12} parent=15 // pred_fallthru
        _
      // Predicated region
      $region21: #{bert_base_uncased_forward.12} parent=15 // pred_check
        %p115 = pneg %p54
      $region22: #{bert_base_uncased_forward.12} parent=15 // pred_check_branch
        %117 = sbr.rel (%p115) target = $region24
      $region23: #{bert_base_uncased_forward.12} parent=15 // pred_region
        %p118 = scmp.lt.s32.totalorder %s8, 1
        %s119 = scalar_select %p118, %s8, 1
        %s120 = scalar_lea.vmem %s1, %s119
      $region24: #{bert_base_uncased_forward.12} parent=15 // pred_fallthru
        _
    $region16: #{bert_base_uncased_forward.12} parent=5 // pred_fallthru
      _
    %p121 = scmp.le.s32.totalorder 1, %s8
    %p122 = scmp.lt.s32.totalorder %s8, 3
    %p123 = pnand %p121, %p122
    %p124 = pneg %p123
    // Predicated region
    $region25: #{bert_base_uncased_forward.12} parent=5 // pred_check
      _
    $region26: #{bert_base_uncased_forward.12} parent=5 // pred_check_branch
      %126 = sbr.rel (%p123) target = $region28
    $region27: #{bert_base_uncased_forward.12} parent=5 // pred_region
      %s127 = ssub.s32 %s8, 1
      %s128 = smul.u32 16, %s13
      %p129 = scmp.lt.s32.totalorder %s128, 31
      %s130 = scalar_select %p129, %s128, 31
      %s131 = smul.addr %s130, 6
      %s132 = smul.addr %s131, 4
      %s133 = scalar_lea.vmem %s0, %s132
      %p134 = pneg %p34
      %p135 = pneg %p31
      %p136 = scmp.lt.s32.totalorder %s13, 1
      %s137 = scalar_select %p136, %s13, 1
      %s138 = scalar_lea.vmem %s1, %s137
      %p139 = pneg %p60
      %p140 = pneg %p57
      %p141 = pneg %p86
      %p142 = pneg %p83
      %s143 = smul.u32 16, %s13
      %p144 = scmp.lt.s32.totalorder %s143, 31
      %s145 = scalar_select %p144, %s143, 31
      %s146 = smul.addr %s145, 2
      %s147 = smul.addr %s146, 4
      %s148 = scalar_lea.vmem %s2, %s147
      %s149 = smul.u32 16, %s13
      %p150 = scmp.lt.s32.totalorder %s149, 31
      %s151 = scalar_select %p150, %s149, 31
      %s152 = smul.addr %s151, 6
      %s153 = smul.addr %s152, 4
      %s154 = scalar_lea.vmem %s0, %s153
      %s155 = smul.u32 16, %s13
      %p156 = scmp.lt.s32.totalorder %s13, 1
      %s157 = scalar_select %p156, %s13, 1
      %s158 = scalar_lea.vmem %s1, %s157
      %s159 = smul.u32 16, %s13
      %p160 = scmp.lt.s32.totalorder %s159, 31
      %s161 = scalar_select %p160, %s159, 31
      %s162 = smul.addr %s161, 2
      %s163 = smul.addr %s162, 4
      %s164 = scalar_lea.vmem %s2, %s163
      %s165 = smul.u32 16, %s13
      %v166 = vld [vmem:[%s158] sm:$0x1]
      %v167 = vld [vmem:[%s154] sm:$0xf]
      %v168 = vld [vmem:[%s154 + $0x18] sm:$0xf]
      %v169 = vld [vmem:[%s154 + $0x30] sm:$0xf]
      %v170 = vld [vmem:[%s154 + $0x48] sm:$0xf]
      %v171 = vld [vmem:[%s154 + $0x60] sm:$0xf]
      %v172 = vld [vmem:[%s154 + $0x78] sm:$0xf]
      %v173 = vld [vmem:[%s154 + $0x90] sm:$0xf]
      %v174 = vld [vmem:[%s154 + $0xa8] sm:$0xf]
      %v175 = vld [vmem:[%s154 + $0xc0] sm:$0xf]
      %v176 = vld [vmem:[%s154 + $0xd8] sm:$0xf]
      %v177 = vld [vmem:[%s154 + $0xf0] sm:$0xf]
      %v178 = vld [vmem:[%s154 + $0x108] sm:$0xf]
      %v179 = vld [vmem:[%s154 + $0x120] sm:$0xf]
      %v180 = vld [vmem:[%s154 + $0x138] sm:$0xf]
      %v181 = vld [vmem:[%s154 + $0x150] sm:$0xf]
      %v182 = vld [vmem:[%s154 + $0x168] sm:$0xf]
      %v183 = vld [vmem:[%s154 + $0x8] sm:$0xf]
      %v184 = vld [vmem:[%s154 + $0x20] sm:$0xf]
      %v185 = vld [vmem:[%s154 + $0x38] sm:$0xf]
      %v186 = vld [vmem:[%s154 + $0x50] sm:$0xf]
      %v187 = vld [vmem:[%s154 + $0x68] sm:$0xf]
      %v188 = vld [vmem:[%s154 + $0x80] sm:$0xf]
      %v189 = vld [vmem:[%s154 + $0x98] sm:$0xf]
      %v190 = vld [vmem:[%s154 + $0xb0] sm:$0xf]
      %v191 = vld [vmem:[%s154 + $0xc8] sm:$0xf]
      %v192 = vld [vmem:[%s154 + $0xe0] sm:$0xf]
      %v193 = vld [vmem:[%s154 + $0xf8] sm:$0xf]
      %v194 = vld [vmem:[%s154 + $0x110] sm:$0xf]
      %v195 = vld [vmem:[%s154 + $0x128] sm:$0xf]
      %v196 = vld [vmem:[%s154 + $0x140] sm:$0xf]
      %v197 = vld [vmem:[%s154 + $0x158] sm:$0xf]
      %v198 = vld [vmem:[%s154 + $0x170] sm:$0xf]
      %v199 = vld [vmem:[%s154 + $0x10] sm:$0xf]
      %v200 = vld [vmem:[%s154 + $0x28] sm:$0xf]
      %v201 = vld [vmem:[%s154 + $0x40] sm:$0xf]
      %v202 = vld [vmem:[%s154 + $0x58] sm:$0xf]
      %v203 = vld [vmem:[%s154 + $0x70] sm:$0xf]
      %v204 = vld [vmem:[%s154 + $0x88] sm:$0xf]
      %v205 = vld [vmem:[%s154 + $0xa0] sm:$0xf]
      %v206 = vld [vmem:[%s154 + $0xb8] sm:$0xf]
      %v207 = vld [vmem:[%s154 + $0xd0] sm:$0xf]
      %v208 = vld [vmem:[%s154 + $0xe8] sm:$0xf]
      %v209 = vld [vmem:[%s154 + $0x100] sm:$0xf]
      %v210 = vld [vmem:[%s154 + $0x118] sm:$0xf]
      %v211 = vld [vmem:[%s154 + $0x130] sm:$0xf]
      %v212 = vld [vmem:[%s154 + $0x148] sm:$0xf]
      %v213 = vld [vmem:[%s154 + $0x160] sm:$0xf]
      %v214 = vld [vmem:[%s154 + $0x178] sm:$0xf]
      %v216 = vperm.slane %v166, 0
      %v234 = vunpack.c.l.b16 %v167
      %v235 = vunpack.c.l.b16 %v168
      %v236 = vunpack.c.l.b16 %v169
      %v237 = vunpack.c.l.b16 %v170
      %v238 = vunpack.c.l.b16 %v171
      %v239 = vunpack.c.l.b16 %v172
      %v240 = vunpack.c.l.b16 %v173
      %v241 = vunpack.c.l.b16 %v174
      %v242 = vunpack.c.l.b16 %v175
      %v243 = vunpack.c.l.b16 %v176
      %v244 = vunpack.c.l.b16 %v177
      %v245 = vunpack.c.l.b16 %v178
      %v246 = vunpack.c.l.b16 %v179
      %v247 = vunpack.c.l.b16 %v180
      %v248 = vunpack.c.l.b16 %v181
      %v249 = vunpack.c.l.b16 %v182
      %v250 = vpack.c.b16 %v235, %v234
      %v251 = vpack.c.b16 %v237, %v236
      %v252 = vpack.c.b16 %v239, %v238
      %v253 = vpack.c.b16 %v241, %v240
      %v254 = vpack.c.b16 %v243, %v242
      %v255 = vpack.c.b16 %v245, %v244
      %v256 = vpack.c.b16 %v247, %v246
      %v257 = vpack.c.b16 %v249, %v248
      %v282 = vunpack.c.l.b16 %v183
      %v283 = vunpack.c.l.b16 %v184
      %v284 = vunpack.c.l.b16 %v185
      %v285 = vunpack.c.l.b16 %v186
      %v286 = vunpack.c.l.b16 %v187
      %v287 = vunpack.c.l.b16 %v188
      %v288 = vunpack.c.l.b16 %v189
      %v289 = vunpack.c.l.b16 %v190
      %v290 = vunpack.c.l.b16 %v191
      %v291 = vunpack.c.l.b16 %v192
      %v292 = vunpack.c.l.b16 %v193
      %v293 = vunpack.c.l.b16 %v194
      %v294 = vunpack.c.l.b16 %v195
      %v295 = vunpack.c.l.b16 %v196
      %v296 = vunpack.c.l.b16 %v197
      %v297 = vunpack.c.l.b16 %v198
      %v298 = vpack.c.b16 %v283, %v282
      %v299 = vpack.c.b16 %v285, %v284
      %v300 = vpack.c.b16 %v287, %v286
      %v301 = vpack.c.b16 %v289, %v288
      %v302 = vpack.c.b16 %v291, %v290
      %v303 = vpack.c.b16 %v293, %v292
      %v304 = vpack.c.b16 %v295, %v294
      %v305 = vpack.c.b16 %v297, %v296
      %314 = vmatpush.bf16.xpose.msra.mxu0 %v305
      %315 = vmatpush.bf16.xpose.msra.mxu0 %v304
      %316 = vmatpush.bf16.xpose.msra.mxu0 %v303
      %317 = vmatpush.bf16.xpose.msra.mxu0 %v302
      %318 = vmatpush.bf16.xpose.msra.mxu0 %v301
      %319 = vmatpush.bf16.xpose.msra.mxu0 %v300
      %320 = vmatpush.bf16.xpose.msra.mxu0 %v299
      %321 = vmatpush.bf16.xpose.msra.mxu0 %v298
      %322 = vmatmul.bf16.gmra.mxu0 %v250
      %v323 = vpop.f32.mrf.mxu0
      %v324 = vadd.f32 %v216, %v323
      %v325 = vpop.f32.mrf.mxu0
      %v326 = vadd.f32 %v216, %v325
      %327 = vmatmul.bf16.gmra.mxu0 %v251
      %v328 = vpop.f32.mrf.mxu0
      %v329 = vadd.f32 %v216, %v328
      %v330 = vpop.f32.mrf.mxu0
      %v331 = vadd.f32 %v216, %v330
      %332 = vmatmul.bf16.gmra.mxu0 %v252
      %v333 = vpop.f32.mrf.mxu0
      %v334 = vadd.f32 %v216, %v333
      %v335 = vpop.f32.mrf.mxu0
      %v336 = vadd.f32 %v216, %v335
      %337 = vmatmul.bf16.gmra.mxu0 %v253
      %v338 = vpop.f32.mrf.mxu0
      %v339 = vadd.f32 %v216, %v338
      %v340 = vpop.f32.mrf.mxu0
      %v341 = vadd.f32 %v216, %v340
      %342 = vmatmul.bf16.gmra.mxu0 %v254
      %v343 = vpop.f32.mrf.mxu0
      %v344 = vadd.f32 %v216, %v343
      %v345 = vpop.f32.mrf.mxu0
      %v346 = vadd.f32 %v216, %v345
      %347 = vmatmul.bf16.gmra.mxu0 %v255
      %v348 = vpop.f32.mrf.mxu0
      %v349 = vadd.f32 %v216, %v348
      %v350 = vpop.f32.mrf.mxu0
      %v351 = vadd.f32 %v216, %v350
      %352 = vmatmul.bf16.gmra.mxu0 %v256
      %v353 = vpop.f32.mrf.mxu0
      %v354 = vadd.f32 %v216, %v353
      %v355 = vpop.f32.mrf.mxu0
      %v356 = vadd.f32 %v216, %v355
      %357 = vmatmul.bf16.gmra.mxu0 %v257
      %v358 = vpop.f32.mrf.mxu0
      %v359 = vadd.f32 %v216, %v358
      %v360 = vpop.f32.mrf.mxu0
      %v361 = vadd.f32 %v216, %v360
      %362 = vdwg.mxu0
      %363 = vmax.xlane.f32.xlu0 %v324
      %v364 = vpop.xlane.xlu0 %363
      %365 = vmax.xlane.f32.xlu0 %v326
      %v366 = vpop.xlane.xlu0 %365
      %367 = vmax.xlane.f32.xlu0 %v329
      %v368 = vpop.xlane.xlu0 %367
      %369 = vmax.xlane.f32.xlu0 %v331
      %v370 = vpop.xlane.xlu0 %369
      %371 = vmax.xlane.f32.xlu0 %v334
      %v372 = vpop.xlane.xlu0 %371
      %373 = vmax.xlane.f32.xlu0 %v336
      %v374 = vpop.xlane.xlu0 %373
      %375 = vmax.xlane.f32.xlu0 %v339
      %v376 = vpop.xlane.xlu0 %375
      %377 = vmax.xlane.f32.xlu0 %v341
      %v378 = vpop.xlane.xlu0 %377
      %379 = vmax.xlane.f32.xlu0 %v344
      %v380 = vpop.xlane.xlu0 %379
      %381 = vmax.xlane.f32.xlu0 %v346
      %v382 = vpop.xlane.xlu0 %381
      %383 = vmax.xlane.f32.xlu0 %v349
      %v384 = vpop.xlane.xlu0 %383
      %385 = vmax.xlane.f32.xlu0 %v351
      %v386 = vpop.xlane.xlu0 %385
      %387 = vmax.xlane.f32.xlu0 %v354
      %v388 = vpop.xlane.xlu0 %387
      %389 = vmax.xlane.f32.xlu0 %v356
      %v390 = vpop.xlane.xlu0 %389
      %391 = vmax.xlane.f32.xlu0 %v359
      %v392 = vpop.xlane.xlu0 %391
      %393 = vmax.xlane.f32.xlu0 %v361
      %v394 = vpop.xlane.xlu0 %393
      %v395 = vsub.f32 %v324, %v364
      %v396 = vsub.f32 %v326, %v366
      %v397 = vsub.f32 %v329, %v368
      %v398 = vsub.f32 %v331, %v370
      %v399 = vsub.f32 %v334, %v372
      %v400 = vsub.f32 %v336, %v374
      %v401 = vsub.f32 %v339, %v376
      %v402 = vsub.f32 %v341, %v378
      %v403 = vsub.f32 %v344, %v380
      %v404 = vsub.f32 %v346, %v382
      %v405 = vsub.f32 %v349, %v384
      %v406 = vsub.f32 %v351, %v386
      %v407 = vsub.f32 %v354, %v388
      %v408 = vsub.f32 %v356, %v390
      %v409 = vsub.f32 %v359, %v392
      %v410 = vsub.f32 %v361, %v394
      %v411 = vmul.f32 %v395, 1.442695
      %v412 = vpow.pop %v411
      %v413 = vmul.f32 %v396, 1.442695
      %v414 = vpow.pop %v413
      %v415 = vmul.f32 %v397, 1.442695
      %v416 = vpow.pop %v415
      %v417 = vmul.f32 %v398, 1.442695
      %v418 = vpow.pop %v417
      %v419 = vmul.f32 %v399, 1.442695
      %v420 = vpow.pop %v419
      %v421 = vmul.f32 %v400, 1.442695
      %v422 = vpow.pop %v421
      %v423 = vmul.f32 %v401, 1.442695
      %v424 = vpow.pop %v423
      %v425 = vmul.f32 %v402, 1.442695
      %v426 = vpow.pop %v425
      %v427 = vmul.f32 %v403, 1.442695
      %v428 = vpow.pop %v427
      %v429 = vmul.f32 %v404, 1.442695
      %v430 = vpow.pop %v429
      %v431 = vmul.f32 %v405, 1.442695
      %v432 = vpow.pop %v431
      %v433 = vmul.f32 %v406, 1.442695
      %v434 = vpow.pop %v433
      %v435 = vmul.f32 %v407, 1.442695
      %v436 = vpow.pop %v435
      %v437 = vmul.f32 %v408, 1.442695
      %v438 = vpow.pop %v437
      %v439 = vmul.f32 %v409, 1.442695
      %v440 = vpow.pop %v439
      %v441 = vmul.f32 %v410, 1.442695
      %v442 = vpow.pop %v441
      %443 = vadd.xlane.f32.xlu0 %v412
      %v444 = vpop.xlane.xlu0 %443
      %445 = vadd.xlane.f32.xlu0 %v414
      %v446 = vpop.xlane.xlu0 %445
      %447 = vadd.xlane.f32.xlu0 %v416
      %v448 = vpop.xlane.xlu0 %447
      %449 = vadd.xlane.f32.xlu0 %v418
      %v450 = vpop.xlane.xlu0 %449
      %451 = vadd.xlane.f32.xlu0 %v420
      %v452 = vpop.xlane.xlu0 %451
      %453 = vadd.xlane.f32.xlu0 %v422
      %v454 = vpop.xlane.xlu0 %453
      %455 = vadd.xlane.f32.xlu0 %v424
      %v456 = vpop.xlane.xlu0 %455
      %457 = vadd.xlane.f32.xlu0 %v426
      %v458 = vpop.xlane.xlu0 %457
      %459 = vadd.xlane.f32.xlu0 %v428
      %v460 = vpop.xlane.xlu0 %459
      %461 = vadd.xlane.f32.xlu0 %v430
      %v462 = vpop.xlane.xlu0 %461
      %463 = vadd.xlane.f32.xlu0 %v432
      %v464 = vpop.xlane.xlu0 %463
      %465 = vadd.xlane.f32.xlu0 %v434
      %v466 = vpop.xlane.xlu0 %465
      %467 = vadd.xlane.f32.xlu0 %v436
      %v468 = vpop.xlane.xlu0 %467
      %469 = vadd.xlane.f32.xlu0 %v438
      %v470 = vpop.xlane.xlu0 %469
      %471 = vadd.xlane.f32.xlu0 %v440
      %v472 = vpop.xlane.xlu0 %471
      %473 = vadd.xlane.f32.xlu0 %v442
      %v474 = vpop.xlane.xlu0 %473
      %v475 = vrcp.pop %v444
      %v476 = vrcp.pop %v446
      %v477 = vrcp.pop %v448
      %v478 = vrcp.pop %v450
      %v479 = vrcp.pop %v452
      %v480 = vrcp.pop %v454
      %v481 = vrcp.pop %v456
      %v482 = vrcp.pop %v458
      %v483 = vrcp.pop %v460
      %v484 = vrcp.pop %v462
      %v485 = vrcp.pop %v464
      %v486 = vrcp.pop %v466
      %v487 = vrcp.pop %v468
      %v488 = vrcp.pop %v470
      %v489 = vrcp.pop %v472
      %v490 = vrcp.pop %v474
      %v491 = vmul.f32 %v412, %v475
      %v492 = vmul.f32 %v414, %v476
      %v493 = vmul.f32 %v416, %v477
      %v494 = vmul.f32 %v418, %v478
      %v495 = vmul.f32 %v420, %v479
      %v496 = vmul.f32 %v422, %v480
      %v497 = vmul.f32 %v424, %v481
      %v498 = vmul.f32 %v426, %v482
      %v499 = vmul.f32 %v428, %v483
      %v500 = vmul.f32 %v430, %v484
      %v501 = vmul.f32 %v432, %v485
      %v502 = vmul.f32 %v434, %v486
      %v503 = vmul.f32 %v436, %v487
      %v504 = vmul.f32 %v438, %v488
      %v505 = vmul.f32 %v440, %v489
      %v506 = vmul.f32 %v442, %v490
      %v507 = vpack.c.bf16 %v492, %v491
      %v508 = vpack.c.bf16 %v494, %v493
      %v509 = vpack.c.bf16 %v496, %v495
      %v510 = vpack.c.bf16 %v498, %v497
      %v511 = vpack.c.bf16 %v500, %v499
      %v512 = vpack.c.bf16 %v502, %v501
      %v513 = vpack.c.bf16 %v504, %v503
      %v514 = vpack.c.bf16 %v506, %v505
      %v531 = vunpack.c.l.b16 %v199
      %v532 = vunpack.c.l.b16 %v200
      %v533 = vunpack.c.l.b16 %v201
      %v534 = vunpack.c.l.b16 %v202
      %v535 = vunpack.c.l.b16 %v203
      %v536 = vunpack.c.l.b16 %v204
      %v537 = vunpack.c.l.b16 %v205
      %v538 = vunpack.c.l.b16 %v206
      %v539 = vunpack.c.l.b16 %v207
      %v540 = vunpack.c.l.b16 %v208
      %v541 = vunpack.c.l.b16 %v209
      %v542 = vunpack.c.l.b16 %v210
      %v543 = vunpack.c.l.b16 %v211
      %v544 = vunpack.c.l.b16 %v212
      %v545 = vunpack.c.l.b16 %v213
      %v546 = vunpack.c.l.b16 %v214
      %v547 = vpack.c.b16 %v532, %v531
      %v548 = vpack.c.b16 %v534, %v533
      %v549 = vpack.c.b16 %v536, %v535
      %v550 = vpack.c.b16 %v538, %v537
      %v551 = vpack.c.b16 %v540, %v539
      %v552 = vpack.c.b16 %v542, %v541
      %v553 = vpack.c.b16 %v544, %v543
      %v554 = vpack.c.b16 %v546, %v545
      %563 = vmatpush.bf16.msra.mxu0 %v554
      %564 = vmatpush.bf16.msra.mxu0 %v553
      %565 = vmatpush.bf16.msra.mxu0 %v552
      %566 = vmatpush.bf16.msra.mxu0 %v551
      %567 = vmatpush.bf16.msra.mxu0 %v550
      %568 = vmatpush.bf16.msra.mxu0 %v549
      %569 = vmatpush.bf16.msra.mxu0 %v548
      %570 = vmatpush.bf16.msra.mxu0 %v547
      %571 = vmatmul.bf16.gmra.mxu0 %v507
      %v572 = vpop.f32.mrf.mxu0
      %v573 = vadd.f32 0.0, %v572
      %v574 = vpop.f32.mrf.mxu0
      %v575 = vadd.f32 0.0, %v574
      %576 = vmatmul.bf16.gmra.mxu0 %v508
      %v577 = vpop.f32.mrf.mxu0
      %v578 = vadd.f32 0.0, %v577
      %v579 = vpop.f32.mrf.mxu0
      %v580 = vadd.f32 0.0, %v579
      %581 = vmatmul.bf16.gmra.mxu0 %v509
      %v582 = vpop.f32.mrf.mxu0
      %v583 = vadd.f32 0.0, %v582
      %v584 = vpop.f32.mrf.mxu0
      %v585 = vadd.f32 0.0, %v584
      %586 = vmatmul.bf16.gmra.mxu0 %v510
      %v587 = vpop.f32.mrf.mxu0
      %v588 = vadd.f32 0.0, %v587
      %v589 = vpop.f32.mrf.mxu0
      %v590 = vadd.f32 0.0, %v589
      %591 = vmatmul.bf16.gmra.mxu0 %v511
      %v592 = vpop.f32.mrf.mxu0
      %v593 = vadd.f32 0.0, %v592
      %v594 = vpop.f32.mrf.mxu0
      %v595 = vadd.f32 0.0, %v594
      %596 = vmatmul.bf16.gmra.mxu0 %v512
      %v597 = vpop.f32.mrf.mxu0
      %v598 = vadd.f32 0.0, %v597
      %v599 = vpop.f32.mrf.mxu0
      %v600 = vadd.f32 0.0, %v599
      %601 = vmatmul.bf16.gmra.mxu0 %v513
      %v602 = vpop.f32.mrf.mxu0
      %v603 = vadd.f32 0.0, %v602
      %v604 = vpop.f32.mrf.mxu0
      %v605 = vadd.f32 0.0, %v604
      %606 = vmatmul.bf16.gmra.mxu0 %v514
      %v607 = vpop.f32.mrf.mxu0
      %v608 = vadd.f32 0.0, %v607
      %v609 = vpop.f32.mrf.mxu0
      %v610 = vadd.f32 0.0, %v609
      %611 = vdwg.mxu0
      %v612 = vpack.c.bf16 %v573, %v573
      %v613 = vpack.c.bf16 %v575, %v575
      %v614 = vpack.c.bf16 %v578, %v578
      %v615 = vpack.c.bf16 %v580, %v580
      %v616 = vpack.c.bf16 %v583, %v583
      %v617 = vpack.c.bf16 %v585, %v585
      %v618 = vpack.c.bf16 %v588, %v588
      %v619 = vpack.c.bf16 %v590, %v590
      %v620 = vpack.c.bf16 %v593, %v593
      %v621 = vpack.c.bf16 %v595, %v595
      %v622 = vpack.c.bf16 %v598, %v598
      %v623 = vpack.c.bf16 %v600, %v600
      %v624 = vpack.c.bf16 %v603, %v603
      %v625 = vpack.c.bf16 %v605, %v605
      %v626 = vpack.c.bf16 %v608, %v608
      %v627 = vpack.c.bf16 %v610, %v610
      %628 = vst [vmem:[%s164] sm:$0xf] %v612
      %629 = vst [vmem:[%s164 + $0x8] sm:$0xf] %v613
      %630 = vst [vmem:[%s164 + $0x10] sm:$0xf] %v614
      %631 = vst [vmem:[%s164 + $0x18] sm:$0xf] %v615
      %632 = vst [vmem:[%s164 + $0x20] sm:$0xf] %v616
      %633 = vst [vmem:[%s164 + $0x28] sm:$0xf] %v617
      %634 = vst [vmem:[%s164 + $0x30] sm:$0xf] %v618
      %635 = vst [vmem:[%s164 + $0x38] sm:$0xf] %v619
      %636 = vst [vmem:[%s164 + $0x40] sm:$0xf] %v620
      %637 = vst [vmem:[%s164 + $0x48] sm:$0xf] %v621
      %638 = vst [vmem:[%s164 + $0x50] sm:$0xf] %v622
      %639 = vst [vmem:[%s164 + $0x58] sm:$0xf] %v623
      %640 = vst [vmem:[%s164 + $0x60] sm:$0xf] %v624
      %641 = vst [vmem:[%s164 + $0x68] sm:$0xf] %v625
      %642 = vst [vmem:[%s164 + $0x70] sm:$0xf] %v626
      %643 = vst [vmem:[%s164 + $0x78] sm:$0xf] %v627
      %v644 = vld [vmem:[%s154 + $0x4] sm:$0xf]
      %v645 = vld [vmem:[%s154 + $0x1c] sm:$0xf]
      %v646 = vld [vmem:[%s154 + $0x34] sm:$0xf]
      %v647 = vld [vmem:[%s154 + $0x4c] sm:$0xf]
      %v648 = vld [vmem:[%s154 + $0x64] sm:$0xf]
      %v649 = vld [vmem:[%s154 + $0x7c] sm:$0xf]
      %v650 = vld [vmem:[%s154 + $0x94] sm:$0xf]
      %v651 = vld [vmem:[%s154 + $0xac] sm:$0xf]
      %v652 = vld [vmem:[%s154 + $0xc4] sm:$0xf]
      %v653 = vld [vmem:[%s154 + $0xdc] sm:$0xf]
      %v654 = vld [vmem:[%s154 + $0xf4] sm:$0xf]
      %v655 = vld [vmem:[%s154 + $0x10c] sm:$0xf]
      %v656 = vld [vmem:[%s154 + $0x124] sm:$0xf]
      %v657 = vld [vmem:[%s154 + $0x13c] sm:$0xf]
      %v658 = vld [vmem:[%s154 + $0x154] sm:$0xf]
      %v659 = vld [vmem:[%s154 + $0x16c] sm:$0xf]
      %v660 = vld [vmem:[%s154 + $0xc] sm:$0xf]
      %v661 = vld [vmem:[%s154 + $0x24] sm:$0xf]
      %v662 = vld [vmem:[%s154 + $0x3c] sm:$0xf]
      %v663 = vld [vmem:[%s154 + $0x54] sm:$0xf]
      %v664 = vld [vmem:[%s154 + $0x6c] sm:$0xf]
      %v665 = vld [vmem:[%s154 + $0x84] sm:$0xf]
      %v666 = vld [vmem:[%s154 + $0x9c] sm:$0xf]
      %v667 = vld [vmem:[%s154 + $0xb4] sm:$0xf]
      %v668 = vld [vmem:[%s154 + $0xcc] sm:$0xf]
      %v669 = vld [vmem:[%s154 + $0xe4] sm:$0xf]
      %v670 = vld [vmem:[%s154 + $0xfc] sm:$0xf]
      %v671 = vld [vmem:[%s154 + $0x114] sm:$0xf]
      %v672 = vld [vmem:[%s154 + $0x12c] sm:$0xf]
      %v673 = vld [vmem:[%s154 + $0x144] sm:$0xf]
      %v674 = vld [vmem:[%s154 + $0x15c] sm:$0xf]
      %v675 = vld [vmem:[%s154 + $0x174] sm:$0xf]
      %v676 = vld [vmem:[%s154 + $0x14] sm:$0xf]
      %v677 = vld [vmem:[%s154 + $0x2c] sm:$0xf]
      %v678 = vld [vmem:[%s154 + $0x44] sm:$0xf]
      %v679 = vld [vmem:[%s154 + $0x5c] sm:$0xf]
      %v680 = vld [vmem:[%s154 + $0x74] sm:$0xf]
      %v681 = vld [vmem:[%s154 + $0x8c] sm:$0xf]
      %v682 = vld [vmem:[%s154 + $0xa4] sm:$0xf]
      %v683 = vld [vmem:[%s154 + $0xbc] sm:$0xf]
      %v684 = vld [vmem:[%s154 + $0xd4] sm:$0xf]
      %v685 = vld [vmem:[%s154 + $0xec] sm:$0xf]
      %v686 = vld [vmem:[%s154 + $0x104] sm:$0xf]
      %v687 = vld [vmem:[%s154 + $0x11c] sm:$0xf]
      %v688 = vld [vmem:[%s154 + $0x134] sm:$0xf]
      %v689 = vld [vmem:[%s154 + $0x14c] sm:$0xf]
      %v690 = vld [vmem:[%s154 + $0x164] sm:$0xf]
      %v691 = vld [vmem:[%s154 + $0x17c] sm:$0xf]
      %v708 = vunpack.c.l.b16 %v644
      %v709 = vunpack.c.l.b16 %v645
      %v710 = vunpack.c.l.b16 %v646
      %v711 = vunpack.c.l.b16 %v647
      %v712 = vunpack.c.l.b16 %v648
      %v713 = vunpack.c.l.b16 %v649
      %v714 = vunpack.c.l.b16 %v650
      %v715 = vunpack.c.l.b16 %v651
      %v716 = vunpack.c.l.b16 %v652
      %v717 = vunpack.c.l.b16 %v653
      %v718 = vunpack.c.l.b16 %v654
      %v719 = vunpack.c.l.b16 %v655
      %v720 = vunpack.c.l.b16 %v656
      %v721 = vunpack.c.l.b16 %v657
      %v722 = vunpack.c.l.b16 %v658
      %v723 = vunpack.c.l.b16 %v659
      %v724 = vpack.c.b16 %v709, %v708
      %v725 = vpack.c.b16 %v711, %v710
      %v726 = vpack.c.b16 %v713, %v712
      %v727 = vpack.c.b16 %v715, %v714
      %v728 = vpack.c.b16 %v717, %v716
      %v729 = vpack.c.b16 %v719, %v718
      %v730 = vpack.c.b16 %v721, %v720
      %v731 = vpack.c.b16 %v723, %v722
      %v756 = vunpack.c.l.b16 %v660
      %v757 = vunpack.c.l.b16 %v661
      %v758 = vunpack.c.l.b16 %v662
      %v759 = vunpack.c.l.b16 %v663
      %v760 = vunpack.c.l.b16 %v664
      %v761 = vunpack.c.l.b16 %v665
      %v762 = vunpack.c.l.b16 %v666
      %v763 = vunpack.c.l.b16 %v667
      %v764 = vunpack.c.l.b16 %v668
      %v765 = vunpack.c.l.b16 %v669
      %v766 = vunpack.c.l.b16 %v670
      %v767 = vunpack.c.l.b16 %v671
      %v768 = vunpack.c.l.b16 %v672
      %v769 = vunpack.c.l.b16 %v673
      %v770 = vunpack.c.l.b16 %v674
      %v771 = vunpack.c.l.b16 %v675
      %v772 = vpack.c.b16 %v757, %v756
      %v773 = vpack.c.b16 %v759, %v758
      %v774 = vpack.c.b16 %v761, %v760
      %v775 = vpack.c.b16 %v763, %v762
      %v776 = vpack.c.b16 %v765, %v764
      %v777 = vpack.c.b16 %v767, %v766
      %v778 = vpack.c.b16 %v769, %v768
      %v779 = vpack.c.b16 %v771, %v770
      %788 = vmatpush.bf16.xpose.msra.mxu0 %v779
      %789 = vmatpush.bf16.xpose.msra.mxu0 %v778
      %790 = vmatpush.bf16.xpose.msra.mxu0 %v777
      %791 = vmatpush.bf16.xpose.msra.mxu0 %v776
      %792 = vmatpush.bf16.xpose.msra.mxu0 %v775
      %793 = vmatpush.bf16.xpose.msra.mxu0 %v774
      %794 = vmatpush.bf16.xpose.msra.mxu0 %v773
      %795 = vmatpush.bf16.xpose.msra.mxu0 %v772
      %796 = vmatmul.bf16.gmra.mxu0 %v724
      %v797 = vpop.f32.mrf.mxu0
      %v798 = vadd.f32 %v216, %v797
      %v799 = vpop.f32.mrf.mxu0
      %v800 = vadd.f32 %v216, %v799
      %801 = vmatmul.bf16.gmra.mxu0 %v725
      %v802 = vpop.f32.mrf.mxu0
      %v803 = vadd.f32 %v216, %v802
      %v804 = vpop.f32.mrf.mxu0
      %v805 = vadd.f32 %v216, %v804
      %806 = vmatmul.bf16.gmra.mxu0 %v726
      %v807 = vpop.f32.mrf.mxu0
      %v808 = vadd.f32 %v216, %v807
      %v809 = vpop.f32.mrf.mxu0
      %v810 = vadd.f32 %v216, %v809
      %811 = vmatmul.bf16.gmra.mxu0 %v727
      %v812 = vpop.f32.mrf.mxu0
      %v813 = vadd.f32 %v216, %v812
      %v814 = vpop.f32.mrf.mxu0
      %v815 = vadd.f32 %v216, %v814
      %816 = vmatmul.bf16.gmra.mxu0 %v728
      %v817 = vpop.f32.mrf.mxu0
      %v818 = vadd.f32 %v216, %v817
      %v819 = vpop.f32.mrf.mxu0
      %v820 = vadd.f32 %v216, %v819
      %821 = vmatmul.bf16.gmra.mxu0 %v729
      %v822 = vpop.f32.mrf.mxu0
      %v823 = vadd.f32 %v216, %v822
      %v824 = vpop.f32.mrf.mxu0
      %v825 = vadd.f32 %v216, %v824
      %826 = vmatmul.bf16.gmra.mxu0 %v730
      %v827 = vpop.f32.mrf.mxu0
      %v828 = vadd.f32 %v216, %v827
      %v829 = vpop.f32.mrf.mxu0
      %v830 = vadd.f32 %v216, %v829
      %831 = vmatmul.bf16.gmra.mxu0 %v731
      %v832 = vpop.f32.mrf.mxu0
      %v833 = vadd.f32 %v216, %v832
      %v834 = vpop.f32.mrf.mxu0
      %v835 = vadd.f32 %v216, %v834
      %836 = vdwg.mxu0
      %837 = vmax.xlane.f32.xlu0 %v798
      %v838 = vpop.xlane.xlu0 %837
      %839 = vmax.xlane.f32.xlu0 %v800
      %v840 = vpop.xlane.xlu0 %839
      %841 = vmax.xlane.f32.xlu0 %v803
      %v842 = vpop.xlane.xlu0 %841
      %843 = vmax.xlane.f32.xlu0 %v805
      %v844 = vpop.xlane.xlu0 %843
      %845 = vmax.xlane.f32.xlu0 %v808
      %v846 = vpop.xlane.xlu0 %845
      %847 = vmax.xlane.f32.xlu0 %v810
      %v848 = vpop.xlane.xlu0 %847
      %849 = vmax.xlane.f32.xlu0 %v813
      %v850 = vpop.xlane.xlu0 %849
      %851 = vmax.xlane.f32.xlu0 %v815
      %v852 = vpop.xlane.xlu0 %851
      %853 = vmax.xlane.f32.xlu0 %v818
      %v854 = vpop.xlane.xlu0 %853
      %855 = vmax.xlane.f32.xlu0 %v820
      %v856 = vpop.xlane.xlu0 %855
      %857 = vmax.xlane.f32.xlu0 %v823
      %v858 = vpop.xlane.xlu0 %857
      %859 = vmax.xlane.f32.xlu0 %v825
      %v860 = vpop.xlane.xlu0 %859
      %861 = vmax.xlane.f32.xlu0 %v828
      %v862 = vpop.xlane.xlu0 %861
      %863 = vmax.xlane.f32.xlu0 %v830
      %v864 = vpop.xlane.xlu0 %863
      %865 = vmax.xlane.f32.xlu0 %v833
      %v866 = vpop.xlane.xlu0 %865
      %867 = vmax.xlane.f32.xlu0 %v835
      %v868 = vpop.xlane.xlu0 %867
      %v869 = vsub.f32 %v798, %v838
      %v870 = vsub.f32 %v800, %v840
      %v871 = vsub.f32 %v803, %v842
      %v872 = vsub.f32 %v805, %v844
      %v873 = vsub.f32 %v808, %v846
      %v874 = vsub.f32 %v810, %v848
      %v875 = vsub.f32 %v813, %v850
      %v876 = vsub.f32 %v815, %v852
      %v877 = vsub.f32 %v818, %v854
      %v878 = vsub.f32 %v820, %v856
      %v879 = vsub.f32 %v823, %v858
      %v880 = vsub.f32 %v825, %v860
      %v881 = vsub.f32 %v828, %v862
      %v882 = vsub.f32 %v830, %v864
      %v883 = vsub.f32 %v833, %v866
      %v884 = vsub.f32 %v835, %v868
      %v885 = vmul.f32 %v869, 1.442695
      %v886 = vpow.pop %v885
      %v887 = vmul.f32 %v870, 1.442695
      %v888 = vpow.pop %v887
      %v889 = vmul.f32 %v871, 1.442695
      %v890 = vpow.pop %v889
      %v891 = vmul.f32 %v872, 1.442695
      %v892 = vpow.pop %v891
      %v893 = vmul.f32 %v873, 1.442695
      %v894 = vpow.pop %v893
      %v895 = vmul.f32 %v874, 1.442695
      %v896 = vpow.pop %v895
      %v897 = vmul.f32 %v875, 1.442695
      %v898 = vpow.pop %v897
      %v899 = vmul.f32 %v876, 1.442695
      %v900 = vpow.pop %v899
      %v901 = vmul.f32 %v877, 1.442695
      %v902 = vpow.pop %v901
      %v903 = vmul.f32 %v878, 1.442695
      %v904 = vpow.pop %v903
      %v905 = vmul.f32 %v879, 1.442695
      %v906 = vpow.pop %v905
      %v907 = vmul.f32 %v880, 1.442695
      %v908 = vpow.pop %v907
      %v909 = vmul.f32 %v881, 1.442695
      %v910 = vpow.pop %v909
      %v911 = vmul.f32 %v882, 1.442695
      %v912 = vpow.pop %v911
      %v913 = vmul.f32 %v883, 1.442695
      %v914 = vpow.pop %v913
      %v915 = vmul.f32 %v884, 1.442695
      %v916 = vpow.pop %v915
      %917 = vadd.xlane.f32.xlu0 %v886
      %v918 = vpop.xlane.xlu0 %917
      %919 = vadd.xlane.f32.xlu0 %v888
      %v920 = vpop.xlane.xlu0 %919
      %921 = vadd.xlane.f32.xlu0 %v890
      %v922 = vpop.xlane.xlu0 %921
      %923 = vadd.xlane.f32.xlu0 %v892
      %v924 = vpop.xlane.xlu0 %923
      %925 = vadd.xlane.f32.xlu0 %v894
      %v926 = vpop.xlane.xlu0 %925
      %927 = vadd.xlane.f32.xlu0 %v896
      %v928 = vpop.xlane.xlu0 %927
      %929 = vadd.xlane.f32.xlu0 %v898
      %v930 = vpop.xlane.xlu0 %929
      %931 = vadd.xlane.f32.xlu0 %v900
      %v932 = vpop.xlane.xlu0 %931
      %933 = vadd.xlane.f32.xlu0 %v902
      %v934 = vpop.xlane.xlu0 %933
      %935 = vadd.xlane.f32.xlu0 %v904
      %v936 = vpop.xlane.xlu0 %935
      %937 = vadd.xlane.f32.xlu0 %v906
      %v938 = vpop.xlane.xlu0 %937
      %939 = vadd.xlane.f32.xlu0 %v908
      %v940 = vpop.xlane.xlu0 %939
      %941 = vadd.xlane.f32.xlu0 %v910
      %v942 = vpop.xlane.xlu0 %941
      %943 = vadd.xlane.f32.xlu0 %v912
      %v944 = vpop.xlane.xlu0 %943
      %945 = vadd.xlane.f32.xlu0 %v914
      %v946 = vpop.xlane.xlu0 %945
      %947 = vadd.xlane.f32.xlu0 %v916
      %v948 = vpop.xlane.xlu0 %947
      %v949 = vrcp.pop %v918
      %v950 = vrcp.pop %v920
      %v951 = vrcp.pop %v922
      %v952 = vrcp.pop %v924
      %v953 = vrcp.pop %v926
      %v954 = vrcp.pop %v928
      %v955 = vrcp.pop %v930
      %v956 = vrcp.pop %v932
      %v957 = vrcp.pop %v934
      %v958 = vrcp.pop %v936
      %v959 = vrcp.pop %v938
      %v960 = vrcp.pop %v940
      %v961 = vrcp.pop %v942
      %v962 = vrcp.pop %v944
      %v963 = vrcp.pop %v946
      %v964 = vrcp.pop %v948
      %v965 = vmul.f32 %v886, %v949
      %v966 = vmul.f32 %v888, %v950
      %v967 = vmul.f32 %v890, %v951
      %v968 = vmul.f32 %v892, %v952
      %v969 = vmul.f32 %v894, %v953
      %v970 = vmul.f32 %v896, %v954
      %v971 = vmul.f32 %v898, %v955
      %v972 = vmul.f32 %v900, %v956
      %v973 = vmul.f32 %v902, %v957
      %v974 = vmul.f32 %v904, %v958
      %v975 = vmul.f32 %v906, %v959
      %v976 = vmul.f32 %v908, %v960
      %v977 = vmul.f32 %v910, %v961
      %v978 = vmul.f32 %v912, %v962
      %v979 = vmul.f32 %v914, %v963
      %v980 = vmul.f32 %v916, %v964
      %v981 = vpack.c.bf16 %v966, %v965
      %v982 = vpack.c.bf16 %v968, %v967
      %v983 = vpack.c.bf16 %v970, %v969
      %v984 = vpack.c.bf16 %v972, %v971
      %v985 = vpack.c.bf16 %v974, %v973
      %v986 = vpack.c.bf16 %v976, %v975
      %v987 = vpack.c.bf16 %v978, %v977
      %v988 = vpack.c.bf16 %v980, %v979
      %v1005 = vunpack.c.l.b16 %v676
      %v1006 = vunpack.c.l.b16 %v677
      %v1007 = vunpack.c.l.b16 %v678
      %v1008 = vunpack.c.l.b16 %v679
      %v1009 = vunpack.c.l.b16 %v680
      %v1010 = vunpack.c.l.b16 %v681
      %v1011 = vunpack.c.l.b16 %v682
      %v1012 = vunpack.c.l.b16 %v683
      %v1013 = vunpack.c.l.b16 %v684
      %v1014 = vunpack.c.l.b16 %v685
      %v1015 = vunpack.c.l.b16 %v686
      %v1016 = vunpack.c.l.b16 %v687
      %v1017 = vunpack.c.l.b16 %v688
      %v1018 = vunpack.c.l.b16 %v689
      %v1019 = vunpack.c.l.b16 %v690
      %v1020 = vunpack.c.l.b16 %v691
      %v1021 = vpack.c.b16 %v1006, %v1005
      %v1022 = vpack.c.b16 %v1008, %v1007
      %v1023 = vpack.c.b16 %v1010, %v1009
      %v1024 = vpack.c.b16 %v1012, %v1011
      %v1025 = vpack.c.b16 %v1014, %v1013
      %v1026 = vpack.c.b16 %v1016, %v1015
      %v1027 = vpack.c.b16 %v1018, %v1017
      %v1028 = vpack.c.b16 %v1020, %v1019
      %1037 = vmatpush.bf16.msra.mxu0 %v1028
      %1038 = vmatpush.bf16.msra.mxu0 %v1027
      %1039 = vmatpush.bf16.msra.mxu0 %v1026
      %1040 = vmatpush.bf16.msra.mxu0 %v1025
      %1041 = vmatpush.bf16.msra.mxu0 %v1024
      %1042 = vmatpush.bf16.msra.mxu0 %v1023
      %1043 = vmatpush.bf16.msra.mxu0 %v1022
      %1044 = vmatpush.bf16.msra.mxu0 %v1021
      %1045 = vmatmul.bf16.gmra.mxu0 %v981
      %v1046 = vpop.f32.mrf.mxu0
      %v1047 = vadd.f32 0.0, %v1046
      %v1048 = vpop.f32.mrf.mxu0
      %v1049 = vadd.f32 0.0, %v1048
      %1050 = vmatmul.bf16.gmra.mxu0 %v982
      %v1051 = vpop.f32.mrf.mxu0
      %v1052 = vadd.f32 0.0, %v1051
      %v1053 = vpop.f32.mrf.mxu0
      %v1054 = vadd.f32 0.0, %v1053
      %1055 = vmatmul.bf16.gmra.mxu0 %v983
      %v1056 = vpop.f32.mrf.mxu0
      %v1057 = vadd.f32 0.0, %v1056
      %v1058 = vpop.f32.mrf.mxu0
      %v1059 = vadd.f32 0.0, %v1058
      %1060 = vmatmul.bf16.gmra.mxu0 %v984
      %v1061 = vpop.f32.mrf.mxu0
      %v1062 = vadd.f32 0.0, %v1061
      %v1063 = vpop.f32.mrf.mxu0
      %v1064 = vadd.f32 0.0, %v1063
      %1065 = vmatmul.bf16.gmra.mxu0 %v985
      %v1066 = vpop.f32.mrf.mxu0
      %v1067 = vadd.f32 0.0, %v1066
      %v1068 = vpop.f32.mrf.mxu0
      %v1069 = vadd.f32 0.0, %v1068
      %1070 = vmatmul.bf16.gmra.mxu0 %v986
      %v1071 = vpop.f32.mrf.mxu0
      %v1072 = vadd.f32 0.0, %v1071
      %v1073 = vpop.f32.mrf.mxu0
      %v1074 = vadd.f32 0.0, %v1073
      %1075 = vmatmul.bf16.gmra.mxu0 %v987
      %v1076 = vpop.f32.mrf.mxu0
      %v1077 = vadd.f32 0.0, %v1076
      %v1078 = vpop.f32.mrf.mxu0
      %v1079 = vadd.f32 0.0, %v1078
      %1080 = vmatmul.bf16.gmra.mxu0 %v988
      %v1081 = vpop.f32.mrf.mxu0
      %v1082 = vadd.f32 0.0, %v1081
      %v1083 = vpop.f32.mrf.mxu0
      %v1084 = vadd.f32 0.0, %v1083
      %1085 = vdwg.mxu0
      %v1086 = vpack.c.bf16 %v1047, %v1047
      %v1087 = vpack.c.bf16 %v1049, %v1049
      %v1088 = vpack.c.bf16 %v1052, %v1052
      %v1089 = vpack.c.bf16 %v1054, %v1054
      %v1090 = vpack.c.bf16 %v1057, %v1057
      %v1091 = vpack.c.bf16 %v1059, %v1059
      %v1092 = vpack.c.bf16 %v1062, %v1062
      %v1093 = vpack.c.bf16 %v1064, %v1064
      %v1094 = vpack.c.bf16 %v1067, %v1067
      %v1095 = vpack.c.bf16 %v1069, %v1069
      %v1096 = vpack.c.bf16 %v1072, %v1072
      %v1097 = vpack.c.bf16 %v1074, %v1074
      %v1098 = vpack.c.bf16 %v1077, %v1077
      %v1099 = vpack.c.bf16 %v1079, %v1079
      %v1100 = vpack.c.bf16 %v1082, %v1082
      %v1101 = vpack.c.bf16 %v1084, %v1084
      %1102 = vst [vmem:[%s164 + $0x4] sm:$0xf] %v1086
      %1103 = vst [vmem:[%s164 + $0xc] sm:$0xf] %v1087
      %1104 = vst [vmem:[%s164 + $0x14] sm:$0xf] %v1088
      %1105 = vst [vmem:[%s164 + $0x1c] sm:$0xf] %v1089
      %1106 = vst [vmem:[%s164 + $0x24] sm:$0xf] %v1090
      %1107 = vst [vmem:[%s164 + $0x2c] sm:$0xf] %v1091
      %1108 = vst [vmem:[%s164 + $0x34] sm:$0xf] %v1092
      %1109 = vst [vmem:[%s164 + $0x3c] sm:$0xf] %v1093
      %1110 = vst [vmem:[%s164 + $0x44] sm:$0xf] %v1094
      %1111 = vst [vmem:[%s164 + $0x4c] sm:$0xf] %v1095
      %1112 = vst [vmem:[%s164 + $0x54] sm:$0xf] %v1096
      %1113 = vst [vmem:[%s164 + $0x5c] sm:$0xf] %v1097
      %1114 = vst [vmem:[%s164 + $0x64] sm:$0xf] %v1098
      %1115 = vst [vmem:[%s164 + $0x6c] sm:$0xf] %v1099
      %1116 = vst [vmem:[%s164 + $0x74] sm:$0xf] %v1100
      %1117 = vst [vmem:[%s164 + $0x7c] sm:$0xf] %v1101
      %s1118 = smul.u32 16, %s13
      %p1119 = scmp.lt.s32.totalorder %s1118, 31
      %s1120 = scalar_select %p1119, %s1118, 31
      %s1121 = smul.addr %s1120, 2
      %s1122 = smul.addr %s1121, 4
      %s1123 = scalar_lea.vmem %s2, %s1122
      // Predicated region
      $region29: #{bert_base_uncased_forward.12} parent=27 // pred_check
        %p1124 = pneg %p83
      $region30: #{bert_base_uncased_forward.12} parent=27 // pred_check_branch
        %1126 = sbr.rel (%p1124) target = $region32
      $region31: #{bert_base_uncased_forward.12} parent=27 // pred_region
        %s1127 = smul.u32 16, %s13
      $region32: #{bert_base_uncased_forward.12} parent=27 // pred_fallthru
        _
    $region28: #{bert_base_uncased_forward.12} parent=5 // pred_fallthru
      _
    %p1128 = scmp.le.s32.totalorder 2, %s8
    // Predicated region
    $region33: #{bert_base_uncased_forward.12} parent=5 // pred_check
      %p1129 = pneg %p1128
    $region34: #{bert_base_uncased_forward.12} parent=5 // pred_check_branch
      %1131 = sbr.rel (%p1129) target = $region36
    $region35: #{bert_base_uncased_forward.12} parent=5 // pred_region
      %s1132 = ssub.s32 %s8, 2
      // Predicated region
      $region37: #{bert_base_uncased_forward.12} parent=35 // pred_check
        %p1133 = pneg %p89
      $region38: #{bert_base_uncased_forward.12} parent=35 // pred_check_branch
        %1135 = sbr.rel (%p1133) target = $region40
      $region39: #{bert_base_uncased_forward.12} parent=35 // pred_region
        %s1136 = smul.u32 16, %s14
        %p1137 = scmp.lt.s32.totalorder %s1136, 31
        %s1138 = scalar_select %p1137, %s1136, 31
        %s1139 = smul.addr %s1138, 2
        %s1140 = smul.addr %s1139, 4
        %s1141 = scalar_lea.vmem %s2, %s1140
      $region40: #{bert_base_uncased_forward.12} parent=35 // pred_fallthru
        _
    $region36: #{bert_base_uncased_forward.12} parent=5 // pred_fallthru
      _
  $region6: #{bert_base_uncased_forward.12} parent=0 // loop_footer
    %s12 = sadd.s32 1, %s8
  $region7: #{bert_base_uncased_forward.12} parent=0 // loop_footer_branch
    %7 = sbr.rel target = $region3
  $region8: #{bert_base_uncased_forward.12} parent=0 // loop_exit
    _

// kernel: bert_base_uncased_forward.11
$region0: #{bert_base_uncased_forward.11}
  #allocation0 [shape = 'u32[]', space=smem, size = 0x4, offset = 0x4, fixed_abs, tag = 'smem constant byte address 0x4 - core index']
  #allocation1 [shape = 'u32[72,128]{1,0:T(1,128)}', space=vmem, size = 0x9000, scoped, tag = 'internal scratch']
  %s0 = inlined_call_operand.vmem [shape: bf16[256,256], index: 0, kind: input, shape index: {}]
  %s1 = inlined_call_operand.vmem [shape: bf16[256,768], index: 1, kind: input, shape index: {}]
  %s2 = inlined_call_operand.vmem [shape: f32[1,768], index: 2, kind: input, shape index: {}]
  %s3 = inlined_call_operand.vmem [shape: bf16[256,768], index: 3, kind: output, shape index: {}]
  %s4 = sld [smem:[#allocation0]]
  $region45: #{bert_base_uncased_forward.11} parent=0
    _
  %s6 = ssub.s32 1, %s4
  %s7 = scalar_select 0, %s6, %s4
  loop: start=0, step=1, limit=4
  $region2: #{bert_base_uncased_forward.11} parent=0 // loop_pre_header
    _
  $region3: #{bert_base_uncased_forward.11} parent=0 // loop_header
    %s9 = sphi 0, %s13
    %p10 = scmp.ge.s32.totalorder %s9, 4
    %s19 = sphi 0, %s21
    %s22 = sphi 0, %s19
    %s23 = sphi 0, %s22
    %s39 = sphi 0, %s23
    %s43 = sphi 0, %s43
    %s45 = sphi 0, %s43
    %s46 = sphi 0, %s45
    %s60 = sphi 0, %s46
    %s64 = sphi 0, %s64
    %s66 = sphi 0, %s64
    %s67 = sphi 0, %s66
    %s81 = sphi 0, %s67
    %s87 = sphi 0, %s89
    %s90 = sphi 0, %s87
    %s91 = sphi 0, %s90
    %s107 = sphi 0, %s91
  $region4: #{bert_base_uncased_forward.11} parent=0 // loop_header_branch
    %12 = sbr.rel (%p10) target = $region8
  $region5: #{bert_base_uncased_forward.11} parent=0 // loop_body
    %s14 = ssub.s32 %s9, 1
    %s15 = ssub.s32 %s9, 2
    %s16 = sadd.s32 %s9, 1
    %s17 = ssub.s32 %s9, %s16
    %p18 = scmp.eq.s32.totalorder %s17, 0
    %s20 = sadd.s32 %s19, 1
    %s21 = scalar_select %p18, %s19, %s20
    %p24 = pneg %p18
    %p25 = scmp.eq.s32.totalorder %s9, 1
    %p26 = por %p24, %p25
    %p27 = scmp.ne.s32.totalorder %s19, %s22
    %p28 = scmp.eq.s32.totalorder %s9, 0
    %p29 = por %p27, %p28
    %p30 = scmp.ne.s32.totalorder %s19, %s22
    %p31 = scmp.eq.s32.totalorder %s14, 1
    %p32 = por %p30, %p31
    %p33 = scmp.ne.s32.totalorder %s22, %s23
    %p34 = scmp.eq.s32.totalorder %s14, 0
    %p35 = por %p33, %p34
    %p36 = scmp.ne.s32.totalorder %s22, %s23
    %p37 = scmp.eq.s32.totalorder %s15, 1
    %p38 = por %p36, %p37
    %p40 = scmp.ne.s32.totalorder %s23, %s39
    %p41 = scmp.eq.s32.totalorder %s15, 0
    %p42 = por %p40, %p41
    %s44 = sadd.s32 %s43, 1
    %p47 = scmp.eq.s32.totalorder %s9, 1
    %p48 = scmp.ne.s32.totalorder %s43, %s45
    %p49 = scmp.eq.s32.totalorder %s9, 0
    %p50 = por %p48, %p49
    %p51 = scmp.ne.s32.totalorder %s43, %s45
    %p52 = scmp.eq.s32.totalorder %s14, 1
    %p53 = por %p51, %p52
    %p54 = scmp.ne.s32.totalorder %s45, %s46
    %p55 = scmp.eq.s32.totalorder %s14, 0
    %p56 = por %p54, %p55
    %p57 = scmp.ne.s32.totalorder %s45, %s46
    %p58 = scmp.eq.s32.totalorder %s15, 1
    %p59 = por %p57, %p58
    %p61 = scmp.ne.s32.totalorder %s46, %s60
    %p62 = scmp.eq.s32.totalorder %s15, 0
    %p63 = por %p61, %p62
    %s65 = sadd.s32 %s64, 1
    %p68 = scmp.eq.s32.totalorder %s9, 1
    %p69 = scmp.ne.s32.totalorder %s64, %s66
    %p70 = scmp.eq.s32.totalorder %s9, 0
    %p71 = por %p69, %p70
    %p72 = scmp.ne.s32.totalorder %s64, %s66
    %p73 = scmp.eq.s32.totalorder %s14, 1
    %p74 = por %p72, %p73
    %p75 = scmp.ne.s32.totalorder %s66, %s67
    %p76 = scmp.eq.s32.totalorder %s14, 0
    %p77 = por %p75, %p76
    %p78 = scmp.ne.s32.totalorder %s66, %s67
    %p79 = scmp.eq.s32.totalorder %s15, 1
    %p80 = por %p78, %p79
    %p82 = scmp.ne.s32.totalorder %s67, %s81
    %p83 = scmp.eq.s32.totalorder %s15, 0
    %p84 = por %p82, %p83
    %s85 = ssub.s32 %s9, %s16
    %p86 = scmp.eq.s32.totalorder %s85, 0
    %s88 = sadd.s32 %s87, 1
    %s89 = scalar_select %p86, %s87, %s88
    %p92 = pneg %p86
    %p93 = scmp.eq.s32.totalorder %s9, 1
    %p94 = por %p92, %p93
    %p95 = scmp.ne.s32.totalorder %s87, %s90
    %p96 = scmp.eq.s32.totalorder %s9, 0
    %p97 = por %p95, %p96
    %p98 = scmp.ne.s32.totalorder %s87, %s90
    %p99 = scmp.eq.s32.totalorder %s14, 1
    %p100 = por %p98, %p99
    %p101 = scmp.ne.s32.totalorder %s90, %s91
    %p102 = scmp.eq.s32.totalorder %s14, 0
    %p103 = por %p101, %p102
    %p104 = scmp.ne.s32.totalorder %s90, %s91
    %p105 = scmp.eq.s32.totalorder %s15, 1
    %p106 = por %p104, %p105
    %p108 = scmp.ne.s32.totalorder %s91, %s107
    %p109 = scmp.eq.s32.totalorder %s15, 0
    %p110 = por %p108, %p109
    %p111 = scmp.le.s32.totalorder 1, %s9
    %p112 = scmp.lt.s32.totalorder %s9, 3
    %p113 = pnand %p111, %p112
    %p114 = pneg %p113
    // Predicated region
    $region9: #{bert_base_uncased_forward.11} parent=5 // pred_check
      _
    $region10: #{bert_base_uncased_forward.11} parent=5 // pred_check_branch
      %116 = sbr.rel (%p113) target = $region12
    $region11: #{bert_base_uncased_forward.11} parent=5 // pred_region
      %s117 = ssub.s32 %s9, 1
      // Predicated region
      $region13: #{bert_base_uncased_forward.11} parent=11 // pred_check
        %p118 = pneg %p56
      $region14: #{bert_base_uncased_forward.11} parent=11 // pred_check_branch
        %120 = sbr.rel (%p118) target = $region16
      $region15: #{bert_base_uncased_forward.11} parent=11 // pred_region
        _
      $region16: #{bert_base_uncased_forward.11} parent=11 // pred_fallthru
        _
      // Predicated region
      $region17: #{bert_base_uncased_forward.11} parent=11 // pred_check
        %p121 = pneg %p77
      $region18: #{bert_base_uncased_forward.11} parent=11 // pred_check_branch
        %123 = sbr.rel (%p121) target = $region20
      $region19: #{bert_base_uncased_forward.11} parent=11 // pred_region
        _
      $region20: #{bert_base_uncased_forward.11} parent=11 // pred_fallthru
        _
    $region12: #{bert_base_uncased_forward.11} parent=5 // pred_fallthru
      _
    %p124 = scmp.lt.s32.totalorder %s9, 2
    // Predicated region
    $region21: #{bert_base_uncased_forward.11} parent=5 // pred_check
      %p125 = pneg %p124
    $region22: #{bert_base_uncased_forward.11} parent=5 // pred_check_branch
      %127 = sbr.rel (%p125) target = $region24
    $region23: #{bert_base_uncased_forward.11} parent=5 // pred_region
      // Predicated region
      $region25: #{bert_base_uncased_forward.11} parent=23 // pred_check
        %p128 = pneg %p29
      $region26: #{bert_base_uncased_forward.11} parent=23 // pred_check_branch
        %130 = sbr.rel (%p128) target = $region28
      $region27: #{bert_base_uncased_forward.11} parent=23 // pred_region
        %s131 = smul.u32 16, %s9
        %p132 = scmp.lt.s32.totalorder %s131, 31
        %s133 = scalar_select %p132, %s131, 31
        %s134 = smul.addr %s133, 2
        %s135 = smul.addr %s134, 4
        %s136 = scalar_lea.vmem %s0, %s135
        %s137 = smul.u32 16, %s9
      $region28: #{bert_base_uncased_forward.11} parent=23 // pred_fallthru
        _
    $region24: #{bert_base_uncased_forward.11} parent=5 // pred_fallthru
      _
    %p138 = scmp.le.s32.totalorder 1, %s9
    %p139 = scmp.lt.s32.totalorder %s9, 3
    %p140 = pnand %p138, %p139
    %p141 = pneg %p140
    // Predicated region
    $region29: #{bert_base_uncased_forward.11} parent=5 // pred_check
      _
    $region30: #{bert_base_uncased_forward.11} parent=5 // pred_check_branch
      %143 = sbr.rel (%p140) target = $region32
    $region31: #{bert_base_uncased_forward.11} parent=5 // pred_region
      %s144 = ssub.s32 %s9, 1
      %s145 = smul.u32 16, %s14
      %p146 = scmp.lt.s32.totalorder %s145, 31
      %s147 = scalar_select %p146, %s145, 31
      %s148 = smul.addr %s147, 2
      %s149 = smul.addr %s148, 4
      %s150 = scalar_lea.vmem %s0, %s149
      %p151 = pneg %p35
      %p152 = pneg %p32
      %p153 = pneg %p56
      %p154 = pneg %p53
      %p155 = pneg %p77
      %p156 = pneg %p74
      %p157 = pneg %p103
      %p158 = pneg %p100
      %s159 = smul.u32 16, %s14
      %p160 = scmp.lt.s32.totalorder %s159, 31
      %s161 = scalar_select %p160, %s159, 31
      %s162 = smul.addr %s161, 6
      %s163 = smul.addr %s162, 4
      %s164 = scalar_lea.vmem %s3, %s163
      %s165 = smul.u32 16, %s14
      %p166 = scmp.lt.s32.totalorder %s165, 31
      %s167 = scalar_select %p166, %s165, 31
      %s168 = smul.addr %s167, 2
      %s169 = smul.addr %s168, 4
      %s170 = scalar_lea.vmem %s0, %s169
      %s171 = smul.u32 16, %s14
      %s172 = smul.u32 16, %s14
      %p173 = scmp.lt.s32.totalorder %s172, 31
      %s174 = scalar_select %p173, %s172, 31
      %s175 = smul.addr %s174, 6
      %s176 = smul.addr %s175, 4
      %s177 = scalar_lea.vmem %s3, %s176
      %s178 = smul.u32 16, %s14
      %v179 = vld [vmem:[%s170] sm:$0xff]
      %v180 = vld [vmem:[%s170 + $0x8] sm:$0xff]
      %v181 = vld [vmem:[%s170 + $0x10] sm:$0xff]
      %v182 = vld [vmem:[%s170 + $0x18] sm:$0xff]
      %v183 = vld [vmem:[%s170 + $0x20] sm:$0xff]
      %v184 = vld [vmem:[%s170 + $0x28] sm:$0xff]
      %v185 = vld [vmem:[%s170 + $0x30] sm:$0xff]
      %v186 = vld [vmem:[%s170 + $0x38] sm:$0xff]
      %v187 = vld [vmem:[%s170 + $0x40] sm:$0xff]
      %v188 = vld [vmem:[%s170 + $0x48] sm:$0xff]
      %v189 = vld [vmem:[%s170 + $0x50] sm:$0xff]
      %v190 = vld [vmem:[%s170 + $0x58] sm:$0xff]
      %v191 = vld [vmem:[%s170 + $0x60] sm:$0xff]
      %v192 = vld [vmem:[%s170 + $0x68] sm:$0xff]
      %v193 = vld [vmem:[%s170 + $0x70] sm:$0xff]
      %v194 = vld [vmem:[%s170 + $0x78] sm:$0xff]
      %v195 = vld [vmem:[%s1] sm:$0xff]
      %v196 = vld [vmem:[%s1 + $0x8] sm:$0xff]
      %v197 = vld [vmem:[%s1 + $0x10] sm:$0xff]
      %v198 = vld [vmem:[%s1 + $0x18] sm:$0xff]
      %v199 = vld [vmem:[%s1 + $0x20] sm:$0xff]
      %v200 = vld [vmem:[%s1 + $0x28] sm:$0xff]
      %v201 = vld [vmem:[%s1 + $0x30] sm:$0xff]
      %v202 = vld [vmem:[%s1 + $0x38] sm:$0xff]
      %v203 = vld [vmem:[%s1 + $0x40] sm:$0xff]
      %v204 = vld [vmem:[%s1 + $0x48] sm:$0xff]
      %v205 = vld [vmem:[%s1 + $0x50] sm:$0xff]
      %v206 = vld [vmem:[%s1 + $0x58] sm:$0xff]
      %v207 = vld [vmem:[%s1 + $0x60] sm:$0xff]
      %v208 = vld [vmem:[%s1 + $0x68] sm:$0xff]
      %v209 = vld [vmem:[%s1 + $0x70] sm:$0xff]
      %v210 = vld [vmem:[%s1 + $0x78] sm:$0xff]
      %v211 = vld [vmem:[%s1 + $0x80] sm:$0xff]
      %v212 = vld [vmem:[%s1 + $0x88] sm:$0xff]
      %v213 = vld [vmem:[%s1 + $0x90] sm:$0xff]
      %v214 = vld [vmem:[%s1 + $0x98] sm:$0xff]
      %v215 = vld [vmem:[%s1 + $0xa0] sm:$0xff]
      %v216 = vld [vmem:[%s1 + $0xa8] sm:$0xff]
      %v217 = vld [vmem:[%s1 + $0xb0] sm:$0xff]
      %v218 = vld [vmem:[%s1 + $0xb8] sm:$0xff]
      %v219 = vld [vmem:[%s1 + $0xc0] sm:$0xff]
      %v220 = vld [vmem:[%s1 + $0xc8] sm:$0xff]
      %v221 = vld [vmem:[%s1 + $0xd0] sm:$0xff]
      %v222 = vld [vmem:[%s1 + $0xd8] sm:$0xff]
      %v223 = vld [vmem:[%s1 + $0xe0] sm:$0xff]
      %v224 = vld [vmem:[%s1 + $0xe8] sm:$0xff]
      %v225 = vld [vmem:[%s1 + $0xf0] sm:$0xff]
      %v226 = vld [vmem:[%s1 + $0xf8] sm:$0xff]
      %v227 = vld [vmem:[%s1 + $0x100] sm:$0xff]
      %v228 = vld [vmem:[%s1 + $0x108] sm:$0xff]
      %v229 = vld [vmem:[%s1 + $0x110] sm:$0xff]
      %v230 = vld [vmem:[%s1 + $0x118] sm:$0xff]
      %v231 = vld [vmem:[%s1 + $0x120] sm:$0xff]
      %v232 = vld [vmem:[%s1 + $0x128] sm:$0xff]
      %v233 = vld [vmem:[%s1 + $0x130] sm:$0xff]
      %v234 = vld [vmem:[%s1 + $0x138] sm:$0xff]
      %v235 = vld [vmem:[%s1 + $0x140] sm:$0xff]
      %v236 = vld [vmem:[%s1 + $0x148] sm:$0xff]
      %v237 = vld [vmem:[%s1 + $0x150] sm:$0xff]
      %v238 = vld [vmem:[%s1 + $0x158] sm:$0xff]
      %v239 = vld [vmem:[%s1 + $0x160] sm:$0xff]
      %v240 = vld [vmem:[%s1 + $0x168] sm:$0xff]
      %v241 = vld [vmem:[%s1 + $0x170] sm:$0xff]
      %v242 = vld [vmem:[%s1 + $0x178] sm:$0xff]
      %v243 = vld [vmem:[%s1 + $0x180] sm:$0xff]
      %v244 = vld [vmem:[%s1 + $0x188] sm:$0xff]
      %v245 = vld [vmem:[%s1 + $0x190] sm:$0xff]
      %v246 = vld [vmem:[%s1 + $0x198] sm:$0xff]
      %v247 = vld [vmem:[%s1 + $0x1a0] sm:$0xff]
      %v248 = vld [vmem:[%s1 + $0x1a8] sm:$0xff]
      %v249 = vld [vmem:[%s1 + $0x1b0] sm:$0xff]
      %v250 = vld [vmem:[%s1 + $0x1b8] sm:$0xff]
      %v251 = vld [vmem:[%s1 + $0x1c0] sm:$0xff]
      %v252 = vld [vmem:[%s1 + $0x1c8] sm:$0xff]
      %v253 = vld [vmem:[%s1 + $0x1d0] sm:$0xff]
      %v254 = vld [vmem:[%s1 + $0x1d8] sm:$0xff]
      %v255 = vld [vmem:[%s1 + $0x1e0] sm:$0xff]
      %v256 = vld [vmem:[%s1 + $0x1e8] sm:$0xff]
      %v257 = vld [vmem:[%s1 + $0x1f0] sm:$0xff]
      %v258 = vld [vmem:[%s1 + $0x1f8] sm:$0xff]
      %v259 = vld [vmem:[%s1 + $0x200] sm:$0xff]
      %v260 = vld [vmem:[%s1 + $0x208] sm:$0xff]
      %v261 = vld [vmem:[%s1 + $0x210] sm:$0xff]
      %v262 = vld [vmem:[%s1 + $0x218] sm:$0xff]
      %v263 = vld [vmem:[%s1 + $0x220] sm:$0xff]
      %v264 = vld [vmem:[%s1 + $0x228] sm:$0xff]
      %v265 = vld [vmem:[%s1 + $0x230] sm:$0xff]
      %v266 = vld [vmem:[%s1 + $0x238] sm:$0xff]
      %v267 = vld [vmem:[%s1 + $0x240] sm:$0xff]
      %v268 = vld [vmem:[%s1 + $0x248] sm:$0xff]
      %v269 = vld [vmem:[%s1 + $0x250] sm:$0xff]
      %v270 = vld [vmem:[%s1 + $0x258] sm:$0xff]
      %v271 = vld [vmem:[%s1 + $0x260] sm:$0xff]
      %v272 = vld [vmem:[%s1 + $0x268] sm:$0xff]
      %v273 = vld [vmem:[%s1 + $0x270] sm:$0xff]
      %v274 = vld [vmem:[%s1 + $0x278] sm:$0xff]
      %v275 = vld [vmem:[%s1 + $0x280] sm:$0xff]
      %v276 = vld [vmem:[%s1 + $0x288] sm:$0xff]
      %v277 = vld [vmem:[%s1 + $0x290] sm:$0xff]
      %v278 = vld [vmem:[%s1 + $0x298] sm:$0xff]
      %v279 = vld [vmem:[%s1 + $0x2a0] sm:$0xff]
      %v280 = vld [vmem:[%s1 + $0x2a8] sm:$0xff]
      %v281 = vld [vmem:[%s1 + $0x2b0] sm:$0xff]
      %v282 = vld [vmem:[%s1 + $0x2b8] sm:$0xff]
      %v283 = vld [vmem:[%s1 + $0x2c0] sm:$0xff]
      %v284 = vld [vmem:[%s1 + $0x2c8] sm:$0xff]
      %v285 = vld [vmem:[%s1 + $0x2d0] sm:$0xff]
      %v286 = vld [vmem:[%s1 + $0x2d8] sm:$0xff]
      %v287 = vld [vmem:[%s1 + $0x2e0] sm:$0xff]
      %v288 = vld [vmem:[%s1 + $0x2e8] sm:$0xff]
      %v289 = vld [vmem:[%s1 + $0x2f0] sm:$0xff]
      %v290 = vld [vmem:[%s1 + $0x2f8] sm:$0xff]
      %v291 = vld [vmem:[%s2] sm:$0x3f]
      %v293 = vperm.slane %v291, 0
      %v294 = vperm.slane %v291, 1
      %v295 = vperm.slane %v291, 2
      %v296 = vperm.slane %v291, 3
      %v297 = vperm.slane %v291, 4
      %v298 = vperm.slane %v291, 5
      %v321 = vunpack.c.l.b16 %v179
      %v322 = vunpack.c.h.b16 %v179
      %v323 = vunpack.c.l.b16 %v180
      %v324 = vunpack.c.h.b16 %v180
      %v325 = vunpack.c.l.b16 %v181
      %v326 = vunpack.c.h.b16 %v181
      %v327 = vunpack.c.l.b16 %v182
      %v328 = vunpack.c.h.b16 %v182
      %v329 = vunpack.c.l.b16 %v183
      %v330 = vunpack.c.h.b16 %v183
      %v331 = vunpack.c.l.b16 %v184
      %v332 = vunpack.c.h.b16 %v184
      %v333 = vunpack.c.l.b16 %v185
      %v334 = vunpack.c.h.b16 %v185
      %v335 = vunpack.c.l.b16 %v186
      %v336 = vunpack.c.h.b16 %v186
      %v337 = vunpack.c.l.b16 %v187
      %v338 = vunpack.c.h.b16 %v187
      %v339 = vunpack.c.l.b16 %v188
      %v340 = vunpack.c.h.b16 %v188
      %v341 = vunpack.c.l.b16 %v189
      %v342 = vunpack.c.h.b16 %v189
      %v343 = vunpack.c.l.b16 %v190
      %v344 = vunpack.c.h.b16 %v190
      %v345 = vunpack.c.l.b16 %v191
      %v346 = vunpack.c.h.b16 %v191
      %v347 = vunpack.c.l.b16 %v192
      %v348 = vunpack.c.h.b16 %v192
      %v349 = vunpack.c.l.b16 %v193
      %v350 = vunpack.c.h.b16 %v193
      %v351 = vunpack.c.l.b16 %v194
      %v352 = vunpack.c.h.b16 %v194
      %v353 = vpack.c.b16 %v323, %v321
      %v354 = vpack.c.b16 %v324, %v322
      %v355 = vpack.c.b16 %v327, %v325
      %v356 = vpack.c.b16 %v328, %v326
      %v357 = vpack.c.b16 %v331, %v329
      %v358 = vpack.c.b16 %v332, %v330
      %v359 = vpack.c.b16 %v335, %v333
      %v360 = vpack.c.b16 %v336, %v334
      %v361 = vpack.c.b16 %v339, %v337
      %v362 = vpack.c.b16 %v340, %v338
      %v363 = vpack.c.b16 %v343, %v341
      %v364 = vpack.c.b16 %v344, %v342
      %v365 = vpack.c.b16 %v347, %v345
      %v366 = vpack.c.b16 %v348, %v346
      %v367 = vpack.c.b16 %v351, %v349
      %v368 = vpack.c.b16 %v352, %v350
      %v481 = vunpack.c.l.b16 %v195
      %v482 = vunpack.c.h.b16 %v195
      %v483 = vunpack.c.l.b16 %v196
      %v484 = vunpack.c.h.b16 %v196
      %v485 = vunpack.c.l.b16 %v197
      %v486 = vunpack.c.h.b16 %v197
      %v487 = vunpack.c.l.b16 %v198
      %v488 = vunpack.c.h.b16 %v198
      %v489 = vunpack.c.l.b16 %v199
      %v490 = vunpack.c.h.b16 %v199
      %v491 = vunpack.c.l.b16 %v200
      %v492 = vunpack.c.h.b16 %v200
      %v493 = vunpack.c.l.b16 %v201
      %v494 = vunpack.c.h.b16 %v201
      %v495 = vunpack.c.l.b16 %v202
      %v496 = vunpack.c.h.b16 %v202
      %v497 = vunpack.c.l.b16 %v203
      %v498 = vunpack.c.h.b16 %v203
      %v499 = vunpack.c.l.b16 %v204
      %v500 = vunpack.c.h.b16 %v204
      %v501 = vunpack.c.l.b16 %v205
      %v502 = vunpack.c.h.b16 %v205
      %v503 = vunpack.c.l.b16 %v206
      %v504 = vunpack.c.h.b16 %v206
      %v505 = vunpack.c.l.b16 %v207
      %v506 = vunpack.c.h.b16 %v207
      %v507 = vunpack.c.l.b16 %v208
      %v508 = vunpack.c.h.b16 %v208
      %v509 = vunpack.c.l.b16 %v209
      %v510 = vunpack.c.h.b16 %v209
      %v511 = vunpack.c.l.b16 %v210
      %v512 = vunpack.c.h.b16 %v210
      %v513 = vunpack.c.l.b16 %v211
      %v514 = vunpack.c.h.b16 %v211
      %v515 = vunpack.c.l.b16 %v212
      %v516 = vunpack.c.h.b16 %v212
      %v517 = vunpack.c.l.b16 %v213
      %v518 = vunpack.c.h.b16 %v213
      %v519 = vunpack.c.l.b16 %v214
      %v520 = vunpack.c.h.b16 %v214
      %v521 = vunpack.c.l.b16 %v215
      %v522 = vunpack.c.h.b16 %v215
      %v523 = vunpack.c.l.b16 %v216
      %v524 = vunpack.c.h.b16 %v216
      %v525 = vunpack.c.l.b16 %v217
      %v526 = vunpack.c.h.b16 %v217
      %v527 = vunpack.c.l.b16 %v218
      %v528 = vunpack.c.h.b16 %v218
      %v529 = vunpack.c.l.b16 %v219
      %v530 = vunpack.c.h.b16 %v219
      %v531 = vunpack.c.l.b16 %v220
      %v532 = vunpack.c.h.b16 %v220
      %v533 = vunpack.c.l.b16 %v221
      %v534 = vunpack.c.h.b16 %v221
      %v535 = vunpack.c.l.b16 %v222
      %v536 = vunpack.c.h.b16 %v222
      %v537 = vunpack.c.l.b16 %v223
      %v538 = vunpack.c.h.b16 %v223
      %v539 = vunpack.c.l.b16 %v224
      %v540 = vunpack.c.h.b16 %v224
      %v541 = vunpack.c.l.b16 %v225
      %v542 = vunpack.c.h.b16 %v225
      %v543 = vunpack.c.l.b16 %v226
      %v544 = vunpack.c.h.b16 %v226
      %v545 = vunpack.c.l.b16 %v227
      %v546 = vunpack.c.h.b16 %v227
      %v547 = vunpack.c.l.b16 %v228
      %v548 = vunpack.c.h.b16 %v228
      %v549 = vunpack.c.l.b16 %v229
      %v550 = vunpack.c.h.b16 %v229
      %v551 = vunpack.c.l.b16 %v230
      %v552 = vunpack.c.h.b16 %v230
      %v553 = vunpack.c.l.b16 %v231
      %v554 = vunpack.c.h.b16 %v231
      %v555 = vunpack.c.l.b16 %v232
      %v556 = vunpack.c.h.b16 %v232
      %v557 = vunpack.c.l.b16 %v233
      %v558 = vunpack.c.h.b16 %v233
      %v559 = vunpack.c.l.b16 %v234
      %v560 = vunpack.c.h.b16 %v234
      %v561 = vunpack.c.l.b16 %v235
      %v562 = vunpack.c.h.b16 %v235
      %v563 = vunpack.c.l.b16 %v236
      %v564 = vunpack.c.h.b16 %v236
      %v565 = vunpack.c.l.b16 %v237
      %v566 = vunpack.c.h.b16 %v237
      %v567 = vunpack.c.l.b16 %v238
      %v568 = vunpack.c.h.b16 %v238
      %v569 = vunpack.c.l.b16 %v239
      %v570 = vunpack.c.h.b16 %v239
      %v571 = vunpack.c.l.b16 %v240
      %v572 = vunpack.c.h.b16 %v240
      %v573 = vunpack.c.l.b16 %v241
      %v574 = vunpack.c.h.b16 %v241
      %v575 = vunpack.c.l.b16 %v242
      %v576 = vunpack.c.h.b16 %v242
      %v577 = vunpack.c.l.b16 %v243
      %v578 = vunpack.c.h.b16 %v243
      %v579 = vunpack.c.l.b16 %v244
      %v580 = vunpack.c.h.b16 %v244
      %v581 = vunpack.c.l.b16 %v245
      %v582 = vunpack.c.h.b16 %v245
      %v583 = vunpack.c.l.b16 %v246
      %v584 = vunpack.c.h.b16 %v246
      %v585 = vunpack.c.l.b16 %v247
      %v586 = vunpack.c.h.b16 %v247
      %v587 = vunpack.c.l.b16 %v248
      %v588 = vunpack.c.h.b16 %v248
      %v589 = vunpack.c.l.b16 %v249
      %v590 = vunpack.c.h.b16 %v249
      %v591 = vunpack.c.l.b16 %v250
      %v592 = vunpack.c.h.b16 %v250
      %v593 = vunpack.c.l.b16 %v251
      %v594 = vunpack.c.h.b16 %v251
      %v595 = vunpack.c.l.b16 %v252
      %v596 = vunpack.c.h.b16 %v252
      %v597 = vunpack.c.l.b16 %v253
      %v598 = vunpack.c.h.b16 %v253
      %v599 = vunpack.c.l.b16 %v254
      %v600 = vunpack.c.h.b16 %v254
      %v601 = vunpack.c.l.b16 %v255
      %v602 = vunpack.c.h.b16 %v255
      %v603 = vunpack.c.l.b16 %v256
      %v604 = vunpack.c.h.b16 %v256
      %v605 = vunpack.c.l.b16 %v257
      %v606 = vunpack.c.h.b16 %v257
      %v607 = vunpack.c.l.b16 %v258
      %v608 = vunpack.c.h.b16 %v258
      %v609 = vunpack.c.l.b16 %v259
      %v610 = vunpack.c.h.b16 %v259
      %v611 = vunpack.c.l.b16 %v260
      %v612 = vunpack.c.h.b16 %v260
      %v613 = vunpack.c.l.b16 %v261
      %v614 = vunpack.c.h.b16 %v261
      %v615 = vunpack.c.l.b16 %v262
      %v616 = vunpack.c.h.b16 %v262
      %v617 = vunpack.c.l.b16 %v263
      %v618 = vunpack.c.h.b16 %v263
      %v619 = vunpack.c.l.b16 %v264
      %v620 = vunpack.c.h.b16 %v264
      %v621 = vunpack.c.l.b16 %v265
      %v622 = vunpack.c.h.b16 %v265
      %v623 = vunpack.c.l.b16 %v266
      %v624 = vunpack.c.h.b16 %v266
      %v625 = vunpack.c.l.b16 %v267
      %v626 = vunpack.c.h.b16 %v267
      %v627 = vunpack.c.l.b16 %v268
      %v628 = vunpack.c.h.b16 %v268
      %v629 = vunpack.c.l.b16 %v269
      %v630 = vunpack.c.h.b16 %v269
      %v631 = vunpack.c.l.b16 %v270
      %v632 = vunpack.c.h.b16 %v270
      %v633 = vunpack.c.l.b16 %v271
      %v634 = vunpack.c.h.b16 %v271
      %v635 = vunpack.c.l.b16 %v272
      %v636 = vunpack.c.h.b16 %v272
      %v637 = vunpack.c.l.b16 %v273
      %v638 = vunpack.c.h.b16 %v273
      %v639 = vunpack.c.l.b16 %v274
      %v640 = vunpack.c.h.b16 %v274
      %v641 = vunpack.c.l.b16 %v275
      %v642 = vunpack.c.h.b16 %v275
      %v643 = vunpack.c.l.b16 %v276
      %v644 = vunpack.c.h.b16 %v276
      %v645 = vunpack.c.l.b16 %v277
      %v646 = vunpack.c.h.b16 %v277
      %v647 = vunpack.c.l.b16 %v278
      %v648 = vunpack.c.h.b16 %v278
      %v649 = vunpack.c.l.b16 %v279
      %v650 = vunpack.c.h.b16 %v279
      %v651 = vunpack.c.l.b16 %v280
      %v652 = vunpack.c.h.b16 %v280
      %v653 = vunpack.c.l.b16 %v281
      %v654 = vunpack.c.h.b16 %v281
      %v655 = vunpack.c.l.b16 %v282
      %v656 = vunpack.c.h.b16 %v282
      %v657 = vunpack.c.l.b16 %v283
      %v658 = vunpack.c.h.b16 %v283
      %v659 = vunpack.c.l.b16 %v284
      %v660 = vunpack.c.h.b16 %v284
      %v661 = vunpack.c.l.b16 %v285
      %v662 = vunpack.c.h.b16 %v285
      %v663 = vunpack.c.l.b16 %v286
      %v664 = vunpack.c.h.b16 %v286
      %v665 = vunpack.c.l.b16 %v287
      %v666 = vunpack.c.h.b16 %v287
      %v667 = vunpack.c.l.b16 %v288
      %v668 = vunpack.c.h.b16 %v288
      %v669 = vunpack.c.l.b16 %v289
      %v670 = vunpack.c.h.b16 %v289
      %v671 = vunpack.c.l.b16 %v290
      %v672 = vunpack.c.h.b16 %v290
      %v673 = vpack.c.b16 %v487, %v481
      %v674 = vpack.c.b16 %v488, %v482
      %v675 = vpack.c.b16 %v489, %v483
      %v676 = vpack.c.b16 %v490, %v484
      %v677 = vpack.c.b16 %v491, %v485
      %v678 = vpack.c.b16 %v492, %v486
      %v679 = vpack.c.b16 %v499, %v493
      %v680 = vpack.c.b16 %v500, %v494
      %v681 = vpack.c.b16 %v501, %v495
      %v682 = vpack.c.b16 %v502, %v496
      %v683 = vpack.c.b16 %v503, %v497
      %v684 = vpack.c.b16 %v504, %v498
      %v685 = vpack.c.b16 %v511, %v505
      %v686 = vpack.c.b16 %v512, %v506
      %v687 = vpack.c.b16 %v513, %v507
      %v688 = vpack.c.b16 %v514, %v508
      %v689 = vpack.c.b16 %v515, %v509
      %v690 = vpack.c.b16 %v516, %v510
      %v691 = vpack.c.b16 %v523, %v517
      %v692 = vpack.c.b16 %v524, %v518
      %v693 = vpack.c.b16 %v525, %v519
      %v694 = vpack.c.b16 %v526, %v520
      %v695 = vpack.c.b16 %v527, %v521
      %v696 = vpack.c.b16 %v528, %v522
      %v697 = vpack.c.b16 %v535, %v529
      %v698 = vpack.c.b16 %v536, %v530
      %v699 = vpack.c.b16 %v537, %v531
      %v700 = vpack.c.b16 %v538, %v532
      %v701 = vpack.c.b16 %v539, %v533
      %v702 = vpack.c.b16 %v540, %v534
      %v703 = vpack.c.b16 %v547, %v541
      %v704 = vpack.c.b16 %v548, %v542
      %v705 = vpack.c.b16 %v549, %v543
      %v706 = vpack.c.b16 %v550, %v544
      %v707 = vpack.c.b16 %v551, %v545
      %v708 = vpack.c.b16 %v552, %v546
      %v709 = vpack.c.b16 %v559, %v553
      %v710 = vpack.c.b16 %v560, %v554
      %v711 = vpack.c.b16 %v561, %v555
      %v712 = vpack.c.b16 %v562, %v556
      %v713 = vpack.c.b16 %v563, %v557
      %v714 = vpack.c.b16 %v564, %v558
      %v715 = vpack.c.b16 %v571, %v565
      %v716 = vpack.c.b16 %v572, %v566
      %v717 = vpack.c.b16 %v573, %v567
      %v718 = vpack.c.b16 %v574, %v568
      %v719 = vpack.c.b16 %v575, %v569
      %v720 = vpack.c.b16 %v576, %v570
      %v721 = vpack.c.b16 %v583, %v577
      %v722 = vpack.c.b16 %v584, %v578
      %v723 = vpack.c.b16 %v585, %v579
      %v724 = vpack.c.b16 %v586, %v580
      %v725 = vpack.c.b16 %v587, %v581
      %v726 = vpack.c.b16 %v588, %v582
      %v727 = vpack.c.b16 %v595, %v589
      %v728 = vpack.c.b16 %v596, %v590
      %v729 = vpack.c.b16 %v597, %v591
      %v730 = vpack.c.b16 %v598, %v592
      %v731 = vpack.c.b16 %v599, %v593
      %v732 = vpack.c.b16 %v600, %v594
      %v733 = vpack.c.b16 %v607, %v601
      %v734 = vpack.c.b16 %v608, %v602
      %v735 = vpack.c.b16 %v609, %v603
      %v736 = vpack.c.b16 %v610, %v604
      %v737 = vpack.c.b16 %v611, %v605
      %v738 = vpack.c.b16 %v612, %v606
      %v739 = vpack.c.b16 %v619, %v613
      %v740 = vpack.c.b16 %v620, %v614
      %v741 = vpack.c.b16 %v621, %v615
      %v742 = vpack.c.b16 %v622, %v616
      %v743 = vpack.c.b16 %v623, %v617
      %v744 = vpack.c.b16 %v624, %v618
      %v745 = vpack.c.b16 %v631, %v625
      %v746 = vpack.c.b16 %v632, %v626
      %v747 = vpack.c.b16 %v633, %v627
      %v748 = vpack.c.b16 %v634, %v628
      %v749 = vpack.c.b16 %v635, %v629
      %v750 = vpack.c.b16 %v636, %v630
      %v751 = vpack.c.b16 %v643, %v637
      %v752 = vpack.c.b16 %v644, %v638
      %v753 = vpack.c.b16 %v645, %v639
      %v754 = vpack.c.b16 %v646, %v640
      %v755 = vpack.c.b16 %v647, %v641
      %v756 = vpack.c.b16 %v648, %v642
      %v757 = vpack.c.b16 %v655, %v649
      %v758 = vpack.c.b16 %v656, %v650
      %v759 = vpack.c.b16 %v657, %v651
      %v760 = vpack.c.b16 %v658, %v652
      %v761 = vpack.c.b16 %v659, %v653
      %v762 = vpack.c.b16 %v660, %v654
      %v763 = vpack.c.b16 %v667, %v661
      %v764 = vpack.c.b16 %v668, %v662
      %v765 = vpack.c.b16 %v669, %v663
      %v766 = vpack.c.b16 %v670, %v664
      %v767 = vpack.c.b16 %v671, %v665
      %v768 = vpack.c.b16 %v672, %v666
      %865 = vmatpush.bf16.msra.mxu0 %v715
      %866 = vmatpush.bf16.msra.mxu0 %v709
      %867 = vmatpush.bf16.msra.mxu0 %v703
      %868 = vmatpush.bf16.msra.mxu0 %v697
      %869 = vmatpush.bf16.msra.mxu0 %v691
      %870 = vmatpush.bf16.msra.mxu0 %v685
      %871 = vmatpush.bf16.msra.mxu0 %v679
      %872 = vmatpush.bf16.msra.mxu0 %v673
      %873 = vmatmul.bf16.gmra.mxu0 %v353
      %v874 = vpop.f32.mrf.mxu0
      %v875 = vadd.f32 %v293, %v874
      %v876 = vpop.f32.mrf.mxu0
      %v877 = vadd.f32 %v293, %v876
      %878 = vmatmul.bf16.gmra.mxu0 %v355
      %v879 = vpop.f32.mrf.mxu0
      %v880 = vadd.f32 %v293, %v879
      %v881 = vpop.f32.mrf.mxu0
      %v882 = vadd.f32 %v293, %v881
      %883 = vmatmul.bf16.gmra.mxu0 %v357
      %v884 = vpop.f32.mrf.mxu0
      %v885 = vadd.f32 %v293, %v884
      %v886 = vpop.f32.mrf.mxu0
      %v887 = vadd.f32 %v293, %v886
      %888 = vmatmul.bf16.gmra.mxu0 %v359
      %v889 = vpop.f32.mrf.mxu0
      %v890 = vadd.f32 %v293, %v889
      %v891 = vpop.f32.mrf.mxu0
      %v892 = vadd.f32 %v293, %v891
      %893 = vmatmul.bf16.gmra.mxu0 %v361
      %v894 = vpop.f32.mrf.mxu0
      %v895 = vadd.f32 %v293, %v894
      %v896 = vpop.f32.mrf.mxu0
      %v897 = vadd.f32 %v293, %v896
      %898 = vmatmul.bf16.gmra.mxu0 %v363
      %v899 = vpop.f32.mrf.mxu0
      %v900 = vadd.f32 %v293, %v899
      %v901 = vpop.f32.mrf.mxu0
      %v902 = vadd.f32 %v293, %v901
      %903 = vmatmul.bf16.gmra.mxu0 %v365
      %v904 = vpop.f32.mrf.mxu0
      %v905 = vadd.f32 %v293, %v904
      %v906 = vpop.f32.mrf.mxu0
      %v907 = vadd.f32 %v293, %v906
      %908 = vmatmul.bf16.gmra.mxu0 %v367
      %v909 = vpop.f32.mrf.mxu0
      %v910 = vadd.f32 %v293, %v909
      %v911 = vpop.f32.mrf.mxu0
      %v912 = vadd.f32 %v293, %v911
      %913 = vdwg.mxu0
      %914 = vmatpush.bf16.msra.mxu0 %v763
      %915 = vmatpush.bf16.msra.mxu0 %v757
      %916 = vmatpush.bf16.msra.mxu0 %v751
      %917 = vmatpush.bf16.msra.mxu0 %v745
      %918 = vmatpush.bf16.msra.mxu0 %v739
      %919 = vmatpush.bf16.msra.mxu0 %v733
      %920 = vmatpush.bf16.msra.mxu0 %v727
      %921 = vmatpush.bf16.msra.mxu0 %v721
      %922 = vmatmul.bf16.gmra.mxu0 %v354
      %v923 = vpop.f32.mrf.mxu0
      %v924 = vadd.f32 %v875, %v923
      %v925 = vpop.f32.mrf.mxu0
      %v926 = vadd.f32 %v877, %v925
      %927 = vmatmul.bf16.gmra.mxu0 %v356
      %v928 = vpop.f32.mrf.mxu0
      %v929 = vadd.f32 %v880, %v928
      %v930 = vpop.f32.mrf.mxu0
      %v931 = vadd.f32 %v882, %v930
      %932 = vmatmul.bf16.gmra.mxu0 %v358
      %v933 = vpop.f32.mrf.mxu0
      %v934 = vadd.f32 %v885, %v933
      %v935 = vpop.f32.mrf.mxu0
      %v936 = vadd.f32 %v887, %v935
      %937 = vmatmul.bf16.gmra.mxu0 %v360
      %v938 = vpop.f32.mrf.mxu0
      %v939 = vadd.f32 %v890, %v938
      %v940 = vpop.f32.mrf.mxu0
      %v941 = vadd.f32 %v892, %v940
      %942 = vmatmul.bf16.gmra.mxu0 %v362
      %v943 = vpop.f32.mrf.mxu0
      %v944 = vadd.f32 %v895, %v943
      %v945 = vpop.f32.mrf.mxu0
      %v946 = vadd.f32 %v897, %v945
      %947 = vmatmul.bf16.gmra.mxu0 %v364
      %v948 = vpop.f32.mrf.mxu0
      %v949 = vadd.f32 %v900, %v948
      %v950 = vpop.f32.mrf.mxu0
      %v951 = vadd.f32 %v902, %v950
      %952 = vmatmul.bf16.gmra.mxu0 %v366
      %v953 = vpop.f32.mrf.mxu0
      %v954 = vadd.f32 %v905, %v953
      %v955 = vpop.f32.mrf.mxu0
      %v956 = vadd.f32 %v907, %v955
      %957 = vmatmul.bf16.gmra.mxu0 %v368
      %v958 = vpop.f32.mrf.mxu0
      %v959 = vadd.f32 %v910, %v958
      %v960 = vpop.f32.mrf.mxu0
      %v961 = vadd.f32 %v912, %v960
      %962 = vdwg.mxu0
      %963 = vmatpush.bf16.msra.mxu0 %v716
      %964 = vmatpush.bf16.msra.mxu0 %v710
      %965 = vmatpush.bf16.msra.mxu0 %v704
      %966 = vmatpush.bf16.msra.mxu0 %v698
      %967 = vmatpush.bf16.msra.mxu0 %v692
      %968 = vmatpush.bf16.msra.mxu0 %v686
      %969 = vmatpush.bf16.msra.mxu0 %v680
      %970 = vmatpush.bf16.msra.mxu0 %v674
      %971 = vmatmul.bf16.gmra.mxu0 %v353
      %v972 = vpop.f32.mrf.mxu0
      %v973 = vadd.f32 %v294, %v972
      %v974 = vpop.f32.mrf.mxu0
      %v975 = vadd.f32 %v294, %v974
      %976 = vmatmul.bf16.gmra.mxu0 %v355
      %v977 = vpop.f32.mrf.mxu0
      %v978 = vadd.f32 %v294, %v977
      %v979 = vpop.f32.mrf.mxu0
      %v980 = vadd.f32 %v294, %v979
      %981 = vmatmul.bf16.gmra.mxu0 %v357
      %v982 = vpop.f32.mrf.mxu0
      %v983 = vadd.f32 %v294, %v982
      %v984 = vpop.f32.mrf.mxu0
      %v985 = vadd.f32 %v294, %v984
      %986 = vmatmul.bf16.gmra.mxu0 %v359
      %v987 = vpop.f32.mrf.mxu0
      %v988 = vadd.f32 %v294, %v987
      %v989 = vpop.f32.mrf.mxu0
      %v990 = vadd.f32 %v294, %v989
      %991 = vmatmul.bf16.gmra.mxu0 %v361
      %v992 = vpop.f32.mrf.mxu0
      %v993 = vadd.f32 %v294, %v992
      %v994 = vpop.f32.mrf.mxu0
      %v995 = vadd.f32 %v294, %v994
      %996 = vmatmul.bf16.gmra.mxu0 %v363
      %v997 = vpop.f32.mrf.mxu0
      %v998 = vadd.f32 %v294, %v997
      %v999 = vpop.f32.mrf.mxu0
      %v1000 = vadd.f32 %v294, %v999
      %1001 = vmatmul.bf16.gmra.mxu0 %v365
      %v1002 = vpop.f32.mrf.mxu0
      %v1003 = vadd.f32 %v294, %v1002
      %v1004 = vpop.f32.mrf.mxu0
      %v1005 = vadd.f32 %v294, %v1004
      %1006 = vmatmul.bf16.gmra.mxu0 %v367
      %v1007 = vpop.f32.mrf.mxu0
      %v1008 = vadd.f32 %v294, %v1007
      %v1009 = vpop.f32.mrf.mxu0
      %v1010 = vadd.f32 %v294, %v1009
      %1011 = vdwg.mxu0
      %1012 = vmatpush.bf16.msra.mxu0 %v764
      %1013 = vmatpush.bf16.msra.mxu0 %v758
      %1014 = vmatpush.bf16.msra.mxu0 %v752
      %1015 = vmatpush.bf16.msra.mxu0 %v746
      %1016 = vmatpush.bf16.msra.mxu0 %v740
      %1017 = vmatpush.bf16.msra.mxu0 %v734
      %1018 = vmatpush.bf16.msra.mxu0 %v728
      %1019 = vmatpush.bf16.msra.mxu0 %v722
      %1020 = vmatmul.bf16.gmra.mxu0 %v354
      %v1021 = vpop.f32.mrf.mxu0
      %v1022 = vadd.f32 %v973, %v1021
      %v1023 = vpop.f32.mrf.mxu0
      %v1024 = vadd.f32 %v975, %v1023
      %1025 = vmatmul.bf16.gmra.mxu0 %v356
      %v1026 = vpop.f32.mrf.mxu0
      %v1027 = vadd.f32 %v978, %v1026
      %v1028 = vpop.f32.mrf.mxu0
      %v1029 = vadd.f32 %v980, %v1028
      %1030 = vmatmul.bf16.gmra.mxu0 %v358
      %v1031 = vpop.f32.mrf.mxu0
      %v1032 = vadd.f32 %v983, %v1031
      %v1033 = vpop.f32.mrf.mxu0
      %v1034 = vadd.f32 %v985, %v1033
      %1035 = vmatmul.bf16.gmra.mxu0 %v360
      %v1036 = vpop.f32.mrf.mxu0
      %v1037 = vadd.f32 %v988, %v1036
      %v1038 = vpop.f32.mrf.mxu0
      %v1039 = vadd.f32 %v990, %v1038
      %1040 = vmatmul.bf16.gmra.mxu0 %v362
      %v1041 = vpop.f32.mrf.mxu0
      %v1042 = vadd.f32 %v993, %v1041
      %v1043 = vpop.f32.mrf.mxu0
      %v1044 = vadd.f32 %v995, %v1043
      %1045 = vmatmul.bf16.gmra.mxu0 %v364
      %v1046 = vpop.f32.mrf.mxu0
      %v1047 = vadd.f32 %v998, %v1046
      %v1048 = vpop.f32.mrf.mxu0
      %v1049 = vadd.f32 %v1000, %v1048
      %1050 = vmatmul.bf16.gmra.mxu0 %v366
      %v1051 = vpop.f32.mrf.mxu0
      %v1052 = vadd.f32 %v1003, %v1051
      %v1053 = vpop.f32.mrf.mxu0
      %v1054 = vadd.f32 %v1005, %v1053
      %1055 = vmatmul.bf16.gmra.mxu0 %v368
      %v1056 = vpop.f32.mrf.mxu0
      %v1057 = vadd.f32 %v1008, %v1056
      %v1058 = vpop.f32.mrf.mxu0
      %v1059 = vadd.f32 %v1010, %v1058
      %1060 = vdwg.mxu0
      %1061 = vmatpush.bf16.msra.mxu0 %v717
      %1062 = vmatpush.bf16.msra.mxu0 %v711
      %1063 = vmatpush.bf16.msra.mxu0 %v705
      %1064 = vmatpush.bf16.msra.mxu0 %v699
      %1065 = vmatpush.bf16.msra.mxu0 %v693
      %1066 = vmatpush.bf16.msra.mxu0 %v687
      %1067 = vmatpush.bf16.msra.mxu0 %v681
      %1068 = vmatpush.bf16.msra.mxu0 %v675
      %1069 = vmatmul.bf16.gmra.mxu0 %v353
      %v1070 = vpop.f32.mrf.mxu0
      %v1071 = vadd.f32 %v295, %v1070
      %v1072 = vpop.f32.mrf.mxu0
      %v1073 = vadd.f32 %v295, %v1072
      %1074 = vmatmul.bf16.gmra.mxu0 %v355
      %v1075 = vpop.f32.mrf.mxu0
      %v1076 = vadd.f32 %v295, %v1075
      %v1077 = vpop.f32.mrf.mxu0
      %v1078 = vadd.f32 %v295, %v1077
      %1079 = vmatmul.bf16.gmra.mxu0 %v357
      %v1080 = vpop.f32.mrf.mxu0
      %v1081 = vadd.f32 %v295, %v1080
      %v1082 = vpop.f32.mrf.mxu0
      %v1083 = vadd.f32 %v295, %v1082
      %1084 = vmatmul.bf16.gmra.mxu0 %v359
      %v1085 = vpop.f32.mrf.mxu0
      %v1086 = vadd.f32 %v295, %v1085
      %v1087 = vpop.f32.mrf.mxu0
      %v1088 = vadd.f32 %v295, %v1087
      %1089 = vmatmul.bf16.gmra.mxu0 %v361
      %v1090 = vpop.f32.mrf.mxu0
      %v1091 = vadd.f32 %v295, %v1090
      %v1092 = vpop.f32.mrf.mxu0
      %v1093 = vadd.f32 %v295, %v1092
      %1094 = vmatmul.bf16.gmra.mxu0 %v363
      %v1095 = vpop.f32.mrf.mxu0
      %v1096 = vadd.f32 %v295, %v1095
      %v1097 = vpop.f32.mrf.mxu0
      %v1098 = vadd.f32 %v295, %v1097
      %1099 = vmatmul.bf16.gmra.mxu0 %v365
      %v1100 = vpop.f32.mrf.mxu0
      %v1101 = vadd.f32 %v295, %v1100
      %v1102 = vpop.f32.mrf.mxu0
      %v1103 = vadd.f32 %v295, %v1102
      %1104 = vmatmul.bf16.gmra.mxu0 %v367
      %v1105 = vpop.f32.mrf.mxu0
      %v1106 = vadd.f32 %v295, %v1105
      %v1107 = vpop.f32.mrf.mxu0
      %v1108 = vadd.f32 %v295, %v1107
      %1109 = vdwg.mxu0
      %1110 = vmatpush.bf16.msra.mxu0 %v765
      %1111 = vmatpush.bf16.msra.mxu0 %v759
      %1112 = vmatpush.bf16.msra.mxu0 %v753
      %1113 = vmatpush.bf16.msra.mxu0 %v747
      %1114 = vmatpush.bf16.msra.mxu0 %v741
      %1115 = vmatpush.bf16.msra.mxu0 %v735
      %1116 = vmatpush.bf16.msra.mxu0 %v729
      %1117 = vmatpush.bf16.msra.mxu0 %v723
      %1118 = vmatmul.bf16.gmra.mxu0 %v354
      %v1119 = vpop.f32.mrf.mxu0
      %v1120 = vadd.f32 %v1071, %v1119
      %v1121 = vpop.f32.mrf.mxu0
      %v1122 = vadd.f32 %v1073, %v1121
      %1123 = vmatmul.bf16.gmra.mxu0 %v356
      %v1124 = vpop.f32.mrf.mxu0
      %v1125 = vadd.f32 %v1076, %v1124
      %v1126 = vpop.f32.mrf.mxu0
      %v1127 = vadd.f32 %v1078, %v1126
      %1128 = vmatmul.bf16.gmra.mxu0 %v358
      %v1129 = vpop.f32.mrf.mxu0
      %v1130 = vadd.f32 %v1081, %v1129
      %v1131 = vpop.f32.mrf.mxu0
      %v1132 = vadd.f32 %v1083, %v1131
      %1133 = vmatmul.bf16.gmra.mxu0 %v360
      %v1134 = vpop.f32.mrf.mxu0
      %v1135 = vadd.f32 %v1086, %v1134
      %v1136 = vpop.f32.mrf.mxu0
      %v1137 = vadd.f32 %v1088, %v1136
      %1138 = vmatmul.bf16.gmra.mxu0 %v362
      %v1139 = vpop.f32.mrf.mxu0
      %v1140 = vadd.f32 %v1091, %v1139
      %v1141 = vpop.f32.mrf.mxu0
      %v1142 = vadd.f32 %v1093, %v1141
      %1143 = vmatmul.bf16.gmra.mxu0 %v364
      %v1144 = vpop.f32.mrf.mxu0
      %v1145 = vadd.f32 %v1096, %v1144
      %v1146 = vpop.f32.mrf.mxu0
      %v1147 = vadd.f32 %v1098, %v1146
      %1148 = vmatmul.bf16.gmra.mxu0 %v366
      %v1149 = vpop.f32.mrf.mxu0
      %v1150 = vadd.f32 %v1101, %v1149
      %v1151 = vpop.f32.mrf.mxu0
      %v1152 = vadd.f32 %v1103, %v1151
      %1153 = vmatmul.bf16.gmra.mxu0 %v368
      %v1154 = vpop.f32.mrf.mxu0
      %v1155 = vadd.f32 %v1106, %v1154
      %v1156 = vpop.f32.mrf.mxu0
      %v1157 = vadd.f32 %v1108, %v1156
      %1158 = vdwg.mxu0
      %1159 = vmatpush.bf16.msra.mxu0 %v718
      %1160 = vmatpush.bf16.msra.mxu0 %v712
      %1161 = vmatpush.bf16.msra.mxu0 %v706
      %1162 = vmatpush.bf16.msra.mxu0 %v700
      %1163 = vmatpush.bf16.msra.mxu0 %v694
      %1164 = vmatpush.bf16.msra.mxu0 %v688
      %1165 = vmatpush.bf16.msra.mxu0 %v682
      %1166 = vmatpush.bf16.msra.mxu0 %v676
      %1167 = vmatmul.bf16.gmra.mxu0 %v353
      %v1168 = vpop.f32.mrf.mxu0
      %v1169 = vadd.f32 %v296, %v1168
      %v1170 = vpop.f32.mrf.mxu0
      %v1171 = vadd.f32 %v296, %v1170
      %1172 = vmatmul.bf16.gmra.mxu0 %v355
      %v1173 = vpop.f32.mrf.mxu0
      %v1174 = vadd.f32 %v296, %v1173
      %v1175 = vpop.f32.mrf.mxu0
      %v1176 = vadd.f32 %v296, %v1175
      %1177 = vmatmul.bf16.gmra.mxu0 %v357
      %v1178 = vpop.f32.mrf.mxu0
      %v1179 = vadd.f32 %v296, %v1178
      %v1180 = vpop.f32.mrf.mxu0
      %v1181 = vadd.f32 %v296, %v1180
      %1182 = vmatmul.bf16.gmra.mxu0 %v359
      %v1183 = vpop.f32.mrf.mxu0
      %v1184 = vadd.f32 %v296, %v1183
      %v1185 = vpop.f32.mrf.mxu0
      %v1186 = vadd.f32 %v296, %v1185
      %1187 = vmatmul.bf16.gmra.mxu0 %v361
      %v1188 = vpop.f32.mrf.mxu0
      %v1189 = vadd.f32 %v296, %v1188
      %v1190 = vpop.f32.mrf.mxu0
      %v1191 = vadd.f32 %v296, %v1190
      %1192 = vmatmul.bf16.gmra.mxu0 %v363
      %v1193 = vpop.f32.mrf.mxu0
      %v1194 = vadd.f32 %v296, %v1193
      %v1195 = vpop.f32.mrf.mxu0
      %v1196 = vadd.f32 %v296, %v1195
      %1197 = vmatmul.bf16.gmra.mxu0 %v365
      %v1198 = vpop.f32.mrf.mxu0
      %v1199 = vadd.f32 %v296, %v1198
      %v1200 = vpop.f32.mrf.mxu0
      %v1201 = vadd.f32 %v296, %v1200
      %1202 = vmatmul.bf16.gmra.mxu0 %v367
      %v1203 = vpop.f32.mrf.mxu0
      %v1204 = vadd.f32 %v296, %v1203
      %v1205 = vpop.f32.mrf.mxu0
      %v1206 = vadd.f32 %v296, %v1205
      %1207 = vdwg.mxu0
      %1208 = vmatpush.bf16.msra.mxu0 %v766
      %1209 = vmatpush.bf16.msra.mxu0 %v760
      %1210 = vmatpush.bf16.msra.mxu0 %v754
      %1211 = vmatpush.bf16.msra.mxu0 %v748
      %1212 = vmatpush.bf16.msra.mxu0 %v742
      %1213 = vmatpush.bf16.msra.mxu0 %v736
      %1214 = vmatpush.bf16.msra.mxu0 %v730
      %1215 = vmatpush.bf16.msra.mxu0 %v724
      %1216 = vmatmul.bf16.gmra.mxu0 %v354
      %v1217 = vpop.f32.mrf.mxu0
      %v1218 = vadd.f32 %v1169, %v1217
      %v1219 = vpop.f32.mrf.mxu0
      %v1220 = vadd.f32 %v1171, %v1219
      %1221 = vmatmul.bf16.gmra.mxu0 %v356
      %v1222 = vpop.f32.mrf.mxu0
      %v1223 = vadd.f32 %v1174, %v1222
      %v1224 = vpop.f32.mrf.mxu0
      %v1225 = vadd.f32 %v1176, %v1224
      %1226 = vmatmul.bf16.gmra.mxu0 %v358
      %v1227 = vpop.f32.mrf.mxu0
      %v1228 = vadd.f32 %v1179, %v1227
      %v1229 = vpop.f32.mrf.mxu0
      %v1230 = vadd.f32 %v1181, %v1229
      %1231 = vmatmul.bf16.gmra.mxu0 %v360
      %v1232 = vpop.f32.mrf.mxu0
      %v1233 = vadd.f32 %v1184, %v1232
      %v1234 = vpop.f32.mrf.mxu0
      %v1235 = vadd.f32 %v1186, %v1234
      %1236 = vmatmul.bf16.gmra.mxu0 %v362
      %v1237 = vpop.f32.mrf.mxu0
      %v1238 = vadd.f32 %v1189, %v1237
      %v1239 = vpop.f32.mrf.mxu0
      %v1240 = vadd.f32 %v1191, %v1239
      %1241 = vmatmul.bf16.gmra.mxu0 %v364
      %v1242 = vpop.f32.mrf.mxu0
      %v1243 = vadd.f32 %v1194, %v1242
      %v1244 = vpop.f32.mrf.mxu0
      %v1245 = vadd.f32 %v1196, %v1244
      %1246 = vmatmul.bf16.gmra.mxu0 %v366
      %v1247 = vpop.f32.mrf.mxu0
      %v1248 = vadd.f32 %v1199, %v1247
      %v1249 = vpop.f32.mrf.mxu0
      %v1250 = vadd.f32 %v1201, %v1249
      %1251 = vmatmul.bf16.gmra.mxu0 %v368
      %v1252 = vpop.f32.mrf.mxu0
      %v1253 = vadd.f32 %v1204, %v1252
      %v1254 = vpop.f32.mrf.mxu0
      %v1255 = vadd.f32 %v1206, %v1254
      %1256 = vdwg.mxu0
      %1257 = vmatpush.bf16.msra.mxu0 %v719
      %1258 = vmatpush.bf16.msra.mxu0 %v713
      %1259 = vmatpush.bf16.msra.mxu0 %v707
      %1260 = vmatpush.bf16.msra.mxu0 %v701
      %1261 = vmatpush.bf16.msra.mxu0 %v695
      %1262 = vmatpush.bf16.msra.mxu0 %v689
      %1263 = vmatpush.bf16.msra.mxu0 %v683
      %1264 = vmatpush.bf16.msra.mxu0 %v677
      %1265 = vmatmul.bf16.gmra.mxu0 %v353
      %v1266 = vpop.f32.mrf.mxu0
      %v1267 = vadd.f32 %v297, %v1266
      %v1268 = vpop.f32.mrf.mxu0
      %v1269 = vadd.f32 %v297, %v1268
      %1270 = vmatmul.bf16.gmra.mxu0 %v355
      %v1271 = vpop.f32.mrf.mxu0
      %v1272 = vadd.f32 %v297, %v1271
      %v1273 = vpop.f32.mrf.mxu0
      %v1274 = vadd.f32 %v297, %v1273
      %1275 = vmatmul.bf16.gmra.mxu0 %v357
      %v1276 = vpop.f32.mrf.mxu0
      %v1277 = vadd.f32 %v297, %v1276
      %v1278 = vpop.f32.mrf.mxu0
      %v1279 = vadd.f32 %v297, %v1278
      %1280 = vmatmul.bf16.gmra.mxu0 %v359
      %v1281 = vpop.f32.mrf.mxu0
      %v1282 = vadd.f32 %v297, %v1281
      %v1283 = vpop.f32.mrf.mxu0
      %v1284 = vadd.f32 %v297, %v1283
      %1285 = vmatmul.bf16.gmra.mxu0 %v361
      %v1286 = vpop.f32.mrf.mxu0
      %v1287 = vadd.f32 %v297, %v1286
      %v1288 = vpop.f32.mrf.mxu0
      %v1289 = vadd.f32 %v297, %v1288
      %1290 = vmatmul.bf16.gmra.mxu0 %v363
      %v1291 = vpop.f32.mrf.mxu0
      %v1292 = vadd.f32 %v297, %v1291
      %v1293 = vpop.f32.mrf.mxu0
      %v1294 = vadd.f32 %v297, %v1293
      %1295 = vmatmul.bf16.gmra.mxu0 %v365
      %v1296 = vpop.f32.mrf.mxu0
      %v1297 = vadd.f32 %v297, %v1296
      %v1298 = vpop.f32.mrf.mxu0
      %v1299 = vadd.f32 %v297, %v1298
      %1300 = vmatmul.bf16.gmra.mxu0 %v367
      %v1301 = vpop.f32.mrf.mxu0
      %v1302 = vadd.f32 %v297, %v1301
      %v1303 = vpop.f32.mrf.mxu0
      %v1304 = vadd.f32 %v297, %v1303
      %1305 = vdwg.mxu0
      %1306 = vmatpush.bf16.msra.mxu0 %v767
      %1307 = vmatpush.bf16.msra.mxu0 %v761
      %1308 = vmatpush.bf16.msra.mxu0 %v755
      %1309 = vmatpush.bf16.msra.mxu0 %v749
      %1310 = vmatpush.bf16.msra.mxu0 %v743
      %1311 = vmatpush.bf16.msra.mxu0 %v737
      %1312 = vmatpush.bf16.msra.mxu0 %v731
      %1313 = vmatpush.bf16.msra.mxu0 %v725
      %1314 = vmatmul.bf16.gmra.mxu0 %v354
      %v1315 = vpop.f32.mrf.mxu0
      %v1316 = vadd.f32 %v1267, %v1315
      %v1317 = vpop.f32.mrf.mxu0
      %v1318 = vadd.f32 %v1269, %v1317
      %1319 = vmatmul.bf16.gmra.mxu0 %v356
      %v1320 = vpop.f32.mrf.mxu0
      %v1321 = vadd.f32 %v1272, %v1320
      %v1322 = vpop.f32.mrf.mxu0
      %v1323 = vadd.f32 %v1274, %v1322
      %1324 = vmatmul.bf16.gmra.mxu0 %v358
      %v1325 = vpop.f32.mrf.mxu0
      %v1326 = vadd.f32 %v1277, %v1325
      %v1327 = vpop.f32.mrf.mxu0
      %v1328 = vadd.f32 %v1279, %v1327
      %1329 = vmatmul.bf16.gmra.mxu0 %v360
      %v1330 = vpop.f32.mrf.mxu0
      %v1331 = vadd.f32 %v1282, %v1330
      %v1332 = vpop.f32.mrf.mxu0
      %v1333 = vadd.f32 %v1284, %v1332
      %1334 = vmatmul.bf16.gmra.mxu0 %v362
      %v1335 = vpop.f32.mrf.mxu0
      %v1336 = vadd.f32 %v1287, %v1335
      %v1337 = vpop.f32.mrf.mxu0
      %v1338 = vadd.f32 %v1289, %v1337
      %1339 = vmatmul.bf16.gmra.mxu0 %v364
      %v1340 = vpop.f32.mrf.mxu0
      %v1341 = vadd.f32 %v1292, %v1340
      %v1342 = vpop.f32.mrf.mxu0
      %v1343 = vadd.f32 %v1294, %v1342
      %1344 = vmatmul.bf16.gmra.mxu0 %v366
      %v1345 = vpop.f32.mrf.mxu0
      %v1346 = vadd.f32 %v1297, %v1345
      %v1347 = vpop.f32.mrf.mxu0
      %v1348 = vadd.f32 %v1299, %v1347
      %1349 = vmatmul.bf16.gmra.mxu0 %v368
      %v1350 = vpop.f32.mrf.mxu0
      %v1351 = vadd.f32 %v1302, %v1350
      %v1352 = vpop.f32.mrf.mxu0
      %v1353 = vadd.f32 %v1304, %v1352
      %1354 = vdwg.mxu0
      %1355 = vmatpush.bf16.msra.mxu0 %v720
      %1356 = vmatpush.bf16.msra.mxu0 %v714
      %1357 = vmatpush.bf16.msra.mxu0 %v708
      %1358 = vmatpush.bf16.msra.mxu0 %v702
      %1359 = vmatpush.bf16.msra.mxu0 %v696
      %1360 = vmatpush.bf16.msra.mxu0 %v690
      %1361 = vmatpush.bf16.msra.mxu0 %v684
      %1362 = vmatpush.bf16.msra.mxu0 %v678
      %1363 = vmatmul.bf16.gmra.mxu0 %v353
      %v1364 = vpop.f32.mrf.mxu0
      %v1365 = vadd.f32 %v298, %v1364
      %v1366 = vpop.f32.mrf.mxu0
      %v1367 = vadd.f32 %v298, %v1366
      %1368 = vmatmul.bf16.gmra.mxu0 %v355
      %v1369 = vpop.f32.mrf.mxu0
      %v1370 = vadd.f32 %v298, %v1369
      %v1371 = vpop.f32.mrf.mxu0
      %v1372 = vadd.f32 %v298, %v1371
      %1373 = vmatmul.bf16.gmra.mxu0 %v357
      %v1374 = vpop.f32.mrf.mxu0
      %v1375 = vadd.f32 %v298, %v1374
      %v1376 = vpop.f32.mrf.mxu0
      %v1377 = vadd.f32 %v298, %v1376
      %1378 = vmatmul.bf16.gmra.mxu0 %v359
      %v1379 = vpop.f32.mrf.mxu0
      %v1380 = vadd.f32 %v298, %v1379
      %v1381 = vpop.f32.mrf.mxu0
      %v1382 = vadd.f32 %v298, %v1381
      %1383 = vmatmul.bf16.gmra.mxu0 %v361
      %v1384 = vpop.f32.mrf.mxu0
      %v1385 = vadd.f32 %v298, %v1384
      %v1386 = vpop.f32.mrf.mxu0
      %v1387 = vadd.f32 %v298, %v1386
      %1388 = vmatmul.bf16.gmra.mxu0 %v363
      %v1389 = vpop.f32.mrf.mxu0
      %v1390 = vadd.f32 %v298, %v1389
      %v1391 = vpop.f32.mrf.mxu0
      %v1392 = vadd.f32 %v298, %v1391
      %1393 = vmatmul.bf16.gmra.mxu0 %v365
      %v1394 = vpop.f32.mrf.mxu0
      %v1395 = vadd.f32 %v298, %v1394
      %v1396 = vpop.f32.mrf.mxu0
      %v1397 = vadd.f32 %v298, %v1396
      %1398 = vmatmul.bf16.gmra.mxu0 %v367
      %v1399 = vpop.f32.mrf.mxu0
      %v1400 = vadd.f32 %v298, %v1399
      %v1401 = vpop.f32.mrf.mxu0
      %v1402 = vadd.f32 %v298, %v1401
      %1403 = vdwg.mxu0
      %1404 = vmatpush.bf16.msra.mxu0 %v768
      %1405 = vmatpush.bf16.msra.mxu0 %v762
      %1406 = vmatpush.bf16.msra.mxu0 %v756
      %1407 = vmatpush.bf16.msra.mxu0 %v750
      %1408 = vmatpush.bf16.msra.mxu0 %v744
      %1409 = vmatpush.bf16.msra.mxu0 %v738
      %1410 = vmatpush.bf16.msra.mxu0 %v732
      %1411 = vmatpush.bf16.msra.mxu0 %v726
      %1412 = vmatmul.bf16.gmra.mxu0 %v354
      %v1413 = vpop.f32.mrf.mxu0
      %v1414 = vadd.f32 %v1365, %v1413
      %v1415 = vpop.f32.mrf.mxu0
      %v1416 = vadd.f32 %v1367, %v1415
      %1417 = vmatmul.bf16.gmra.mxu0 %v356
      %v1418 = vpop.f32.mrf.mxu0
      %v1419 = vadd.f32 %v1370, %v1418
      %v1420 = vpop.f32.mrf.mxu0
      %v1421 = vadd.f32 %v1372, %v1420
      %1422 = vmatmul.bf16.gmra.mxu0 %v358
      %v1423 = vpop.f32.mrf.mxu0
      %v1424 = vadd.f32 %v1375, %v1423
      %v1425 = vpop.f32.mrf.mxu0
      %v1426 = vadd.f32 %v1377, %v1425
      %1427 = vmatmul.bf16.gmra.mxu0 %v360
      %v1428 = vpop.f32.mrf.mxu0
      %v1429 = vadd.f32 %v1380, %v1428
      %v1430 = vpop.f32.mrf.mxu0
      %v1431 = vadd.f32 %v1382, %v1430
      %1432 = vmatmul.bf16.gmra.mxu0 %v362
      %v1433 = vpop.f32.mrf.mxu0
      %v1434 = vadd.f32 %v1385, %v1433
      %v1435 = vpop.f32.mrf.mxu0
      %v1436 = vadd.f32 %v1387, %v1435
      %1437 = vmatmul.bf16.gmra.mxu0 %v364
      %v1438 = vpop.f32.mrf.mxu0
      %v1439 = vadd.f32 %v1390, %v1438
      %v1440 = vpop.f32.mrf.mxu0
      %v1441 = vadd.f32 %v1392, %v1440
      %1442 = vmatmul.bf16.gmra.mxu0 %v366
      %v1443 = vpop.f32.mrf.mxu0
      %v1444 = vadd.f32 %v1395, %v1443
      %v1445 = vpop.f32.mrf.mxu0
      %v1446 = vadd.f32 %v1397, %v1445
      %1447 = vmatmul.bf16.gmra.mxu0 %v368
      %v1448 = vpop.f32.mrf.mxu0
      %v1449 = vadd.f32 %v1400, %v1448
      %v1450 = vpop.f32.mrf.mxu0
      %v1451 = vadd.f32 %v1402, %v1450
      %1452 = vdwg.mxu0
      %v1453 = vpack.c.bf16 %v1022, %v924
      %v1454 = vpack.c.bf16 %v1218, %v1120
      %v1455 = vpack.c.bf16 %v1414, %v1316
      %v1456 = vpack.c.bf16 %v1024, %v926
      %v1457 = vpack.c.bf16 %v1220, %v1122
      %v1458 = vpack.c.bf16 %v1416, %v1318
      %v1459 = vpack.c.bf16 %v1027, %v929
      %v1460 = vpack.c.bf16 %v1223, %v1125
      %v1461 = vpack.c.bf16 %v1419, %v1321
      %v1462 = vpack.c.bf16 %v1029, %v931
      %v1463 = vpack.c.bf16 %v1225, %v1127
      %v1464 = vpack.c.bf16 %v1421, %v1323
      %v1465 = vpack.c.bf16 %v1032, %v934
      %v1466 = vpack.c.bf16 %v1228, %v1130
      %v1467 = vpack.c.bf16 %v1424, %v1326
      %v1468 = vpack.c.bf16 %v1034, %v936
      %v1469 = vpack.c.bf16 %v1230, %v1132
      %v1470 = vpack.c.bf16 %v1426, %v1328
      %v1471 = vpack.c.bf16 %v1037, %v939
      %v1472 = vpack.c.bf16 %v1233, %v1135
      %v1473 = vpack.c.bf16 %v1429, %v1331
      %v1474 = vpack.c.bf16 %v1039, %v941
      %v1475 = vpack.c.bf16 %v1235, %v1137
      %v1476 = vpack.c.bf16 %v1431, %v1333
      %v1477 = vpack.c.bf16 %v1042, %v944
      %v1478 = vpack.c.bf16 %v1238, %v1140
      %v1479 = vpack.c.bf16 %v1434, %v1336
      %v1480 = vpack.c.bf16 %v1044, %v946
      %v1481 = vpack.c.bf16 %v1240, %v1142
      %v1482 = vpack.c.bf16 %v1436, %v1338
      %v1483 = vpack.c.bf16 %v1047, %v949
      %v1484 = vpack.c.bf16 %v1243, %v1145
      %v1485 = vpack.c.bf16 %v1439, %v1341
      %v1486 = vpack.c.bf16 %v1049, %v951
      %v1487 = vpack.c.bf16 %v1245, %v1147
      %v1488 = vpack.c.bf16 %v1441, %v1343
      %v1489 = vpack.c.bf16 %v1052, %v954
      %v1490 = vpack.c.bf16 %v1248, %v1150
      %v1491 = vpack.c.bf16 %v1444, %v1346
      %v1492 = vpack.c.bf16 %v1054, %v956
      %v1493 = vpack.c.bf16 %v1250, %v1152
      %v1494 = vpack.c.bf16 %v1446, %v1348
      %v1495 = vpack.c.bf16 %v1057, %v959
      %v1496 = vpack.c.bf16 %v1253, %v1155
      %v1497 = vpack.c.bf16 %v1449, %v1351
      %v1498 = vpack.c.bf16 %v1059, %v961
      %v1499 = vpack.c.bf16 %v1255, %v1157
      %v1500 = vpack.c.bf16 %v1451, %v1353
      %1501 = vst [vmem:[%s177] sm:$0xff] %v1453
      %1502 = vst [vmem:[%s177 + $0x8] sm:$0xff] %v1454
      %1503 = vst [vmem:[%s177 + $0x10] sm:$0xff] %v1455
      %1504 = vst [vmem:[%s177 + $0x18] sm:$0xff] %v1456
      %1505 = vst [vmem:[%s177 + $0x20] sm:$0xff] %v1457
      %1506 = vst [vmem:[%s177 + $0x28] sm:$0xff] %v1458
      %1507 = vst [vmem:[%s177 + $0x30] sm:$0xff] %v1459
      %1508 = vst [vmem:[%s177 + $0x38] sm:$0xff] %v1460
      %1509 = vst [vmem:[%s177 + $0x40] sm:$0xff] %v1461
      %1510 = vst [vmem:[%s177 + $0x48] sm:$0xff] %v1462
      %1511 = vst [vmem:[%s177 + $0x50] sm:$0xff] %v1463
      %1512 = vst [vmem:[%s177 + $0x58] sm:$0xff] %v1464
      %1513 = vst [vmem:[%s177 + $0x60] sm:$0xff] %v1465
      %1514 = vst [vmem:[%s177 + $0x68] sm:$0xff] %v1466
      %1515 = vst [vmem:[%s177 + $0x70] sm:$0xff] %v1467
      %1516 = vst [vmem:[%s177 + $0x78] sm:$0xff] %v1468
      %1517 = vst [vmem:[%s177 + $0x80] sm:$0xff] %v1469
      %1518 = vst [vmem:[%s177 + $0x88] sm:$0xff] %v1470
      %1519 = vst [vmem:[%s177 + $0x90] sm:$0xff] %v1471
      %1520 = vst [vmem:[%s177 + $0x98] sm:$0xff] %v1472
      %1521 = vst [vmem:[%s177 + $0xa0] sm:$0xff] %v1473
      %1522 = vst [vmem:[%s177 + $0xa8] sm:$0xff] %v1474
      %1523 = vst [vmem:[%s177 + $0xb0] sm:$0xff] %v1475
      %1524 = vst [vmem:[%s177 + $0xb8] sm:$0xff] %v1476
      %1525 = vst [vmem:[%s177 + $0xc0] sm:$0xff] %v1477
      %1526 = vst [vmem:[%s177 + $0xc8] sm:$0xff] %v1478
      %1527 = vst [vmem:[%s177 + $0xd0] sm:$0xff] %v1479
      %1528 = vst [vmem:[%s177 + $0xd8] sm:$0xff] %v1480
      %1529 = vst [vmem:[%s177 + $0xe0] sm:$0xff] %v1481
      %1530 = vst [vmem:[%s177 + $0xe8] sm:$0xff] %v1482
      %1531 = vst [vmem:[%s177 + $0xf0] sm:$0xff] %v1483
      %1532 = vst [vmem:[%s177 + $0xf8] sm:$0xff] %v1484
      %1533 = vst [vmem:[%s177 + $0x100] sm:$0xff] %v1485
      %1534 = vst [vmem:[%s177 + $0x108] sm:$0xff] %v1486
      %1535 = vst [vmem:[%s177 + $0x110] sm:$0xff] %v1487
      %1536 = vst [vmem:[%s177 + $0x118] sm:$0xff] %v1488
      %1537 = vst [vmem:[%s177 + $0x120] sm:$0xff] %v1489
      %1538 = vst [vmem:[%s177 + $0x128] sm:$0xff] %v1490
      %1539 = vst [vmem:[%s177 + $0x130] sm:$0xff] %v1491
      %1540 = vst [vmem:[%s177 + $0x138] sm:$0xff] %v1492
      %1541 = vst [vmem:[%s177 + $0x140] sm:$0xff] %v1493
      %1542 = vst [vmem:[%s177 + $0x148] sm:$0xff] %v1494
      %1543 = vst [vmem:[%s177 + $0x150] sm:$0xff] %v1495
      %1544 = vst [vmem:[%s177 + $0x158] sm:$0xff] %v1496
      %1545 = vst [vmem:[%s177 + $0x160] sm:$0xff] %v1497
      %1546 = vst [vmem:[%s177 + $0x168] sm:$0xff] %v1498
      %1547 = vst [vmem:[%s177 + $0x170] sm:$0xff] %v1499
      %1548 = vst [vmem:[%s177 + $0x178] sm:$0xff] %v1500
      %s1549 = smul.u32 16, %s14
      %p1550 = scmp.lt.s32.totalorder %s1549, 31
      %s1551 = scalar_select %p1550, %s1549, 31
      %s1552 = smul.addr %s1551, 6
      %s1553 = smul.addr %s1552, 4
      %s1554 = scalar_lea.vmem %s3, %s1553
      // Predicated region
      $region33: #{bert_base_uncased_forward.11} parent=31 // pred_check
        %p1555 = pneg %p100
      $region34: #{bert_base_uncased_forward.11} parent=31 // pred_check_branch
        %1557 = sbr.rel (%p1555) target = $region36
      $region35: #{bert_base_uncased_forward.11} parent=31 // pred_region
        %s1558 = smul.u32 16, %s14
      $region36: #{bert_base_uncased_forward.11} parent=31 // pred_fallthru
        _
    $region32: #{bert_base_uncased_forward.11} parent=5 // pred_fallthru
      _
    %p1559 = scmp.le.s32.totalorder 2, %s9
    // Predicated region
    $region37: #{bert_base_uncased_forward.11} parent=5 // pred_check
      %p1560 = pneg %p1559
    $region38: #{bert_base_uncased_forward.11} parent=5 // pred_check_branch
      %1562 = sbr.rel (%p1560) target = $region40
    $region39: #{bert_base_uncased_forward.11} parent=5 // pred_region
      %s1563 = ssub.s32 %s9, 2
      // Predicated region
      $region41: #{bert_base_uncased_forward.11} parent=39 // pred_check
        %p1564 = pneg %p106
      $region42: #{bert_base_uncased_forward.11} parent=39 // pred_check_branch
        %1566 = sbr.rel (%p1564) target = $region44
      $region43: #{bert_base_uncased_forward.11} parent=39 // pred_region
        %s1567 = smul.u32 16, %s15
        %p1568 = scmp.lt.s32.totalorder %s1567, 31
        %s1569 = scalar_select %p1568, %s1567, 31
        %s1570 = smul.addr %s1569, 6
        %s1571 = smul.addr %s1570, 4
        %s1572 = scalar_lea.vmem %s3, %s1571
      $region44: #{bert_base_uncased_forward.11} parent=39 // pred_fallthru
        _
    $region40: #{bert_base_uncased_forward.11} parent=5 // pred_fallthru
      _
  $region6: #{bert_base_uncased_forward.11} parent=0 // loop_footer
    %s13 = sadd.s32 1, %s9
  $region7: #{bert_base_uncased_forward.11} parent=0 // loop_footer_branch
    %8 = sbr.rel target = $region3
  $region8: #{bert_base_uncased_forward.11} parent=0 // loop_exit
    _

// kernel: bert_base_uncased_forward.13
$region0: #{bert_base_uncased_forward.13}
  #allocation0 [shape = 'u32[]', space=smem, size = 0x4, offset = 0x4, fixed_abs, tag = 'smem constant byte address 0x4 - core index']
  #allocation1 [shape = 'u32[72,128]{1,0:T(1,128)}', space=vmem, size = 0x9000, scoped, tag = 'internal scratch']
  %s0 = inlined_call_operand.vmem [shape: bf16[256,256], index: 0, kind: input, shape index: {}]
  %s1 = inlined_call_operand.vmem [shape: bf16[256,256], index: 1, kind: input, shape index: {}]
  %s2 = inlined_call_operand.vmem [shape: f32[1,256], index: 2, kind: input, shape index: {}]
  %s3 = inlined_call_operand.vmem [shape: bf16[256,256], index: 3, kind: input, shape index: {}]
  %s4 = inlined_call_operand.vmem [shape: f32[1,256], index: 4, kind: input, shape index: {}]
  %s5 = inlined_call_operand.vmem [shape: f32[1,256], index: 5, kind: input, shape index: {}]
  %s6 = inlined_call_operand.vmem [shape: bf16[256,256], index: 6, kind: output, shape index: {}]
  %s7 = sld [smem:[#allocation0]]
  $region57: #{bert_base_uncased_forward.13} parent=0
    _
  %s9 = ssub.s32 1, %s7
  %s10 = scalar_select 0, %s9, %s7
  loop: start=0, step=1, limit=4
  $region2: #{bert_base_uncased_forward.13} parent=0 // loop_pre_header
    _
  $region3: #{bert_base_uncased_forward.13} parent=0 // loop_header
    %s12 = sphi 0, %s16
    %p13 = scmp.ge.s32.totalorder %s12, 4
    %s22 = sphi 0, %s24
    %s25 = sphi 0, %s22
    %s26 = sphi 0, %s25
    %s42 = sphi 0, %s26
    %s46 = sphi 0, %s46
    %s48 = sphi 0, %s46
    %s49 = sphi 0, %s48
    %s63 = sphi 0, %s49
    %s67 = sphi 0, %s67
    %s69 = sphi 0, %s67
    %s70 = sphi 0, %s69
    %s84 = sphi 0, %s70
    %s90 = sphi 0, %s92
    %s93 = sphi 0, %s90
    %s94 = sphi 0, %s93
    %s110 = sphi 0, %s94
    %s114 = sphi 0, %s114
    %s116 = sphi 0, %s114
    %s117 = sphi 0, %s116
    %s131 = sphi 0, %s117
    %s135 = sphi 0, %s135
    %s137 = sphi 0, %s135
    %s138 = sphi 0, %s137
    %s152 = sphi 0, %s138
    %s158 = sphi 0, %s160
    %s161 = sphi 0, %s158
    %s162 = sphi 0, %s161
    %s178 = sphi 0, %s162
  $region4: #{bert_base_uncased_forward.13} parent=0 // loop_header_branch
    %15 = sbr.rel (%p13) target = $region8
  $region5: #{bert_base_uncased_forward.13} parent=0 // loop_body
    %s17 = ssub.s32 %s12, 1
    %s18 = ssub.s32 %s12, 2
    %s19 = sadd.s32 %s12, 1
    %s20 = ssub.s32 %s12, %s19
    %p21 = scmp.eq.s32.totalorder %s20, 0
    %s23 = sadd.s32 %s22, 1
    %s24 = scalar_select %p21, %s22, %s23
    %p27 = pneg %p21
    %p28 = scmp.eq.s32.totalorder %s12, 1
    %p29 = por %p27, %p28
    %p30 = scmp.ne.s32.totalorder %s22, %s25
    %p31 = scmp.eq.s32.totalorder %s12, 0
    %p32 = por %p30, %p31
    %p33 = scmp.ne.s32.totalorder %s22, %s25
    %p34 = scmp.eq.s32.totalorder %s17, 1
    %p35 = por %p33, %p34
    %p36 = scmp.ne.s32.totalorder %s25, %s26
    %p37 = scmp.eq.s32.totalorder %s17, 0
    %p38 = por %p36, %p37
    %p39 = scmp.ne.s32.totalorder %s25, %s26
    %p40 = scmp.eq.s32.totalorder %s18, 1
    %p41 = por %p39, %p40
    %p43 = scmp.ne.s32.totalorder %s26, %s42
    %p44 = scmp.eq.s32.totalorder %s18, 0
    %p45 = por %p43, %p44
    %s47 = sadd.s32 %s46, 1
    %p50 = scmp.eq.s32.totalorder %s12, 1
    %p51 = scmp.ne.s32.totalorder %s46, %s48
    %p52 = scmp.eq.s32.totalorder %s12, 0
    %p53 = por %p51, %p52
    %p54 = scmp.ne.s32.totalorder %s46, %s48
    %p55 = scmp.eq.s32.totalorder %s17, 1
    %p56 = por %p54, %p55
    %p57 = scmp.ne.s32.totalorder %s48, %s49
    %p58 = scmp.eq.s32.totalorder %s17, 0
    %p59 = por %p57, %p58
    %p60 = scmp.ne.s32.totalorder %s48, %s49
    %p61 = scmp.eq.s32.totalorder %s18, 1
    %p62 = por %p60, %p61
    %p64 = scmp.ne.s32.totalorder %s49, %s63
    %p65 = scmp.eq.s32.totalorder %s18, 0
    %p66 = por %p64, %p65
    %s68 = sadd.s32 %s67, 1
    %p71 = scmp.eq.s32.totalorder %s12, 1
    %p72 = scmp.ne.s32.totalorder %s67, %s69
    %p73 = scmp.eq.s32.totalorder %s12, 0
    %p74 = por %p72, %p73
    %p75 = scmp.ne.s32.totalorder %s67, %s69
    %p76 = scmp.eq.s32.totalorder %s17, 1
    %p77 = por %p75, %p76
    %p78 = scmp.ne.s32.totalorder %s69, %s70
    %p79 = scmp.eq.s32.totalorder %s17, 0
    %p80 = por %p78, %p79
    %p81 = scmp.ne.s32.totalorder %s69, %s70
    %p82 = scmp.eq.s32.totalorder %s18, 1
    %p83 = por %p81, %p82
    %p85 = scmp.ne.s32.totalorder %s70, %s84
    %p86 = scmp.eq.s32.totalorder %s18, 0
    %p87 = por %p85, %p86
    %s88 = ssub.s32 %s12, %s19
    %p89 = scmp.eq.s32.totalorder %s88, 0
    %s91 = sadd.s32 %s90, 1
    %s92 = scalar_select %p89, %s90, %s91
    %p95 = pneg %p89
    %p96 = scmp.eq.s32.totalorder %s12, 1
    %p97 = por %p95, %p96
    %p98 = scmp.ne.s32.totalorder %s90, %s93
    %p99 = scmp.eq.s32.totalorder %s12, 0
    %p100 = por %p98, %p99
    %p101 = scmp.ne.s32.totalorder %s90, %s93
    %p102 = scmp.eq.s32.totalorder %s17, 1
    %p103 = por %p101, %p102
    %p104 = scmp.ne.s32.totalorder %s93, %s94
    %p105 = scmp.eq.s32.totalorder %s17, 0
    %p106 = por %p104, %p105
    %p107 = scmp.ne.s32.totalorder %s93, %s94
    %p108 = scmp.eq.s32.totalorder %s18, 1
    %p109 = por %p107, %p108
    %p111 = scmp.ne.s32.totalorder %s94, %s110
    %p112 = scmp.eq.s32.totalorder %s18, 0
    %p113 = por %p111, %p112
    %s115 = sadd.s32 %s114, 1
    %p118 = scmp.eq.s32.totalorder %s12, 1
    %p119 = scmp.ne.s32.totalorder %s114, %s116
    %p120 = scmp.eq.s32.totalorder %s12, 0
    %p121 = por %p119, %p120
    %p122 = scmp.ne.s32.totalorder %s114, %s116
    %p123 = scmp.eq.s32.totalorder %s17, 1
    %p124 = por %p122, %p123
    %p125 = scmp.ne.s32.totalorder %s116, %s117
    %p126 = scmp.eq.s32.totalorder %s17, 0
    %p127 = por %p125, %p126
    %p128 = scmp.ne.s32.totalorder %s116, %s117
    %p129 = scmp.eq.s32.totalorder %s18, 1
    %p130 = por %p128, %p129
    %p132 = scmp.ne.s32.totalorder %s117, %s131
    %p133 = scmp.eq.s32.totalorder %s18, 0
    %p134 = por %p132, %p133
    %s136 = sadd.s32 %s135, 1
    %p139 = scmp.eq.s32.totalorder %s12, 1
    %p140 = scmp.ne.s32.totalorder %s135, %s137
    %p141 = scmp.eq.s32.totalorder %s12, 0
    %p142 = por %p140, %p141
    %p143 = scmp.ne.s32.totalorder %s135, %s137
    %p144 = scmp.eq.s32.totalorder %s17, 1
    %p145 = por %p143, %p144
    %p146 = scmp.ne.s32.totalorder %s137, %s138
    %p147 = scmp.eq.s32.totalorder %s17, 0
    %p148 = por %p146, %p147
    %p149 = scmp.ne.s32.totalorder %s137, %s138
    %p150 = scmp.eq.s32.totalorder %s18, 1
    %p151 = por %p149, %p150
    %p153 = scmp.ne.s32.totalorder %s138, %s152
    %p154 = scmp.eq.s32.totalorder %s18, 0
    %p155 = por %p153, %p154
    %s156 = ssub.s32 %s12, %s19
    %p157 = scmp.eq.s32.totalorder %s156, 0
    %s159 = sadd.s32 %s158, 1
    %s160 = scalar_select %p157, %s158, %s159
    %p163 = pneg %p157
    %p164 = scmp.eq.s32.totalorder %s12, 1
    %p165 = por %p163, %p164
    %p166 = scmp.ne.s32.totalorder %s158, %s161
    %p167 = scmp.eq.s32.totalorder %s12, 0
    %p168 = por %p166, %p167
    %p169 = scmp.ne.s32.totalorder %s158, %s161
    %p170 = scmp.eq.s32.totalorder %s17, 1
    %p171 = por %p169, %p170
    %p172 = scmp.ne.s32.totalorder %s161, %s162
    %p173 = scmp.eq.s32.totalorder %s17, 0
    %p174 = por %p172, %p173
    %p175 = scmp.ne.s32.totalorder %s161, %s162
    %p176 = scmp.eq.s32.totalorder %s18, 1
    %p177 = por %p175, %p176
    %p179 = scmp.ne.s32.totalorder %s162, %s178
    %p180 = scmp.eq.s32.totalorder %s18, 0
    %p181 = por %p179, %p180
    %p182 = scmp.le.s32.totalorder 1, %s12
    %p183 = scmp.lt.s32.totalorder %s12, 3
    %p184 = pnand %p182, %p183
    %p185 = pneg %p184
    // Predicated region
    $region9: #{bert_base_uncased_forward.13} parent=5 // pred_check
      _
    $region10: #{bert_base_uncased_forward.13} parent=5 // pred_check_branch
      %187 = sbr.rel (%p184) target = $region12
    $region11: #{bert_base_uncased_forward.13} parent=5 // pred_region
      %s188 = ssub.s32 %s12, 1
      // Predicated region
      $region13: #{bert_base_uncased_forward.13} parent=11 // pred_check
        %p189 = pneg %p59
      $region14: #{bert_base_uncased_forward.13} parent=11 // pred_check_branch
        %191 = sbr.rel (%p189) target = $region16
      $region15: #{bert_base_uncased_forward.13} parent=11 // pred_region
        _
      $region16: #{bert_base_uncased_forward.13} parent=11 // pred_fallthru
        _
      // Predicated region
      $region17: #{bert_base_uncased_forward.13} parent=11 // pred_check
        %p192 = pneg %p80
      $region18: #{bert_base_uncased_forward.13} parent=11 // pred_check_branch
        %194 = sbr.rel (%p192) target = $region20
      $region19: #{bert_base_uncased_forward.13} parent=11 // pred_region
        _
      $region20: #{bert_base_uncased_forward.13} parent=11 // pred_fallthru
        _
      // Predicated region
      $region21: #{bert_base_uncased_forward.13} parent=11 // pred_check
        %p195 = pneg %p127
      $region22: #{bert_base_uncased_forward.13} parent=11 // pred_check_branch
        %197 = sbr.rel (%p195) target = $region24
      $region23: #{bert_base_uncased_forward.13} parent=11 // pred_region
        _
      $region24: #{bert_base_uncased_forward.13} parent=11 // pred_fallthru
        _
      // Predicated region
      $region25: #{bert_base_uncased_forward.13} parent=11 // pred_check
        %p198 = pneg %p148
      $region26: #{bert_base_uncased_forward.13} parent=11 // pred_check_branch
        %200 = sbr.rel (%p198) target = $region28
      $region27: #{bert_base_uncased_forward.13} parent=11 // pred_region
        _
      $region28: #{bert_base_uncased_forward.13} parent=11 // pred_fallthru
        _
    $region12: #{bert_base_uncased_forward.13} parent=5 // pred_fallthru
      _
    %p201 = scmp.lt.s32.totalorder %s12, 2
    // Predicated region
    $region29: #{bert_base_uncased_forward.13} parent=5 // pred_check
      %p202 = pneg %p201
    $region30: #{bert_base_uncased_forward.13} parent=5 // pred_check_branch
      %204 = sbr.rel (%p202) target = $region32
    $region31: #{bert_base_uncased_forward.13} parent=5 // pred_region
      // Predicated region
      $region33: #{bert_base_uncased_forward.13} parent=31 // pred_check
        %p205 = pneg %p32
      $region34: #{bert_base_uncased_forward.13} parent=31 // pred_check_branch
        %207 = sbr.rel (%p205) target = $region36
      $region35: #{bert_base_uncased_forward.13} parent=31 // pred_region
        %s208 = smul.u32 16, %s12
        %p209 = scmp.lt.s32.totalorder %s208, 31
        %s210 = scalar_select %p209, %s208, 31
        %s211 = smul.addr %s210, 2
        %s212 = smul.addr %s211, 4
        %s213 = scalar_lea.vmem %s0, %s212
        %s214 = smul.u32 16, %s12
      $region36: #{bert_base_uncased_forward.13} parent=31 // pred_fallthru
        _
      // Predicated region
      $region37: #{bert_base_uncased_forward.13} parent=31 // pred_check
        %p215 = pneg %p100
      $region38: #{bert_base_uncased_forward.13} parent=31 // pred_check_branch
        %217 = sbr.rel (%p215) target = $region40
      $region39: #{bert_base_uncased_forward.13} parent=31 // pred_region
        %s218 = smul.u32 16, %s12
        %p219 = scmp.lt.s32.totalorder %s218, 31
        %s220 = scalar_select %p219, %s218, 31
        %s221 = smul.addr %s220, 2
        %s222 = smul.addr %s221, 4
        %s223 = scalar_lea.vmem %s3, %s222
        %s224 = smul.u32 16, %s12
      $region40: #{bert_base_uncased_forward.13} parent=31 // pred_fallthru
        _
    $region32: #{bert_base_uncased_forward.13} parent=5 // pred_fallthru
      _
    %p225 = scmp.le.s32.totalorder 1, %s12
    %p226 = scmp.lt.s32.totalorder %s12, 3
    %p227 = pnand %p225, %p226
    %p228 = pneg %p227
    // Predicated region
    $region41: #{bert_base_uncased_forward.13} parent=5 // pred_check
      _
    $region42: #{bert_base_uncased_forward.13} parent=5 // pred_check_branch
      %230 = sbr.rel (%p227) target = $region44
    $region43: #{bert_base_uncased_forward.13} parent=5 // pred_region
      %s231 = ssub.s32 %s12, 1
      %s232 = smul.u32 16, %s17
      %p233 = scmp.lt.s32.totalorder %s232, 31
      %s234 = scalar_select %p233, %s232, 31
      %s235 = smul.addr %s234, 2
      %s236 = smul.addr %s235, 4
      %s237 = scalar_lea.vmem %s0, %s236
      %p238 = pneg %p38
      %p239 = pneg %p35
      %p240 = pneg %p59
      %p241 = pneg %p56
      %p242 = pneg %p80
      %p243 = pneg %p77
      %s244 = smul.u32 16, %s17
      %p245 = scmp.lt.s32.totalorder %s244, 31
      %s246 = scalar_select %p245, %s244, 31
      %s247 = smul.addr %s246, 2
      %s248 = smul.addr %s247, 4
      %s249 = scalar_lea.vmem %s3, %s248
      %p250 = pneg %p106
      %p251 = pneg %p103
      %p252 = pneg %p127
      %p253 = pneg %p124
      %p254 = pneg %p148
      %p255 = pneg %p145
      %p256 = pneg %p174
      %p257 = pneg %p171
      %s258 = smul.u32 16, %s17
      %p259 = scmp.lt.s32.totalorder %s258, 31
      %s260 = scalar_select %p259, %s258, 31
      %s261 = smul.addr %s260, 2
      %s262 = smul.addr %s261, 4
      %s263 = scalar_lea.vmem %s6, %s262
      %s264 = smul.u32 16, %s17
      %p265 = scmp.lt.s32.totalorder %s264, 31
      %s266 = scalar_select %p265, %s264, 31
      %s267 = smul.addr %s266, 2
      %s268 = smul.addr %s267, 4
      %s269 = scalar_lea.vmem %s0, %s268
      %s270 = smul.u32 16, %s17
      %s271 = smul.u32 16, %s17
      %p272 = scmp.lt.s32.totalorder %s271, 31
      %s273 = scalar_select %p272, %s271, 31
      %s274 = smul.addr %s273, 2
      %s275 = smul.addr %s274, 4
      %s276 = scalar_lea.vmem %s3, %s275
      %s277 = smul.u32 16, %s17
      %s278 = smul.u32 16, %s17
      %p279 = scmp.lt.s32.totalorder %s278, 31
      %s280 = scalar_select %p279, %s278, 31
      %s281 = smul.addr %s280, 2
      %s282 = smul.addr %s281, 4
      %s283 = scalar_lea.vmem %s6, %s282
      %s284 = smul.u32 16, %s17
      %v285 = vld [vmem:[%s269] sm:$0xff]
      %v286 = vld [vmem:[%s269 + $0x8] sm:$0xff]
      %v287 = vld [vmem:[%s269 + $0x10] sm:$0xff]
      %v288 = vld [vmem:[%s269 + $0x18] sm:$0xff]
      %v289 = vld [vmem:[%s269 + $0x20] sm:$0xff]
      %v290 = vld [vmem:[%s269 + $0x28] sm:$0xff]
      %v291 = vld [vmem:[%s269 + $0x30] sm:$0xff]
      %v292 = vld [vmem:[%s269 + $0x38] sm:$0xff]
      %v293 = vld [vmem:[%s269 + $0x40] sm:$0xff]
      %v294 = vld [vmem:[%s269 + $0x48] sm:$0xff]
      %v295 = vld [vmem:[%s269 + $0x50] sm:$0xff]
      %v296 = vld [vmem:[%s269 + $0x58] sm:$0xff]
      %v297 = vld [vmem:[%s269 + $0x60] sm:$0xff]
      %v298 = vld [vmem:[%s269 + $0x68] sm:$0xff]
      %v299 = vld [vmem:[%s269 + $0x70] sm:$0xff]
      %v300 = vld [vmem:[%s269 + $0x78] sm:$0xff]
      %v301 = vld [vmem:[%s1] sm:$0xff]
      %v302 = vld [vmem:[%s1 + $0x8] sm:$0xff]
      %v303 = vld [vmem:[%s1 + $0x10] sm:$0xff]
      %v304 = vld [vmem:[%s1 + $0x18] sm:$0xff]
      %v305 = vld [vmem:[%s1 + $0x20] sm:$0xff]
      %v306 = vld [vmem:[%s1 + $0x28] sm:$0xff]
      %v307 = vld [vmem:[%s1 + $0x30] sm:$0xff]
      %v308 = vld [vmem:[%s1 + $0x38] sm:$0xff]
      %v309 = vld [vmem:[%s1 + $0x40] sm:$0xff]
      %v310 = vld [vmem:[%s1 + $0x48] sm:$0xff]
      %v311 = vld [vmem:[%s1 + $0x50] sm:$0xff]
      %v312 = vld [vmem:[%s1 + $0x58] sm:$0xff]
      %v313 = vld [vmem:[%s1 + $0x60] sm:$0xff]
      %v314 = vld [vmem:[%s1 + $0x68] sm:$0xff]
      %v315 = vld [vmem:[%s1 + $0x70] sm:$0xff]
      %v316 = vld [vmem:[%s1 + $0x78] sm:$0xff]
      %v317 = vld [vmem:[%s1 + $0x80] sm:$0xff]
      %v318 = vld [vmem:[%s1 + $0x88] sm:$0xff]
      %v319 = vld [vmem:[%s1 + $0x90] sm:$0xff]
      %v320 = vld [vmem:[%s1 + $0x98] sm:$0xff]
      %v321 = vld [vmem:[%s1 + $0xa0] sm:$0xff]
      %v322 = vld [vmem:[%s1 + $0xa8] sm:$0xff]
      %v323 = vld [vmem:[%s1 + $0xb0] sm:$0xff]
      %v324 = vld [vmem:[%s1 + $0xb8] sm:$0xff]
      %v325 = vld [vmem:[%s1 + $0xc0] sm:$0xff]
      %v326 = vld [vmem:[%s1 + $0xc8] sm:$0xff]
      %v327 = vld [vmem:[%s1 + $0xd0] sm:$0xff]
      %v328 = vld [vmem:[%s1 + $0xd8] sm:$0xff]
      %v329 = vld [vmem:[%s1 + $0xe0] sm:$0xff]
      %v330 = vld [vmem:[%s1 + $0xe8] sm:$0xff]
      %v331 = vld [vmem:[%s1 + $0xf0] sm:$0xff]
      %v332 = vld [vmem:[%s1 + $0xf8] sm:$0xff]
      %v333 = vld [vmem:[%s2] sm:$0x3]
      %v335 = vperm.slane %v333, 0
      %v336 = vperm.slane %v333, 1
      %v355 = vunpack.c.l.b16 %v285
      %v356 = vunpack.c.h.b16 %v285
      %v357 = vunpack.c.l.b16 %v286
      %v358 = vunpack.c.h.b16 %v286
      %v359 = vunpack.c.l.b16 %v287
      %v360 = vunpack.c.h.b16 %v287
      %v361 = vunpack.c.l.b16 %v288
      %v362 = vunpack.c.h.b16 %v288
      %v363 = vunpack.c.l.b16 %v289
      %v364 = vunpack.c.h.b16 %v289
      %v365 = vunpack.c.l.b16 %v290
      %v366 = vunpack.c.h.b16 %v290
      %v367 = vunpack.c.l.b16 %v291
      %v368 = vunpack.c.h.b16 %v291
      %v369 = vunpack.c.l.b16 %v292
      %v370 = vunpack.c.h.b16 %v292
      %v371 = vunpack.c.l.b16 %v293
      %v372 = vunpack.c.h.b16 %v293
      %v373 = vunpack.c.l.b16 %v294
      %v374 = vunpack.c.h.b16 %v294
      %v375 = vunpack.c.l.b16 %v295
      %v376 = vunpack.c.h.b16 %v295
      %v377 = vunpack.c.l.b16 %v296
      %v378 = vunpack.c.h.b16 %v296
      %v379 = vunpack.c.l.b16 %v297
      %v380 = vunpack.c.h.b16 %v297
      %v381 = vunpack.c.l.b16 %v298
      %v382 = vunpack.c.h.b16 %v298
      %v383 = vunpack.c.l.b16 %v299
      %v384 = vunpack.c.h.b16 %v299
      %v385 = vunpack.c.l.b16 %v300
      %v386 = vunpack.c.h.b16 %v300
      %v387 = vpack.c.b16 %v357, %v355
      %v388 = vpack.c.b16 %v358, %v356
      %v389 = vpack.c.b16 %v361, %v359
      %v390 = vpack.c.b16 %v362, %v360
      %v391 = vpack.c.b16 %v365, %v363
      %v392 = vpack.c.b16 %v366, %v364
      %v393 = vpack.c.b16 %v369, %v367
      %v394 = vpack.c.b16 %v370, %v368
      %v395 = vpack.c.b16 %v373, %v371
      %v396 = vpack.c.b16 %v374, %v372
      %v397 = vpack.c.b16 %v377, %v375
      %v398 = vpack.c.b16 %v378, %v376
      %v399 = vpack.c.b16 %v381, %v379
      %v400 = vpack.c.b16 %v382, %v380
      %v401 = vpack.c.b16 %v385, %v383
      %v402 = vpack.c.b16 %v386, %v384
      %v451 = vunpack.c.l.b16 %v301
      %v452 = vunpack.c.h.b16 %v301
      %v453 = vunpack.c.l.b16 %v302
      %v454 = vunpack.c.h.b16 %v302
      %v455 = vunpack.c.l.b16 %v303
      %v456 = vunpack.c.h.b16 %v303
      %v457 = vunpack.c.l.b16 %v304
      %v458 = vunpack.c.h.b16 %v304
      %v459 = vunpack.c.l.b16 %v305
      %v460 = vunpack.c.h.b16 %v305
      %v461 = vunpack.c.l.b16 %v306
      %v462 = vunpack.c.h.b16 %v306
      %v463 = vunpack.c.l.b16 %v307
      %v464 = vunpack.c.h.b16 %v307
      %v465 = vunpack.c.l.b16 %v308
      %v466 = vunpack.c.h.b16 %v308
      %v467 = vunpack.c.l.b16 %v309
      %v468 = vunpack.c.h.b16 %v309
      %v469 = vunpack.c.l.b16 %v310
      %v470 = vunpack.c.h.b16 %v310
      %v471 = vunpack.c.l.b16 %v311
      %v472 = vunpack.c.h.b16 %v311
      %v473 = vunpack.c.l.b16 %v312
      %v474 = vunpack.c.h.b16 %v312
      %v475 = vunpack.c.l.b16 %v313
      %v476 = vunpack.c.h.b16 %v313
      %v477 = vunpack.c.l.b16 %v314
      %v478 = vunpack.c.h.b16 %v314
      %v479 = vunpack.c.l.b16 %v315
      %v480 = vunpack.c.h.b16 %v315
      %v481 = vunpack.c.l.b16 %v316
      %v482 = vunpack.c.h.b16 %v316
      %v483 = vunpack.c.l.b16 %v317
      %v484 = vunpack.c.h.b16 %v317
      %v485 = vunpack.c.l.b16 %v318
      %v486 = vunpack.c.h.b16 %v318
      %v487 = vunpack.c.l.b16 %v319
      %v488 = vunpack.c.h.b16 %v319
      %v489 = vunpack.c.l.b16 %v320
      %v490 = vunpack.c.h.b16 %v320
      %v491 = vunpack.c.l.b16 %v321
      %v492 = vunpack.c.h.b16 %v321
      %v493 = vunpack.c.l.b16 %v322
      %v494 = vunpack.c.h.b16 %v322
      %v495 = vunpack.c.l.b16 %v323
      %v496 = vunpack.c.h.b16 %v323
      %v497 = vunpack.c.l.b16 %v324
      %v498 = vunpack.c.h.b16 %v324
      %v499 = vunpack.c.l.b16 %v325
      %v500 = vunpack.c.h.b16 %v325
      %v501 = vunpack.c.l.b16 %v326
      %v502 = vunpack.c.h.b16 %v326
      %v503 = vunpack.c.l.b16 %v327
      %v504 = vunpack.c.h.b16 %v327
      %v505 = vunpack.c.l.b16 %v328
      %v506 = vunpack.c.h.b16 %v328
      %v507 = vunpack.c.l.b16 %v329
      %v508 = vunpack.c.h.b16 %v329
      %v509 = vunpack.c.l.b16 %v330
      %v510 = vunpack.c.h.b16 %v330
      %v511 = vunpack.c.l.b16 %v331
      %v512 = vunpack.c.h.b16 %v331
      %v513 = vunpack.c.l.b16 %v332
      %v514 = vunpack.c.h.b16 %v332
      %v515 = vpack.c.b16 %v453, %v451
      %v516 = vpack.c.b16 %v454, %v452
      %v517 = vpack.c.b16 %v457, %v455
      %v518 = vpack.c.b16 %v458, %v456
      %v519 = vpack.c.b16 %v461, %v459
      %v520 = vpack.c.b16 %v462, %v460
      %v521 = vpack.c.b16 %v465, %v463
      %v522 = vpack.c.b16 %v466, %v464
      %v523 = vpack.c.b16 %v469, %v467
      %v524 = vpack.c.b16 %v470, %v468
      %v525 = vpack.c.b16 %v473, %v471
      %v526 = vpack.c.b16 %v474, %v472
      %v527 = vpack.c.b16 %v477, %v475
      %v528 = vpack.c.b16 %v478, %v476
      %v529 = vpack.c.b16 %v481, %v479
      %v530 = vpack.c.b16 %v482, %v480
      %v531 = vpack.c.b16 %v485, %v483
      %v532 = vpack.c.b16 %v486, %v484
      %v533 = vpack.c.b16 %v489, %v487
      %v534 = vpack.c.b16 %v490, %v488
      %v535 = vpack.c.b16 %v493, %v491
      %v536 = vpack.c.b16 %v494, %v492
      %v537 = vpack.c.b16 %v497, %v495
      %v538 = vpack.c.b16 %v498, %v496
      %v539 = vpack.c.b16 %v501, %v499
      %v540 = vpack.c.b16 %v502, %v500
      %v541 = vpack.c.b16 %v505, %v503
      %v542 = vpack.c.b16 %v506, %v504
      %v543 = vpack.c.b16 %v509, %v507
      %v544 = vpack.c.b16 %v510, %v508
      %v545 = vpack.c.b16 %v513, %v511
      %v546 = vpack.c.b16 %v514, %v512
      %579 = vmatpush.bf16.msra.mxu0 %v529
      %580 = vmatpush.bf16.msra.mxu0 %v527
      %581 = vmatpush.bf16.msra.mxu0 %v525
      %582 = vmatpush.bf16.msra.mxu0 %v523
      %583 = vmatpush.bf16.msra.mxu0 %v521
      %584 = vmatpush.bf16.msra.mxu0 %v519
      %585 = vmatpush.bf16.msra.mxu0 %v517
      %586 = vmatpush.bf16.msra.mxu0 %v515
      %587 = vmatmul.bf16.gmra.mxu0 %v387
      %v588 = vpop.f32.mrf.mxu0
      %v589 = vadd.f32 %v335, %v588
      %v590 = vpop.f32.mrf.mxu0
      %v591 = vadd.f32 %v335, %v590
      %592 = vmatmul.bf16.gmra.mxu0 %v389
      %v593 = vpop.f32.mrf.mxu0
      %v594 = vadd.f32 %v335, %v593
      %v595 = vpop.f32.mrf.mxu0
      %v596 = vadd.f32 %v335, %v595
      %597 = vmatmul.bf16.gmra.mxu0 %v391
      %v598 = vpop.f32.mrf.mxu0
      %v599 = vadd.f32 %v335, %v598
      %v600 = vpop.f32.mrf.mxu0
      %v601 = vadd.f32 %v335, %v600
      %602 = vmatmul.bf16.gmra.mxu0 %v393
      %v603 = vpop.f32.mrf.mxu0
      %v604 = vadd.f32 %v335, %v603
      %v605 = vpop.f32.mrf.mxu0
      %v606 = vadd.f32 %v335, %v605
      %607 = vmatmul.bf16.gmra.mxu0 %v395
      %v608 = vpop.f32.mrf.mxu0
      %v609 = vadd.f32 %v335, %v608
      %v610 = vpop.f32.mrf.mxu0
      %v611 = vadd.f32 %v335, %v610
      %612 = vmatmul.bf16.gmra.mxu0 %v397
      %v613 = vpop.f32.mrf.mxu0
      %v614 = vadd.f32 %v335, %v613
      %v615 = vpop.f32.mrf.mxu0
      %v616 = vadd.f32 %v335, %v615
      %617 = vmatmul.bf16.gmra.mxu0 %v399
      %v618 = vpop.f32.mrf.mxu0
      %v619 = vadd.f32 %v335, %v618
      %v620 = vpop.f32.mrf.mxu0
      %v621 = vadd.f32 %v335, %v620
      %622 = vmatmul.bf16.gmra.mxu0 %v401
      %v623 = vpop.f32.mrf.mxu0
      %v624 = vadd.f32 %v335, %v623
      %v625 = vpop.f32.mrf.mxu0
      %v626 = vadd.f32 %v335, %v625
      %627 = vdwg.mxu0
      %628 = vmatpush.bf16.msra.mxu0 %v545
      %629 = vmatpush.bf16.msra.mxu0 %v543
      %630 = vmatpush.bf16.msra.mxu0 %v541
      %631 = vmatpush.bf16.msra.mxu0 %v539
      %632 = vmatpush.bf16.msra.mxu0 %v537
      %633 = vmatpush.bf16.msra.mxu0 %v535
      %634 = vmatpush.bf16.msra.mxu0 %v533
      %635 = vmatpush.bf16.msra.mxu0 %v531
      %636 = vmatmul.bf16.gmra.mxu0 %v388
      %v637 = vpop.f32.mrf.mxu0
      %v638 = vadd.f32 %v589, %v637
      %v639 = vpop.f32.mrf.mxu0
      %v640 = vadd.f32 %v591, %v639
      %641 = vmatmul.bf16.gmra.mxu0 %v390
      %v642 = vpop.f32.mrf.mxu0
      %v643 = vadd.f32 %v594, %v642
      %v644 = vpop.f32.mrf.mxu0
      %v645 = vadd.f32 %v596, %v644
      %646 = vmatmul.bf16.gmra.mxu0 %v392
      %v647 = vpop.f32.mrf.mxu0
      %v648 = vadd.f32 %v599, %v647
      %v649 = vpop.f32.mrf.mxu0
      %v650 = vadd.f32 %v601, %v649
      %651 = vmatmul.bf16.gmra.mxu0 %v394
      %v652 = vpop.f32.mrf.mxu0
      %v653 = vadd.f32 %v604, %v652
      %v654 = vpop.f32.mrf.mxu0
      %v655 = vadd.f32 %v606, %v654
      %656 = vmatmul.bf16.gmra.mxu0 %v396
      %v657 = vpop.f32.mrf.mxu0
      %v658 = vadd.f32 %v609, %v657
      %v659 = vpop.f32.mrf.mxu0
      %v660 = vadd.f32 %v611, %v659
      %661 = vmatmul.bf16.gmra.mxu0 %v398
      %v662 = vpop.f32.mrf.mxu0
      %v663 = vadd.f32 %v614, %v662
      %v664 = vpop.f32.mrf.mxu0
      %v665 = vadd.f32 %v616, %v664
      %666 = vmatmul.bf16.gmra.mxu0 %v400
      %v667 = vpop.f32.mrf.mxu0
      %v668 = vadd.f32 %v619, %v667
      %v669 = vpop.f32.mrf.mxu0
      %v670 = vadd.f32 %v621, %v669
      %671 = vmatmul.bf16.gmra.mxu0 %v402
      %v672 = vpop.f32.mrf.mxu0
      %v673 = vadd.f32 %v624, %v672
      %v674 = vpop.f32.mrf.mxu0
      %v675 = vadd.f32 %v626, %v674
      %676 = vdwg.mxu0
      %677 = vmatpush.bf16.msra.mxu0 %v530
      %678 = vmatpush.bf16.msra.mxu0 %v528
      %679 = vmatpush.bf16.msra.mxu0 %v526
      %680 = vmatpush.bf16.msra.mxu0 %v524
      %681 = vmatpush.bf16.msra.mxu0 %v522
      %682 = vmatpush.bf16.msra.mxu0 %v520
      %683 = vmatpush.bf16.msra.mxu0 %v518
      %684 = vmatpush.bf16.msra.mxu0 %v516
      %685 = vmatmul.bf16.gmra.mxu0 %v387
      %v686 = vpop.f32.mrf.mxu0
      %v687 = vadd.f32 %v336, %v686
      %v688 = vpop.f32.mrf.mxu0
      %v689 = vadd.f32 %v336, %v688
      %690 = vmatmul.bf16.gmra.mxu0 %v389
      %v691 = vpop.f32.mrf.mxu0
      %v692 = vadd.f32 %v336, %v691
      %v693 = vpop.f32.mrf.mxu0
      %v694 = vadd.f32 %v336, %v693
      %695 = vmatmul.bf16.gmra.mxu0 %v391
      %v696 = vpop.f32.mrf.mxu0
      %v697 = vadd.f32 %v336, %v696
      %v698 = vpop.f32.mrf.mxu0
      %v699 = vadd.f32 %v336, %v698
      %700 = vmatmul.bf16.gmra.mxu0 %v393
      %v701 = vpop.f32.mrf.mxu0
      %v702 = vadd.f32 %v336, %v701
      %v703 = vpop.f32.mrf.mxu0
      %v704 = vadd.f32 %v336, %v703
      %705 = vmatmul.bf16.gmra.mxu0 %v395
      %v706 = vpop.f32.mrf.mxu0
      %v707 = vadd.f32 %v336, %v706
      %v708 = vpop.f32.mrf.mxu0
      %v709 = vadd.f32 %v336, %v708
      %710 = vmatmul.bf16.gmra.mxu0 %v397
      %v711 = vpop.f32.mrf.mxu0
      %v712 = vadd.f32 %v336, %v711
      %v713 = vpop.f32.mrf.mxu0
      %v714 = vadd.f32 %v336, %v713
      %715 = vmatmul.bf16.gmra.mxu0 %v399
      %v716 = vpop.f32.mrf.mxu0
      %v717 = vadd.f32 %v336, %v716
      %v718 = vpop.f32.mrf.mxu0
      %v719 = vadd.f32 %v336, %v718
      %720 = vmatmul.bf16.gmra.mxu0 %v401
      %v721 = vpop.f32.mrf.mxu0
      %v722 = vadd.f32 %v336, %v721
      %v723 = vpop.f32.mrf.mxu0
      %v724 = vadd.f32 %v336, %v723
      %725 = vdwg.mxu0
      %726 = vmatpush.bf16.msra.mxu0 %v546
      %727 = vmatpush.bf16.msra.mxu0 %v544
      %728 = vmatpush.bf16.msra.mxu0 %v542
      %729 = vmatpush.bf16.msra.mxu0 %v540
      %730 = vmatpush.bf16.msra.mxu0 %v538
      %731 = vmatpush.bf16.msra.mxu0 %v536
      %732 = vmatpush.bf16.msra.mxu0 %v534
      %733 = vmatpush.bf16.msra.mxu0 %v532
      %734 = vmatmul.bf16.gmra.mxu0 %v388
      %v735 = vpop.f32.mrf.mxu0
      %v736 = vadd.f32 %v687, %v735
      %v737 = vpop.f32.mrf.mxu0
      %v738 = vadd.f32 %v689, %v737
      %739 = vmatmul.bf16.gmra.mxu0 %v390
      %v740 = vpop.f32.mrf.mxu0
      %v741 = vadd.f32 %v692, %v740
      %v742 = vpop.f32.mrf.mxu0
      %v743 = vadd.f32 %v694, %v742
      %744 = vmatmul.bf16.gmra.mxu0 %v392
      %v745 = vpop.f32.mrf.mxu0
      %v746 = vadd.f32 %v697, %v745
      %v747 = vpop.f32.mrf.mxu0
      %v748 = vadd.f32 %v699, %v747
      %749 = vmatmul.bf16.gmra.mxu0 %v394
      %v750 = vpop.f32.mrf.mxu0
      %v751 = vadd.f32 %v702, %v750
      %v752 = vpop.f32.mrf.mxu0
      %v753 = vadd.f32 %v704, %v752
      %754 = vmatmul.bf16.gmra.mxu0 %v396
      %v755 = vpop.f32.mrf.mxu0
      %v756 = vadd.f32 %v707, %v755
      %v757 = vpop.f32.mrf.mxu0
      %v758 = vadd.f32 %v709, %v757
      %759 = vmatmul.bf16.gmra.mxu0 %v398
      %v760 = vpop.f32.mrf.mxu0
      %v761 = vadd.f32 %v712, %v760
      %v762 = vpop.f32.mrf.mxu0
      %v763 = vadd.f32 %v714, %v762
      %764 = vmatmul.bf16.gmra.mxu0 %v400
      %v765 = vpop.f32.mrf.mxu0
      %v766 = vadd.f32 %v717, %v765
      %v767 = vpop.f32.mrf.mxu0
      %v768 = vadd.f32 %v719, %v767
      %769 = vmatmul.bf16.gmra.mxu0 %v402
      %v770 = vpop.f32.mrf.mxu0
      %v771 = vadd.f32 %v722, %v770
      %v772 = vpop.f32.mrf.mxu0
      %v773 = vadd.f32 %v724, %v772
      %774 = vdwg.mxu0
      %v775 = vld [vmem:[%s276] sm:$0xff]
      %v776 = vld [vmem:[%s276 + $0x8] sm:$0xff]
      %v777 = vld [vmem:[%s276 + $0x10] sm:$0xff]
      %v778 = vld [vmem:[%s276 + $0x18] sm:$0xff]
      %v779 = vld [vmem:[%s276 + $0x20] sm:$0xff]
      %v780 = vld [vmem:[%s276 + $0x28] sm:$0xff]
      %v781 = vld [vmem:[%s276 + $0x30] sm:$0xff]
      %v782 = vld [vmem:[%s276 + $0x38] sm:$0xff]
      %v783 = vld [vmem:[%s276 + $0x40] sm:$0xff]
      %v784 = vld [vmem:[%s276 + $0x48] sm:$0xff]
      %v785 = vld [vmem:[%s276 + $0x50] sm:$0xff]
      %v786 = vld [vmem:[%s276 + $0x58] sm:$0xff]
      %v787 = vld [vmem:[%s276 + $0x60] sm:$0xff]
      %v788 = vld [vmem:[%s276 + $0x68] sm:$0xff]
      %v789 = vld [vmem:[%s276 + $0x70] sm:$0xff]
      %v790 = vld [vmem:[%s276 + $0x78] sm:$0xff]
      %v791 = vunpack.c.l.bf16 %v775
      %v792 = vunpack.c.h.bf16 %v775
      %v793 = vunpack.c.l.bf16 %v776
      %v794 = vunpack.c.h.bf16 %v776
      %v795 = vunpack.c.l.bf16 %v777
      %v796 = vunpack.c.h.bf16 %v777
      %v797 = vunpack.c.l.bf16 %v778
      %v798 = vunpack.c.h.bf16 %v778
      %v799 = vunpack.c.l.bf16 %v779
      %v800 = vunpack.c.h.bf16 %v779
      %v801 = vunpack.c.l.bf16 %v780
      %v802 = vunpack.c.h.bf16 %v780
      %v803 = vunpack.c.l.bf16 %v781
      %v804 = vunpack.c.h.bf16 %v781
      %v805 = vunpack.c.l.bf16 %v782
      %v806 = vunpack.c.h.bf16 %v782
      %v807 = vunpack.c.l.bf16 %v783
      %v808 = vunpack.c.h.bf16 %v783
      %v809 = vunpack.c.l.bf16 %v784
      %v810 = vunpack.c.h.bf16 %v784
      %v811 = vunpack.c.l.bf16 %v785
      %v812 = vunpack.c.h.bf16 %v785
      %v813 = vunpack.c.l.bf16 %v786
      %v814 = vunpack.c.h.bf16 %v786
      %v815 = vunpack.c.l.bf16 %v787
      %v816 = vunpack.c.h.bf16 %v787
      %v817 = vunpack.c.l.bf16 %v788
      %v818 = vunpack.c.h.bf16 %v788
      %v819 = vunpack.c.l.bf16 %v789
      %v820 = vunpack.c.h.bf16 %v789
      %v821 = vunpack.c.l.bf16 %v790
      %v822 = vunpack.c.h.bf16 %v790
      %v823 = vadd.f32 %v638, %v791
      %v824 = vadd.f32 %v736, %v792
      %v825 = vadd.f32 %v640, %v793
      %v826 = vadd.f32 %v738, %v794
      %v827 = vadd.f32 %v643, %v795
      %v828 = vadd.f32 %v741, %v796
      %v829 = vadd.f32 %v645, %v797
      %v830 = vadd.f32 %v743, %v798
      %v831 = vadd.f32 %v648, %v799
      %v832 = vadd.f32 %v746, %v800
      %v833 = vadd.f32 %v650, %v801
      %v834 = vadd.f32 %v748, %v802
      %v835 = vadd.f32 %v653, %v803
      %v836 = vadd.f32 %v751, %v804
      %v837 = vadd.f32 %v655, %v805
      %v838 = vadd.f32 %v753, %v806
      %v839 = vadd.f32 %v658, %v807
      %v840 = vadd.f32 %v756, %v808
      %v841 = vadd.f32 %v660, %v809
      %v842 = vadd.f32 %v758, %v810
      %v843 = vadd.f32 %v663, %v811
      %v844 = vadd.f32 %v761, %v812
      %v845 = vadd.f32 %v665, %v813
      %v846 = vadd.f32 %v763, %v814
      %v847 = vadd.f32 %v668, %v815
      %v848 = vadd.f32 %v766, %v816
      %v849 = vadd.f32 %v670, %v817
      %v850 = vadd.f32 %v768, %v818
      %v851 = vadd.f32 %v673, %v819
      %v852 = vadd.f32 %v771, %v820
      %v853 = vadd.f32 %v675, %v821
      %v854 = vadd.f32 %v773, %v822
      %v855 = vld [vmem:[%s4] sm:$0x3]
      %v856 = vld [vmem:[%s5] sm:$0x3]
      %v857 = vadd.f32 %v823, %v824
      %858 = vadd.xlane.f32.xlu0 %v857
      %v859 = vpop.xlane.xlu0 %858
      %v860 = vadd.f32 %v825, %v826
      %861 = vadd.xlane.f32.xlu0 %v860
      %v862 = vpop.xlane.xlu0 %861
      %v863 = vadd.f32 %v827, %v828
      %864 = vadd.xlane.f32.xlu0 %v863
      %v865 = vpop.xlane.xlu0 %864
      %v866 = vadd.f32 %v829, %v830
      %867 = vadd.xlane.f32.xlu0 %v866
      %v868 = vpop.xlane.xlu0 %867
      %v869 = vadd.f32 %v831, %v832
      %870 = vadd.xlane.f32.xlu0 %v869
      %v871 = vpop.xlane.xlu0 %870
      %v872 = vadd.f32 %v833, %v834
      %873 = vadd.xlane.f32.xlu0 %v872
      %v874 = vpop.xlane.xlu0 %873
      %v875 = vadd.f32 %v835, %v836
      %876 = vadd.xlane.f32.xlu0 %v875
      %v877 = vpop.xlane.xlu0 %876
      %v878 = vadd.f32 %v837, %v838
      %879 = vadd.xlane.f32.xlu0 %v878
      %v880 = vpop.xlane.xlu0 %879
      %v881 = vadd.f32 %v839, %v840
      %882 = vadd.xlane.f32.xlu0 %v881
      %v883 = vpop.xlane.xlu0 %882
      %v884 = vadd.f32 %v841, %v842
      %885 = vadd.xlane.f32.xlu0 %v884
      %v886 = vpop.xlane.xlu0 %885
      %v887 = vadd.f32 %v843, %v844
      %888 = vadd.xlane.f32.xlu0 %v887
      %v889 = vpop.xlane.xlu0 %888
      %v890 = vadd.f32 %v845, %v846
      %891 = vadd.xlane.f32.xlu0 %v890
      %v892 = vpop.xlane.xlu0 %891
      %v893 = vadd.f32 %v847, %v848
      %894 = vadd.xlane.f32.xlu0 %v893
      %v895 = vpop.xlane.xlu0 %894
      %v896 = vadd.f32 %v849, %v850
      %897 = vadd.xlane.f32.xlu0 %v896
      %v898 = vpop.xlane.xlu0 %897
      %v899 = vadd.f32 %v851, %v852
      %900 = vadd.xlane.f32.xlu0 %v899
      %v901 = vpop.xlane.xlu0 %900
      %v902 = vadd.f32 %v853, %v854
      %903 = vadd.xlane.f32.xlu0 %v902
      %v904 = vpop.xlane.xlu0 %903
      %v905 = vrcp.pop 256.0
      %v906 = vmul.f32 256.0, %v905
      %v907 = vsub.f32 1.0, %v906
      %v908 = vmul.f32 %v905, %v907
      %v909 = vadd.f32 %v905, %v908
      %vm910 = vweird.f32 %v905
      %v911 = vsel %vm910, %v905, %v909
      %v912 = vmul.f32 %v859, %v911
      %v913 = vmul.f32 %v862, %v911
      %v914 = vmul.f32 %v865, %v911
      %v915 = vmul.f32 %v868, %v911
      %v916 = vmul.f32 %v871, %v911
      %v917 = vmul.f32 %v874, %v911
      %v918 = vmul.f32 %v877, %v911
      %v919 = vmul.f32 %v880, %v911
      %v920 = vmul.f32 %v883, %v911
      %v921 = vmul.f32 %v886, %v911
      %v922 = vmul.f32 %v889, %v911
      %v923 = vmul.f32 %v892, %v911
      %v924 = vmul.f32 %v895, %v911
      %v925 = vmul.f32 %v898, %v911
      %v926 = vmul.f32 %v901, %v911
      %v927 = vmul.f32 %v904, %v911
      %v928 = vsub.f32 %v823, %v912
      %v929 = vsub.f32 %v824, %v912
      %v930 = vsub.f32 %v825, %v913
      %v931 = vsub.f32 %v826, %v913
      %v932 = vsub.f32 %v827, %v914
      %v933 = vsub.f32 %v828, %v914
      %v934 = vsub.f32 %v829, %v915
      %v935 = vsub.f32 %v830, %v915
      %v936 = vsub.f32 %v831, %v916
      %v937 = vsub.f32 %v832, %v916
      %v938 = vsub.f32 %v833, %v917
      %v939 = vsub.f32 %v834, %v917
      %v940 = vsub.f32 %v835, %v918
      %v941 = vsub.f32 %v836, %v918
      %v942 = vsub.f32 %v837, %v919
      %v943 = vsub.f32 %v838, %v919
      %v944 = vsub.f32 %v839, %v920
      %v945 = vsub.f32 %v840, %v920
      %v946 = vsub.f32 %v841, %v921
      %v947 = vsub.f32 %v842, %v921
      %v948 = vsub.f32 %v843, %v922
      %v949 = vsub.f32 %v844, %v922
      %v950 = vsub.f32 %v845, %v923
      %v951 = vsub.f32 %v846, %v923
      %v952 = vsub.f32 %v847, %v924
      %v953 = vsub.f32 %v848, %v924
      %v954 = vsub.f32 %v849, %v925
      %v955 = vsub.f32 %v850, %v925
      %v956 = vsub.f32 %v851, %v926
      %v957 = vsub.f32 %v852, %v926
      %v958 = vsub.f32 %v853, %v927
      %v959 = vsub.f32 %v854, %v927
      %v960 = vmul.f32 %v928, %v928
      %v961 = vmul.f32 %v929, %v929
      %v962 = vmul.f32 %v930, %v930
      %v963 = vmul.f32 %v931, %v931
      %v964 = vmul.f32 %v932, %v932
      %v965 = vmul.f32 %v933, %v933
      %v966 = vmul.f32 %v934, %v934
      %v967 = vmul.f32 %v935, %v935
      %v968 = vmul.f32 %v936, %v936
      %v969 = vmul.f32 %v937, %v937
      %v970 = vmul.f32 %v938, %v938
      %v971 = vmul.f32 %v939, %v939
      %v972 = vmul.f32 %v940, %v940
      %v973 = vmul.f32 %v941, %v941
      %v974 = vmul.f32 %v942, %v942
      %v975 = vmul.f32 %v943, %v943
      %v976 = vmul.f32 %v944, %v944
      %v977 = vmul.f32 %v945, %v945
      %v978 = vmul.f32 %v946, %v946
      %v979 = vmul.f32 %v947, %v947
      %v980 = vmul.f32 %v948, %v948
      %v981 = vmul.f32 %v949, %v949
      %v982 = vmul.f32 %v950, %v950
      %v983 = vmul.f32 %v951, %v951
      %v984 = vmul.f32 %v952, %v952
      %v985 = vmul.f32 %v953, %v953
      %v986 = vmul.f32 %v954, %v954
      %v987 = vmul.f32 %v955, %v955
      %v988 = vmul.f32 %v956, %v956
      %v989 = vmul.f32 %v957, %v957
      %v990 = vmul.f32 %v958, %v958
      %v991 = vmul.f32 %v959, %v959
      %v992 = vadd.f32 %v960, %v961
      %993 = vadd.xlane.f32.xlu0 %v992
      %v994 = vpop.xlane.xlu0 %993
      %v995 = vadd.f32 %v962, %v963
      %996 = vadd.xlane.f32.xlu0 %v995
      %v997 = vpop.xlane.xlu0 %996
      %v998 = vadd.f32 %v964, %v965
      %999 = vadd.xlane.f32.xlu0 %v998
      %v1000 = vpop.xlane.xlu0 %999
      %v1001 = vadd.f32 %v966, %v967
      %1002 = vadd.xlane.f32.xlu0 %v1001
      %v1003 = vpop.xlane.xlu0 %1002
      %v1004 = vadd.f32 %v968, %v969
      %1005 = vadd.xlane.f32.xlu0 %v1004
      %v1006 = vpop.xlane.xlu0 %1005
      %v1007 = vadd.f32 %v970, %v971
      %1008 = vadd.xlane.f32.xlu0 %v1007
      %v1009 = vpop.xlane.xlu0 %1008
      %v1010 = vadd.f32 %v972, %v973
      %1011 = vadd.xlane.f32.xlu0 %v1010
      %v1012 = vpop.xlane.xlu0 %1011
      %v1013 = vadd.f32 %v974, %v975
      %1014 = vadd.xlane.f32.xlu0 %v1013
      %v1015 = vpop.xlane.xlu0 %1014
      %v1016 = vadd.f32 %v976, %v977
      %1017 = vadd.xlane.f32.xlu0 %v1016
      %v1018 = vpop.xlane.xlu0 %1017
      %v1019 = vadd.f32 %v978, %v979
      %1020 = vadd.xlane.f32.xlu0 %v1019
      %v1021 = vpop.xlane.xlu0 %1020
      %v1022 = vadd.f32 %v980, %v981
      %1023 = vadd.xlane.f32.xlu0 %v1022
      %v1024 = vpop.xlane.xlu0 %1023
      %v1025 = vadd.f32 %v982, %v983
      %1026 = vadd.xlane.f32.xlu0 %v1025
      %v1027 = vpop.xlane.xlu0 %1026
      %v1028 = vadd.f32 %v984, %v985
      %1029 = vadd.xlane.f32.xlu0 %v1028
      %v1030 = vpop.xlane.xlu0 %1029
      %v1031 = vadd.f32 %v986, %v987
      %1032 = vadd.xlane.f32.xlu0 %v1031
      %v1033 = vpop.xlane.xlu0 %1032
      %v1034 = vadd.f32 %v988, %v989
      %1035 = vadd.xlane.f32.xlu0 %v1034
      %v1036 = vpop.xlane.xlu0 %1035
      %v1037 = vadd.f32 %v990, %v991
      %1038 = vadd.xlane.f32.xlu0 %v1037
      %v1039 = vpop.xlane.xlu0 %1038
      %v1040 = vmul.f32 %v994, %v911
      %v1041 = vmul.f32 %v997, %v911
      %v1042 = vmul.f32 %v1000, %v911
      %v1043 = vmul.f32 %v1003, %v911
      %v1044 = vmul.f32 %v1006, %v911
      %v1045 = vmul.f32 %v1009, %v911
      %v1046 = vmul.f32 %v1012, %v911
      %v1047 = vmul.f32 %v1015, %v911
      %v1048 = vmul.f32 %v1018, %v911
      %v1049 = vmul.f32 %v1021, %v911
      %v1050 = vmul.f32 %v1024, %v911
      %v1051 = vmul.f32 %v1027, %v911
      %v1052 = vmul.f32 %v1030, %v911
      %v1053 = vmul.f32 %v1033, %v911
      %v1054 = vmul.f32 %v1036, %v911
      %v1055 = vmul.f32 %v1039, %v911
      %v1056 = vadd.f32 %v1040, 1e-12
      %v1057 = vadd.f32 %v1041, 1e-12
      %v1058 = vadd.f32 %v1042, 1e-12
      %v1059 = vadd.f32 %v1043, 1e-12
      %v1060 = vadd.f32 %v1044, 1e-12
      %v1061 = vadd.f32 %v1045, 1e-12
      %v1062 = vadd.f32 %v1046, 1e-12
      %v1063 = vadd.f32 %v1047, 1e-12
      %v1064 = vadd.f32 %v1048, 1e-12
      %v1065 = vadd.f32 %v1049, 1e-12
      %v1066 = vadd.f32 %v1050, 1e-12
      %v1067 = vadd.f32 %v1051, 1e-12
      %v1068 = vadd.f32 %v1052, 1e-12
      %v1069 = vadd.f32 %v1053, 1e-12
      %v1070 = vadd.f32 %v1054, 1e-12
      %v1071 = vadd.f32 %v1055, 1e-12
      %v1072 = vrsqrt.pop %v1056
      %v1073 = vmul.f32 %v1072, %v1056
      %v1074 = vmul.f32 %v1073, %v1072
      %v1075 = vmul.f32 0.5, %v1074
      %v1076 = vsub.f32 1.5, %v1075
      %v1077 = vmul.f32 %v1072, %v1076
      %vm1078 = vweird.f32 %v1056
      %vm1079 = vweird.f32 %v1072
      %vm1080 = vmor %vm1078, %vm1079
      %v1081 = vsel %vm1080, %v1072, %v1077
      %v1082 = vrsqrt.pop %v1057
      %v1083 = vmul.f32 %v1082, %v1057
      %v1084 = vmul.f32 %v1083, %v1082
      %v1085 = vmul.f32 0.5, %v1084
      %v1086 = vsub.f32 1.5, %v1085
      %v1087 = vmul.f32 %v1082, %v1086
      %vm1088 = vweird.f32 %v1057
      %vm1089 = vweird.f32 %v1082
      %vm1090 = vmor %vm1088, %vm1089
      %v1091 = vsel %vm1090, %v1082, %v1087
      %v1092 = vrsqrt.pop %v1058
      %v1093 = vmul.f32 %v1092, %v1058
      %v1094 = vmul.f32 %v1093, %v1092
      %v1095 = vmul.f32 0.5, %v1094
      %v1096 = vsub.f32 1.5, %v1095
      %v1097 = vmul.f32 %v1092, %v1096
      %vm1098 = vweird.f32 %v1058
      %vm1099 = vweird.f32 %v1092
      %vm1100 = vmor %vm1098, %vm1099
      %v1101 = vsel %vm1100, %v1092, %v1097
      %v1102 = vrsqrt.pop %v1059
      %v1103 = vmul.f32 %v1102, %v1059
      %v1104 = vmul.f32 %v1103, %v1102
      %v1105 = vmul.f32 0.5, %v1104
      %v1106 = vsub.f32 1.5, %v1105
      %v1107 = vmul.f32 %v1102, %v1106
      %vm1108 = vweird.f32 %v1059
      %vm1109 = vweird.f32 %v1102
      %vm1110 = vmor %vm1108, %vm1109
      %v1111 = vsel %vm1110, %v1102, %v1107
      %v1112 = vrsqrt.pop %v1060
      %v1113 = vmul.f32 %v1112, %v1060
      %v1114 = vmul.f32 %v1113, %v1112
      %v1115 = vmul.f32 0.5, %v1114
      %v1116 = vsub.f32 1.5, %v1115
      %v1117 = vmul.f32 %v1112, %v1116
      %vm1118 = vweird.f32 %v1060
      %vm1119 = vweird.f32 %v1112
      %vm1120 = vmor %vm1118, %vm1119
      %v1121 = vsel %vm1120, %v1112, %v1117
      %v1122 = vrsqrt.pop %v1061
      %v1123 = vmul.f32 %v1122, %v1061
      %v1124 = vmul.f32 %v1123, %v1122
      %v1125 = vmul.f32 0.5, %v1124
      %v1126 = vsub.f32 1.5, %v1125
      %v1127 = vmul.f32 %v1122, %v1126
      %vm1128 = vweird.f32 %v1061
      %vm1129 = vweird.f32 %v1122
      %vm1130 = vmor %vm1128, %vm1129
      %v1131 = vsel %vm1130, %v1122, %v1127
      %v1132 = vrsqrt.pop %v1062
      %v1133 = vmul.f32 %v1132, %v1062
      %v1134 = vmul.f32 %v1133, %v1132
      %v1135 = vmul.f32 0.5, %v1134
      %v1136 = vsub.f32 1.5, %v1135
      %v1137 = vmul.f32 %v1132, %v1136
      %vm1138 = vweird.f32 %v1062
      %vm1139 = vweird.f32 %v1132
      %vm1140 = vmor %vm1138, %vm1139
      %v1141 = vsel %vm1140, %v1132, %v1137
      %v1142 = vrsqrt.pop %v1063
      %v1143 = vmul.f32 %v1142, %v1063
      %v1144 = vmul.f32 %v1143, %v1142
      %v1145 = vmul.f32 0.5, %v1144
      %v1146 = vsub.f32 1.5, %v1145
      %v1147 = vmul.f32 %v1142, %v1146
      %vm1148 = vweird.f32 %v1063
      %vm1149 = vweird.f32 %v1142
      %vm1150 = vmor %vm1148, %vm1149
      %v1151 = vsel %vm1150, %v1142, %v1147
      %v1152 = vrsqrt.pop %v1064
      %v1153 = vmul.f32 %v1152, %v1064
      %v1154 = vmul.f32 %v1153, %v1152
      %v1155 = vmul.f32 0.5, %v1154
      %v1156 = vsub.f32 1.5, %v1155
      %v1157 = vmul.f32 %v1152, %v1156
      %vm1158 = vweird.f32 %v1064
      %vm1159 = vweird.f32 %v1152
      %vm1160 = vmor %vm1158, %vm1159
      %v1161 = vsel %vm1160, %v1152, %v1157
      %v1162 = vrsqrt.pop %v1065
      %v1163 = vmul.f32 %v1162, %v1065
      %v1164 = vmul.f32 %v1163, %v1162
      %v1165 = vmul.f32 0.5, %v1164
      %v1166 = vsub.f32 1.5, %v1165
      %v1167 = vmul.f32 %v1162, %v1166
      %vm1168 = vweird.f32 %v1065
      %vm1169 = vweird.f32 %v1162
      %vm1170 = vmor %vm1168, %vm1169
      %v1171 = vsel %vm1170, %v1162, %v1167
      %v1172 = vrsqrt.pop %v1066
      %v1173 = vmul.f32 %v1172, %v1066
      %v1174 = vmul.f32 %v1173, %v1172
      %v1175 = vmul.f32 0.5, %v1174
      %v1176 = vsub.f32 1.5, %v1175
      %v1177 = vmul.f32 %v1172, %v1176
      %vm1178 = vweird.f32 %v1066
      %vm1179 = vweird.f32 %v1172
      %vm1180 = vmor %vm1178, %vm1179
      %v1181 = vsel %vm1180, %v1172, %v1177
      %v1182 = vrsqrt.pop %v1067
      %v1183 = vmul.f32 %v1182, %v1067
      %v1184 = vmul.f32 %v1183, %v1182
      %v1185 = vmul.f32 0.5, %v1184
      %v1186 = vsub.f32 1.5, %v1185
      %v1187 = vmul.f32 %v1182, %v1186
      %vm1188 = vweird.f32 %v1067
      %vm1189 = vweird.f32 %v1182
      %vm1190 = vmor %vm1188, %vm1189
      %v1191 = vsel %vm1190, %v1182, %v1187
      %v1192 = vrsqrt.pop %v1068
      %v1193 = vmul.f32 %v1192, %v1068
      %v1194 = vmul.f32 %v1193, %v1192
      %v1195 = vmul.f32 0.5, %v1194
      %v1196 = vsub.f32 1.5, %v1195
      %v1197 = vmul.f32 %v1192, %v1196
      %vm1198 = vweird.f32 %v1068
      %vm1199 = vweird.f32 %v1192
      %vm1200 = vmor %vm1198, %vm1199
      %v1201 = vsel %vm1200, %v1192, %v1197
      %v1202 = vrsqrt.pop %v1069
      %v1203 = vmul.f32 %v1202, %v1069
      %v1204 = vmul.f32 %v1203, %v1202
      %v1205 = vmul.f32 0.5, %v1204
      %v1206 = vsub.f32 1.5, %v1205
      %v1207 = vmul.f32 %v1202, %v1206
      %vm1208 = vweird.f32 %v1069
      %vm1209 = vweird.f32 %v1202
      %vm1210 = vmor %vm1208, %vm1209
      %v1211 = vsel %vm1210, %v1202, %v1207
      %v1212 = vrsqrt.pop %v1070
      %v1213 = vmul.f32 %v1212, %v1070
      %v1214 = vmul.f32 %v1213, %v1212
      %v1215 = vmul.f32 0.5, %v1214
      %v1216 = vsub.f32 1.5, %v1215
      %v1217 = vmul.f32 %v1212, %v1216
      %vm1218 = vweird.f32 %v1070
      %vm1219 = vweird.f32 %v1212
      %vm1220 = vmor %vm1218, %vm1219
      %v1221 = vsel %vm1220, %v1212, %v1217
      %v1222 = vrsqrt.pop %v1071
      %v1223 = vmul.f32 %v1222, %v1071
      %v1224 = vmul.f32 %v1223, %v1222
      %v1225 = vmul.f32 0.5, %v1224
      %v1226 = vsub.f32 1.5, %v1225
      %v1227 = vmul.f32 %v1222, %v1226
      %vm1228 = vweird.f32 %v1071
      %vm1229 = vweird.f32 %v1222
      %vm1230 = vmor %vm1228, %vm1229
      %v1231 = vsel %vm1230, %v1222, %v1227
      %v1232 = vmul.f32 %v928, %v1081
      %v1233 = vmul.f32 %v929, %v1081
      %v1234 = vmul.f32 %v930, %v1091
      %v1235 = vmul.f32 %v931, %v1091
      %v1236 = vmul.f32 %v932, %v1101
      %v1237 = vmul.f32 %v933, %v1101
      %v1238 = vmul.f32 %v934, %v1111
      %v1239 = vmul.f32 %v935, %v1111
      %v1240 = vmul.f32 %v936, %v1121
      %v1241 = vmul.f32 %v937, %v1121
      %v1242 = vmul.f32 %v938, %v1131
      %v1243 = vmul.f32 %v939, %v1131
      %v1244 = vmul.f32 %v940, %v1141
      %v1245 = vmul.f32 %v941, %v1141
      %v1246 = vmul.f32 %v942, %v1151
      %v1247 = vmul.f32 %v943, %v1151
      %v1248 = vmul.f32 %v944, %v1161
      %v1249 = vmul.f32 %v945, %v1161
      %v1250 = vmul.f32 %v946, %v1171
      %v1251 = vmul.f32 %v947, %v1171
      %v1252 = vmul.f32 %v948, %v1181
      %v1253 = vmul.f32 %v949, %v1181
      %v1254 = vmul.f32 %v950, %v1191
      %v1255 = vmul.f32 %v951, %v1191
      %v1256 = vmul.f32 %v952, %v1201
      %v1257 = vmul.f32 %v953, %v1201
      %v1258 = vmul.f32 %v954, %v1211
      %v1259 = vmul.f32 %v955, %v1211
      %v1260 = vmul.f32 %v956, %v1221
      %v1261 = vmul.f32 %v957, %v1221
      %v1262 = vmul.f32 %v958, %v1231
      %v1263 = vmul.f32 %v959, %v1231
      %v1265 = vperm.slane %v855, 0
      %v1266 = vperm.slane %v855, 1
      %v1269 = vmul.f32 %v1232, %v1265
      %v1270 = vmul.f32 %v1233, %v1266
      %v1271 = vmul.f32 %v1234, %v1265
      %v1272 = vmul.f32 %v1235, %v1266
      %v1273 = vmul.f32 %v1236, %v1265
      %v1274 = vmul.f32 %v1237, %v1266
      %v1275 = vmul.f32 %v1238, %v1265
      %v1276 = vmul.f32 %v1239, %v1266
      %v1277 = vmul.f32 %v1240, %v1265
      %v1278 = vmul.f32 %v1241, %v1266
      %v1279 = vmul.f32 %v1242, %v1265
      %v1280 = vmul.f32 %v1243, %v1266
      %v1281 = vmul.f32 %v1244, %v1265
      %v1282 = vmul.f32 %v1245, %v1266
      %v1283 = vmul.f32 %v1246, %v1265
      %v1284 = vmul.f32 %v1247, %v1266
      %v1285 = vmul.f32 %v1248, %v1265
      %v1286 = vmul.f32 %v1249, %v1266
      %v1287 = vmul.f32 %v1250, %v1265
      %v1288 = vmul.f32 %v1251, %v1266
      %v1289 = vmul.f32 %v1252, %v1265
      %v1290 = vmul.f32 %v1253, %v1266
      %v1291 = vmul.f32 %v1254, %v1265
      %v1292 = vmul.f32 %v1255, %v1266
      %v1293 = vmul.f32 %v1256, %v1265
      %v1294 = vmul.f32 %v1257, %v1266
      %v1295 = vmul.f32 %v1258, %v1265
      %v1296 = vmul.f32 %v1259, %v1266
      %v1297 = vmul.f32 %v1260, %v1265
      %v1298 = vmul.f32 %v1261, %v1266
      %v1299 = vmul.f32 %v1262, %v1265
      %v1300 = vmul.f32 %v1263, %v1266
      %v1302 = vperm.slane %v856, 0
      %v1303 = vperm.slane %v856, 1
      %v1306 = vadd.f32 %v1269, %v1302
      %v1307 = vadd.f32 %v1270, %v1303
      %v1308 = vadd.f32 %v1271, %v1302
      %v1309 = vadd.f32 %v1272, %v1303
      %v1310 = vadd.f32 %v1273, %v1302
      %v1311 = vadd.f32 %v1274, %v1303
      %v1312 = vadd.f32 %v1275, %v1302
      %v1313 = vadd.f32 %v1276, %v1303
      %v1314 = vadd.f32 %v1277, %v1302
      %v1315 = vadd.f32 %v1278, %v1303
      %v1316 = vadd.f32 %v1279, %v1302
      %v1317 = vadd.f32 %v1280, %v1303
      %v1318 = vadd.f32 %v1281, %v1302
      %v1319 = vadd.f32 %v1282, %v1303
      %v1320 = vadd.f32 %v1283, %v1302
      %v1321 = vadd.f32 %v1284, %v1303
      %v1322 = vadd.f32 %v1285, %v1302
      %v1323 = vadd.f32 %v1286, %v1303
      %v1324 = vadd.f32 %v1287, %v1302
      %v1325 = vadd.f32 %v1288, %v1303
      %v1326 = vadd.f32 %v1289, %v1302
      %v1327 = vadd.f32 %v1290, %v1303
      %v1328 = vadd.f32 %v1291, %v1302
      %v1329 = vadd.f32 %v1292, %v1303
      %v1330 = vadd.f32 %v1293, %v1302
      %v1331 = vadd.f32 %v1294, %v1303
      %v1332 = vadd.f32 %v1295, %v1302
      %v1333 = vadd.f32 %v1296, %v1303
      %v1334 = vadd.f32 %v1297, %v1302
      %v1335 = vadd.f32 %v1298, %v1303
      %v1336 = vadd.f32 %v1299, %v1302
      %v1337 = vadd.f32 %v1300, %v1303
      %v1338 = vpack.c.bf16 %v1307, %v1306
      %v1339 = vpack.c.bf16 %v1309, %v1308
      %v1340 = vpack.c.bf16 %v1311, %v1310
      %v1341 = vpack.c.bf16 %v1313, %v1312
      %v1342 = vpack.c.bf16 %v1315, %v1314
      %v1343 = vpack.c.bf16 %v1317, %v1316
      %v1344 = vpack.c.bf16 %v1319, %v1318
      %v1345 = vpack.c.bf16 %v1321, %v1320
      %v1346 = vpack.c.bf16 %v1323, %v1322
      %v1347 = vpack.c.bf16 %v1325, %v1324
      %v1348 = vpack.c.bf16 %v1327, %v1326
      %v1349 = vpack.c.bf16 %v1329, %v1328
      %v1350 = vpack.c.bf16 %v1331, %v1330
      %v1351 = vpack.c.bf16 %v1333, %v1332
      %v1352 = vpack.c.bf16 %v1335, %v1334
      %v1353 = vpack.c.bf16 %v1337, %v1336
      %1354 = vst [vmem:[%s283] sm:$0xff] %v1338
      %1355 = vst [vmem:[%s283 + $0x8] sm:$0xff] %v1339
      %1356 = vst [vmem:[%s283 + $0x10] sm:$0xff] %v1340
      %1357 = vst [vmem:[%s283 + $0x18] sm:$0xff] %v1341
      %1358 = vst [vmem:[%s283 + $0x20] sm:$0xff] %v1342
      %1359 = vst [vmem:[%s283 + $0x28] sm:$0xff] %v1343
      %1360 = vst [vmem:[%s283 + $0x30] sm:$0xff] %v1344
      %1361 = vst [vmem:[%s283 + $0x38] sm:$0xff] %v1345
      %1362 = vst [vmem:[%s283 + $0x40] sm:$0xff] %v1346
      %1363 = vst [vmem:[%s283 + $0x48] sm:$0xff] %v1347
      %1364 = vst [vmem:[%s283 + $0x50] sm:$0xff] %v1348
      %1365 = vst [vmem:[%s283 + $0x58] sm:$0xff] %v1349
      %1366 = vst [vmem:[%s283 + $0x60] sm:$0xff] %v1350
      %1367 = vst [vmem:[%s283 + $0x68] sm:$0xff] %v1351
      %1368 = vst [vmem:[%s283 + $0x70] sm:$0xff] %v1352
      %1369 = vst [vmem:[%s283 + $0x78] sm:$0xff] %v1353
      %s1370 = smul.u32 16, %s17
      %p1371 = scmp.lt.s32.totalorder %s1370, 31
      %s1372 = scalar_select %p1371, %s1370, 31
      %s1373 = smul.addr %s1372, 2
      %s1374 = smul.addr %s1373, 4
      %s1375 = scalar_lea.vmem %s6, %s1374
      // Predicated region
      $region45: #{bert_base_uncased_forward.13} parent=43 // pred_check
        %p1376 = pneg %p171
      $region46: #{bert_base_uncased_forward.13} parent=43 // pred_check_branch
        %1378 = sbr.rel (%p1376) target = $region48
      $region47: #{bert_base_uncased_forward.13} parent=43 // pred_region
        %s1379 = smul.u32 16, %s17
      $region48: #{bert_base_uncased_forward.13} parent=43 // pred_fallthru
        _
    $region44: #{bert_base_uncased_forward.13} parent=5 // pred_fallthru
      _
    %p1380 = scmp.le.s32.totalorder 2, %s12
    // Predicated region
    $region49: #{bert_base_uncased_forward.13} parent=5 // pred_check
      %p1381 = pneg %p1380
    $region50: #{bert_base_uncased_forward.13} parent=5 // pred_check_branch
      %1383 = sbr.rel (%p1381) target = $region52
    $region51: #{bert_base_uncased_forward.13} parent=5 // pred_region
      %s1384 = ssub.s32 %s12, 2
      // Predicated region
      $region53: #{bert_base_uncased_forward.13} parent=51 // pred_check
        %p1385 = pneg %p177
      $region54: #{bert_base_uncased_forward.13} parent=51 // pred_check_branch
        %1387 = sbr.rel (%p1385) target = $region56
      $region55: #{bert_base_uncased_forward.13} parent=51 // pred_region
        %s1388 = smul.u32 16, %s18
        %p1389 = scmp.lt.s32.totalorder %s1388, 31
        %s1390 = scalar_select %p1389, %s1388, 31
        %s1391 = smul.addr %s1390, 2
        %s1392 = smul.addr %s1391, 4
        %s1393 = scalar_lea.vmem %s6, %s1392
      $region56: #{bert_base_uncased_forward.13} parent=51 // pred_fallthru
        _
    $region52: #{bert_base_uncased_forward.13} parent=5 // pred_fallthru
      _
  $region6: #{bert_base_uncased_forward.13} parent=0 // loop_footer
    %s16 = sadd.s32 1, %s12
  $region7: #{bert_base_uncased_forward.13} parent=0 // loop_footer_branch
    %11 = sbr.rel target = $region3
  $region8: #{bert_base_uncased_forward.13} parent=0 // loop_exit
    _

// kernel: bert_base_uncased_forward.19
$region0: #{bert_base_uncased_forward.19}
  #allocation0 [shape = 'u32[]', space=smem, size = 0x4, offset = 0x4, fixed_abs, tag = 'smem constant byte address 0x4 - core index']
  #allocation1 [shape = 'u32[72,128]{1,0:T(1,128)}', space=vmem, size = 0x9000, scoped, tag = 'internal scratch']
  #allocation2 [shape = 'f32[1,1]{1,0:T(1,128)S(1)}', space=vmem, size = 0x200, scoped, tag = 'scoped memory for bert_base_uncased_forward.19']
  %s0 = inlined_call_operand.vmem [shape: bf16[2,256], index: 0, kind: input, shape index: {}]
  %s1 = inlined_call_operand.vmem [shape: bf16[256,256], index: 1, kind: input, shape index: {}]
  %s2 = inlined_call_operand.vmem [shape: f32[1,256], index: 2, kind: input, shape index: {}]
  %s3 = inlined_call_operand.vmem [shape: f32[1,256], index: 3, kind: input, shape index: {}]
  %s4 = inlined_call_operand.<no memory space> [shape: f32[1,1], index: 4, kind: input, shape index: {}]
  %s5 = inlined_call_operand.vmem [shape: f32[2,128], index: 5, kind: output, shape index: {}]
  %s6 = sld [smem:[#allocation0]]
  $region30: #{bert_base_uncased_forward.19} parent=0
    _
  %s8 = ssub.s32 1, %s6
  %s9 = scalar_select 0, %s8, %s6
  %v10 = vstv %s4
  %11 = vst [vmem:[#allocation2] sm:$0x1] %v10
  // Predicated region
  $region2: #{bert_base_uncased_forward.19} parent=0 // pred_check
    _
  $region3: #{bert_base_uncased_forward.19} parent=0 // pred_check_branch
    %13 = sbr.rel (0) target = $region5
  $region4: #{bert_base_uncased_forward.19} parent=0 // pred_region
    _
  $region5: #{bert_base_uncased_forward.19} parent=0 // pred_fallthru
    _
  // Predicated region
  $region6: #{bert_base_uncased_forward.19} parent=0 // pred_check
    _
  $region7: #{bert_base_uncased_forward.19} parent=0 // pred_check_branch
    %15 = sbr.rel (0) target = $region9
  $region8: #{bert_base_uncased_forward.19} parent=0 // pred_region
    _
  $region9: #{bert_base_uncased_forward.19} parent=0 // pred_fallthru
    _
  // Predicated region
  $region10: #{bert_base_uncased_forward.19} parent=0 // pred_check
    _
  $region11: #{bert_base_uncased_forward.19} parent=0 // pred_check_branch
    %17 = sbr.rel (0) target = $region13
  $region12: #{bert_base_uncased_forward.19} parent=0 // pred_region
    _
  $region13: #{bert_base_uncased_forward.19} parent=0 // pred_fallthru
    _
  // Predicated region
  $region14: #{bert_base_uncased_forward.19} parent=0 // pred_check
    _
  $region15: #{bert_base_uncased_forward.19} parent=0 // pred_check_branch
    %19 = sbr.rel (0) target = $region17
  $region16: #{bert_base_uncased_forward.19} parent=0 // pred_region
    _
  $region17: #{bert_base_uncased_forward.19} parent=0 // pred_fallthru
    _
  // Predicated region
  $region18: #{bert_base_uncased_forward.19} parent=0 // pred_check
    _
  $region19: #{bert_base_uncased_forward.19} parent=0 // pred_check_branch
    %21 = sbr.rel (0) target = $region21
  $region20: #{bert_base_uncased_forward.19} parent=0 // pred_region
    _
  $region21: #{bert_base_uncased_forward.19} parent=0 // pred_fallthru
    _
  %v22 = vld [vmem:[%s0] sm:$0x3]
  %v23 = vld [vmem:[%s1] sm:$0xff]
  %v24 = vld [vmem:[%s1 + $0x8] sm:$0xff]
  %v25 = vld [vmem:[%s1 + $0x10] sm:$0xff]
  %v26 = vld [vmem:[%s1 + $0x18] sm:$0xff]
  %v27 = vld [vmem:[%s1 + $0x20] sm:$0xff]
  %v28 = vld [vmem:[%s1 + $0x28] sm:$0xff]
  %v29 = vld [vmem:[%s1 + $0x30] sm:$0xff]
  %v30 = vld [vmem:[%s1 + $0x38] sm:$0xff]
  %v31 = vld [vmem:[%s1 + $0x40] sm:$0xff]
  %v32 = vld [vmem:[%s1 + $0x48] sm:$0xff]
  %v33 = vld [vmem:[%s1 + $0x50] sm:$0xff]
  %v34 = vld [vmem:[%s1 + $0x58] sm:$0xff]
  %v35 = vld [vmem:[%s1 + $0x60] sm:$0xff]
  %v36 = vld [vmem:[%s1 + $0x68] sm:$0xff]
  %v37 = vld [vmem:[%s1 + $0x70] sm:$0xff]
  %v38 = vld [vmem:[%s1 + $0x78] sm:$0xff]
  %v39 = vld [vmem:[%s1 + $0x80] sm:$0xff]
  %v40 = vld [vmem:[%s1 + $0x88] sm:$0xff]
  %v41 = vld [vmem:[%s1 + $0x90] sm:$0xff]
  %v42 = vld [vmem:[%s1 + $0x98] sm:$0xff]
  %v43 = vld [vmem:[%s1 + $0xa0] sm:$0xff]
  %v44 = vld [vmem:[%s1 + $0xa8] sm:$0xff]
  %v45 = vld [vmem:[%s1 + $0xb0] sm:$0xff]
  %v46 = vld [vmem:[%s1 + $0xb8] sm:$0xff]
  %v47 = vld [vmem:[%s1 + $0xc0] sm:$0xff]
  %v48 = vld [vmem:[%s1 + $0xc8] sm:$0xff]
  %v49 = vld [vmem:[%s1 + $0xd0] sm:$0xff]
  %v50 = vld [vmem:[%s1 + $0xd8] sm:$0xff]
  %v51 = vld [vmem:[%s1 + $0xe0] sm:$0xff]
  %v52 = vld [vmem:[%s1 + $0xe8] sm:$0xff]
  %v53 = vld [vmem:[%s1 + $0xf0] sm:$0xff]
  %v54 = vld [vmem:[%s1 + $0xf8] sm:$0xff]
  %v55 = vld [vmem:[%s2] sm:$0x3]
  %v57 = vperm.slane %v55, 0
  %v58 = vperm.slane %v55, 1
  %62 = vst [vmem:[#allocation1] ss:$9 sm:$0xff] %v22
  %v63 = vld [vmem:[#allocation1] sm:$0xff]
  %v64 = vld [vmem:[#allocation1 + $0x9] sm:$0xff]
  %v99 = vunpack.c.l.b16 %v23
  %v100 = vunpack.c.h.b16 %v23
  %v101 = vunpack.c.l.b16 %v24
  %v102 = vunpack.c.h.b16 %v24
  %v103 = vunpack.c.l.b16 %v25
  %v104 = vunpack.c.h.b16 %v25
  %v105 = vunpack.c.l.b16 %v26
  %v106 = vunpack.c.h.b16 %v26
  %v107 = vunpack.c.l.b16 %v27
  %v108 = vunpack.c.h.b16 %v27
  %v109 = vunpack.c.l.b16 %v28
  %v110 = vunpack.c.h.b16 %v28
  %v111 = vunpack.c.l.b16 %v29
  %v112 = vunpack.c.h.b16 %v29
  %v113 = vunpack.c.l.b16 %v30
  %v114 = vunpack.c.h.b16 %v30
  %v115 = vunpack.c.l.b16 %v31
  %v116 = vunpack.c.h.b16 %v31
  %v117 = vunpack.c.l.b16 %v32
  %v118 = vunpack.c.h.b16 %v32
  %v119 = vunpack.c.l.b16 %v33
  %v120 = vunpack.c.h.b16 %v33
  %v121 = vunpack.c.l.b16 %v34
  %v122 = vunpack.c.h.b16 %v34
  %v123 = vunpack.c.l.b16 %v35
  %v124 = vunpack.c.h.b16 %v35
  %v125 = vunpack.c.l.b16 %v36
  %v126 = vunpack.c.h.b16 %v36
  %v127 = vunpack.c.l.b16 %v37
  %v128 = vunpack.c.h.b16 %v37
  %v129 = vunpack.c.l.b16 %v38
  %v130 = vunpack.c.h.b16 %v38
  %v131 = vunpack.c.l.b16 %v39
  %v132 = vunpack.c.h.b16 %v39
  %v133 = vunpack.c.l.b16 %v40
  %v134 = vunpack.c.h.b16 %v40
  %v135 = vunpack.c.l.b16 %v41
  %v136 = vunpack.c.h.b16 %v41
  %v137 = vunpack.c.l.b16 %v42
  %v138 = vunpack.c.h.b16 %v42
  %v139 = vunpack.c.l.b16 %v43
  %v140 = vunpack.c.h.b16 %v43
  %v141 = vunpack.c.l.b16 %v44
  %v142 = vunpack.c.h.b16 %v44
  %v143 = vunpack.c.l.b16 %v45
  %v144 = vunpack.c.h.b16 %v45
  %v145 = vunpack.c.l.b16 %v46
  %v146 = vunpack.c.h.b16 %v46
  %v147 = vunpack.c.l.b16 %v47
  %v148 = vunpack.c.h.b16 %v47
  %v149 = vunpack.c.l.b16 %v48
  %v150 = vunpack.c.h.b16 %v48
  %v151 = vunpack.c.l.b16 %v49
  %v152 = vunpack.c.h.b16 %v49
  %v153 = vunpack.c.l.b16 %v50
  %v154 = vunpack.c.h.b16 %v50
  %v155 = vunpack.c.l.b16 %v51
  %v156 = vunpack.c.h.b16 %v51
  %v157 = vunpack.c.l.b16 %v52
  %v158 = vunpack.c.h.b16 %v52
  %v159 = vunpack.c.l.b16 %v53
  %v160 = vunpack.c.h.b16 %v53
  %v161 = vunpack.c.l.b16 %v54
  %v162 = vunpack.c.h.b16 %v54
  %v163 = vpack.c.b16 %v101, %v99
  %v164 = vpack.c.b16 %v102, %v100
  %v165 = vpack.c.b16 %v105, %v103
  %v166 = vpack.c.b16 %v106, %v104
  %v167 = vpack.c.b16 %v109, %v107
  %v168 = vpack.c.b16 %v110, %v108
  %v169 = vpack.c.b16 %v113, %v111
  %v170 = vpack.c.b16 %v114, %v112
  %v171 = vpack.c.b16 %v117, %v115
  %v172 = vpack.c.b16 %v118, %v116
  %v173 = vpack.c.b16 %v121, %v119
  %v174 = vpack.c.b16 %v122, %v120
  %v175 = vpack.c.b16 %v125, %v123
  %v176 = vpack.c.b16 %v126, %v124
  %v177 = vpack.c.b16 %v129, %v127
  %v178 = vpack.c.b16 %v130, %v128
  %v179 = vpack.c.b16 %v133, %v131
  %v180 = vpack.c.b16 %v134, %v132
  %v181 = vpack.c.b16 %v137, %v135
  %v182 = vpack.c.b16 %v138, %v136
  %v183 = vpack.c.b16 %v141, %v139
  %v184 = vpack.c.b16 %v142, %v140
  %v185 = vpack.c.b16 %v145, %v143
  %v186 = vpack.c.b16 %v146, %v144
  %v187 = vpack.c.b16 %v149, %v147
  %v188 = vpack.c.b16 %v150, %v148
  %v189 = vpack.c.b16 %v153, %v151
  %v190 = vpack.c.b16 %v154, %v152
  %v191 = vpack.c.b16 %v157, %v155
  %v192 = vpack.c.b16 %v158, %v156
  %v193 = vpack.c.b16 %v161, %v159
  %v194 = vpack.c.b16 %v162, %v160
  %227 = vmatpush.bf16.msra.mxu0 %v177
  %228 = vmatpush.bf16.msra.mxu0 %v175
  %229 = vmatpush.bf16.msra.mxu0 %v173
  %230 = vmatpush.bf16.msra.mxu0 %v171
  %231 = vmatpush.bf16.msra.mxu0 %v169
  %232 = vmatpush.bf16.msra.mxu0 %v167
  %233 = vmatpush.bf16.msra.mxu0 %v165
  %234 = vmatpush.bf16.msra.mxu0 %v163
  %235 = vmatmul.bf16.gmra.mxu0 %v63
  %v236 = vpop.f32.mrf.mxu0
  %v237 = vadd.f32 %v57, %v236
  %v238 = vpop.f32.mrf.mxu0
  %239 = vdwg.mxu0
  %240 = vmatpush.bf16.msra.mxu0 %v193
  %241 = vmatpush.bf16.msra.mxu0 %v191
  %242 = vmatpush.bf16.msra.mxu0 %v189
  %243 = vmatpush.bf16.msra.mxu0 %v187
  %244 = vmatpush.bf16.msra.mxu0 %v185
  %245 = vmatpush.bf16.msra.mxu0 %v183
  %246 = vmatpush.bf16.msra.mxu0 %v181
  %247 = vmatpush.bf16.msra.mxu0 %v179
  %248 = vmatmul.bf16.gmra.mxu0 %v64
  %v249 = vpop.f32.mrf.mxu0
  %v250 = vadd.f32 %v237, %v249
  %v251 = vpop.f32.mrf.mxu0
  %252 = vdwg.mxu0
  %253 = vmatpush.bf16.msra.mxu0 %v178
  %254 = vmatpush.bf16.msra.mxu0 %v176
  %255 = vmatpush.bf16.msra.mxu0 %v174
  %256 = vmatpush.bf16.msra.mxu0 %v172
  %257 = vmatpush.bf16.msra.mxu0 %v170
  %258 = vmatpush.bf16.msra.mxu0 %v168
  %259 = vmatpush.bf16.msra.mxu0 %v166
  %260 = vmatpush.bf16.msra.mxu0 %v164
  %261 = vmatmul.bf16.gmra.mxu0 %v63
  %v262 = vpop.f32.mrf.mxu0
  %v263 = vadd.f32 %v58, %v262
  %v264 = vpop.f32.mrf.mxu0
  %265 = vdwg.mxu0
  %266 = vmatpush.bf16.msra.mxu0 %v194
  %267 = vmatpush.bf16.msra.mxu0 %v192
  %268 = vmatpush.bf16.msra.mxu0 %v190
  %269 = vmatpush.bf16.msra.mxu0 %v188
  %270 = vmatpush.bf16.msra.mxu0 %v186
  %271 = vmatpush.bf16.msra.mxu0 %v184
  %272 = vmatpush.bf16.msra.mxu0 %v182
  %273 = vmatpush.bf16.msra.mxu0 %v180
  %274 = vmatmul.bf16.gmra.mxu0 %v64
  %v275 = vpop.f32.mrf.mxu0
  %v276 = vadd.f32 %v263, %v275
  %v277 = vpop.f32.mrf.mxu0
  %278 = vdwg.mxu0
  %v279 = vtanh.pop %v250
  %v280 = vtanh.pop %v276
  %v281 = vld [vmem:[%s3] sm:$0x3]
  %v283 = vperm.slane %v281, 0
  %v284 = vperm.slane %v281, 1
  %v287 = vmul.f32 %v279, %v283
  %v288 = vmul.f32 %v280, %v284
  %vm289 = vcmask 1041408
  %v290 = vsel %vm289, %v287, 0.0
  %v291 = vsel %vm289, %v288, 0.0
  %v292 = vadd.f32 %v290, %v291
  %293 = vadd.xlane.f32.xlu0 %v292
  %v294 = vpop.xlane.xlu0 %293
  %v295 = vld [vmem:[#allocation2] sm:$0x1]
  %v297 = vperm.slane %v295, 0
  %v299 = vadd.f32 %v294, %v297
  %301 = vset.pattern.permute.xlu0 0
  %302 = vperm.xlu0 %301, %v299
  %v303 = vpop.permute.xlu0 %302
  %305 = vst [vmem:[%s5] sm:$0x3] %v303
  // Predicated region
  $region22: #{bert_base_uncased_forward.19} parent=0 // pred_check
    _
  $region23: #{bert_base_uncased_forward.19} parent=0 // pred_check_branch
    %307 = sbr.rel (0) target = $region25
  $region24: #{bert_base_uncased_forward.19} parent=0 // pred_region
    _
  $region25: #{bert_base_uncased_forward.19} parent=0 // pred_fallthru
    _
  // Predicated region
  $region26: #{bert_base_uncased_forward.19} parent=0 // pred_check
    _
  $region27: #{bert_base_uncased_forward.19} parent=0 // pred_check_branch
    %309 = sbr.rel (0) target = $region29
  $region28: #{bert_base_uncased_forward.19} parent=0 // pred_region
    _
  $region29: #{bert_base_uncased_forward.19} parent=0 // pred_fallthru
    _

// kernel: bert_base_uncased_forward.14
$region0: #{bert_base_uncased_forward.14}
  #allocation0 [shape = 'u32[]', space=smem, size = 0x4, offset = 0x4, fixed_abs, tag = 'smem constant byte address 0x4 - core index']
  #allocation1 [shape = 'u32[72,128]{1,0:T(1,128)}', space=vmem, size = 0x9000, scoped, tag = 'internal scratch']
  %s0 = inlined_call_operand.vmem [shape: bf16[256,256], index: 0, kind: input, shape index: {}]
  %s1 = inlined_call_operand.vmem [shape: bf16[256,512], index: 1, kind: input, shape index: {}]
  %s2 = inlined_call_operand.vmem [shape: f32[1,512], index: 2, kind: input, shape index: {}]
  %s3 = inlined_call_operand.vmem [shape: bf16[512,256], index: 3, kind: input, shape index: {}]
  %s4 = inlined_call_operand.vmem [shape: f32[1,256], index: 4, kind: input, shape index: {}]
  %s5 = inlined_call_operand.vmem [shape: f32[1,256], index: 5, kind: input, shape index: {}]
  %s6 = inlined_call_operand.vmem [shape: f32[1,256], index: 6, kind: input, shape index: {}]
  %s7 = inlined_call_operand.vmem [shape: bf16[256,256], index: 7, kind: output, shape index: {}]
  %s8 = sld [smem:[#allocation0]]
  $region61: #{bert_base_uncased_forward.14} parent=0
    _
  %s10 = ssub.s32 1, %s8
  %s11 = scalar_select 0, %s10, %s8
  loop: start=0, step=1, limit=4
  $region2: #{bert_base_uncased_forward.14} parent=0 // loop_pre_header
    _
  $region3: #{bert_base_uncased_forward.14} parent=0 // loop_header
    %s13 = sphi 0, %s17
    %p14 = scmp.ge.s32.totalorder %s13, 4
    %s23 = sphi 0, %s25
    %s26 = sphi 0, %s23
    %s27 = sphi 0, %s26
    %s43 = sphi 0, %s27
    %s47 = sphi 0, %s47
    %s49 = sphi 0, %s47
    %s50 = sphi 0, %s49
    %s64 = sphi 0, %s50
    %s68 = sphi 0, %s68
    %s70 = sphi 0, %s68
    %s71 = sphi 0, %s70
    %s85 = sphi 0, %s71
    %s89 = sphi 0, %s89
    %s91 = sphi 0, %s89
    %s92 = sphi 0, %s91
    %s106 = sphi 0, %s92
    %s110 = sphi 0, %s110
    %s112 = sphi 0, %s110
    %s113 = sphi 0, %s112
    %s127 = sphi 0, %s113
    %s131 = sphi 0, %s131
    %s133 = sphi 0, %s131
    %s134 = sphi 0, %s133
    %s148 = sphi 0, %s134
    %s152 = sphi 0, %s152
    %s154 = sphi 0, %s152
    %s155 = sphi 0, %s154
    %s169 = sphi 0, %s155
    %s175 = sphi 0, %s177
    %s178 = sphi 0, %s175
    %s179 = sphi 0, %s178
    %s195 = sphi 0, %s179
  $region4: #{bert_base_uncased_forward.14} parent=0 // loop_header_branch
    %16 = sbr.rel (%p14) target = $region8
  $region5: #{bert_base_uncased_forward.14} parent=0 // loop_body
    %s18 = ssub.s32 %s13, 1
    %s19 = ssub.s32 %s13, 2
    %s20 = sadd.s32 %s13, 1
    %s21 = ssub.s32 %s13, %s20
    %p22 = scmp.eq.s32.totalorder %s21, 0
    %s24 = sadd.s32 %s23, 1
    %s25 = scalar_select %p22, %s23, %s24
    %p28 = pneg %p22
    %p29 = scmp.eq.s32.totalorder %s13, 1
    %p30 = por %p28, %p29
    %p31 = scmp.ne.s32.totalorder %s23, %s26
    %p32 = scmp.eq.s32.totalorder %s13, 0
    %p33 = por %p31, %p32
    %p34 = scmp.ne.s32.totalorder %s23, %s26
    %p35 = scmp.eq.s32.totalorder %s18, 1
    %p36 = por %p34, %p35
    %p37 = scmp.ne.s32.totalorder %s26, %s27
    %p38 = scmp.eq.s32.totalorder %s18, 0
    %p39 = por %p37, %p38
    %p40 = scmp.ne.s32.totalorder %s26, %s27
    %p41 = scmp.eq.s32.totalorder %s19, 1
    %p42 = por %p40, %p41
    %p44 = scmp.ne.s32.totalorder %s27, %s43
    %p45 = scmp.eq.s32.totalorder %s19, 0
    %p46 = por %p44, %p45
    %s48 = sadd.s32 %s47, 1
    %p51 = scmp.eq.s32.totalorder %s13, 1
    %p52 = scmp.ne.s32.totalorder %s47, %s49
    %p53 = scmp.eq.s32.totalorder %s13, 0
    %p54 = por %p52, %p53
    %p55 = scmp.ne.s32.totalorder %s47, %s49
    %p56 = scmp.eq.s32.totalorder %s18, 1
    %p57 = por %p55, %p56
    %p58 = scmp.ne.s32.totalorder %s49, %s50
    %p59 = scmp.eq.s32.totalorder %s18, 0
    %p60 = por %p58, %p59
    %p61 = scmp.ne.s32.totalorder %s49, %s50
    %p62 = scmp.eq.s32.totalorder %s19, 1
    %p63 = por %p61, %p62
    %p65 = scmp.ne.s32.totalorder %s50, %s64
    %p66 = scmp.eq.s32.totalorder %s19, 0
    %p67 = por %p65, %p66
    %s69 = sadd.s32 %s68, 1
    %p72 = scmp.eq.s32.totalorder %s13, 1
    %p73 = scmp.ne.s32.totalorder %s68, %s70
    %p74 = scmp.eq.s32.totalorder %s13, 0
    %p75 = por %p73, %p74
    %p76 = scmp.ne.s32.totalorder %s68, %s70
    %p77 = scmp.eq.s32.totalorder %s18, 1
    %p78 = por %p76, %p77
    %p79 = scmp.ne.s32.totalorder %s70, %s71
    %p80 = scmp.eq.s32.totalorder %s18, 0
    %p81 = por %p79, %p80
    %p82 = scmp.ne.s32.totalorder %s70, %s71
    %p83 = scmp.eq.s32.totalorder %s19, 1
    %p84 = por %p82, %p83
    %p86 = scmp.ne.s32.totalorder %s71, %s85
    %p87 = scmp.eq.s32.totalorder %s19, 0
    %p88 = por %p86, %p87
    %s90 = sadd.s32 %s89, 1
    %p93 = scmp.eq.s32.totalorder %s13, 1
    %p94 = scmp.ne.s32.totalorder %s89, %s91
    %p95 = scmp.eq.s32.totalorder %s13, 0
    %p96 = por %p94, %p95
    %p97 = scmp.ne.s32.totalorder %s89, %s91
    %p98 = scmp.eq.s32.totalorder %s18, 1
    %p99 = por %p97, %p98
    %p100 = scmp.ne.s32.totalorder %s91, %s92
    %p101 = scmp.eq.s32.totalorder %s18, 0
    %p102 = por %p100, %p101
    %p103 = scmp.ne.s32.totalorder %s91, %s92
    %p104 = scmp.eq.s32.totalorder %s19, 1
    %p105 = por %p103, %p104
    %p107 = scmp.ne.s32.totalorder %s92, %s106
    %p108 = scmp.eq.s32.totalorder %s19, 0
    %p109 = por %p107, %p108
    %s111 = sadd.s32 %s110, 1
    %p114 = scmp.eq.s32.totalorder %s13, 1
    %p115 = scmp.ne.s32.totalorder %s110, %s112
    %p116 = scmp.eq.s32.totalorder %s13, 0
    %p117 = por %p115, %p116
    %p118 = scmp.ne.s32.totalorder %s110, %s112
    %p119 = scmp.eq.s32.totalorder %s18, 1
    %p120 = por %p118, %p119
    %p121 = scmp.ne.s32.totalorder %s112, %s113
    %p122 = scmp.eq.s32.totalorder %s18, 0
    %p123 = por %p121, %p122
    %p124 = scmp.ne.s32.totalorder %s112, %s113
    %p125 = scmp.eq.s32.totalorder %s19, 1
    %p126 = por %p124, %p125
    %p128 = scmp.ne.s32.totalorder %s113, %s127
    %p129 = scmp.eq.s32.totalorder %s19, 0
    %p130 = por %p128, %p129
    %s132 = sadd.s32 %s131, 1
    %p135 = scmp.eq.s32.totalorder %s13, 1
    %p136 = scmp.ne.s32.totalorder %s131, %s133
    %p137 = scmp.eq.s32.totalorder %s13, 0
    %p138 = por %p136, %p137
    %p139 = scmp.ne.s32.totalorder %s131, %s133
    %p140 = scmp.eq.s32.totalorder %s18, 1
    %p141 = por %p139, %p140
    %p142 = scmp.ne.s32.totalorder %s133, %s134
    %p143 = scmp.eq.s32.totalorder %s18, 0
    %p144 = por %p142, %p143
    %p145 = scmp.ne.s32.totalorder %s133, %s134
    %p146 = scmp.eq.s32.totalorder %s19, 1
    %p147 = por %p145, %p146
    %p149 = scmp.ne.s32.totalorder %s134, %s148
    %p150 = scmp.eq.s32.totalorder %s19, 0
    %p151 = por %p149, %p150
    %s153 = sadd.s32 %s152, 1
    %p156 = scmp.eq.s32.totalorder %s13, 1
    %p157 = scmp.ne.s32.totalorder %s152, %s154
    %p158 = scmp.eq.s32.totalorder %s13, 0
    %p159 = por %p157, %p158
    %p160 = scmp.ne.s32.totalorder %s152, %s154
    %p161 = scmp.eq.s32.totalorder %s18, 1
    %p162 = por %p160, %p161
    %p163 = scmp.ne.s32.totalorder %s154, %s155
    %p164 = scmp.eq.s32.totalorder %s18, 0
    %p165 = por %p163, %p164
    %p166 = scmp.ne.s32.totalorder %s154, %s155
    %p167 = scmp.eq.s32.totalorder %s19, 1
    %p168 = por %p166, %p167
    %p170 = scmp.ne.s32.totalorder %s155, %s169
    %p171 = scmp.eq.s32.totalorder %s19, 0
    %p172 = por %p170, %p171
    %s173 = ssub.s32 %s13, %s20
    %p174 = scmp.eq.s32.totalorder %s173, 0
    %s176 = sadd.s32 %s175, 1
    %s177 = scalar_select %p174, %s175, %s176
    %p180 = pneg %p174
    %p181 = scmp.eq.s32.totalorder %s13, 1
    %p182 = por %p180, %p181
    %p183 = scmp.ne.s32.totalorder %s175, %s178
    %p184 = scmp.eq.s32.totalorder %s13, 0
    %p185 = por %p183, %p184
    %p186 = scmp.ne.s32.totalorder %s175, %s178
    %p187 = scmp.eq.s32.totalorder %s18, 1
    %p188 = por %p186, %p187
    %p189 = scmp.ne.s32.totalorder %s178, %s179
    %p190 = scmp.eq.s32.totalorder %s18, 0
    %p191 = por %p189, %p190
    %p192 = scmp.ne.s32.totalorder %s178, %s179
    %p193 = scmp.eq.s32.totalorder %s19, 1
    %p194 = por %p192, %p193
    %p196 = scmp.ne.s32.totalorder %s179, %s195
    %p197 = scmp.eq.s32.totalorder %s19, 0
    %p198 = por %p196, %p197
    %p199 = scmp.le.s32.totalorder 1, %s13
    %p200 = scmp.lt.s32.totalorder %s13, 3
    %p201 = pnand %p199, %p200
    %p202 = pneg %p201
    // Predicated region
    $region9: #{bert_base_uncased_forward.14} parent=5 // pred_check
      _
    $region10: #{bert_base_uncased_forward.14} parent=5 // pred_check_branch
      %204 = sbr.rel (%p201) target = $region12
    $region11: #{bert_base_uncased_forward.14} parent=5 // pred_region
      %s205 = ssub.s32 %s13, 1
      // Predicated region
      $region13: #{bert_base_uncased_forward.14} parent=11 // pred_check
        %p206 = pneg %p60
      $region14: #{bert_base_uncased_forward.14} parent=11 // pred_check_branch
        %208 = sbr.rel (%p206) target = $region16
      $region15: #{bert_base_uncased_forward.14} parent=11 // pred_region
        _
      $region16: #{bert_base_uncased_forward.14} parent=11 // pred_fallthru
        _
      // Predicated region
      $region17: #{bert_base_uncased_forward.14} parent=11 // pred_check
        %p209 = pneg %p81
      $region18: #{bert_base_uncased_forward.14} parent=11 // pred_check_branch
        %211 = sbr.rel (%p209) target = $region20
      $region19: #{bert_base_uncased_forward.14} parent=11 // pred_region
        _
      $region20: #{bert_base_uncased_forward.14} parent=11 // pred_fallthru
        _
      // Predicated region
      $region21: #{bert_base_uncased_forward.14} parent=11 // pred_check
        %p212 = pneg %p102
      $region22: #{bert_base_uncased_forward.14} parent=11 // pred_check_branch
        %214 = sbr.rel (%p212) target = $region24
      $region23: #{bert_base_uncased_forward.14} parent=11 // pred_region
        _
      $region24: #{bert_base_uncased_forward.14} parent=11 // pred_fallthru
        _
      // Predicated region
      $region25: #{bert_base_uncased_forward.14} parent=11 // pred_check
        %p215 = pneg %p123
      $region26: #{bert_base_uncased_forward.14} parent=11 // pred_check_branch
        %217 = sbr.rel (%p215) target = $region28
      $region27: #{bert_base_uncased_forward.14} parent=11 // pred_region
        _
      $region28: #{bert_base_uncased_forward.14} parent=11 // pred_fallthru
        _
      // Predicated region
      $region29: #{bert_base_uncased_forward.14} parent=11 // pred_check
        %p218 = pneg %p144
      $region30: #{bert_base_uncased_forward.14} parent=11 // pred_check_branch
        %220 = sbr.rel (%p218) target = $region32
      $region31: #{bert_base_uncased_forward.14} parent=11 // pred_region
        _
      $region32: #{bert_base_uncased_forward.14} parent=11 // pred_fallthru
        _
      // Predicated region
      $region33: #{bert_base_uncased_forward.14} parent=11 // pred_check
        %p221 = pneg %p165
      $region34: #{bert_base_uncased_forward.14} parent=11 // pred_check_branch
        %223 = sbr.rel (%p221) target = $region36
      $region35: #{bert_base_uncased_forward.14} parent=11 // pred_region
        _
      $region36: #{bert_base_uncased_forward.14} parent=11 // pred_fallthru
        _
    $region12: #{bert_base_uncased_forward.14} parent=5 // pred_fallthru
      _
    %p224 = scmp.lt.s32.totalorder %s13, 2
    // Predicated region
    $region37: #{bert_base_uncased_forward.14} parent=5 // pred_check
      %p225 = pneg %p224
    $region38: #{bert_base_uncased_forward.14} parent=5 // pred_check_branch
      %227 = sbr.rel (%p225) target = $region40
    $region39: #{bert_base_uncased_forward.14} parent=5 // pred_region
      // Predicated region
      $region41: #{bert_base_uncased_forward.14} parent=39 // pred_check
        %p228 = pneg %p33
      $region42: #{bert_base_uncased_forward.14} parent=39 // pred_check_branch
        %230 = sbr.rel (%p228) target = $region44
      $region43: #{bert_base_uncased_forward.14} parent=39 // pred_region
        %s231 = smul.u32 16, %s13
        %p232 = scmp.lt.s32.totalorder %s231, 31
        %s233 = scalar_select %p232, %s231, 31
        %s234 = smul.addr %s233, 2
        %s235 = smul.addr %s234, 4
        %s236 = scalar_lea.vmem %s0, %s235
        %s237 = smul.u32 16, %s13
      $region44: #{bert_base_uncased_forward.14} parent=39 // pred_fallthru
        _
    $region40: #{bert_base_uncased_forward.14} parent=5 // pred_fallthru
      _
    %p238 = scmp.le.s32.totalorder 1, %s13
    %p239 = scmp.lt.s32.totalorder %s13, 3
    %p240 = pnand %p238, %p239
    %p241 = pneg %p240
    // Predicated region
    $region45: #{bert_base_uncased_forward.14} parent=5 // pred_check
      _
    $region46: #{bert_base_uncased_forward.14} parent=5 // pred_check_branch
      %243 = sbr.rel (%p240) target = $region48
    $region47: #{bert_base_uncased_forward.14} parent=5 // pred_region
      %s244 = ssub.s32 %s13, 1
      %s245 = smul.u32 16, %s18
      %p246 = scmp.lt.s32.totalorder %s245, 31
      %s247 = scalar_select %p246, %s245, 31
      %s248 = smul.addr %s247, 2
      %s249 = smul.addr %s248, 4
      %s250 = scalar_lea.vmem %s0, %s249
      %p251 = pneg %p39
      %p252 = pneg %p36
      %p253 = pneg %p60
      %p254 = pneg %p57
      %p255 = pneg %p81
      %p256 = pneg %p78
      %p257 = pneg %p102
      %p258 = pneg %p99
      %p259 = pneg %p123
      %p260 = pneg %p120
      %p261 = pneg %p144
      %p262 = pneg %p141
      %p263 = pneg %p165
      %p264 = pneg %p162
      %p265 = pneg %p191
      %p266 = pneg %p188
      %s267 = smul.u32 16, %s18
      %p268 = scmp.lt.s32.totalorder %s267, 31
      %s269 = scalar_select %p268, %s267, 31
      %s270 = smul.addr %s269, 2
      %s271 = smul.addr %s270, 4
      %s272 = scalar_lea.vmem %s7, %s271
      %s273 = smul.u32 16, %s18
      %p274 = scmp.lt.s32.totalorder %s273, 31
      %s275 = scalar_select %p274, %s273, 31
      %s276 = smul.addr %s275, 2
      %s277 = smul.addr %s276, 4
      %s278 = scalar_lea.vmem %s0, %s277
      %s279 = smul.u32 16, %s18
      %s280 = smul.u32 16, %s18
      %p281 = scmp.lt.s32.totalorder %s280, 31
      %s282 = scalar_select %p281, %s280, 31
      %s283 = smul.addr %s282, 2
      %s284 = smul.addr %s283, 4
      %s285 = scalar_lea.vmem %s7, %s284
      %s286 = smul.u32 16, %s18
      %v287 = vld [vmem:[%s278] sm:$0xff]
      %v288 = vld [vmem:[%s278 + $0x8] sm:$0xff]
      %v289 = vld [vmem:[%s278 + $0x10] sm:$0xff]
      %v290 = vld [vmem:[%s278 + $0x18] sm:$0xff]
      %v291 = vld [vmem:[%s278 + $0x20] sm:$0xff]
      %v292 = vld [vmem:[%s278 + $0x28] sm:$0xff]
      %v293 = vld [vmem:[%s278 + $0x30] sm:$0xff]
      %v294 = vld [vmem:[%s278 + $0x38] sm:$0xff]
      %v295 = vld [vmem:[%s278 + $0x40] sm:$0xff]
      %v296 = vld [vmem:[%s278 + $0x48] sm:$0xff]
      %v297 = vld [vmem:[%s278 + $0x50] sm:$0xff]
      %v298 = vld [vmem:[%s278 + $0x58] sm:$0xff]
      %v299 = vld [vmem:[%s278 + $0x60] sm:$0xff]
      %v300 = vld [vmem:[%s278 + $0x68] sm:$0xff]
      %v301 = vld [vmem:[%s278 + $0x70] sm:$0xff]
      %v302 = vld [vmem:[%s278 + $0x78] sm:$0xff]
      %v303 = vld [vmem:[%s1] sm:$0xff]
      %v304 = vld [vmem:[%s1 + $0x8] sm:$0xff]
      %v305 = vld [vmem:[%s1 + $0x10] sm:$0xff]
      %v306 = vld [vmem:[%s1 + $0x18] sm:$0xff]
      %v307 = vld [vmem:[%s1 + $0x20] sm:$0xff]
      %v308 = vld [vmem:[%s1 + $0x28] sm:$0xff]
      %v309 = vld [vmem:[%s1 + $0x30] sm:$0xff]
      %v310 = vld [vmem:[%s1 + $0x38] sm:$0xff]
      %v311 = vld [vmem:[%s1 + $0x40] sm:$0xff]
      %v312 = vld [vmem:[%s1 + $0x48] sm:$0xff]
      %v313 = vld [vmem:[%s1 + $0x50] sm:$0xff]
      %v314 = vld [vmem:[%s1 + $0x58] sm:$0xff]
      %v315 = vld [vmem:[%s1 + $0x60] sm:$0xff]
      %v316 = vld [vmem:[%s1 + $0x68] sm:$0xff]
      %v317 = vld [vmem:[%s1 + $0x70] sm:$0xff]
      %v318 = vld [vmem:[%s1 + $0x78] sm:$0xff]
      %v319 = vld [vmem:[%s1 + $0x80] sm:$0xff]
      %v320 = vld [vmem:[%s1 + $0x88] sm:$0xff]
      %v321 = vld [vmem:[%s1 + $0x90] sm:$0xff]
      %v322 = vld [vmem:[%s1 + $0x98] sm:$0xff]
      %v323 = vld [vmem:[%s1 + $0xa0] sm:$0xff]
      %v324 = vld [vmem:[%s1 + $0xa8] sm:$0xff]
      %v325 = vld [vmem:[%s1 + $0xb0] sm:$0xff]
      %v326 = vld [vmem:[%s1 + $0xb8] sm:$0xff]
      %v327 = vld [vmem:[%s1 + $0xc0] sm:$0xff]
      %v328 = vld [vmem:[%s1 + $0xc8] sm:$0xff]
      %v329 = vld [vmem:[%s1 + $0xd0] sm:$0xff]
      %v330 = vld [vmem:[%s1 + $0xd8] sm:$0xff]
      %v331 = vld [vmem:[%s1 + $0xe0] sm:$0xff]
      %v332 = vld [vmem:[%s1 + $0xe8] sm:$0xff]
      %v333 = vld [vmem:[%s1 + $0xf0] sm:$0xff]
      %v334 = vld [vmem:[%s1 + $0xf8] sm:$0xff]
      %v335 = vld [vmem:[%s1 + $0x100] sm:$0xff]
      %v336 = vld [vmem:[%s1 + $0x108] sm:$0xff]
      %v337 = vld [vmem:[%s1 + $0x110] sm:$0xff]
      %v338 = vld [vmem:[%s1 + $0x118] sm:$0xff]
      %v339 = vld [vmem:[%s1 + $0x120] sm:$0xff]
      %v340 = vld [vmem:[%s1 + $0x128] sm:$0xff]
      %v341 = vld [vmem:[%s1 + $0x130] sm:$0xff]
      %v342 = vld [vmem:[%s1 + $0x138] sm:$0xff]
      %v343 = vld [vmem:[%s1 + $0x140] sm:$0xff]
      %v344 = vld [vmem:[%s1 + $0x148] sm:$0xff]
      %v345 = vld [vmem:[%s1 + $0x150] sm:$0xff]
      %v346 = vld [vmem:[%s1 + $0x158] sm:$0xff]
      %v347 = vld [vmem:[%s1 + $0x160] sm:$0xff]
      %v348 = vld [vmem:[%s1 + $0x168] sm:$0xff]
      %v349 = vld [vmem:[%s1 + $0x170] sm:$0xff]
      %v350 = vld [vmem:[%s1 + $0x178] sm:$0xff]
      %v351 = vld [vmem:[%s1 + $0x180] sm:$0xff]
      %v352 = vld [vmem:[%s1 + $0x188] sm:$0xff]
      %v353 = vld [vmem:[%s1 + $0x190] sm:$0xff]
      %v354 = vld [vmem:[%s1 + $0x198] sm:$0xff]
      %v355 = vld [vmem:[%s1 + $0x1a0] sm:$0xff]
      %v356 = vld [vmem:[%s1 + $0x1a8] sm:$0xff]
      %v357 = vld [vmem:[%s1 + $0x1b0] sm:$0xff]
      %v358 = vld [vmem:[%s1 + $0x1b8] sm:$0xff]
      %v359 = vld [vmem:[%s1 + $0x1c0] sm:$0xff]
      %v360 = vld [vmem:[%s1 + $0x1c8] sm:$0xff]
      %v361 = vld [vmem:[%s1 + $0x1d0] sm:$0xff]
      %v362 = vld [vmem:[%s1 + $0x1d8] sm:$0xff]
      %v363 = vld [vmem:[%s1 + $0x1e0] sm:$0xff]
      %v364 = vld [vmem:[%s1 + $0x1e8] sm:$0xff]
      %v365 = vld [vmem:[%s1 + $0x1f0] sm:$0xff]
      %v366 = vld [vmem:[%s1 + $0x1f8] sm:$0xff]
      %v367 = vld [vmem:[%s2] sm:$0xf]
      %v369 = vperm.slane %v367, 0
      %v370 = vperm.slane %v367, 1
      %v371 = vperm.slane %v367, 2
      %v372 = vperm.slane %v367, 3
      %v393 = vunpack.c.l.b16 %v287
      %v394 = vunpack.c.h.b16 %v287
      %v395 = vunpack.c.l.b16 %v288
      %v396 = vunpack.c.h.b16 %v288
      %v397 = vunpack.c.l.b16 %v289
      %v398 = vunpack.c.h.b16 %v289
      %v399 = vunpack.c.l.b16 %v290
      %v400 = vunpack.c.h.b16 %v290
      %v401 = vunpack.c.l.b16 %v291
      %v402 = vunpack.c.h.b16 %v291
      %v403 = vunpack.c.l.b16 %v292
      %v404 = vunpack.c.h.b16 %v292
      %v405 = vunpack.c.l.b16 %v293
      %v406 = vunpack.c.h.b16 %v293
      %v407 = vunpack.c.l.b16 %v294
      %v408 = vunpack.c.h.b16 %v294
      %v409 = vunpack.c.l.b16 %v295
      %v410 = vunpack.c.h.b16 %v295
      %v411 = vunpack.c.l.b16 %v296
      %v412 = vunpack.c.h.b16 %v296
      %v413 = vunpack.c.l.b16 %v297
      %v414 = vunpack.c.h.b16 %v297
      %v415 = vunpack.c.l.b16 %v298
      %v416 = vunpack.c.h.b16 %v298
      %v417 = vunpack.c.l.b16 %v299
      %v418 = vunpack.c.h.b16 %v299
      %v419 = vunpack.c.l.b16 %v300
      %v420 = vunpack.c.h.b16 %v300
      %v421 = vunpack.c.l.b16 %v301
      %v422 = vunpack.c.h.b16 %v301
      %v423 = vunpack.c.l.b16 %v302
      %v424 = vunpack.c.h.b16 %v302
      %v425 = vpack.c.b16 %v395, %v393
      %v426 = vpack.c.b16 %v396, %v394
      %v427 = vpack.c.b16 %v399, %v397
      %v428 = vpack.c.b16 %v400, %v398
      %v429 = vpack.c.b16 %v403, %v401
      %v430 = vpack.c.b16 %v404, %v402
      %v431 = vpack.c.b16 %v407, %v405
      %v432 = vpack.c.b16 %v408, %v406
      %v433 = vpack.c.b16 %v411, %v409
      %v434 = vpack.c.b16 %v412, %v410
      %v435 = vpack.c.b16 %v415, %v413
      %v436 = vpack.c.b16 %v416, %v414
      %v437 = vpack.c.b16 %v419, %v417
      %v438 = vpack.c.b16 %v420, %v418
      %v439 = vpack.c.b16 %v423, %v421
      %v440 = vpack.c.b16 %v424, %v422
      %v521 = vunpack.c.l.b16 %v303
      %v522 = vunpack.c.h.b16 %v303
      %v523 = vunpack.c.l.b16 %v304
      %v524 = vunpack.c.h.b16 %v304
      %v525 = vunpack.c.l.b16 %v305
      %v526 = vunpack.c.h.b16 %v305
      %v527 = vunpack.c.l.b16 %v306
      %v528 = vunpack.c.h.b16 %v306
      %v529 = vunpack.c.l.b16 %v307
      %v530 = vunpack.c.h.b16 %v307
      %v531 = vunpack.c.l.b16 %v308
      %v532 = vunpack.c.h.b16 %v308
      %v533 = vunpack.c.l.b16 %v309
      %v534 = vunpack.c.h.b16 %v309
      %v535 = vunpack.c.l.b16 %v310
      %v536 = vunpack.c.h.b16 %v310
      %v537 = vunpack.c.l.b16 %v311
      %v538 = vunpack.c.h.b16 %v311
      %v539 = vunpack.c.l.b16 %v312
      %v540 = vunpack.c.h.b16 %v312
      %v541 = vunpack.c.l.b16 %v313
      %v542 = vunpack.c.h.b16 %v313
      %v543 = vunpack.c.l.b16 %v314
      %v544 = vunpack.c.h.b16 %v314
      %v545 = vunpack.c.l.b16 %v315
      %v546 = vunpack.c.h.b16 %v315
      %v547 = vunpack.c.l.b16 %v316
      %v548 = vunpack.c.h.b16 %v316
      %v549 = vunpack.c.l.b16 %v317
      %v550 = vunpack.c.h.b16 %v317
      %v551 = vunpack.c.l.b16 %v318
      %v552 = vunpack.c.h.b16 %v318
      %v553 = vunpack.c.l.b16 %v319
      %v554 = vunpack.c.h.b16 %v319
      %v555 = vunpack.c.l.b16 %v320
      %v556 = vunpack.c.h.b16 %v320
      %v557 = vunpack.c.l.b16 %v321
      %v558 = vunpack.c.h.b16 %v321
      %v559 = vunpack.c.l.b16 %v322
      %v560 = vunpack.c.h.b16 %v322
      %v561 = vunpack.c.l.b16 %v323
      %v562 = vunpack.c.h.b16 %v323
      %v563 = vunpack.c.l.b16 %v324
      %v564 = vunpack.c.h.b16 %v324
      %v565 = vunpack.c.l.b16 %v325
      %v566 = vunpack.c.h.b16 %v325
      %v567 = vunpack.c.l.b16 %v326
      %v568 = vunpack.c.h.b16 %v326
      %v569 = vunpack.c.l.b16 %v327
      %v570 = vunpack.c.h.b16 %v327
      %v571 = vunpack.c.l.b16 %v328
      %v572 = vunpack.c.h.b16 %v328
      %v573 = vunpack.c.l.b16 %v329
      %v574 = vunpack.c.h.b16 %v329
      %v575 = vunpack.c.l.b16 %v330
      %v576 = vunpack.c.h.b16 %v330
      %v577 = vunpack.c.l.b16 %v331
      %v578 = vunpack.c.h.b16 %v331
      %v579 = vunpack.c.l.b16 %v332
      %v580 = vunpack.c.h.b16 %v332
      %v581 = vunpack.c.l.b16 %v333
      %v582 = vunpack.c.h.b16 %v333
      %v583 = vunpack.c.l.b16 %v334
      %v584 = vunpack.c.h.b16 %v334
      %v585 = vunpack.c.l.b16 %v335
      %v586 = vunpack.c.h.b16 %v335
      %v587 = vunpack.c.l.b16 %v336
      %v588 = vunpack.c.h.b16 %v336
      %v589 = vunpack.c.l.b16 %v337
      %v590 = vunpack.c.h.b16 %v337
      %v591 = vunpack.c.l.b16 %v338
      %v592 = vunpack.c.h.b16 %v338
      %v593 = vunpack.c.l.b16 %v339
      %v594 = vunpack.c.h.b16 %v339
      %v595 = vunpack.c.l.b16 %v340
      %v596 = vunpack.c.h.b16 %v340
      %v597 = vunpack.c.l.b16 %v341
      %v598 = vunpack.c.h.b16 %v341
      %v599 = vunpack.c.l.b16 %v342
      %v600 = vunpack.c.h.b16 %v342
      %v601 = vunpack.c.l.b16 %v343
      %v602 = vunpack.c.h.b16 %v343
      %v603 = vunpack.c.l.b16 %v344
      %v604 = vunpack.c.h.b16 %v344
      %v605 = vunpack.c.l.b16 %v345
      %v606 = vunpack.c.h.b16 %v345
      %v607 = vunpack.c.l.b16 %v346
      %v608 = vunpack.c.h.b16 %v346
      %v609 = vunpack.c.l.b16 %v347
      %v610 = vunpack.c.h.b16 %v347
      %v611 = vunpack.c.l.b16 %v348
      %v612 = vunpack.c.h.b16 %v348
      %v613 = vunpack.c.l.b16 %v349
      %v614 = vunpack.c.h.b16 %v349
      %v615 = vunpack.c.l.b16 %v350
      %v616 = vunpack.c.h.b16 %v350
      %v617 = vunpack.c.l.b16 %v351
      %v618 = vunpack.c.h.b16 %v351
      %v619 = vunpack.c.l.b16 %v352
      %v620 = vunpack.c.h.b16 %v352
      %v621 = vunpack.c.l.b16 %v353
      %v622 = vunpack.c.h.b16 %v353
      %v623 = vunpack.c.l.b16 %v354
      %v624 = vunpack.c.h.b16 %v354
      %v625 = vunpack.c.l.b16 %v355
      %v626 = vunpack.c.h.b16 %v355
      %v627 = vunpack.c.l.b16 %v356
      %v628 = vunpack.c.h.b16 %v356
      %v629 = vunpack.c.l.b16 %v357
      %v630 = vunpack.c.h.b16 %v357
      %v631 = vunpack.c.l.b16 %v358
      %v632 = vunpack.c.h.b16 %v358
      %v633 = vunpack.c.l.b16 %v359
      %v634 = vunpack.c.h.b16 %v359
      %v635 = vunpack.c.l.b16 %v360
      %v636 = vunpack.c.h.b16 %v360
      %v637 = vunpack.c.l.b16 %v361
      %v638 = vunpack.c.h.b16 %v361
      %v639 = vunpack.c.l.b16 %v362
      %v640 = vunpack.c.h.b16 %v362
      %v641 = vunpack.c.l.b16 %v363
      %v642 = vunpack.c.h.b16 %v363
      %v643 = vunpack.c.l.b16 %v364
      %v644 = vunpack.c.h.b16 %v364
      %v645 = vunpack.c.l.b16 %v365
      %v646 = vunpack.c.h.b16 %v365
      %v647 = vunpack.c.l.b16 %v366
      %v648 = vunpack.c.h.b16 %v366
      %v649 = vpack.c.b16 %v525, %v521
      %v650 = vpack.c.b16 %v526, %v522
      %v651 = vpack.c.b16 %v527, %v523
      %v652 = vpack.c.b16 %v528, %v524
      %v653 = vpack.c.b16 %v533, %v529
      %v654 = vpack.c.b16 %v534, %v530
      %v655 = vpack.c.b16 %v535, %v531
      %v656 = vpack.c.b16 %v536, %v532
      %v657 = vpack.c.b16 %v541, %v537
      %v658 = vpack.c.b16 %v542, %v538
      %v659 = vpack.c.b16 %v543, %v539
      %v660 = vpack.c.b16 %v544, %v540
      %v661 = vpack.c.b16 %v549, %v545
      %v662 = vpack.c.b16 %v550, %v546
      %v663 = vpack.c.b16 %v551, %v547
      %v664 = vpack.c.b16 %v552, %v548
      %v665 = vpack.c.b16 %v557, %v553
      %v666 = vpack.c.b16 %v558, %v554
      %v667 = vpack.c.b16 %v559, %v555
      %v668 = vpack.c.b16 %v560, %v556
      %v669 = vpack.c.b16 %v565, %v561
      %v670 = vpack.c.b16 %v566, %v562
      %v671 = vpack.c.b16 %v567, %v563
      %v672 = vpack.c.b16 %v568, %v564
      %v673 = vpack.c.b16 %v573, %v569
      %v674 = vpack.c.b16 %v574, %v570
      %v675 = vpack.c.b16 %v575, %v571
      %v676 = vpack.c.b16 %v576, %v572
      %v677 = vpack.c.b16 %v581, %v577
      %v678 = vpack.c.b16 %v582, %v578
      %v679 = vpack.c.b16 %v583, %v579
      %v680 = vpack.c.b16 %v584, %v580
      %v681 = vpack.c.b16 %v589, %v585
      %v682 = vpack.c.b16 %v590, %v586
      %v683 = vpack.c.b16 %v591, %v587
      %v684 = vpack.c.b16 %v592, %v588
      %v685 = vpack.c.b16 %v597, %v593
      %v686 = vpack.c.b16 %v598, %v594
      %v687 = vpack.c.b16 %v599, %v595
      %v688 = vpack.c.b16 %v600, %v596
      %v689 = vpack.c.b16 %v605, %v601
      %v690 = vpack.c.b16 %v606, %v602
      %v691 = vpack.c.b16 %v607, %v603
      %v692 = vpack.c.b16 %v608, %v604
      %v693 = vpack.c.b16 %v613, %v609
      %v694 = vpack.c.b16 %v614, %v610
      %v695 = vpack.c.b16 %v615, %v611
      %v696 = vpack.c.b16 %v616, %v612
      %v697 = vpack.c.b16 %v621, %v617
      %v698 = vpack.c.b16 %v622, %v618
      %v699 = vpack.c.b16 %v623, %v619
      %v700 = vpack.c.b16 %v624, %v620
      %v701 = vpack.c.b16 %v629, %v625
      %v702 = vpack.c.b16 %v630, %v626
      %v703 = vpack.c.b16 %v631, %v627
      %v704 = vpack.c.b16 %v632, %v628
      %v705 = vpack.c.b16 %v637, %v633
      %v706 = vpack.c.b16 %v638, %v634
      %v707 = vpack.c.b16 %v639, %v635
      %v708 = vpack.c.b16 %v640, %v636
      %v709 = vpack.c.b16 %v645, %v641
      %v710 = vpack.c.b16 %v646, %v642
      %v711 = vpack.c.b16 %v647, %v643
      %v712 = vpack.c.b16 %v648, %v644
      %777 = vmatpush.bf16.msra.mxu0 %v677
      %778 = vmatpush.bf16.msra.mxu0 %v673
      %779 = vmatpush.bf16.msra.mxu0 %v669
      %780 = vmatpush.bf16.msra.mxu0 %v665
      %781 = vmatpush.bf16.msra.mxu0 %v661
      %782 = vmatpush.bf16.msra.mxu0 %v657
      %783 = vmatpush.bf16.msra.mxu0 %v653
      %784 = vmatpush.bf16.msra.mxu0 %v649
      %785 = vmatmul.bf16.gmra.mxu0 %v425
      %v786 = vpop.f32.mrf.mxu0
      %v787 = vadd.f32 %v369, %v786
      %v788 = vpop.f32.mrf.mxu0
      %v789 = vadd.f32 %v369, %v788
      %790 = vmatmul.bf16.gmra.mxu0 %v427
      %v791 = vpop.f32.mrf.mxu0
      %v792 = vadd.f32 %v369, %v791
      %v793 = vpop.f32.mrf.mxu0
      %v794 = vadd.f32 %v369, %v793
      %795 = vmatmul.bf16.gmra.mxu0 %v429
      %v796 = vpop.f32.mrf.mxu0
      %v797 = vadd.f32 %v369, %v796
      %v798 = vpop.f32.mrf.mxu0
      %v799 = vadd.f32 %v369, %v798
      %800 = vmatmul.bf16.gmra.mxu0 %v431
      %v801 = vpop.f32.mrf.mxu0
      %v802 = vadd.f32 %v369, %v801
      %v803 = vpop.f32.mrf.mxu0
      %v804 = vadd.f32 %v369, %v803
      %805 = vmatmul.bf16.gmra.mxu0 %v433
      %v806 = vpop.f32.mrf.mxu0
      %v807 = vadd.f32 %v369, %v806
      %v808 = vpop.f32.mrf.mxu0
      %v809 = vadd.f32 %v369, %v808
      %810 = vmatmul.bf16.gmra.mxu0 %v435
      %v811 = vpop.f32.mrf.mxu0
      %v812 = vadd.f32 %v369, %v811
      %v813 = vpop.f32.mrf.mxu0
      %v814 = vadd.f32 %v369, %v813
      %815 = vmatmul.bf16.gmra.mxu0 %v437
      %v816 = vpop.f32.mrf.mxu0
      %v817 = vadd.f32 %v369, %v816
      %v818 = vpop.f32.mrf.mxu0
      %v819 = vadd.f32 %v369, %v818
      %820 = vmatmul.bf16.gmra.mxu0 %v439
      %v821 = vpop.f32.mrf.mxu0
      %v822 = vadd.f32 %v369, %v821
      %v823 = vpop.f32.mrf.mxu0
      %v824 = vadd.f32 %v369, %v823
      %825 = vdwg.mxu0
      %826 = vmatpush.bf16.msra.mxu0 %v709
      %827 = vmatpush.bf16.msra.mxu0 %v705
      %828 = vmatpush.bf16.msra.mxu0 %v701
      %829 = vmatpush.bf16.msra.mxu0 %v697
      %830 = vmatpush.bf16.msra.mxu0 %v693
      %831 = vmatpush.bf16.msra.mxu0 %v689
      %832 = vmatpush.bf16.msra.mxu0 %v685
      %833 = vmatpush.bf16.msra.mxu0 %v681
      %834 = vmatmul.bf16.gmra.mxu0 %v426
      %v835 = vpop.f32.mrf.mxu0
      %v836 = vadd.f32 %v787, %v835
      %v837 = vpop.f32.mrf.mxu0
      %v838 = vadd.f32 %v789, %v837
      %839 = vmatmul.bf16.gmra.mxu0 %v428
      %v840 = vpop.f32.mrf.mxu0
      %v841 = vadd.f32 %v792, %v840
      %v842 = vpop.f32.mrf.mxu0
      %v843 = vadd.f32 %v794, %v842
      %844 = vmatmul.bf16.gmra.mxu0 %v430
      %v845 = vpop.f32.mrf.mxu0
      %v846 = vadd.f32 %v797, %v845
      %v847 = vpop.f32.mrf.mxu0
      %v848 = vadd.f32 %v799, %v847
      %849 = vmatmul.bf16.gmra.mxu0 %v432
      %v850 = vpop.f32.mrf.mxu0
      %v851 = vadd.f32 %v802, %v850
      %v852 = vpop.f32.mrf.mxu0
      %v853 = vadd.f32 %v804, %v852
      %854 = vmatmul.bf16.gmra.mxu0 %v434
      %v855 = vpop.f32.mrf.mxu0
      %v856 = vadd.f32 %v807, %v855
      %v857 = vpop.f32.mrf.mxu0
      %v858 = vadd.f32 %v809, %v857
      %859 = vmatmul.bf16.gmra.mxu0 %v436
      %v860 = vpop.f32.mrf.mxu0
      %v861 = vadd.f32 %v812, %v860
      %v862 = vpop.f32.mrf.mxu0
      %v863 = vadd.f32 %v814, %v862
      %864 = vmatmul.bf16.gmra.mxu0 %v438
      %v865 = vpop.f32.mrf.mxu0
      %v866 = vadd.f32 %v817, %v865
      %v867 = vpop.f32.mrf.mxu0
      %v868 = vadd.f32 %v819, %v867
      %869 = vmatmul.bf16.gmra.mxu0 %v440
      %v870 = vpop.f32.mrf.mxu0
      %v871 = vadd.f32 %v822, %v870
      %v872 = vpop.f32.mrf.mxu0
      %v873 = vadd.f32 %v824, %v872
      %874 = vdwg.mxu0
      %875 = vmatpush.bf16.msra.mxu0 %v678
      %876 = vmatpush.bf16.msra.mxu0 %v674
      %877 = vmatpush.bf16.msra.mxu0 %v670
      %878 = vmatpush.bf16.msra.mxu0 %v666
      %879 = vmatpush.bf16.msra.mxu0 %v662
      %880 = vmatpush.bf16.msra.mxu0 %v658
      %881 = vmatpush.bf16.msra.mxu0 %v654
      %882 = vmatpush.bf16.msra.mxu0 %v650
      %883 = vmatmul.bf16.gmra.mxu0 %v425
      %v884 = vpop.f32.mrf.mxu0
      %v885 = vadd.f32 %v370, %v884
      %v886 = vpop.f32.mrf.mxu0
      %v887 = vadd.f32 %v370, %v886
      %888 = vmatmul.bf16.gmra.mxu0 %v427
      %v889 = vpop.f32.mrf.mxu0
      %v890 = vadd.f32 %v370, %v889
      %v891 = vpop.f32.mrf.mxu0
      %v892 = vadd.f32 %v370, %v891
      %893 = vmatmul.bf16.gmra.mxu0 %v429
      %v894 = vpop.f32.mrf.mxu0
      %v895 = vadd.f32 %v370, %v894
      %v896 = vpop.f32.mrf.mxu0
      %v897 = vadd.f32 %v370, %v896
      %898 = vmatmul.bf16.gmra.mxu0 %v431
      %v899 = vpop.f32.mrf.mxu0
      %v900 = vadd.f32 %v370, %v899
      %v901 = vpop.f32.mrf.mxu0
      %v902 = vadd.f32 %v370, %v901
      %903 = vmatmul.bf16.gmra.mxu0 %v433
      %v904 = vpop.f32.mrf.mxu0
      %v905 = vadd.f32 %v370, %v904
      %v906 = vpop.f32.mrf.mxu0
      %v907 = vadd.f32 %v370, %v906
      %908 = vmatmul.bf16.gmra.mxu0 %v435
      %v909 = vpop.f32.mrf.mxu0
      %v910 = vadd.f32 %v370, %v909
      %v911 = vpop.f32.mrf.mxu0
      %v912 = vadd.f32 %v370, %v911
      %913 = vmatmul.bf16.gmra.mxu0 %v437
      %v914 = vpop.f32.mrf.mxu0
      %v915 = vadd.f32 %v370, %v914
      %v916 = vpop.f32.mrf.mxu0
      %v917 = vadd.f32 %v370, %v916
      %918 = vmatmul.bf16.gmra.mxu0 %v439
      %v919 = vpop.f32.mrf.mxu0
      %v920 = vadd.f32 %v370, %v919
      %v921 = vpop.f32.mrf.mxu0
      %v922 = vadd.f32 %v370, %v921
      %923 = vdwg.mxu0
      %924 = vmatpush.bf16.msra.mxu0 %v710
      %925 = vmatpush.bf16.msra.mxu0 %v706
      %926 = vmatpush.bf16.msra.mxu0 %v702
      %927 = vmatpush.bf16.msra.mxu0 %v698
      %928 = vmatpush.bf16.msra.mxu0 %v694
      %929 = vmatpush.bf16.msra.mxu0 %v690
      %930 = vmatpush.bf16.msra.mxu0 %v686
      %931 = vmatpush.bf16.msra.mxu0 %v682
      %932 = vmatmul.bf16.gmra.mxu0 %v426
      %v933 = vpop.f32.mrf.mxu0
      %v934 = vadd.f32 %v885, %v933
      %v935 = vpop.f32.mrf.mxu0
      %v936 = vadd.f32 %v887, %v935
      %937 = vmatmul.bf16.gmra.mxu0 %v428
      %v938 = vpop.f32.mrf.mxu0
      %v939 = vadd.f32 %v890, %v938
      %v940 = vpop.f32.mrf.mxu0
      %v941 = vadd.f32 %v892, %v940
      %942 = vmatmul.bf16.gmra.mxu0 %v430
      %v943 = vpop.f32.mrf.mxu0
      %v944 = vadd.f32 %v895, %v943
      %v945 = vpop.f32.mrf.mxu0
      %v946 = vadd.f32 %v897, %v945
      %947 = vmatmul.bf16.gmra.mxu0 %v432
      %v948 = vpop.f32.mrf.mxu0
      %v949 = vadd.f32 %v900, %v948
      %v950 = vpop.f32.mrf.mxu0
      %v951 = vadd.f32 %v902, %v950
      %952 = vmatmul.bf16.gmra.mxu0 %v434
      %v953 = vpop.f32.mrf.mxu0
      %v954 = vadd.f32 %v905, %v953
      %v955 = vpop.f32.mrf.mxu0
      %v956 = vadd.f32 %v907, %v955
      %957 = vmatmul.bf16.gmra.mxu0 %v436
      %v958 = vpop.f32.mrf.mxu0
      %v959 = vadd.f32 %v910, %v958
      %v960 = vpop.f32.mrf.mxu0
      %v961 = vadd.f32 %v912, %v960
      %962 = vmatmul.bf16.gmra.mxu0 %v438
      %v963 = vpop.f32.mrf.mxu0
      %v964 = vadd.f32 %v915, %v963
      %v965 = vpop.f32.mrf.mxu0
      %v966 = vadd.f32 %v917, %v965
      %967 = vmatmul.bf16.gmra.mxu0 %v440
      %v968 = vpop.f32.mrf.mxu0
      %v969 = vadd.f32 %v920, %v968
      %v970 = vpop.f32.mrf.mxu0
      %v971 = vadd.f32 %v922, %v970
      %972 = vdwg.mxu0
      %973 = vmatpush.bf16.msra.mxu0 %v679
      %974 = vmatpush.bf16.msra.mxu0 %v675
      %975 = vmatpush.bf16.msra.mxu0 %v671
      %976 = vmatpush.bf16.msra.mxu0 %v667
      %977 = vmatpush.bf16.msra.mxu0 %v663
      %978 = vmatpush.bf16.msra.mxu0 %v659
      %979 = vmatpush.bf16.msra.mxu0 %v655
      %980 = vmatpush.bf16.msra.mxu0 %v651
      %981 = vmatmul.bf16.gmra.mxu0 %v425
      %v982 = vpop.f32.mrf.mxu0
      %v983 = vadd.f32 %v371, %v982
      %v984 = vpop.f32.mrf.mxu0
      %v985 = vadd.f32 %v371, %v984
      %986 = vmatmul.bf16.gmra.mxu0 %v427
      %v987 = vpop.f32.mrf.mxu0
      %v988 = vadd.f32 %v371, %v987
      %v989 = vpop.f32.mrf.mxu0
      %v990 = vadd.f32 %v371, %v989
      %991 = vmatmul.bf16.gmra.mxu0 %v429
      %v992 = vpop.f32.mrf.mxu0
      %v993 = vadd.f32 %v371, %v992
      %v994 = vpop.f32.mrf.mxu0
      %v995 = vadd.f32 %v371, %v994
      %996 = vmatmul.bf16.gmra.mxu0 %v431
      %v997 = vpop.f32.mrf.mxu0
      %v998 = vadd.f32 %v371, %v997
      %v999 = vpop.f32.mrf.mxu0
      %v1000 = vadd.f32 %v371, %v999
      %1001 = vmatmul.bf16.gmra.mxu0 %v433
      %v1002 = vpop.f32.mrf.mxu0
      %v1003 = vadd.f32 %v371, %v1002
      %v1004 = vpop.f32.mrf.mxu0
      %v1005 = vadd.f32 %v371, %v1004
      %1006 = vmatmul.bf16.gmra.mxu0 %v435
      %v1007 = vpop.f32.mrf.mxu0
      %v1008 = vadd.f32 %v371, %v1007
      %v1009 = vpop.f32.mrf.mxu0
      %v1010 = vadd.f32 %v371, %v1009
      %1011 = vmatmul.bf16.gmra.mxu0 %v437
      %v1012 = vpop.f32.mrf.mxu0
      %v1013 = vadd.f32 %v371, %v1012
      %v1014 = vpop.f32.mrf.mxu0
      %v1015 = vadd.f32 %v371, %v1014
      %1016 = vmatmul.bf16.gmra.mxu0 %v439
      %v1017 = vpop.f32.mrf.mxu0
      %v1018 = vadd.f32 %v371, %v1017
      %v1019 = vpop.f32.mrf.mxu0
      %v1020 = vadd.f32 %v371, %v1019
      %1021 = vdwg.mxu0
      %1022 = vmatpush.bf16.msra.mxu0 %v711
      %1023 = vmatpush.bf16.msra.mxu0 %v707
      %1024 = vmatpush.bf16.msra.mxu0 %v703
      %1025 = vmatpush.bf16.msra.mxu0 %v699
      %1026 = vmatpush.bf16.msra.mxu0 %v695
      %1027 = vmatpush.bf16.msra.mxu0 %v691
      %1028 = vmatpush.bf16.msra.mxu0 %v687
      %1029 = vmatpush.bf16.msra.mxu0 %v683
      %1030 = vmatmul.bf16.gmra.mxu0 %v426
      %v1031 = vpop.f32.mrf.mxu0
      %v1032 = vadd.f32 %v983, %v1031
      %v1033 = vpop.f32.mrf.mxu0
      %v1034 = vadd.f32 %v985, %v1033
      %1035 = vmatmul.bf16.gmra.mxu0 %v428
      %v1036 = vpop.f32.mrf.mxu0
      %v1037 = vadd.f32 %v988, %v1036
      %v1038 = vpop.f32.mrf.mxu0
      %v1039 = vadd.f32 %v990, %v1038
      %1040 = vmatmul.bf16.gmra.mxu0 %v430
      %v1041 = vpop.f32.mrf.mxu0
      %v1042 = vadd.f32 %v993, %v1041
      %v1043 = vpop.f32.mrf.mxu0
      %v1044 = vadd.f32 %v995, %v1043
      %1045 = vmatmul.bf16.gmra.mxu0 %v432
      %v1046 = vpop.f32.mrf.mxu0
      %v1047 = vadd.f32 %v998, %v1046
      %v1048 = vpop.f32.mrf.mxu0
      %v1049 = vadd.f32 %v1000, %v1048
      %1050 = vmatmul.bf16.gmra.mxu0 %v434
      %v1051 = vpop.f32.mrf.mxu0
      %v1052 = vadd.f32 %v1003, %v1051
      %v1053 = vpop.f32.mrf.mxu0
      %v1054 = vadd.f32 %v1005, %v1053
      %1055 = vmatmul.bf16.gmra.mxu0 %v436
      %v1056 = vpop.f32.mrf.mxu0
      %v1057 = vadd.f32 %v1008, %v1056
      %v1058 = vpop.f32.mrf.mxu0
      %v1059 = vadd.f32 %v1010, %v1058
      %1060 = vmatmul.bf16.gmra.mxu0 %v438
      %v1061 = vpop.f32.mrf.mxu0
      %v1062 = vadd.f32 %v1013, %v1061
      %v1063 = vpop.f32.mrf.mxu0
      %v1064 = vadd.f32 %v1015, %v1063
      %1065 = vmatmul.bf16.gmra.mxu0 %v440
      %v1066 = vpop.f32.mrf.mxu0
      %v1067 = vadd.f32 %v1018, %v1066
      %v1068 = vpop.f32.mrf.mxu0
      %v1069 = vadd.f32 %v1020, %v1068
      %1070 = vdwg.mxu0
      %1071 = vmatpush.bf16.msra.mxu0 %v680
      %1072 = vmatpush.bf16.msra.mxu0 %v676
      %1073 = vmatpush.bf16.msra.mxu0 %v672
      %1074 = vmatpush.bf16.msra.mxu0 %v668
      %1075 = vmatpush.bf16.msra.mxu0 %v664
      %1076 = vmatpush.bf16.msra.mxu0 %v660
      %1077 = vmatpush.bf16.msra.mxu0 %v656
      %1078 = vmatpush.bf16.msra.mxu0 %v652
      %1079 = vmatmul.bf16.gmra.mxu0 %v425
      %v1080 = vpop.f32.mrf.mxu0
      %v1081 = vadd.f32 %v372, %v1080
      %v1082 = vpop.f32.mrf.mxu0
      %v1083 = vadd.f32 %v372, %v1082
      %1084 = vmatmul.bf16.gmra.mxu0 %v427
      %v1085 = vpop.f32.mrf.mxu0
      %v1086 = vadd.f32 %v372, %v1085
      %v1087 = vpop.f32.mrf.mxu0
      %v1088 = vadd.f32 %v372, %v1087
      %1089 = vmatmul.bf16.gmra.mxu0 %v429
      %v1090 = vpop.f32.mrf.mxu0
      %v1091 = vadd.f32 %v372, %v1090
      %v1092 = vpop.f32.mrf.mxu0
      %v1093 = vadd.f32 %v372, %v1092
      %1094 = vmatmul.bf16.gmra.mxu0 %v431
      %v1095 = vpop.f32.mrf.mxu0
      %v1096 = vadd.f32 %v372, %v1095
      %v1097 = vpop.f32.mrf.mxu0
      %v1098 = vadd.f32 %v372, %v1097
      %1099 = vmatmul.bf16.gmra.mxu0 %v433
      %v1100 = vpop.f32.mrf.mxu0
      %v1101 = vadd.f32 %v372, %v1100
      %v1102 = vpop.f32.mrf.mxu0
      %v1103 = vadd.f32 %v372, %v1102
      %1104 = vmatmul.bf16.gmra.mxu0 %v435
      %v1105 = vpop.f32.mrf.mxu0
      %v1106 = vadd.f32 %v372, %v1105
      %v1107 = vpop.f32.mrf.mxu0
      %v1108 = vadd.f32 %v372, %v1107
      %1109 = vmatmul.bf16.gmra.mxu0 %v437
      %v1110 = vpop.f32.mrf.mxu0
      %v1111 = vadd.f32 %v372, %v1110
      %v1112 = vpop.f32.mrf.mxu0
      %v1113 = vadd.f32 %v372, %v1112
      %1114 = vmatmul.bf16.gmra.mxu0 %v439
      %v1115 = vpop.f32.mrf.mxu0
      %v1116 = vadd.f32 %v372, %v1115
      %v1117 = vpop.f32.mrf.mxu0
      %v1118 = vadd.f32 %v372, %v1117
      %1119 = vdwg.mxu0
      %1120 = vmatpush.bf16.msra.mxu0 %v712
      %1121 = vmatpush.bf16.msra.mxu0 %v708
      %1122 = vmatpush.bf16.msra.mxu0 %v704
      %1123 = vmatpush.bf16.msra.mxu0 %v700
      %1124 = vmatpush.bf16.msra.mxu0 %v696
      %1125 = vmatpush.bf16.msra.mxu0 %v692
      %1126 = vmatpush.bf16.msra.mxu0 %v688
      %1127 = vmatpush.bf16.msra.mxu0 %v684
      %1128 = vmatmul.bf16.gmra.mxu0 %v426
      %v1129 = vpop.f32.mrf.mxu0
      %v1130 = vadd.f32 %v1081, %v1129
      %v1131 = vpop.f32.mrf.mxu0
      %v1132 = vadd.f32 %v1083, %v1131
      %1133 = vmatmul.bf16.gmra.mxu0 %v428
      %v1134 = vpop.f32.mrf.mxu0
      %v1135 = vadd.f32 %v1086, %v1134
      %v1136 = vpop.f32.mrf.mxu0
      %v1137 = vadd.f32 %v1088, %v1136
      %1138 = vmatmul.bf16.gmra.mxu0 %v430
      %v1139 = vpop.f32.mrf.mxu0
      %v1140 = vadd.f32 %v1091, %v1139
      %v1141 = vpop.f32.mrf.mxu0
      %v1142 = vadd.f32 %v1093, %v1141
      %1143 = vmatmul.bf16.gmra.mxu0 %v432
      %v1144 = vpop.f32.mrf.mxu0
      %v1145 = vadd.f32 %v1096, %v1144
      %v1146 = vpop.f32.mrf.mxu0
      %v1147 = vadd.f32 %v1098, %v1146
      %1148 = vmatmul.bf16.gmra.mxu0 %v434
      %v1149 = vpop.f32.mrf.mxu0
      %v1150 = vadd.f32 %v1101, %v1149
      %v1151 = vpop.f32.mrf.mxu0
      %v1152 = vadd.f32 %v1103, %v1151
      %1153 = vmatmul.bf16.gmra.mxu0 %v436
      %v1154 = vpop.f32.mrf.mxu0
      %v1155 = vadd.f32 %v1106, %v1154
      %v1156 = vpop.f32.mrf.mxu0
      %v1157 = vadd.f32 %v1108, %v1156
      %1158 = vmatmul.bf16.gmra.mxu0 %v438
      %v1159 = vpop.f32.mrf.mxu0
      %v1160 = vadd.f32 %v1111, %v1159
      %v1161 = vpop.f32.mrf.mxu0
      %v1162 = vadd.f32 %v1113, %v1161
      %1163 = vmatmul.bf16.gmra.mxu0 %v440
      %v1164 = vpop.f32.mrf.mxu0
      %v1165 = vadd.f32 %v1116, %v1164
      %v1166 = vpop.f32.mrf.mxu0
      %v1167 = vadd.f32 %v1118, %v1166
      %1168 = vdwg.mxu0
      %v1169 = vmul.f32 %v836, 0.5
      %v1170 = vmul.f32 %v934, 0.5
      %v1171 = vmul.f32 %v1032, 0.5
      %v1172 = vmul.f32 %v1130, 0.5
      %v1173 = vmul.f32 %v838, 0.5
      %v1174 = vmul.f32 %v936, 0.5
      %v1175 = vmul.f32 %v1034, 0.5
      %v1176 = vmul.f32 %v1132, 0.5
      %v1177 = vmul.f32 %v841, 0.5
      %v1178 = vmul.f32 %v939, 0.5
      %v1179 = vmul.f32 %v1037, 0.5
      %v1180 = vmul.f32 %v1135, 0.5
      %v1181 = vmul.f32 %v843, 0.5
      %v1182 = vmul.f32 %v941, 0.5
      %v1183 = vmul.f32 %v1039, 0.5
      %v1184 = vmul.f32 %v1137, 0.5
      %v1185 = vmul.f32 %v846, 0.5
      %v1186 = vmul.f32 %v944, 0.5
      %v1187 = vmul.f32 %v1042, 0.5
      %v1188 = vmul.f32 %v1140, 0.5
      %v1189 = vmul.f32 %v848, 0.5
      %v1190 = vmul.f32 %v946, 0.5
      %v1191 = vmul.f32 %v1044, 0.5
      %v1192 = vmul.f32 %v1142, 0.5
      %v1193 = vmul.f32 %v851, 0.5
      %v1194 = vmul.f32 %v949, 0.5
      %v1195 = vmul.f32 %v1047, 0.5
      %v1196 = vmul.f32 %v1145, 0.5
      %v1197 = vmul.f32 %v853, 0.5
      %v1198 = vmul.f32 %v951, 0.5
      %v1199 = vmul.f32 %v1049, 0.5
      %v1200 = vmul.f32 %v1147, 0.5
      %v1201 = vmul.f32 %v856, 0.5
      %v1202 = vmul.f32 %v954, 0.5
      %v1203 = vmul.f32 %v1052, 0.5
      %v1204 = vmul.f32 %v1150, 0.5
      %v1205 = vmul.f32 %v858, 0.5
      %v1206 = vmul.f32 %v956, 0.5
      %v1207 = vmul.f32 %v1054, 0.5
      %v1208 = vmul.f32 %v1152, 0.5
      %v1209 = vmul.f32 %v861, 0.5
      %v1210 = vmul.f32 %v959, 0.5
      %v1211 = vmul.f32 %v1057, 0.5
      %v1212 = vmul.f32 %v1155, 0.5
      %v1213 = vmul.f32 %v863, 0.5
      %v1214 = vmul.f32 %v961, 0.5
      %v1215 = vmul.f32 %v1059, 0.5
      %v1216 = vmul.f32 %v1157, 0.5
      %v1217 = vmul.f32 %v866, 0.5
      %v1218 = vmul.f32 %v964, 0.5
      %v1219 = vmul.f32 %v1062, 0.5
      %v1220 = vmul.f32 %v1160, 0.5
      %v1221 = vmul.f32 %v868, 0.5
      %v1222 = vmul.f32 %v966, 0.5
      %v1223 = vmul.f32 %v1064, 0.5
      %v1224 = vmul.f32 %v1162, 0.5
      %v1225 = vmul.f32 %v871, 0.5
      %v1226 = vmul.f32 %v969, 0.5
      %v1227 = vmul.f32 %v1067, 0.5
      %v1228 = vmul.f32 %v1165, 0.5
      %v1229 = vmul.f32 %v873, 0.5
      %v1230 = vmul.f32 %v971, 0.5
      %v1231 = vmul.f32 %v1069, 0.5
      %v1232 = vmul.f32 %v1167, 0.5
      %v1233 = vmul.f32 %v836, 0.044715
      %v1234 = vmul.f32 %v934, 0.044715
      %v1235 = vmul.f32 %v1032, 0.044715
      %v1236 = vmul.f32 %v1130, 0.044715
      %v1237 = vmul.f32 %v838, 0.044715
      %v1238 = vmul.f32 %v936, 0.044715
      %v1239 = vmul.f32 %v1034, 0.044715
      %v1240 = vmul.f32 %v1132, 0.044715
      %v1241 = vmul.f32 %v841, 0.044715
      %v1242 = vmul.f32 %v939, 0.044715
      %v1243 = vmul.f32 %v1037, 0.044715
      %v1244 = vmul.f32 %v1135, 0.044715
      %v1245 = vmul.f32 %v843, 0.044715
      %v1246 = vmul.f32 %v941, 0.044715
      %v1247 = vmul.f32 %v1039, 0.044715
      %v1248 = vmul.f32 %v1137, 0.044715
      %v1249 = vmul.f32 %v846, 0.044715
      %v1250 = vmul.f32 %v944, 0.044715
      %v1251 = vmul.f32 %v1042, 0.044715
      %v1252 = vmul.f32 %v1140, 0.044715
      %v1253 = vmul.f32 %v848, 0.044715
      %v1254 = vmul.f32 %v946, 0.044715
      %v1255 = vmul.f32 %v1044, 0.044715
      %v1256 = vmul.f32 %v1142, 0.044715
      %v1257 = vmul.f32 %v851, 0.044715
      %v1258 = vmul.f32 %v949, 0.044715
      %v1259 = vmul.f32 %v1047, 0.044715
      %v1260 = vmul.f32 %v1145, 0.044715
      %v1261 = vmul.f32 %v853, 0.044715
      %v1262 = vmul.f32 %v951, 0.044715
      %v1263 = vmul.f32 %v1049, 0.044715
      %v1264 = vmul.f32 %v1147, 0.044715
      %v1265 = vmul.f32 %v856, 0.044715
      %v1266 = vmul.f32 %v954, 0.044715
      %v1267 = vmul.f32 %v1052, 0.044715
      %v1268 = vmul.f32 %v1150, 0.044715
      %v1269 = vmul.f32 %v858, 0.044715
      %v1270 = vmul.f32 %v956, 0.044715
      %v1271 = vmul.f32 %v1054, 0.044715
      %v1272 = vmul.f32 %v1152, 0.044715
      %v1273 = vmul.f32 %v861, 0.044715
      %v1274 = vmul.f32 %v959, 0.044715
      %v1275 = vmul.f32 %v1057, 0.044715
      %v1276 = vmul.f32 %v1155, 0.044715
      %v1277 = vmul.f32 %v863, 0.044715
      %v1278 = vmul.f32 %v961, 0.044715
      %v1279 = vmul.f32 %v1059, 0.044715
      %v1280 = vmul.f32 %v1157, 0.044715
      %v1281 = vmul.f32 %v866, 0.044715
      %v1282 = vmul.f32 %v964, 0.044715
      %v1283 = vmul.f32 %v1062, 0.044715
      %v1284 = vmul.f32 %v1160, 0.044715
      %v1285 = vmul.f32 %v868, 0.044715
      %v1286 = vmul.f32 %v966, 0.044715
      %v1287 = vmul.f32 %v1064, 0.044715
      %v1288 = vmul.f32 %v1162, 0.044715
      %v1289 = vmul.f32 %v871, 0.044715
      %v1290 = vmul.f32 %v969, 0.044715
      %v1291 = vmul.f32 %v1067, 0.044715
      %v1292 = vmul.f32 %v1165, 0.044715
      %v1293 = vmul.f32 %v873, 0.044715
      %v1294 = vmul.f32 %v971, 0.044715
      %v1295 = vmul.f32 %v1069, 0.044715
      %v1296 = vmul.f32 %v1167, 0.044715
      %v1297 = vmul.f32 %v1233, %v836
      %v1298 = vmul.f32 %v1234, %v934
      %v1299 = vmul.f32 %v1235, %v1032
      %v1300 = vmul.f32 %v1236, %v1130
      %v1301 = vmul.f32 %v1237, %v838
      %v1302 = vmul.f32 %v1238, %v936
      %v1303 = vmul.f32 %v1239, %v1034
      %v1304 = vmul.f32 %v1240, %v1132
      %v1305 = vmul.f32 %v1241, %v841
      %v1306 = vmul.f32 %v1242, %v939
      %v1307 = vmul.f32 %v1243, %v1037
      %v1308 = vmul.f32 %v1244, %v1135
      %v1309 = vmul.f32 %v1245, %v843
      %v1310 = vmul.f32 %v1246, %v941
      %v1311 = vmul.f32 %v1247, %v1039
      %v1312 = vmul.f32 %v1248, %v1137
      %v1313 = vmul.f32 %v1249, %v846
      %v1314 = vmul.f32 %v1250, %v944
      %v1315 = vmul.f32 %v1251, %v1042
      %v1316 = vmul.f32 %v1252, %v1140
      %v1317 = vmul.f32 %v1253, %v848
      %v1318 = vmul.f32 %v1254, %v946
      %v1319 = vmul.f32 %v1255, %v1044
      %v1320 = vmul.f32 %v1256, %v1142
      %v1321 = vmul.f32 %v1257, %v851
      %v1322 = vmul.f32 %v1258, %v949
      %v1323 = vmul.f32 %v1259, %v1047
      %v1324 = vmul.f32 %v1260, %v1145
      %v1325 = vmul.f32 %v1261, %v853
      %v1326 = vmul.f32 %v1262, %v951
      %v1327 = vmul.f32 %v1263, %v1049
      %v1328 = vmul.f32 %v1264, %v1147
      %v1329 = vmul.f32 %v1265, %v856
      %v1330 = vmul.f32 %v1266, %v954
      %v1331 = vmul.f32 %v1267, %v1052
      %v1332 = vmul.f32 %v1268, %v1150
      %v1333 = vmul.f32 %v1269, %v858
      %v1334 = vmul.f32 %v1270, %v956
      %v1335 = vmul.f32 %v1271, %v1054
      %v1336 = vmul.f32 %v1272, %v1152
      %v1337 = vmul.f32 %v1273, %v861
      %v1338 = vmul.f32 %v1274, %v959
      %v1339 = vmul.f32 %v1275, %v1057
      %v1340 = vmul.f32 %v1276, %v1155
      %v1341 = vmul.f32 %v1277, %v863
      %v1342 = vmul.f32 %v1278, %v961
      %v1343 = vmul.f32 %v1279, %v1059
      %v1344 = vmul.f32 %v1280, %v1157
      %v1345 = vmul.f32 %v1281, %v866
      %v1346 = vmul.f32 %v1282, %v964
      %v1347 = vmul.f32 %v1283, %v1062
      %v1348 = vmul.f32 %v1284, %v1160
      %v1349 = vmul.f32 %v1285, %v868
      %v1350 = vmul.f32 %v1286, %v966
      %v1351 = vmul.f32 %v1287, %v1064
      %v1352 = vmul.f32 %v1288, %v1162
      %v1353 = vmul.f32 %v1289, %v871
      %v1354 = vmul.f32 %v1290, %v969
      %v1355 = vmul.f32 %v1291, %v1067
      %v1356 = vmul.f32 %v1292, %v1165
      %v1357 = vmul.f32 %v1293, %v873
      %v1358 = vmul.f32 %v1294, %v971
      %v1359 = vmul.f32 %v1295, %v1069
      %v1360 = vmul.f32 %v1296, %v1167
      %v1361 = vmul.f32 %v1297, %v836
      %v1362 = vmul.f32 %v1298, %v934
      %v1363 = vmul.f32 %v1299, %v1032
      %v1364 = vmul.f32 %v1300, %v1130
      %v1365 = vmul.f32 %v1301, %v838
      %v1366 = vmul.f32 %v1302, %v936
      %v1367 = vmul.f32 %v1303, %v1034
      %v1368 = vmul.f32 %v1304, %v1132
      %v1369 = vmul.f32 %v1305, %v841
      %v1370 = vmul.f32 %v1306, %v939
      %v1371 = vmul.f32 %v1307, %v1037
      %v1372 = vmul.f32 %v1308, %v1135
      %v1373 = vmul.f32 %v1309, %v843
      %v1374 = vmul.f32 %v1310, %v941
      %v1375 = vmul.f32 %v1311, %v1039
      %v1376 = vmul.f32 %v1312, %v1137
      %v1377 = vmul.f32 %v1313, %v846
      %v1378 = vmul.f32 %v1314, %v944
      %v1379 = vmul.f32 %v1315, %v1042
      %v1380 = vmul.f32 %v1316, %v1140
      %v1381 = vmul.f32 %v1317, %v848
      %v1382 = vmul.f32 %v1318, %v946
      %v1383 = vmul.f32 %v1319, %v1044
      %v1384 = vmul.f32 %v1320, %v1142
      %v1385 = vmul.f32 %v1321, %v851
      %v1386 = vmul.f32 %v1322, %v949
      %v1387 = vmul.f32 %v1323, %v1047
      %v1388 = vmul.f32 %v1324, %v1145
      %v1389 = vmul.f32 %v1325, %v853
      %v1390 = vmul.f32 %v1326, %v951
      %v1391 = vmul.f32 %v1327, %v1049
      %v1392 = vmul.f32 %v1328, %v1147
      %v1393 = vmul.f32 %v1329, %v856
      %v1394 = vmul.f32 %v1330, %v954
      %v1395 = vmul.f32 %v1331, %v1052
      %v1396 = vmul.f32 %v1332, %v1150
      %v1397 = vmul.f32 %v1333, %v858
      %v1398 = vmul.f32 %v1334, %v956
      %v1399 = vmul.f32 %v1335, %v1054
      %v1400 = vmul.f32 %v1336, %v1152
      %v1401 = vmul.f32 %v1337, %v861
      %v1402 = vmul.f32 %v1338, %v959
      %v1403 = vmul.f32 %v1339, %v1057
      %v1404 = vmul.f32 %v1340, %v1155
      %v1405 = vmul.f32 %v1341, %v863
      %v1406 = vmul.f32 %v1342, %v961
      %v1407 = vmul.f32 %v1343, %v1059
      %v1408 = vmul.f32 %v1344, %v1157
      %v1409 = vmul.f32 %v1345, %v866
      %v1410 = vmul.f32 %v1346, %v964
      %v1411 = vmul.f32 %v1347, %v1062
      %v1412 = vmul.f32 %v1348, %v1160
      %v1413 = vmul.f32 %v1349, %v868
      %v1414 = vmul.f32 %v1350, %v966
      %v1415 = vmul.f32 %v1351, %v1064
      %v1416 = vmul.f32 %v1352, %v1162
      %v1417 = vmul.f32 %v1353, %v871
      %v1418 = vmul.f32 %v1354, %v969
      %v1419 = vmul.f32 %v1355, %v1067
      %v1420 = vmul.f32 %v1356, %v1165
      %v1421 = vmul.f32 %v1357, %v873
      %v1422 = vmul.f32 %v1358, %v971
      %v1423 = vmul.f32 %v1359, %v1069
      %v1424 = vmul.f32 %v1360, %v1167
      %v1425 = vadd.f32 %v836, %v1361
      %v1426 = vadd.f32 %v934, %v1362
      %v1427 = vadd.f32 %v1032, %v1363
      %v1428 = vadd.f32 %v1130, %v1364
      %v1429 = vadd.f32 %v838, %v1365
      %v1430 = vadd.f32 %v936, %v1366
      %v1431 = vadd.f32 %v1034, %v1367
      %v1432 = vadd.f32 %v1132, %v1368
      %v1433 = vadd.f32 %v841, %v1369
      %v1434 = vadd.f32 %v939, %v1370
      %v1435 = vadd.f32 %v1037, %v1371
      %v1436 = vadd.f32 %v1135, %v1372
      %v1437 = vadd.f32 %v843, %v1373
      %v1438 = vadd.f32 %v941, %v1374
      %v1439 = vadd.f32 %v1039, %v1375
      %v1440 = vadd.f32 %v1137, %v1376
      %v1441 = vadd.f32 %v846, %v1377
      %v1442 = vadd.f32 %v944, %v1378
      %v1443 = vadd.f32 %v1042, %v1379
      %v1444 = vadd.f32 %v1140, %v1380
      %v1445 = vadd.f32 %v848, %v1381
      %v1446 = vadd.f32 %v946, %v1382
      %v1447 = vadd.f32 %v1044, %v1383
      %v1448 = vadd.f32 %v1142, %v1384
      %v1449 = vadd.f32 %v851, %v1385
      %v1450 = vadd.f32 %v949, %v1386
      %v1451 = vadd.f32 %v1047, %v1387
      %v1452 = vadd.f32 %v1145, %v1388
      %v1453 = vadd.f32 %v853, %v1389
      %v1454 = vadd.f32 %v951, %v1390
      %v1455 = vadd.f32 %v1049, %v1391
      %v1456 = vadd.f32 %v1147, %v1392
      %v1457 = vadd.f32 %v856, %v1393
      %v1458 = vadd.f32 %v954, %v1394
      %v1459 = vadd.f32 %v1052, %v1395
      %v1460 = vadd.f32 %v1150, %v1396
      %v1461 = vadd.f32 %v858, %v1397
      %v1462 = vadd.f32 %v956, %v1398
      %v1463 = vadd.f32 %v1054, %v1399
      %v1464 = vadd.f32 %v1152, %v1400
      %v1465 = vadd.f32 %v861, %v1401
      %v1466 = vadd.f32 %v959, %v1402
      %v1467 = vadd.f32 %v1057, %v1403
      %v1468 = vadd.f32 %v1155, %v1404
      %v1469 = vadd.f32 %v863, %v1405
      %v1470 = vadd.f32 %v961, %v1406
      %v1471 = vadd.f32 %v1059, %v1407
      %v1472 = vadd.f32 %v1157, %v1408
      %v1473 = vadd.f32 %v866, %v1409
      %v1474 = vadd.f32 %v964, %v1410
      %v1475 = vadd.f32 %v1062, %v1411
      %v1476 = vadd.f32 %v1160, %v1412
      %v1477 = vadd.f32 %v868, %v1413
      %v1478 = vadd.f32 %v966, %v1414
      %v1479 = vadd.f32 %v1064, %v1415
      %v1480 = vadd.f32 %v1162, %v1416
      %v1481 = vadd.f32 %v871, %v1417
      %v1482 = vadd.f32 %v969, %v1418
      %v1483 = vadd.f32 %v1067, %v1419
      %v1484 = vadd.f32 %v1165, %v1420
      %v1485 = vadd.f32 %v873, %v1421
      %v1486 = vadd.f32 %v971, %v1422
      %v1487 = vadd.f32 %v1069, %v1423
      %v1488 = vadd.f32 %v1167, %v1424
      %v1489 = vmul.f32 %v1425, 0.7978846
      %v1490 = vmul.f32 %v1426, 0.7978846
      %v1491 = vmul.f32 %v1427, 0.7978846
      %v1492 = vmul.f32 %v1428, 0.7978846
      %v1493 = vmul.f32 %v1429, 0.7978846
      %v1494 = vmul.f32 %v1430, 0.7978846
      %v1495 = vmul.f32 %v1431, 0.7978846
      %v1496 = vmul.f32 %v1432, 0.7978846
      %v1497 = vmul.f32 %v1433, 0.7978846
      %v1498 = vmul.f32 %v1434, 0.7978846
      %v1499 = vmul.f32 %v1435, 0.7978846
      %v1500 = vmul.f32 %v1436, 0.7978846
      %v1501 = vmul.f32 %v1437, 0.7978846
      %v1502 = vmul.f32 %v1438, 0.7978846
      %v1503 = vmul.f32 %v1439, 0.7978846
      %v1504 = vmul.f32 %v1440, 0.7978846
      %v1505 = vmul.f32 %v1441, 0.7978846
      %v1506 = vmul.f32 %v1442, 0.7978846
      %v1507 = vmul.f32 %v1443, 0.7978846
      %v1508 = vmul.f32 %v1444, 0.7978846
      %v1509 = vmul.f32 %v1445, 0.7978846
      %v1510 = vmul.f32 %v1446, 0.7978846
      %v1511 = vmul.f32 %v1447, 0.7978846
      %v1512 = vmul.f32 %v1448, 0.7978846
      %v1513 = vmul.f32 %v1449, 0.7978846
      %v1514 = vmul.f32 %v1450, 0.7978846
      %v1515 = vmul.f32 %v1451, 0.7978846
      %v1516 = vmul.f32 %v1452, 0.7978846
      %v1517 = vmul.f32 %v1453, 0.7978846
      %v1518 = vmul.f32 %v1454, 0.7978846
      %v1519 = vmul.f32 %v1455, 0.7978846
      %v1520 = vmul.f32 %v1456, 0.7978846
      %v1521 = vmul.f32 %v1457, 0.7978846
      %v1522 = vmul.f32 %v1458, 0.7978846
      %v1523 = vmul.f32 %v1459, 0.7978846
      %v1524 = vmul.f32 %v1460, 0.7978846
      %v1525 = vmul.f32 %v1461, 0.7978846
      %v1526 = vmul.f32 %v1462, 0.7978846
      %v1527 = vmul.f32 %v1463, 0.7978846
      %v1528 = vmul.f32 %v1464, 0.7978846
      %v1529 = vmul.f32 %v1465, 0.7978846
      %v1530 = vmul.f32 %v1466, 0.7978846
      %v1531 = vmul.f32 %v1467, 0.7978846
      %v1532 = vmul.f32 %v1468, 0.7978846
      %v1533 = vmul.f32 %v1469, 0.7978846
      %v1534 = vmul.f32 %v1470, 0.7978846
      %v1535 = vmul.f32 %v1471, 0.7978846
      %v1536 = vmul.f32 %v1472, 0.7978846
      %v1537 = vmul.f32 %v1473, 0.7978846
      %v1538 = vmul.f32 %v1474, 0.7978846
      %v1539 = vmul.f32 %v1475, 0.7978846
      %v1540 = vmul.f32 %v1476, 0.7978846
      %v1541 = vmul.f32 %v1477, 0.7978846
      %v1542 = vmul.f32 %v1478, 0.7978846
      %v1543 = vmul.f32 %v1479, 0.7978846
      %v1544 = vmul.f32 %v1480, 0.7978846
      %v1545 = vmul.f32 %v1481, 0.7978846
      %v1546 = vmul.f32 %v1482, 0.7978846
      %v1547 = vmul.f32 %v1483, 0.7978846
      %v1548 = vmul.f32 %v1484, 0.7978846
      %v1549 = vmul.f32 %v1485, 0.7978846
      %v1550 = vmul.f32 %v1486, 0.7978846
      %v1551 = vmul.f32 %v1487, 0.7978846
      %v1552 = vmul.f32 %v1488, 0.7978846
      %v1553 = vtanh.pop %v1489
      %v1554 = vtanh.pop %v1490
      %v1555 = vtanh.pop %v1491
      %v1556 = vtanh.pop %v1492
      %v1557 = vtanh.pop %v1493
      %v1558 = vtanh.pop %v1494
      %v1559 = vtanh.pop %v1495
      %v1560 = vtanh.pop %v1496
      %v1561 = vtanh.pop %v1497
      %v1562 = vtanh.pop %v1498
      %v1563 = vtanh.pop %v1499
      %v1564 = vtanh.pop %v1500
      %v1565 = vtanh.pop %v1501
      %v1566 = vtanh.pop %v1502
      %v1567 = vtanh.pop %v1503
      %v1568 = vtanh.pop %v1504
      %v1569 = vtanh.pop %v1505
      %v1570 = vtanh.pop %v1506
      %v1571 = vtanh.pop %v1507
      %v1572 = vtanh.pop %v1508
      %v1573 = vtanh.pop %v1509
      %v1574 = vtanh.pop %v1510
      %v1575 = vtanh.pop %v1511
      %v1576 = vtanh.pop %v1512
      %v1577 = vtanh.pop %v1513
      %v1578 = vtanh.pop %v1514
      %v1579 = vtanh.pop %v1515
      %v1580 = vtanh.pop %v1516
      %v1581 = vtanh.pop %v1517
      %v1582 = vtanh.pop %v1518
      %v1583 = vtanh.pop %v1519
      %v1584 = vtanh.pop %v1520
      %v1585 = vtanh.pop %v1521
      %v1586 = vtanh.pop %v1522
      %v1587 = vtanh.pop %v1523
      %v1588 = vtanh.pop %v1524
      %v1589 = vtanh.pop %v1525
      %v1590 = vtanh.pop %v1526
      %v1591 = vtanh.pop %v1527
      %v1592 = vtanh.pop %v1528
      %v1593 = vtanh.pop %v1529
      %v1594 = vtanh.pop %v1530
      %v1595 = vtanh.pop %v1531
      %v1596 = vtanh.pop %v1532
      %v1597 = vtanh.pop %v1533
      %v1598 = vtanh.pop %v1534
      %v1599 = vtanh.pop %v1535
      %v1600 = vtanh.pop %v1536
      %v1601 = vtanh.pop %v1537
      %v1602 = vtanh.pop %v1538
      %v1603 = vtanh.pop %v1539
      %v1604 = vtanh.pop %v1540
      %v1605 = vtanh.pop %v1541
      %v1606 = vtanh.pop %v1542
      %v1607 = vtanh.pop %v1543
      %v1608 = vtanh.pop %v1544
      %v1609 = vtanh.pop %v1545
      %v1610 = vtanh.pop %v1546
      %v1611 = vtanh.pop %v1547
      %v1612 = vtanh.pop %v1548
      %v1613 = vtanh.pop %v1549
      %v1614 = vtanh.pop %v1550
      %v1615 = vtanh.pop %v1551
      %v1616 = vtanh.pop %v1552
      %v1617 = vadd.f32 %v1553, 1.0
      %v1618 = vadd.f32 %v1554, 1.0
      %v1619 = vadd.f32 %v1555, 1.0
      %v1620 = vadd.f32 %v1556, 1.0
      %v1621 = vadd.f32 %v1557, 1.0
      %v1622 = vadd.f32 %v1558, 1.0
      %v1623 = vadd.f32 %v1559, 1.0
      %v1624 = vadd.f32 %v1560, 1.0
      %v1625 = vadd.f32 %v1561, 1.0
      %v1626 = vadd.f32 %v1562, 1.0
      %v1627 = vadd.f32 %v1563, 1.0
      %v1628 = vadd.f32 %v1564, 1.0
      %v1629 = vadd.f32 %v1565, 1.0
      %v1630 = vadd.f32 %v1566, 1.0
      %v1631 = vadd.f32 %v1567, 1.0
      %v1632 = vadd.f32 %v1568, 1.0
      %v1633 = vadd.f32 %v1569, 1.0
      %v1634 = vadd.f32 %v1570, 1.0
      %v1635 = vadd.f32 %v1571, 1.0
      %v1636 = vadd.f32 %v1572, 1.0
      %v1637 = vadd.f32 %v1573, 1.0
      %v1638 = vadd.f32 %v1574, 1.0
      %v1639 = vadd.f32 %v1575, 1.0
      %v1640 = vadd.f32 %v1576, 1.0
      %v1641 = vadd.f32 %v1577, 1.0
      %v1642 = vadd.f32 %v1578, 1.0
      %v1643 = vadd.f32 %v1579, 1.0
      %v1644 = vadd.f32 %v1580, 1.0
      %v1645 = vadd.f32 %v1581, 1.0
      %v1646 = vadd.f32 %v1582, 1.0
      %v1647 = vadd.f32 %v1583, 1.0
      %v1648 = vadd.f32 %v1584, 1.0
      %v1649 = vadd.f32 %v1585, 1.0
      %v1650 = vadd.f32 %v1586, 1.0
      %v1651 = vadd.f32 %v1587, 1.0
      %v1652 = vadd.f32 %v1588, 1.0
      %v1653 = vadd.f32 %v1589, 1.0
      %v1654 = vadd.f32 %v1590, 1.0
      %v1655 = vadd.f32 %v1591, 1.0
      %v1656 = vadd.f32 %v1592, 1.0
      %v1657 = vadd.f32 %v1593, 1.0
      %v1658 = vadd.f32 %v1594, 1.0
      %v1659 = vadd.f32 %v1595, 1.0
      %v1660 = vadd.f32 %v1596, 1.0
      %v1661 = vadd.f32 %v1597, 1.0
      %v1662 = vadd.f32 %v1598, 1.0
      %v1663 = vadd.f32 %v1599, 1.0
      %v1664 = vadd.f32 %v1600, 1.0
      %v1665 = vadd.f32 %v1601, 1.0
      %v1666 = vadd.f32 %v1602, 1.0
      %v1667 = vadd.f32 %v1603, 1.0
      %v1668 = vadd.f32 %v1604, 1.0
      %v1669 = vadd.f32 %v1605, 1.0
      %v1670 = vadd.f32 %v1606, 1.0
      %v1671 = vadd.f32 %v1607, 1.0
      %v1672 = vadd.f32 %v1608, 1.0
      %v1673 = vadd.f32 %v1609, 1.0
      %v1674 = vadd.f32 %v1610, 1.0
      %v1675 = vadd.f32 %v1611, 1.0
      %v1676 = vadd.f32 %v1612, 1.0
      %v1677 = vadd.f32 %v1613, 1.0
      %v1678 = vadd.f32 %v1614, 1.0
      %v1679 = vadd.f32 %v1615, 1.0
      %v1680 = vadd.f32 %v1616, 1.0
      %v1681 = vmul.f32 %v1169, %v1617
      %v1682 = vmul.f32 %v1170, %v1618
      %v1683 = vmul.f32 %v1171, %v1619
      %v1684 = vmul.f32 %v1172, %v1620
      %v1685 = vmul.f32 %v1173, %v1621
      %v1686 = vmul.f32 %v1174, %v1622
      %v1687 = vmul.f32 %v1175, %v1623
      %v1688 = vmul.f32 %v1176, %v1624
      %v1689 = vmul.f32 %v1177, %v1625
      %v1690 = vmul.f32 %v1178, %v1626
      %v1691 = vmul.f32 %v1179, %v1627
      %v1692 = vmul.f32 %v1180, %v1628
      %v1693 = vmul.f32 %v1181, %v1629
      %v1694 = vmul.f32 %v1182, %v1630
      %v1695 = vmul.f32 %v1183, %v1631
      %v1696 = vmul.f32 %v1184, %v1632
      %v1697 = vmul.f32 %v1185, %v1633
      %v1698 = vmul.f32 %v1186, %v1634
      %v1699 = vmul.f32 %v1187, %v1635
      %v1700 = vmul.f32 %v1188, %v1636
      %v1701 = vmul.f32 %v1189, %v1637
      %v1702 = vmul.f32 %v1190, %v1638
      %v1703 = vmul.f32 %v1191, %v1639
      %v1704 = vmul.f32 %v1192, %v1640
      %v1705 = vmul.f32 %v1193, %v1641
      %v1706 = vmul.f32 %v1194, %v1642
      %v1707 = vmul.f32 %v1195, %v1643
      %v1708 = vmul.f32 %v1196, %v1644
      %v1709 = vmul.f32 %v1197, %v1645
      %v1710 = vmul.f32 %v1198, %v1646
      %v1711 = vmul.f32 %v1199, %v1647
      %v1712 = vmul.f32 %v1200, %v1648
      %v1713 = vmul.f32 %v1201, %v1649
      %v1714 = vmul.f32 %v1202, %v1650
      %v1715 = vmul.f32 %v1203, %v1651
      %v1716 = vmul.f32 %v1204, %v1652
      %v1717 = vmul.f32 %v1205, %v1653
      %v1718 = vmul.f32 %v1206, %v1654
      %v1719 = vmul.f32 %v1207, %v1655
      %v1720 = vmul.f32 %v1208, %v1656
      %v1721 = vmul.f32 %v1209, %v1657
      %v1722 = vmul.f32 %v1210, %v1658
      %v1723 = vmul.f32 %v1211, %v1659
      %v1724 = vmul.f32 %v1212, %v1660
      %v1725 = vmul.f32 %v1213, %v1661
      %v1726 = vmul.f32 %v1214, %v1662
      %v1727 = vmul.f32 %v1215, %v1663
      %v1728 = vmul.f32 %v1216, %v1664
      %v1729 = vmul.f32 %v1217, %v1665
      %v1730 = vmul.f32 %v1218, %v1666
      %v1731 = vmul.f32 %v1219, %v1667
      %v1732 = vmul.f32 %v1220, %v1668
      %v1733 = vmul.f32 %v1221, %v1669
      %v1734 = vmul.f32 %v1222, %v1670
      %v1735 = vmul.f32 %v1223, %v1671
      %v1736 = vmul.f32 %v1224, %v1672
      %v1737 = vmul.f32 %v1225, %v1673
      %v1738 = vmul.f32 %v1226, %v1674
      %v1739 = vmul.f32 %v1227, %v1675
      %v1740 = vmul.f32 %v1228, %v1676
      %v1741 = vmul.f32 %v1229, %v1677
      %v1742 = vmul.f32 %v1230, %v1678
      %v1743 = vmul.f32 %v1231, %v1679
      %v1744 = vmul.f32 %v1232, %v1680
      %v1745 = vpack.c.bf16 %v1685, %v1681
      %v1746 = vpack.c.bf16 %v1686, %v1682
      %v1747 = vpack.c.bf16 %v1687, %v1683
      %v1748 = vpack.c.bf16 %v1688, %v1684
      %v1749 = vpack.c.bf16 %v1693, %v1689
      %v1750 = vpack.c.bf16 %v1694, %v1690
      %v1751 = vpack.c.bf16 %v1695, %v1691
      %v1752 = vpack.c.bf16 %v1696, %v1692
      %v1753 = vpack.c.bf16 %v1701, %v1697
      %v1754 = vpack.c.bf16 %v1702, %v1698
      %v1755 = vpack.c.bf16 %v1703, %v1699
      %v1756 = vpack.c.bf16 %v1704, %v1700
      %v1757 = vpack.c.bf16 %v1709, %v1705
      %v1758 = vpack.c.bf16 %v1710, %v1706
      %v1759 = vpack.c.bf16 %v1711, %v1707
      %v1760 = vpack.c.bf16 %v1712, %v1708
      %v1761 = vpack.c.bf16 %v1717, %v1713
      %v1762 = vpack.c.bf16 %v1718, %v1714
      %v1763 = vpack.c.bf16 %v1719, %v1715
      %v1764 = vpack.c.bf16 %v1720, %v1716
      %v1765 = vpack.c.bf16 %v1725, %v1721
      %v1766 = vpack.c.bf16 %v1726, %v1722
      %v1767 = vpack.c.bf16 %v1727, %v1723
      %v1768 = vpack.c.bf16 %v1728, %v1724
      %v1769 = vpack.c.bf16 %v1733, %v1729
      %v1770 = vpack.c.bf16 %v1734, %v1730
      %v1771 = vpack.c.bf16 %v1735, %v1731
      %v1772 = vpack.c.bf16 %v1736, %v1732
      %v1773 = vpack.c.bf16 %v1741, %v1737
      %v1774 = vpack.c.bf16 %v1742, %v1738
      %v1775 = vpack.c.bf16 %v1743, %v1739
      %v1776 = vpack.c.bf16 %v1744, %v1740
      %v1777 = vld [vmem:[%s3] sm:$0xff]
      %v1778 = vld [vmem:[%s3 + $0x8] sm:$0xff]
      %v1779 = vld [vmem:[%s3 + $0x10] sm:$0xff]
      %v1780 = vld [vmem:[%s3 + $0x18] sm:$0xff]
      %v1781 = vld [vmem:[%s3 + $0x20] sm:$0xff]
      %v1782 = vld [vmem:[%s3 + $0x28] sm:$0xff]
      %v1783 = vld [vmem:[%s3 + $0x30] sm:$0xff]
      %v1784 = vld [vmem:[%s3 + $0x38] sm:$0xff]
      %v1785 = vld [vmem:[%s3 + $0x40] sm:$0xff]
      %v1786 = vld [vmem:[%s3 + $0x48] sm:$0xff]
      %v1787 = vld [vmem:[%s3 + $0x50] sm:$0xff]
      %v1788 = vld [vmem:[%s3 + $0x58] sm:$0xff]
      %v1789 = vld [vmem:[%s3 + $0x60] sm:$0xff]
      %v1790 = vld [vmem:[%s3 + $0x68] sm:$0xff]
      %v1791 = vld [vmem:[%s3 + $0x70] sm:$0xff]
      %v1792 = vld [vmem:[%s3 + $0x78] sm:$0xff]
      %v1793 = vld [vmem:[%s3 + $0x80] sm:$0xff]
      %v1794 = vld [vmem:[%s3 + $0x88] sm:$0xff]
      %v1795 = vld [vmem:[%s3 + $0x90] sm:$0xff]
      %v1796 = vld [vmem:[%s3 + $0x98] sm:$0xff]
      %v1797 = vld [vmem:[%s3 + $0xa0] sm:$0xff]
      %v1798 = vld [vmem:[%s3 + $0xa8] sm:$0xff]
      %v1799 = vld [vmem:[%s3 + $0xb0] sm:$0xff]
      %v1800 = vld [vmem:[%s3 + $0xb8] sm:$0xff]
      %v1801 = vld [vmem:[%s3 + $0xc0] sm:$0xff]
      %v1802 = vld [vmem:[%s3 + $0xc8] sm:$0xff]
      %v1803 = vld [vmem:[%s3 + $0xd0] sm:$0xff]
      %v1804 = vld [vmem:[%s3 + $0xd8] sm:$0xff]
      %v1805 = vld [vmem:[%s3 + $0xe0] sm:$0xff]
      %v1806 = vld [vmem:[%s3 + $0xe8] sm:$0xff]
      %v1807 = vld [vmem:[%s3 + $0xf0] sm:$0xff]
      %v1808 = vld [vmem:[%s3 + $0xf8] sm:$0xff]
      %v1809 = vld [vmem:[%s3 + $0x100] sm:$0xff]
      %v1810 = vld [vmem:[%s3 + $0x108] sm:$0xff]
      %v1811 = vld [vmem:[%s3 + $0x110] sm:$0xff]
      %v1812 = vld [vmem:[%s3 + $0x118] sm:$0xff]
      %v1813 = vld [vmem:[%s3 + $0x120] sm:$0xff]
      %v1814 = vld [vmem:[%s3 + $0x128] sm:$0xff]
      %v1815 = vld [vmem:[%s3 + $0x130] sm:$0xff]
      %v1816 = vld [vmem:[%s3 + $0x138] sm:$0xff]
      %v1817 = vld [vmem:[%s3 + $0x140] sm:$0xff]
      %v1818 = vld [vmem:[%s3 + $0x148] sm:$0xff]
      %v1819 = vld [vmem:[%s3 + $0x150] sm:$0xff]
      %v1820 = vld [vmem:[%s3 + $0x158] sm:$0xff]
      %v1821 = vld [vmem:[%s3 + $0x160] sm:$0xff]
      %v1822 = vld [vmem:[%s3 + $0x168] sm:$0xff]
      %v1823 = vld [vmem:[%s3 + $0x170] sm:$0xff]
      %v1824 = vld [vmem:[%s3 + $0x178] sm:$0xff]
      %v1825 = vld [vmem:[%s3 + $0x180] sm:$0xff]
      %v1826 = vld [vmem:[%s3 + $0x188] sm:$0xff]
      %v1827 = vld [vmem:[%s3 + $0x190] sm:$0xff]
      %v1828 = vld [vmem:[%s3 + $0x198] sm:$0xff]
      %v1829 = vld [vmem:[%s3 + $0x1a0] sm:$0xff]
      %v1830 = vld [vmem:[%s3 + $0x1a8] sm:$0xff]
      %v1831 = vld [vmem:[%s3 + $0x1b0] sm:$0xff]
      %v1832 = vld [vmem:[%s3 + $0x1b8] sm:$0xff]
      %v1833 = vld [vmem:[%s3 + $0x1c0] sm:$0xff]
      %v1834 = vld [vmem:[%s3 + $0x1c8] sm:$0xff]
      %v1835 = vld [vmem:[%s3 + $0x1d0] sm:$0xff]
      %v1836 = vld [vmem:[%s3 + $0x1d8] sm:$0xff]
      %v1837 = vld [vmem:[%s3 + $0x1e0] sm:$0xff]
      %v1838 = vld [vmem:[%s3 + $0x1e8] sm:$0xff]
      %v1839 = vld [vmem:[%s3 + $0x1f0] sm:$0xff]
      %v1840 = vld [vmem:[%s3 + $0x1f8] sm:$0xff]
      %v1841 = vld [vmem:[%s4] sm:$0x3]
      %v1843 = vperm.slane %v1841, 0
      %v1844 = vperm.slane %v1841, 1
      %v1911 = vunpack.c.l.b16 %v1777
      %v1912 = vunpack.c.h.b16 %v1777
      %v1913 = vunpack.c.l.b16 %v1778
      %v1914 = vunpack.c.h.b16 %v1778
      %v1915 = vunpack.c.l.b16 %v1779
      %v1916 = vunpack.c.h.b16 %v1779
      %v1917 = vunpack.c.l.b16 %v1780
      %v1918 = vunpack.c.h.b16 %v1780
      %v1919 = vunpack.c.l.b16 %v1781
      %v1920 = vunpack.c.h.b16 %v1781
      %v1921 = vunpack.c.l.b16 %v1782
      %v1922 = vunpack.c.h.b16 %v1782
      %v1923 = vunpack.c.l.b16 %v1783
      %v1924 = vunpack.c.h.b16 %v1783
      %v1925 = vunpack.c.l.b16 %v1784
      %v1926 = vunpack.c.h.b16 %v1784
      %v1927 = vunpack.c.l.b16 %v1785
      %v1928 = vunpack.c.h.b16 %v1785
      %v1929 = vunpack.c.l.b16 %v1786
      %v1930 = vunpack.c.h.b16 %v1786
      %v1931 = vunpack.c.l.b16 %v1787
      %v1932 = vunpack.c.h.b16 %v1787
      %v1933 = vunpack.c.l.b16 %v1788
      %v1934 = vunpack.c.h.b16 %v1788
      %v1935 = vunpack.c.l.b16 %v1789
      %v1936 = vunpack.c.h.b16 %v1789
      %v1937 = vunpack.c.l.b16 %v1790
      %v1938 = vunpack.c.h.b16 %v1790
      %v1939 = vunpack.c.l.b16 %v1791
      %v1940 = vunpack.c.h.b16 %v1791
      %v1941 = vunpack.c.l.b16 %v1792
      %v1942 = vunpack.c.h.b16 %v1792
      %v1943 = vunpack.c.l.b16 %v1793
      %v1944 = vunpack.c.h.b16 %v1793
      %v1945 = vunpack.c.l.b16 %v1794
      %v1946 = vunpack.c.h.b16 %v1794
      %v1947 = vunpack.c.l.b16 %v1795
      %v1948 = vunpack.c.h.b16 %v1795
      %v1949 = vunpack.c.l.b16 %v1796
      %v1950 = vunpack.c.h.b16 %v1796
      %v1951 = vunpack.c.l.b16 %v1797
      %v1952 = vunpack.c.h.b16 %v1797
      %v1953 = vunpack.c.l.b16 %v1798
      %v1954 = vunpack.c.h.b16 %v1798
      %v1955 = vunpack.c.l.b16 %v1799
      %v1956 = vunpack.c.h.b16 %v1799
      %v1957 = vunpack.c.l.b16 %v1800
      %v1958 = vunpack.c.h.b16 %v1800
      %v1959 = vunpack.c.l.b16 %v1801
      %v1960 = vunpack.c.h.b16 %v1801
      %v1961 = vunpack.c.l.b16 %v1802
      %v1962 = vunpack.c.h.b16 %v1802
      %v1963 = vunpack.c.l.b16 %v1803
      %v1964 = vunpack.c.h.b16 %v1803
      %v1965 = vunpack.c.l.b16 %v1804
      %v1966 = vunpack.c.h.b16 %v1804
      %v1967 = vunpack.c.l.b16 %v1805
      %v1968 = vunpack.c.h.b16 %v1805
      %v1969 = vunpack.c.l.b16 %v1806
      %v1970 = vunpack.c.h.b16 %v1806
      %v1971 = vunpack.c.l.b16 %v1807
      %v1972 = vunpack.c.h.b16 %v1807
      %v1973 = vunpack.c.l.b16 %v1808
      %v1974 = vunpack.c.h.b16 %v1808
      %v1975 = vunpack.c.l.b16 %v1809
      %v1976 = vunpack.c.h.b16 %v1809
      %v1977 = vunpack.c.l.b16 %v1810
      %v1978 = vunpack.c.h.b16 %v1810
      %v1979 = vunpack.c.l.b16 %v1811
      %v1980 = vunpack.c.h.b16 %v1811
      %v1981 = vunpack.c.l.b16 %v1812
      %v1982 = vunpack.c.h.b16 %v1812
      %v1983 = vunpack.c.l.b16 %v1813
      %v1984 = vunpack.c.h.b16 %v1813
      %v1985 = vunpack.c.l.b16 %v1814
      %v1986 = vunpack.c.h.b16 %v1814
      %v1987 = vunpack.c.l.b16 %v1815
      %v1988 = vunpack.c.h.b16 %v1815
      %v1989 = vunpack.c.l.b16 %v1816
      %v1990 = vunpack.c.h.b16 %v1816
      %v1991 = vunpack.c.l.b16 %v1817
      %v1992 = vunpack.c.h.b16 %v1817
      %v1993 = vunpack.c.l.b16 %v1818
      %v1994 = vunpack.c.h.b16 %v1818
      %v1995 = vunpack.c.l.b16 %v1819
      %v1996 = vunpack.c.h.b16 %v1819
      %v1997 = vunpack.c.l.b16 %v1820
      %v1998 = vunpack.c.h.b16 %v1820
      %v1999 = vunpack.c.l.b16 %v1821
      %v2000 = vunpack.c.h.b16 %v1821
      %v2001 = vunpack.c.l.b16 %v1822
      %v2002 = vunpack.c.h.b16 %v1822
      %v2003 = vunpack.c.l.b16 %v1823
      %v2004 = vunpack.c.h.b16 %v1823
      %v2005 = vunpack.c.l.b16 %v1824
      %v2006 = vunpack.c.h.b16 %v1824
      %v2007 = vunpack.c.l.b16 %v1825
      %v2008 = vunpack.c.h.b16 %v1825
      %v2009 = vunpack.c.l.b16 %v1826
      %v2010 = vunpack.c.h.b16 %v1826
      %v2011 = vunpack.c.l.b16 %v1827
      %v2012 = vunpack.c.h.b16 %v1827
      %v2013 = vunpack.c.l.b16 %v1828
      %v2014 = vunpack.c.h.b16 %v1828
      %v2015 = vunpack.c.l.b16 %v1829
      %v2016 = vunpack.c.h.b16 %v1829
      %v2017 = vunpack.c.l.b16 %v1830
      %v2018 = vunpack.c.h.b16 %v1830
      %v2019 = vunpack.c.l.b16 %v1831
      %v2020 = vunpack.c.h.b16 %v1831
      %v2021 = vunpack.c.l.b16 %v1832
      %v2022 = vunpack.c.h.b16 %v1832
      %v2023 = vunpack.c.l.b16 %v1833
      %v2024 = vunpack.c.h.b16 %v1833
      %v2025 = vunpack.c.l.b16 %v1834
      %v2026 = vunpack.c.h.b16 %v1834
      %v2027 = vunpack.c.l.b16 %v1835
      %v2028 = vunpack.c.h.b16 %v1835
      %v2029 = vunpack.c.l.b16 %v1836
      %v2030 = vunpack.c.h.b16 %v1836
      %v2031 = vunpack.c.l.b16 %v1837
      %v2032 = vunpack.c.h.b16 %v1837
      %v2033 = vunpack.c.l.b16 %v1838
      %v2034 = vunpack.c.h.b16 %v1838
      %v2035 = vunpack.c.l.b16 %v1839
      %v2036 = vunpack.c.h.b16 %v1839
      %v2037 = vunpack.c.l.b16 %v1840
      %v2038 = vunpack.c.h.b16 %v1840
      %v2039 = vpack.c.b16 %v1913, %v1911
      %v2040 = vpack.c.b16 %v1914, %v1912
      %v2041 = vpack.c.b16 %v1917, %v1915
      %v2042 = vpack.c.b16 %v1918, %v1916
      %v2043 = vpack.c.b16 %v1921, %v1919
      %v2044 = vpack.c.b16 %v1922, %v1920
      %v2045 = vpack.c.b16 %v1925, %v1923
      %v2046 = vpack.c.b16 %v1926, %v1924
      %v2047 = vpack.c.b16 %v1929, %v1927
      %v2048 = vpack.c.b16 %v1930, %v1928
      %v2049 = vpack.c.b16 %v1933, %v1931
      %v2050 = vpack.c.b16 %v1934, %v1932
      %v2051 = vpack.c.b16 %v1937, %v1935
      %v2052 = vpack.c.b16 %v1938, %v1936
      %v2053 = vpack.c.b16 %v1941, %v1939
      %v2054 = vpack.c.b16 %v1942, %v1940
      %v2055 = vpack.c.b16 %v1945, %v1943
      %v2056 = vpack.c.b16 %v1946, %v1944
      %v2057 = vpack.c.b16 %v1949, %v1947
      %v2058 = vpack.c.b16 %v1950, %v1948
      %v2059 = vpack.c.b16 %v1953, %v1951
      %v2060 = vpack.c.b16 %v1954, %v1952
      %v2061 = vpack.c.b16 %v1957, %v1955
      %v2062 = vpack.c.b16 %v1958, %v1956
      %v2063 = vpack.c.b16 %v1961, %v1959
      %v2064 = vpack.c.b16 %v1962, %v1960
      %v2065 = vpack.c.b16 %v1965, %v1963
      %v2066 = vpack.c.b16 %v1966, %v1964
      %v2067 = vpack.c.b16 %v1969, %v1967
      %v2068 = vpack.c.b16 %v1970, %v1968
      %v2069 = vpack.c.b16 %v1973, %v1971
      %v2070 = vpack.c.b16 %v1974, %v1972
      %v2071 = vpack.c.b16 %v1977, %v1975
      %v2072 = vpack.c.b16 %v1978, %v1976
      %v2073 = vpack.c.b16 %v1981, %v1979
      %v2074 = vpack.c.b16 %v1982, %v1980
      %v2075 = vpack.c.b16 %v1985, %v1983
      %v2076 = vpack.c.b16 %v1986, %v1984
      %v2077 = vpack.c.b16 %v1989, %v1987
      %v2078 = vpack.c.b16 %v1990, %v1988
      %v2079 = vpack.c.b16 %v1993, %v1991
      %v2080 = vpack.c.b16 %v1994, %v1992
      %v2081 = vpack.c.b16 %v1997, %v1995
      %v2082 = vpack.c.b16 %v1998, %v1996
      %v2083 = vpack.c.b16 %v2001, %v1999
      %v2084 = vpack.c.b16 %v2002, %v2000
      %v2085 = vpack.c.b16 %v2005, %v2003
      %v2086 = vpack.c.b16 %v2006, %v2004
      %v2087 = vpack.c.b16 %v2009, %v2007
      %v2088 = vpack.c.b16 %v2010, %v2008
      %v2089 = vpack.c.b16 %v2013, %v2011
      %v2090 = vpack.c.b16 %v2014, %v2012
      %v2091 = vpack.c.b16 %v2017, %v2015
      %v2092 = vpack.c.b16 %v2018, %v2016
      %v2093 = vpack.c.b16 %v2021, %v2019
      %v2094 = vpack.c.b16 %v2022, %v2020
      %v2095 = vpack.c.b16 %v2025, %v2023
      %v2096 = vpack.c.b16 %v2026, %v2024
      %v2097 = vpack.c.b16 %v2029, %v2027
      %v2098 = vpack.c.b16 %v2030, %v2028
      %v2099 = vpack.c.b16 %v2033, %v2031
      %v2100 = vpack.c.b16 %v2034, %v2032
      %v2101 = vpack.c.b16 %v2037, %v2035
      %v2102 = vpack.c.b16 %v2038, %v2036
      %2167 = vmatpush.bf16.msra.mxu0 %v2053
      %2168 = vmatpush.bf16.msra.mxu0 %v2051
      %2169 = vmatpush.bf16.msra.mxu0 %v2049
      %2170 = vmatpush.bf16.msra.mxu0 %v2047
      %2171 = vmatpush.bf16.msra.mxu0 %v2045
      %2172 = vmatpush.bf16.msra.mxu0 %v2043
      %2173 = vmatpush.bf16.msra.mxu0 %v2041
      %2174 = vmatpush.bf16.msra.mxu0 %v2039
      %2175 = vmatmul.bf16.gmra.mxu0 %v1745
      %v2176 = vpop.f32.mrf.mxu0
      %v2177 = vadd.f32 %v1843, %v2176
      %v2178 = vpop.f32.mrf.mxu0
      %v2179 = vadd.f32 %v1843, %v2178
      %2180 = vmatmul.bf16.gmra.mxu0 %v1749
      %v2181 = vpop.f32.mrf.mxu0
      %v2182 = vadd.f32 %v1843, %v2181
      %v2183 = vpop.f32.mrf.mxu0
      %v2184 = vadd.f32 %v1843, %v2183
      %2185 = vmatmul.bf16.gmra.mxu0 %v1753
      %v2186 = vpop.f32.mrf.mxu0
      %v2187 = vadd.f32 %v1843, %v2186
      %v2188 = vpop.f32.mrf.mxu0
      %v2189 = vadd.f32 %v1843, %v2188
      %2190 = vmatmul.bf16.gmra.mxu0 %v1757
      %v2191 = vpop.f32.mrf.mxu0
      %v2192 = vadd.f32 %v1843, %v2191
      %v2193 = vpop.f32.mrf.mxu0
      %v2194 = vadd.f32 %v1843, %v2193
      %2195 = vmatmul.bf16.gmra.mxu0 %v1761
      %v2196 = vpop.f32.mrf.mxu0
      %v2197 = vadd.f32 %v1843, %v2196
      %v2198 = vpop.f32.mrf.mxu0
      %v2199 = vadd.f32 %v1843, %v2198
      %2200 = vmatmul.bf16.gmra.mxu0 %v1765
      %v2201 = vpop.f32.mrf.mxu0
      %v2202 = vadd.f32 %v1843, %v2201
      %v2203 = vpop.f32.mrf.mxu0
      %v2204 = vadd.f32 %v1843, %v2203
      %2205 = vmatmul.bf16.gmra.mxu0 %v1769
      %v2206 = vpop.f32.mrf.mxu0
      %v2207 = vadd.f32 %v1843, %v2206
      %v2208 = vpop.f32.mrf.mxu0
      %v2209 = vadd.f32 %v1843, %v2208
      %2210 = vmatmul.bf16.gmra.mxu0 %v1773
      %v2211 = vpop.f32.mrf.mxu0
      %v2212 = vadd.f32 %v1843, %v2211
      %v2213 = vpop.f32.mrf.mxu0
      %v2214 = vadd.f32 %v1843, %v2213
      %2215 = vdwg.mxu0
      %2216 = vmatpush.bf16.msra.mxu0 %v2069
      %2217 = vmatpush.bf16.msra.mxu0 %v2067
      %2218 = vmatpush.bf16.msra.mxu0 %v2065
      %2219 = vmatpush.bf16.msra.mxu0 %v2063
      %2220 = vmatpush.bf16.msra.mxu0 %v2061
      %2221 = vmatpush.bf16.msra.mxu0 %v2059
      %2222 = vmatpush.bf16.msra.mxu0 %v2057
      %2223 = vmatpush.bf16.msra.mxu0 %v2055
      %2224 = vmatmul.bf16.gmra.mxu0 %v1746
      %v2225 = vpop.f32.mrf.mxu0
      %v2226 = vadd.f32 %v2177, %v2225
      %v2227 = vpop.f32.mrf.mxu0
      %v2228 = vadd.f32 %v2179, %v2227
      %2229 = vmatmul.bf16.gmra.mxu0 %v1750
      %v2230 = vpop.f32.mrf.mxu0
      %v2231 = vadd.f32 %v2182, %v2230
      %v2232 = vpop.f32.mrf.mxu0
      %v2233 = vadd.f32 %v2184, %v2232
      %2234 = vmatmul.bf16.gmra.mxu0 %v1754
      %v2235 = vpop.f32.mrf.mxu0
      %v2236 = vadd.f32 %v2187, %v2235
      %v2237 = vpop.f32.mrf.mxu0
      %v2238 = vadd.f32 %v2189, %v2237
      %2239 = vmatmul.bf16.gmra.mxu0 %v1758
      %v2240 = vpop.f32.mrf.mxu0
      %v2241 = vadd.f32 %v2192, %v2240
      %v2242 = vpop.f32.mrf.mxu0
      %v2243 = vadd.f32 %v2194, %v2242
      %2244 = vmatmul.bf16.gmra.mxu0 %v1762
      %v2245 = vpop.f32.mrf.mxu0
      %v2246 = vadd.f32 %v2197, %v2245
      %v2247 = vpop.f32.mrf.mxu0
      %v2248 = vadd.f32 %v2199, %v2247
      %2249 = vmatmul.bf16.gmra.mxu0 %v1766
      %v2250 = vpop.f32.mrf.mxu0
      %v2251 = vadd.f32 %v2202, %v2250
      %v2252 = vpop.f32.mrf.mxu0
      %v2253 = vadd.f32 %v2204, %v2252
      %2254 = vmatmul.bf16.gmra.mxu0 %v1770
      %v2255 = vpop.f32.mrf.mxu0
      %v2256 = vadd.f32 %v2207, %v2255
      %v2257 = vpop.f32.mrf.mxu0
      %v2258 = vadd.f32 %v2209, %v2257
      %2259 = vmatmul.bf16.gmra.mxu0 %v1774
      %v2260 = vpop.f32.mrf.mxu0
      %v2261 = vadd.f32 %v2212, %v2260
      %v2262 = vpop.f32.mrf.mxu0
      %v2263 = vadd.f32 %v2214, %v2262
      %2264 = vdwg.mxu0
      %2265 = vmatpush.bf16.msra.mxu0 %v2085
      %2266 = vmatpush.bf16.msra.mxu0 %v2083
      %2267 = vmatpush.bf16.msra.mxu0 %v2081
      %2268 = vmatpush.bf16.msra.mxu0 %v2079
      %2269 = vmatpush.bf16.msra.mxu0 %v2077
      %2270 = vmatpush.bf16.msra.mxu0 %v2075
      %2271 = vmatpush.bf16.msra.mxu0 %v2073
      %2272 = vmatpush.bf16.msra.mxu0 %v2071
      %2273 = vmatmul.bf16.gmra.mxu0 %v1747
      %v2274 = vpop.f32.mrf.mxu0
      %v2275 = vadd.f32 %v2226, %v2274
      %v2276 = vpop.f32.mrf.mxu0
      %v2277 = vadd.f32 %v2228, %v2276
      %2278 = vmatmul.bf16.gmra.mxu0 %v1751
      %v2279 = vpop.f32.mrf.mxu0
      %v2280 = vadd.f32 %v2231, %v2279
      %v2281 = vpop.f32.mrf.mxu0
      %v2282 = vadd.f32 %v2233, %v2281
      %2283 = vmatmul.bf16.gmra.mxu0 %v1755
      %v2284 = vpop.f32.mrf.mxu0
      %v2285 = vadd.f32 %v2236, %v2284
      %v2286 = vpop.f32.mrf.mxu0
      %v2287 = vadd.f32 %v2238, %v2286
      %2288 = vmatmul.bf16.gmra.mxu0 %v1759
      %v2289 = vpop.f32.mrf.mxu0
      %v2290 = vadd.f32 %v2241, %v2289
      %v2291 = vpop.f32.mrf.mxu0
      %v2292 = vadd.f32 %v2243, %v2291
      %2293 = vmatmul.bf16.gmra.mxu0 %v1763
      %v2294 = vpop.f32.mrf.mxu0
      %v2295 = vadd.f32 %v2246, %v2294
      %v2296 = vpop.f32.mrf.mxu0
      %v2297 = vadd.f32 %v2248, %v2296
      %2298 = vmatmul.bf16.gmra.mxu0 %v1767
      %v2299 = vpop.f32.mrf.mxu0
      %v2300 = vadd.f32 %v2251, %v2299
      %v2301 = vpop.f32.mrf.mxu0
      %v2302 = vadd.f32 %v2253, %v2301
      %2303 = vmatmul.bf16.gmra.mxu0 %v1771
      %v2304 = vpop.f32.mrf.mxu0
      %v2305 = vadd.f32 %v2256, %v2304
      %v2306 = vpop.f32.mrf.mxu0
      %v2307 = vadd.f32 %v2258, %v2306
      %2308 = vmatmul.bf16.gmra.mxu0 %v1775
      %v2309 = vpop.f32.mrf.mxu0
      %v2310 = vadd.f32 %v2261, %v2309
      %v2311 = vpop.f32.mrf.mxu0
      %v2312 = vadd.f32 %v2263, %v2311
      %2313 = vdwg.mxu0
      %2314 = vmatpush.bf16.msra.mxu0 %v2101
      %2315 = vmatpush.bf16.msra.mxu0 %v2099
      %2316 = vmatpush.bf16.msra.mxu0 %v2097
      %2317 = vmatpush.bf16.msra.mxu0 %v2095
      %2318 = vmatpush.bf16.msra.mxu0 %v2093
      %2319 = vmatpush.bf16.msra.mxu0 %v2091
      %2320 = vmatpush.bf16.msra.mxu0 %v2089
      %2321 = vmatpush.bf16.msra.mxu0 %v2087
      %2322 = vmatmul.bf16.gmra.mxu0 %v1748
      %v2323 = vpop.f32.mrf.mxu0
      %v2324 = vadd.f32 %v2275, %v2323
      %v2325 = vpop.f32.mrf.mxu0
      %v2326 = vadd.f32 %v2277, %v2325
      %2327 = vmatmul.bf16.gmra.mxu0 %v1752
      %v2328 = vpop.f32.mrf.mxu0
      %v2329 = vadd.f32 %v2280, %v2328
      %v2330 = vpop.f32.mrf.mxu0
      %v2331 = vadd.f32 %v2282, %v2330
      %2332 = vmatmul.bf16.gmra.mxu0 %v1756
      %v2333 = vpop.f32.mrf.mxu0
      %v2334 = vadd.f32 %v2285, %v2333
      %v2335 = vpop.f32.mrf.mxu0
      %v2336 = vadd.f32 %v2287, %v2335
      %2337 = vmatmul.bf16.gmra.mxu0 %v1760
      %v2338 = vpop.f32.mrf.mxu0
      %v2339 = vadd.f32 %v2290, %v2338
      %v2340 = vpop.f32.mrf.mxu0
      %v2341 = vadd.f32 %v2292, %v2340
      %2342 = vmatmul.bf16.gmra.mxu0 %v1764
      %v2343 = vpop.f32.mrf.mxu0
      %v2344 = vadd.f32 %v2295, %v2343
      %v2345 = vpop.f32.mrf.mxu0
      %v2346 = vadd.f32 %v2297, %v2345
      %2347 = vmatmul.bf16.gmra.mxu0 %v1768
      %v2348 = vpop.f32.mrf.mxu0
      %v2349 = vadd.f32 %v2300, %v2348
      %v2350 = vpop.f32.mrf.mxu0
      %v2351 = vadd.f32 %v2302, %v2350
      %2352 = vmatmul.bf16.gmra.mxu0 %v1772
      %v2353 = vpop.f32.mrf.mxu0
      %v2354 = vadd.f32 %v2305, %v2353
      %v2355 = vpop.f32.mrf.mxu0
      %v2356 = vadd.f32 %v2307, %v2355
      %2357 = vmatmul.bf16.gmra.mxu0 %v1776
      %v2358 = vpop.f32.mrf.mxu0
      %v2359 = vadd.f32 %v2310, %v2358
      %v2360 = vpop.f32.mrf.mxu0
      %v2361 = vadd.f32 %v2312, %v2360
      %2362 = vdwg.mxu0
      %2363 = vmatpush.bf16.msra.mxu0 %v2054
      %2364 = vmatpush.bf16.msra.mxu0 %v2052
      %2365 = vmatpush.bf16.msra.mxu0 %v2050
      %2366 = vmatpush.bf16.msra.mxu0 %v2048
      %2367 = vmatpush.bf16.msra.mxu0 %v2046
      %2368 = vmatpush.bf16.msra.mxu0 %v2044
      %2369 = vmatpush.bf16.msra.mxu0 %v2042
      %2370 = vmatpush.bf16.msra.mxu0 %v2040
      %2371 = vmatmul.bf16.gmra.mxu0 %v1745
      %v2372 = vpop.f32.mrf.mxu0
      %v2373 = vadd.f32 %v1844, %v2372
      %v2374 = vpop.f32.mrf.mxu0
      %v2375 = vadd.f32 %v1844, %v2374
      %2376 = vmatmul.bf16.gmra.mxu0 %v1749
      %v2377 = vpop.f32.mrf.mxu0
      %v2378 = vadd.f32 %v1844, %v2377
      %v2379 = vpop.f32.mrf.mxu0
      %v2380 = vadd.f32 %v1844, %v2379
      %2381 = vmatmul.bf16.gmra.mxu0 %v1753
      %v2382 = vpop.f32.mrf.mxu0
      %v2383 = vadd.f32 %v1844, %v2382
      %v2384 = vpop.f32.mrf.mxu0
      %v2385 = vadd.f32 %v1844, %v2384
      %2386 = vmatmul.bf16.gmra.mxu0 %v1757
      %v2387 = vpop.f32.mrf.mxu0
      %v2388 = vadd.f32 %v1844, %v2387
      %v2389 = vpop.f32.mrf.mxu0
      %v2390 = vadd.f32 %v1844, %v2389
      %2391 = vmatmul.bf16.gmra.mxu0 %v1761
      %v2392 = vpop.f32.mrf.mxu0
      %v2393 = vadd.f32 %v1844, %v2392
      %v2394 = vpop.f32.mrf.mxu0
      %v2395 = vadd.f32 %v1844, %v2394
      %2396 = vmatmul.bf16.gmra.mxu0 %v1765
      %v2397 = vpop.f32.mrf.mxu0
      %v2398 = vadd.f32 %v1844, %v2397
      %v2399 = vpop.f32.mrf.mxu0
      %v2400 = vadd.f32 %v1844, %v2399
      %2401 = vmatmul.bf16.gmra.mxu0 %v1769
      %v2402 = vpop.f32.mrf.mxu0
      %v2403 = vadd.f32 %v1844, %v2402
      %v2404 = vpop.f32.mrf.mxu0
      %v2405 = vadd.f32 %v1844, %v2404
      %2406 = vmatmul.bf16.gmra.mxu0 %v1773
      %v2407 = vpop.f32.mrf.mxu0
      %v2408 = vadd.f32 %v1844, %v2407
      %v2409 = vpop.f32.mrf.mxu0
      %v2410 = vadd.f32 %v1844, %v2409
      %2411 = vdwg.mxu0
      %2412 = vmatpush.bf16.msra.mxu0 %v2070
      %2413 = vmatpush.bf16.msra.mxu0 %v2068
      %2414 = vmatpush.bf16.msra.mxu0 %v2066
      %2415 = vmatpush.bf16.msra.mxu0 %v2064
      %2416 = vmatpush.bf16.msra.mxu0 %v2062
      %2417 = vmatpush.bf16.msra.mxu0 %v2060
      %2418 = vmatpush.bf16.msra.mxu0 %v2058
      %2419 = vmatpush.bf16.msra.mxu0 %v2056
      %2420 = vmatmul.bf16.gmra.mxu0 %v1746
      %v2421 = vpop.f32.mrf.mxu0
      %v2422 = vadd.f32 %v2373, %v2421
      %v2423 = vpop.f32.mrf.mxu0
      %v2424 = vadd.f32 %v2375, %v2423
      %2425 = vmatmul.bf16.gmra.mxu0 %v1750
      %v2426 = vpop.f32.mrf.mxu0
      %v2427 = vadd.f32 %v2378, %v2426
      %v2428 = vpop.f32.mrf.mxu0
      %v2429 = vadd.f32 %v2380, %v2428
      %2430 = vmatmul.bf16.gmra.mxu0 %v1754
      %v2431 = vpop.f32.mrf.mxu0
      %v2432 = vadd.f32 %v2383, %v2431
      %v2433 = vpop.f32.mrf.mxu0
      %v2434 = vadd.f32 %v2385, %v2433
      %2435 = vmatmul.bf16.gmra.mxu0 %v1758
      %v2436 = vpop.f32.mrf.mxu0
      %v2437 = vadd.f32 %v2388, %v2436
      %v2438 = vpop.f32.mrf.mxu0
      %v2439 = vadd.f32 %v2390, %v2438
      %2440 = vmatmul.bf16.gmra.mxu0 %v1762
      %v2441 = vpop.f32.mrf.mxu0
      %v2442 = vadd.f32 %v2393, %v2441
      %v2443 = vpop.f32.mrf.mxu0
      %v2444 = vadd.f32 %v2395, %v2443
      %2445 = vmatmul.bf16.gmra.mxu0 %v1766
      %v2446 = vpop.f32.mrf.mxu0
      %v2447 = vadd.f32 %v2398, %v2446
      %v2448 = vpop.f32.mrf.mxu0
      %v2449 = vadd.f32 %v2400, %v2448
      %2450 = vmatmul.bf16.gmra.mxu0 %v1770
      %v2451 = vpop.f32.mrf.mxu0
      %v2452 = vadd.f32 %v2403, %v2451
      %v2453 = vpop.f32.mrf.mxu0
      %v2454 = vadd.f32 %v2405, %v2453
      %2455 = vmatmul.bf16.gmra.mxu0 %v1774
      %v2456 = vpop.f32.mrf.mxu0
      %v2457 = vadd.f32 %v2408, %v2456
      %v2458 = vpop.f32.mrf.mxu0
      %v2459 = vadd.f32 %v2410, %v2458
      %2460 = vdwg.mxu0
      %2461 = vmatpush.bf16.msra.mxu0 %v2086
      %2462 = vmatpush.bf16.msra.mxu0 %v2084
      %2463 = vmatpush.bf16.msra.mxu0 %v2082
      %2464 = vmatpush.bf16.msra.mxu0 %v2080
      %2465 = vmatpush.bf16.msra.mxu0 %v2078
      %2466 = vmatpush.bf16.msra.mxu0 %v2076
      %2467 = vmatpush.bf16.msra.mxu0 %v2074
      %2468 = vmatpush.bf16.msra.mxu0 %v2072
      %2469 = vmatmul.bf16.gmra.mxu0 %v1747
      %v2470 = vpop.f32.mrf.mxu0
      %v2471 = vadd.f32 %v2422, %v2470
      %v2472 = vpop.f32.mrf.mxu0
      %v2473 = vadd.f32 %v2424, %v2472
      %2474 = vmatmul.bf16.gmra.mxu0 %v1751
      %v2475 = vpop.f32.mrf.mxu0
      %v2476 = vadd.f32 %v2427, %v2475
      %v2477 = vpop.f32.mrf.mxu0
      %v2478 = vadd.f32 %v2429, %v2477
      %2479 = vmatmul.bf16.gmra.mxu0 %v1755
      %v2480 = vpop.f32.mrf.mxu0
      %v2481 = vadd.f32 %v2432, %v2480
      %v2482 = vpop.f32.mrf.mxu0
      %v2483 = vadd.f32 %v2434, %v2482
      %2484 = vmatmul.bf16.gmra.mxu0 %v1759
      %v2485 = vpop.f32.mrf.mxu0
      %v2486 = vadd.f32 %v2437, %v2485
      %v2487 = vpop.f32.mrf.mxu0
      %v2488 = vadd.f32 %v2439, %v2487
      %2489 = vmatmul.bf16.gmra.mxu0 %v1763
      %v2490 = vpop.f32.mrf.mxu0
      %v2491 = vadd.f32 %v2442, %v2490
      %v2492 = vpop.f32.mrf.mxu0
      %v2493 = vadd.f32 %v2444, %v2492
      %2494 = vmatmul.bf16.gmra.mxu0 %v1767
      %v2495 = vpop.f32.mrf.mxu0
      %v2496 = vadd.f32 %v2447, %v2495
      %v2497 = vpop.f32.mrf.mxu0
      %v2498 = vadd.f32 %v2449, %v2497
      %2499 = vmatmul.bf16.gmra.mxu0 %v1771
      %v2500 = vpop.f32.mrf.mxu0
      %v2501 = vadd.f32 %v2452, %v2500
      %v2502 = vpop.f32.mrf.mxu0
      %v2503 = vadd.f32 %v2454, %v2502
      %2504 = vmatmul.bf16.gmra.mxu0 %v1775
      %v2505 = vpop.f32.mrf.mxu0
      %v2506 = vadd.f32 %v2457, %v2505
      %v2507 = vpop.f32.mrf.mxu0
      %v2508 = vadd.f32 %v2459, %v2507
      %2509 = vdwg.mxu0
      %2510 = vmatpush.bf16.msra.mxu0 %v2102
      %2511 = vmatpush.bf16.msra.mxu0 %v2100
      %2512 = vmatpush.bf16.msra.mxu0 %v2098
      %2513 = vmatpush.bf16.msra.mxu0 %v2096
      %2514 = vmatpush.bf16.msra.mxu0 %v2094
      %2515 = vmatpush.bf16.msra.mxu0 %v2092
      %2516 = vmatpush.bf16.msra.mxu0 %v2090
      %2517 = vmatpush.bf16.msra.mxu0 %v2088
      %2518 = vmatmul.bf16.gmra.mxu0 %v1748
      %v2519 = vpop.f32.mrf.mxu0
      %v2520 = vadd.f32 %v2471, %v2519
      %v2521 = vpop.f32.mrf.mxu0
      %v2522 = vadd.f32 %v2473, %v2521
      %2523 = vmatmul.bf16.gmra.mxu0 %v1752
      %v2524 = vpop.f32.mrf.mxu0
      %v2525 = vadd.f32 %v2476, %v2524
      %v2526 = vpop.f32.mrf.mxu0
      %v2527 = vadd.f32 %v2478, %v2526
      %2528 = vmatmul.bf16.gmra.mxu0 %v1756
      %v2529 = vpop.f32.mrf.mxu0
      %v2530 = vadd.f32 %v2481, %v2529
      %v2531 = vpop.f32.mrf.mxu0
      %v2532 = vadd.f32 %v2483, %v2531
      %2533 = vmatmul.bf16.gmra.mxu0 %v1760
      %v2534 = vpop.f32.mrf.mxu0
      %v2535 = vadd.f32 %v2486, %v2534
      %v2536 = vpop.f32.mrf.mxu0
      %v2537 = vadd.f32 %v2488, %v2536
      %2538 = vmatmul.bf16.gmra.mxu0 %v1764
      %v2539 = vpop.f32.mrf.mxu0
      %v2540 = vadd.f32 %v2491, %v2539
      %v2541 = vpop.f32.mrf.mxu0
      %v2542 = vadd.f32 %v2493, %v2541
      %2543 = vmatmul.bf16.gmra.mxu0 %v1768
      %v2544 = vpop.f32.mrf.mxu0
      %v2545 = vadd.f32 %v2496, %v2544
      %v2546 = vpop.f32.mrf.mxu0
      %v2547 = vadd.f32 %v2498, %v2546
      %2548 = vmatmul.bf16.gmra.mxu0 %v1772
      %v2549 = vpop.f32.mrf.mxu0
      %v2550 = vadd.f32 %v2501, %v2549
      %v2551 = vpop.f32.mrf.mxu0
      %v2552 = vadd.f32 %v2503, %v2551
      %2553 = vmatmul.bf16.gmra.mxu0 %v1776
      %v2554 = vpop.f32.mrf.mxu0
      %v2555 = vadd.f32 %v2506, %v2554
      %v2556 = vpop.f32.mrf.mxu0
      %v2557 = vadd.f32 %v2508, %v2556
      %2558 = vdwg.mxu0
      %v2559 = vunpack.c.l.bf16 %v287
      %v2560 = vunpack.c.h.bf16 %v287
      %v2561 = vunpack.c.l.bf16 %v288
      %v2562 = vunpack.c.h.bf16 %v288
      %v2563 = vunpack.c.l.bf16 %v289
      %v2564 = vunpack.c.h.bf16 %v289
      %v2565 = vunpack.c.l.bf16 %v290
      %v2566 = vunpack.c.h.bf16 %v290
      %v2567 = vunpack.c.l.bf16 %v291
      %v2568 = vunpack.c.h.bf16 %v291
      %v2569 = vunpack.c.l.bf16 %v292
      %v2570 = vunpack.c.h.bf16 %v292
      %v2571 = vunpack.c.l.bf16 %v293
      %v2572 = vunpack.c.h.bf16 %v293
      %v2573 = vunpack.c.l.bf16 %v294
      %v2574 = vunpack.c.h.bf16 %v294
      %v2575 = vunpack.c.l.bf16 %v295
      %v2576 = vunpack.c.h.bf16 %v295
      %v2577 = vunpack.c.l.bf16 %v296
      %v2578 = vunpack.c.h.bf16 %v296
      %v2579 = vunpack.c.l.bf16 %v297
      %v2580 = vunpack.c.h.bf16 %v297
      %v2581 = vunpack.c.l.bf16 %v298
      %v2582 = vunpack.c.h.bf16 %v298
      %v2583 = vunpack.c.l.bf16 %v299
      %v2584 = vunpack.c.h.bf16 %v299
      %v2585 = vunpack.c.l.bf16 %v300
      %v2586 = vunpack.c.h.bf16 %v300
      %v2587 = vunpack.c.l.bf16 %v301
      %v2588 = vunpack.c.h.bf16 %v301
      %v2589 = vunpack.c.l.bf16 %v302
      %v2590 = vunpack.c.h.bf16 %v302
      %v2591 = vadd.f32 %v2324, %v2559
      %v2592 = vadd.f32 %v2520, %v2560
      %v2593 = vadd.f32 %v2326, %v2561
      %v2594 = vadd.f32 %v2522, %v2562
      %v2595 = vadd.f32 %v2329, %v2563
      %v2596 = vadd.f32 %v2525, %v2564
      %v2597 = vadd.f32 %v2331, %v2565
      %v2598 = vadd.f32 %v2527, %v2566
      %v2599 = vadd.f32 %v2334, %v2567
      %v2600 = vadd.f32 %v2530, %v2568
      %v2601 = vadd.f32 %v2336, %v2569
      %v2602 = vadd.f32 %v2532, %v2570
      %v2603 = vadd.f32 %v2339, %v2571
      %v2604 = vadd.f32 %v2535, %v2572
      %v2605 = vadd.f32 %v2341, %v2573
      %v2606 = vadd.f32 %v2537, %v2574
      %v2607 = vadd.f32 %v2344, %v2575
      %v2608 = vadd.f32 %v2540, %v2576
      %v2609 = vadd.f32 %v2346, %v2577
      %v2610 = vadd.f32 %v2542, %v2578
      %v2611 = vadd.f32 %v2349, %v2579
      %v2612 = vadd.f32 %v2545, %v2580
      %v2613 = vadd.f32 %v2351, %v2581
      %v2614 = vadd.f32 %v2547, %v2582
      %v2615 = vadd.f32 %v2354, %v2583
      %v2616 = vadd.f32 %v2550, %v2584
      %v2617 = vadd.f32 %v2356, %v2585
      %v2618 = vadd.f32 %v2552, %v2586
      %v2619 = vadd.f32 %v2359, %v2587
      %v2620 = vadd.f32 %v2555, %v2588
      %v2621 = vadd.f32 %v2361, %v2589
      %v2622 = vadd.f32 %v2557, %v2590
      %v2623 = vld [vmem:[%s5] sm:$0x3]
      %v2624 = vld [vmem:[%s6] sm:$0x3]
      %v2625 = vadd.f32 %v2591, %v2592
      %2626 = vadd.xlane.f32.xlu0 %v2625
      %v2627 = vpop.xlane.xlu0 %2626
      %v2628 = vadd.f32 %v2593, %v2594
      %2629 = vadd.xlane.f32.xlu0 %v2628
      %v2630 = vpop.xlane.xlu0 %2629
      %v2631 = vadd.f32 %v2595, %v2596
      %2632 = vadd.xlane.f32.xlu0 %v2631
      %v2633 = vpop.xlane.xlu0 %2632
      %v2634 = vadd.f32 %v2597, %v2598
      %2635 = vadd.xlane.f32.xlu0 %v2634
      %v2636 = vpop.xlane.xlu0 %2635
      %v2637 = vadd.f32 %v2599, %v2600
      %2638 = vadd.xlane.f32.xlu0 %v2637
      %v2639 = vpop.xlane.xlu0 %2638
      %v2640 = vadd.f32 %v2601, %v2602
      %2641 = vadd.xlane.f32.xlu0 %v2640
      %v2642 = vpop.xlane.xlu0 %2641
      %v2643 = vadd.f32 %v2603, %v2604
      %2644 = vadd.xlane.f32.xlu0 %v2643
      %v2645 = vpop.xlane.xlu0 %2644
      %v2646 = vadd.f32 %v2605, %v2606
      %2647 = vadd.xlane.f32.xlu0 %v2646
      %v2648 = vpop.xlane.xlu0 %2647
      %v2649 = vadd.f32 %v2607, %v2608
      %2650 = vadd.xlane.f32.xlu0 %v2649
      %v2651 = vpop.xlane.xlu0 %2650
      %v2652 = vadd.f32 %v2609, %v2610
      %2653 = vadd.xlane.f32.xlu0 %v2652
      %v2654 = vpop.xlane.xlu0 %2653
      %v2655 = vadd.f32 %v2611, %v2612
      %2656 = vadd.xlane.f32.xlu0 %v2655
      %v2657 = vpop.xlane.xlu0 %2656
      %v2658 = vadd.f32 %v2613, %v2614
      %2659 = vadd.xlane.f32.xlu0 %v2658
      %v2660 = vpop.xlane.xlu0 %2659
      %v2661 = vadd.f32 %v2615, %v2616
      %2662 = vadd.xlane.f32.xlu0 %v2661
      %v2663 = vpop.xlane.xlu0 %2662
      %v2664 = vadd.f32 %v2617, %v2618
      %2665 = vadd.xlane.f32.xlu0 %v2664
      %v2666 = vpop.xlane.xlu0 %2665
      %v2667 = vadd.f32 %v2619, %v2620
      %2668 = vadd.xlane.f32.xlu0 %v2667
      %v2669 = vpop.xlane.xlu0 %2668
      %v2670 = vadd.f32 %v2621, %v2622
      %2671 = vadd.xlane.f32.xlu0 %v2670
      %v2672 = vpop.xlane.xlu0 %2671
      %v2673 = vrcp.pop 256.0
      %v2674 = vmul.f32 256.0, %v2673
      %v2675 = vsub.f32 1.0, %v2674
      %v2676 = vmul.f32 %v2673, %v2675
      %v2677 = vadd.f32 %v2673, %v2676
      %vm2678 = vweird.f32 %v2673
      %v2679 = vsel %vm2678, %v2673, %v2677
      %v2680 = vmul.f32 %v2627, %v2679
      %v2681 = vmul.f32 %v2630, %v2679
      %v2682 = vmul.f32 %v2633, %v2679
      %v2683 = vmul.f32 %v2636, %v2679
      %v2684 = vmul.f32 %v2639, %v2679
      %v2685 = vmul.f32 %v2642, %v2679
      %v2686 = vmul.f32 %v2645, %v2679
      %v2687 = vmul.f32 %v2648, %v2679
      %v2688 = vmul.f32 %v2651, %v2679
      %v2689 = vmul.f32 %v2654, %v2679
      %v2690 = vmul.f32 %v2657, %v2679
      %v2691 = vmul.f32 %v2660, %v2679
      %v2692 = vmul.f32 %v2663, %v2679
      %v2693 = vmul.f32 %v2666, %v2679
      %v2694 = vmul.f32 %v2669, %v2679
      %v2695 = vmul.f32 %v2672, %v2679
      %v2696 = vsub.f32 %v2591, %v2680
      %v2697 = vsub.f32 %v2592, %v2680
      %v2698 = vsub.f32 %v2593, %v2681
      %v2699 = vsub.f32 %v2594, %v2681
      %v2700 = vsub.f32 %v2595, %v2682
      %v2701 = vsub.f32 %v2596, %v2682
      %v2702 = vsub.f32 %v2597, %v2683
      %v2703 = vsub.f32 %v2598, %v2683
      %v2704 = vsub.f32 %v2599, %v2684
      %v2705 = vsub.f32 %v2600, %v2684
      %v2706 = vsub.f32 %v2601, %v2685
      %v2707 = vsub.f32 %v2602, %v2685
      %v2708 = vsub.f32 %v2603, %v2686
      %v2709 = vsub.f32 %v2604, %v2686
      %v2710 = vsub.f32 %v2605, %v2687
      %v2711 = vsub.f32 %v2606, %v2687
      %v2712 = vsub.f32 %v2607, %v2688
      %v2713 = vsub.f32 %v2608, %v2688
      %v2714 = vsub.f32 %v2609, %v2689
      %v2715 = vsub.f32 %v2610, %v2689
      %v2716 = vsub.f32 %v2611, %v2690
      %v2717 = vsub.f32 %v2612, %v2690
      %v2718 = vsub.f32 %v2613, %v2691
      %v2719 = vsub.f32 %v2614, %v2691
      %v2720 = vsub.f32 %v2615, %v2692
      %v2721 = vsub.f32 %v2616, %v2692
      %v2722 = vsub.f32 %v2617, %v2693
      %v2723 = vsub.f32 %v2618, %v2693
      %v2724 = vsub.f32 %v2619, %v2694
      %v2725 = vsub.f32 %v2620, %v2694
      %v2726 = vsub.f32 %v2621, %v2695
      %v2727 = vsub.f32 %v2622, %v2695
      %v2728 = vmul.f32 %v2696, %v2696
      %v2729 = vmul.f32 %v2697, %v2697
      %v2730 = vmul.f32 %v2698, %v2698
      %v2731 = vmul.f32 %v2699, %v2699
      %v2732 = vmul.f32 %v2700, %v2700
      %v2733 = vmul.f32 %v2701, %v2701
      %v2734 = vmul.f32 %v2702, %v2702
      %v2735 = vmul.f32 %v2703, %v2703
      %v2736 = vmul.f32 %v2704, %v2704
      %v2737 = vmul.f32 %v2705, %v2705
      %v2738 = vmul.f32 %v2706, %v2706
      %v2739 = vmul.f32 %v2707, %v2707
      %v2740 = vmul.f32 %v2708, %v2708
      %v2741 = vmul.f32 %v2709, %v2709
      %v2742 = vmul.f32 %v2710, %v2710
      %v2743 = vmul.f32 %v2711, %v2711
      %v2744 = vmul.f32 %v2712, %v2712
      %v2745 = vmul.f32 %v2713, %v2713
      %v2746 = vmul.f32 %v2714, %v2714
      %v2747 = vmul.f32 %v2715, %v2715
      %v2748 = vmul.f32 %v2716, %v2716
      %v2749 = vmul.f32 %v2717, %v2717
      %v2750 = vmul.f32 %v2718, %v2718
      %v2751 = vmul.f32 %v2719, %v2719
      %v2752 = vmul.f32 %v2720, %v2720
      %v2753 = vmul.f32 %v2721, %v2721
      %v2754 = vmul.f32 %v2722, %v2722
      %v2755 = vmul.f32 %v2723, %v2723
      %v2756 = vmul.f32 %v2724, %v2724
      %v2757 = vmul.f32 %v2725, %v2725
      %v2758 = vmul.f32 %v2726, %v2726
      %v2759 = vmul.f32 %v2727, %v2727
      %v2760 = vadd.f32 %v2728, %v2729
      %2761 = vadd.xlane.f32.xlu0 %v2760
      %v2762 = vpop.xlane.xlu0 %2761
      %v2763 = vadd.f32 %v2730, %v2731
      %2764 = vadd.xlane.f32.xlu0 %v2763
      %v2765 = vpop.xlane.xlu0 %2764
      %v2766 = vadd.f32 %v2732, %v2733
      %2767 = vadd.xlane.f32.xlu0 %v2766
      %v2768 = vpop.xlane.xlu0 %2767
      %v2769 = vadd.f32 %v2734, %v2735
      %2770 = vadd.xlane.f32.xlu0 %v2769
      %v2771 = vpop.xlane.xlu0 %2770
      %v2772 = vadd.f32 %v2736, %v2737
      %2773 = vadd.xlane.f32.xlu0 %v2772
      %v2774 = vpop.xlane.xlu0 %2773
      %v2775 = vadd.f32 %v2738, %v2739
      %2776 = vadd.xlane.f32.xlu0 %v2775
      %v2777 = vpop.xlane.xlu0 %2776
      %v2778 = vadd.f32 %v2740, %v2741
      %2779 = vadd.xlane.f32.xlu0 %v2778
      %v2780 = vpop.xlane.xlu0 %2779
      %v2781 = vadd.f32 %v2742, %v2743
      %2782 = vadd.xlane.f32.xlu0 %v2781
      %v2783 = vpop.xlane.xlu0 %2782
      %v2784 = vadd.f32 %v2744, %v2745
      %2785 = vadd.xlane.f32.xlu0 %v2784
      %v2786 = vpop.xlane.xlu0 %2785
      %v2787 = vadd.f32 %v2746, %v2747
      %2788 = vadd.xlane.f32.xlu0 %v2787
      %v2789 = vpop.xlane.xlu0 %2788
      %v2790 = vadd.f32 %v2748, %v2749
      %2791 = vadd.xlane.f32.xlu0 %v2790
      %v2792 = vpop.xlane.xlu0 %2791
      %v2793 = vadd.f32 %v2750, %v2751
      %2794 = vadd.xlane.f32.xlu0 %v2793
      %v2795 = vpop.xlane.xlu0 %2794
      %v2796 = vadd.f32 %v2752, %v2753
      %2797 = vadd.xlane.f32.xlu0 %v2796
      %v2798 = vpop.xlane.xlu0 %2797
      %v2799 = vadd.f32 %v2754, %v2755
      %2800 = vadd.xlane.f32.xlu0 %v2799
      %v2801 = vpop.xlane.xlu0 %2800
      %v2802 = vadd.f32 %v2756, %v2757
      %2803 = vadd.xlane.f32.xlu0 %v2802
      %v2804 = vpop.xlane.xlu0 %2803
      %v2805 = vadd.f32 %v2758, %v2759
      %2806 = vadd.xlane.f32.xlu0 %v2805
      %v2807 = vpop.xlane.xlu0 %2806
      %v2808 = vmul.f32 %v2762, %v2679
      %v2809 = vmul.f32 %v2765, %v2679
      %v2810 = vmul.f32 %v2768, %v2679
      %v2811 = vmul.f32 %v2771, %v2679
      %v2812 = vmul.f32 %v2774, %v2679
      %v2813 = vmul.f32 %v2777, %v2679
      %v2814 = vmul.f32 %v2780, %v2679
      %v2815 = vmul.f32 %v2783, %v2679
      %v2816 = vmul.f32 %v2786, %v2679
      %v2817 = vmul.f32 %v2789, %v2679
      %v2818 = vmul.f32 %v2792, %v2679
      %v2819 = vmul.f32 %v2795, %v2679
      %v2820 = vmul.f32 %v2798, %v2679
      %v2821 = vmul.f32 %v2801, %v2679
      %v2822 = vmul.f32 %v2804, %v2679
      %v2823 = vmul.f32 %v2807, %v2679
      %v2824 = vadd.f32 %v2808, 1e-12
      %v2825 = vadd.f32 %v2809, 1e-12
      %v2826 = vadd.f32 %v2810, 1e-12
      %v2827 = vadd.f32 %v2811, 1e-12
      %v2828 = vadd.f32 %v2812, 1e-12
      %v2829 = vadd.f32 %v2813, 1e-12
      %v2830 = vadd.f32 %v2814, 1e-12
      %v2831 = vadd.f32 %v2815, 1e-12
      %v2832 = vadd.f32 %v2816, 1e-12
      %v2833 = vadd.f32 %v2817, 1e-12
      %v2834 = vadd.f32 %v2818, 1e-12
      %v2835 = vadd.f32 %v2819, 1e-12
      %v2836 = vadd.f32 %v2820, 1e-12
      %v2837 = vadd.f32 %v2821, 1e-12
      %v2838 = vadd.f32 %v2822, 1e-12
      %v2839 = vadd.f32 %v2823, 1e-12
      %v2840 = vrsqrt.pop %v2824
      %v2841 = vmul.f32 %v2840, %v2824
      %v2842 = vmul.f32 %v2841, %v2840
      %v2843 = vmul.f32 0.5, %v2842
      %v2844 = vsub.f32 1.5, %v2843
      %v2845 = vmul.f32 %v2840, %v2844
      %vm2846 = vweird.f32 %v2824
      %vm2847 = vweird.f32 %v2840
      %vm2848 = vmor %vm2846, %vm2847
      %v2849 = vsel %vm2848, %v2840, %v2845
      %v2850 = vrsqrt.pop %v2825
      %v2851 = vmul.f32 %v2850, %v2825
      %v2852 = vmul.f32 %v2851, %v2850
      %v2853 = vmul.f32 0.5, %v2852
      %v2854 = vsub.f32 1.5, %v2853
      %v2855 = vmul.f32 %v2850, %v2854
      %vm2856 = vweird.f32 %v2825
      %vm2857 = vweird.f32 %v2850
      %vm2858 = vmor %vm2856, %vm2857
      %v2859 = vsel %vm2858, %v2850, %v2855
      %v2860 = vrsqrt.pop %v2826
      %v2861 = vmul.f32 %v2860, %v2826
      %v2862 = vmul.f32 %v2861, %v2860
      %v2863 = vmul.f32 0.5, %v2862
      %v2864 = vsub.f32 1.5, %v2863
      %v2865 = vmul.f32 %v2860, %v2864
      %vm2866 = vweird.f32 %v2826
      %vm2867 = vweird.f32 %v2860
      %vm2868 = vmor %vm2866, %vm2867
      %v2869 = vsel %vm2868, %v2860, %v2865
      %v2870 = vrsqrt.pop %v2827
      %v2871 = vmul.f32 %v2870, %v2827
      %v2872 = vmul.f32 %v2871, %v2870
      %v2873 = vmul.f32 0.5, %v2872
      %v2874 = vsub.f32 1.5, %v2873
      %v2875 = vmul.f32 %v2870, %v2874
      %vm2876 = vweird.f32 %v2827
      %vm2877 = vweird.f32 %v2870
      %vm2878 = vmor %vm2876, %vm2877
      %v2879 = vsel %vm2878, %v2870, %v2875
      %v2880 = vrsqrt.pop %v2828
      %v2881 = vmul.f32 %v2880, %v2828
      %v2882 = vmul.f32 %v2881, %v2880
      %v2883 = vmul.f32 0.5, %v2882
      %v2884 = vsub.f32 1.5, %v2883
      %v2885 = vmul.f32 %v2880, %v2884
      %vm2886 = vweird.f32 %v2828
      %vm2887 = vweird.f32 %v2880
      %vm2888 = vmor %vm2886, %vm2887
      %v2889 = vsel %vm2888, %v2880, %v2885
      %v2890 = vrsqrt.pop %v2829
      %v2891 = vmul.f32 %v2890, %v2829
      %v2892 = vmul.f32 %v2891, %v2890
      %v2893 = vmul.f32 0.5, %v2892
      %v2894 = vsub.f32 1.5, %v2893
      %v2895 = vmul.f32 %v2890, %v2894
      %vm2896 = vweird.f32 %v2829
      %vm2897 = vweird.f32 %v2890
      %vm2898 = vmor %vm2896, %vm2897
      %v2899 = vsel %vm2898, %v2890, %v2895
      %v2900 = vrsqrt.pop %v2830
      %v2901 = vmul.f32 %v2900, %v2830
      %v2902 = vmul.f32 %v2901, %v2900
      %v2903 = vmul.f32 0.5, %v2902
      %v2904 = vsub.f32 1.5, %v2903
      %v2905 = vmul.f32 %v2900, %v2904
      %vm2906 = vweird.f32 %v2830
      %vm2907 = vweird.f32 %v2900
      %vm2908 = vmor %vm2906, %vm2907
      %v2909 = vsel %vm2908, %v2900, %v2905
      %v2910 = vrsqrt.pop %v2831
      %v2911 = vmul.f32 %v2910, %v2831
      %v2912 = vmul.f32 %v2911, %v2910
      %v2913 = vmul.f32 0.5, %v2912
      %v2914 = vsub.f32 1.5, %v2913
      %v2915 = vmul.f32 %v2910, %v2914
      %vm2916 = vweird.f32 %v2831
      %vm2917 = vweird.f32 %v2910
      %vm2918 = vmor %vm2916, %vm2917
      %v2919 = vsel %vm2918, %v2910, %v2915
      %v2920 = vrsqrt.pop %v2832
      %v2921 = vmul.f32 %v2920, %v2832
      %v2922 = vmul.f32 %v2921, %v2920
      %v2923 = vmul.f32 0.5, %v2922
      %v2924 = vsub.f32 1.5, %v2923
      %v2925 = vmul.f32 %v2920, %v2924
      %vm2926 = vweird.f32 %v2832
      %vm2927 = vweird.f32 %v2920
      %vm2928 = vmor %vm2926, %vm2927
      %v2929 = vsel %vm2928, %v2920, %v2925
      %v2930 = vrsqrt.pop %v2833
      %v2931 = vmul.f32 %v2930, %v2833
      %v2932 = vmul.f32 %v2931, %v2930
      %v2933 = vmul.f32 0.5, %v2932
      %v2934 = vsub.f32 1.5, %v2933
      %v2935 = vmul.f32 %v2930, %v2934
      %vm2936 = vweird.f32 %v2833
      %vm2937 = vweird.f32 %v2930
      %vm2938 = vmor %vm2936, %vm2937
      %v2939 = vsel %vm2938, %v2930, %v2935
      %v2940 = vrsqrt.pop %v2834
      %v2941 = vmul.f32 %v2940, %v2834
      %v2942 = vmul.f32 %v2941, %v2940
      %v2943 = vmul.f32 0.5, %v2942
      %v2944 = vsub.f32 1.5, %v2943
      %v2945 = vmul.f32 %v2940, %v2944
      %vm2946 = vweird.f32 %v2834
      %vm2947 = vweird.f32 %v2940
      %vm2948 = vmor %vm2946, %vm2947
      %v2949 = vsel %vm2948, %v2940, %v2945
      %v2950 = vrsqrt.pop %v2835
      %v2951 = vmul.f32 %v2950, %v2835
      %v2952 = vmul.f32 %v2951, %v2950
      %v2953 = vmul.f32 0.5, %v2952
      %v2954 = vsub.f32 1.5, %v2953
      %v2955 = vmul.f32 %v2950, %v2954
      %vm2956 = vweird.f32 %v2835
      %vm2957 = vweird.f32 %v2950
      %vm2958 = vmor %vm2956, %vm2957
      %v2959 = vsel %vm2958, %v2950, %v2955
      %v2960 = vrsqrt.pop %v2836
      %v2961 = vmul.f32 %v2960, %v2836
      %v2962 = vmul.f32 %v2961, %v2960
      %v2963 = vmul.f32 0.5, %v2962
      %v2964 = vsub.f32 1.5, %v2963
      %v2965 = vmul.f32 %v2960, %v2964
      %vm2966 = vweird.f32 %v2836
      %vm2967 = vweird.f32 %v2960
      %vm2968 = vmor %vm2966, %vm2967
      %v2969 = vsel %vm2968, %v2960, %v2965
      %v2970 = vrsqrt.pop %v2837
      %v2971 = vmul.f32 %v2970, %v2837
      %v2972 = vmul.f32 %v2971, %v2970
      %v2973 = vmul.f32 0.5, %v2972
      %v2974 = vsub.f32 1.5, %v2973
      %v2975 = vmul.f32 %v2970, %v2974
      %vm2976 = vweird.f32 %v2837
      %vm2977 = vweird.f32 %v2970
      %vm2978 = vmor %vm2976, %vm2977
      %v2979 = vsel %vm2978, %v2970, %v2975
      %v2980 = vrsqrt.pop %v2838
      %v2981 = vmul.f32 %v2980, %v2838
      %v2982 = vmul.f32 %v2981, %v2980
      %v2983 = vmul.f32 0.5, %v2982
      %v2984 = vsub.f32 1.5, %v2983
      %v2985 = vmul.f32 %v2980, %v2984
      %vm2986 = vweird.f32 %v2838
      %vm2987 = vweird.f32 %v2980
      %vm2988 = vmor %vm2986, %vm2987
      %v2989 = vsel %vm2988, %v2980, %v2985
      %v2990 = vrsqrt.pop %v2839
      %v2991 = vmul.f32 %v2990, %v2839
      %v2992 = vmul.f32 %v2991, %v2990
      %v2993 = vmul.f32 0.5, %v2992
      %v2994 = vsub.f32 1.5, %v2993
      %v2995 = vmul.f32 %v2990, %v2994
      %vm2996 = vweird.f32 %v2839
      %vm2997 = vweird.f32 %v2990
      %vm2998 = vmor %vm2996, %vm2997
      %v2999 = vsel %vm2998, %v2990, %v2995
      %v3000 = vmul.f32 %v2696, %v2849
      %v3001 = vmul.f32 %v2697, %v2849
      %v3002 = vmul.f32 %v2698, %v2859
      %v3003 = vmul.f32 %v2699, %v2859
      %v3004 = vmul.f32 %v2700, %v2869
      %v3005 = vmul.f32 %v2701, %v2869
      %v3006 = vmul.f32 %v2702, %v2879
      %v3007 = vmul.f32 %v2703, %v2879
      %v3008 = vmul.f32 %v2704, %v2889
      %v3009 = vmul.f32 %v2705, %v2889
      %v3010 = vmul.f32 %v2706, %v2899
      %v3011 = vmul.f32 %v2707, %v2899
      %v3012 = vmul.f32 %v2708, %v2909
      %v3013 = vmul.f32 %v2709, %v2909
      %v3014 = vmul.f32 %v2710, %v2919
      %v3015 = vmul.f32 %v2711, %v2919
      %v3016 = vmul.f32 %v2712, %v2929
      %v3017 = vmul.f32 %v2713, %v2929
      %v3018 = vmul.f32 %v2714, %v2939
      %v3019 = vmul.f32 %v2715, %v2939
      %v3020 = vmul.f32 %v2716, %v2949
      %v3021 = vmul.f32 %v2717, %v2949
      %v3022 = vmul.f32 %v2718, %v2959
      %v3023 = vmul.f32 %v2719, %v2959
      %v3024 = vmul.f32 %v2720, %v2969
      %v3025 = vmul.f32 %v2721, %v2969
      %v3026 = vmul.f32 %v2722, %v2979
      %v3027 = vmul.f32 %v2723, %v2979
      %v3028 = vmul.f32 %v2724, %v2989
      %v3029 = vmul.f32 %v2725, %v2989
      %v3030 = vmul.f32 %v2726, %v2999
      %v3031 = vmul.f32 %v2727, %v2999
      %v3033 = vperm.slane %v2623, 0
      %v3034 = vperm.slane %v2623, 1
      %v3037 = vmul.f32 %v3000, %v3033
      %v3038 = vmul.f32 %v3001, %v3034
      %v3039 = vmul.f32 %v3002, %v3033
      %v3040 = vmul.f32 %v3003, %v3034
      %v3041 = vmul.f32 %v3004, %v3033
      %v3042 = vmul.f32 %v3005, %v3034
      %v3043 = vmul.f32 %v3006, %v3033
      %v3044 = vmul.f32 %v3007, %v3034
      %v3045 = vmul.f32 %v3008, %v3033
      %v3046 = vmul.f32 %v3009, %v3034
      %v3047 = vmul.f32 %v3010, %v3033
      %v3048 = vmul.f32 %v3011, %v3034
      %v3049 = vmul.f32 %v3012, %v3033
      %v3050 = vmul.f32 %v3013, %v3034
      %v3051 = vmul.f32 %v3014, %v3033
      %v3052 = vmul.f32 %v3015, %v3034
      %v3053 = vmul.f32 %v3016, %v3033
      %v3054 = vmul.f32 %v3017, %v3034
      %v3055 = vmul.f32 %v3018, %v3033
      %v3056 = vmul.f32 %v3019, %v3034
      %v3057 = vmul.f32 %v3020, %v3033
      %v3058 = vmul.f32 %v3021, %v3034
      %v3059 = vmul.f32 %v3022, %v3033
      %v3060 = vmul.f32 %v3023, %v3034
      %v3061 = vmul.f32 %v3024, %v3033
      %v3062 = vmul.f32 %v3025, %v3034
      %v3063 = vmul.f32 %v3026, %v3033
      %v3064 = vmul.f32 %v3027, %v3034
      %v3065 = vmul.f32 %v3028, %v3033
      %v3066 = vmul.f32 %v3029, %v3034
      %v3067 = vmul.f32 %v3030, %v3033
      %v3068 = vmul.f32 %v3031, %v3034
      %v3070 = vperm.slane %v2624, 0
      %v3071 = vperm.slane %v2624, 1
      %v3074 = vadd.f32 %v3037, %v3070
      %v3075 = vadd.f32 %v3038, %v3071
      %v3076 = vadd.f32 %v3039, %v3070
      %v3077 = vadd.f32 %v3040, %v3071
      %v3078 = vadd.f32 %v3041, %v3070
      %v3079 = vadd.f32 %v3042, %v3071
      %v3080 = vadd.f32 %v3043, %v3070
      %v3081 = vadd.f32 %v3044, %v3071
      %v3082 = vadd.f32 %v3045, %v3070
      %v3083 = vadd.f32 %v3046, %v3071
      %v3084 = vadd.f32 %v3047, %v3070
      %v3085 = vadd.f32 %v3048, %v3071
      %v3086 = vadd.f32 %v3049, %v3070
      %v3087 = vadd.f32 %v3050, %v3071
      %v3088 = vadd.f32 %v3051, %v3070
      %v3089 = vadd.f32 %v3052, %v3071
      %v3090 = vadd.f32 %v3053, %v3070
      %v3091 = vadd.f32 %v3054, %v3071
      %v3092 = vadd.f32 %v3055, %v3070
      %v3093 = vadd.f32 %v3056, %v3071
      %v3094 = vadd.f32 %v3057, %v3070
      %v3095 = vadd.f32 %v3058, %v3071
      %v3096 = vadd.f32 %v3059, %v3070
      %v3097 = vadd.f32 %v3060, %v3071
      %v3098 = vadd.f32 %v3061, %v3070
      %v3099 = vadd.f32 %v3062, %v3071
      %v3100 = vadd.f32 %v3063, %v3070
      %v3101 = vadd.f32 %v3064, %v3071
      %v3102 = vadd.f32 %v3065, %v3070
      %v3103 = vadd.f32 %v3066, %v3071
      %v3104 = vadd.f32 %v3067, %v3070
      %v3105 = vadd.f32 %v3068, %v3071
      %v3106 = vpack.c.bf16 %v3075, %v3074
      %v3107 = vpack.c.bf16 %v3077, %v3076
      %v3108 = vpack.c.bf16 %v3079, %v3078
      %v3109 = vpack.c.bf16 %v3081, %v3080
      %v3110 = vpack.c.bf16 %v3083, %v3082
      %v3111 = vpack.c.bf16 %v3085, %v3084
      %v3112 = vpack.c.bf16 %v3087, %v3086
      %v3113 = vpack.c.bf16 %v3089, %v3088
      %v3114 = vpack.c.bf16 %v3091, %v3090
      %v3115 = vpack.c.bf16 %v3093, %v3092
      %v3116 = vpack.c.bf16 %v3095, %v3094
      %v3117 = vpack.c.bf16 %v3097, %v3096
      %v3118 = vpack.c.bf16 %v3099, %v3098
      %v3119 = vpack.c.bf16 %v3101, %v3100
      %v3120 = vpack.c.bf16 %v3103, %v3102
      %v3121 = vpack.c.bf16 %v3105, %v3104
      %3122 = vst [vmem:[%s285] sm:$0xff] %v3106
      %3123 = vst [vmem:[%s285 + $0x8] sm:$0xff] %v3107
      %3124 = vst [vmem:[%s285 + $0x10] sm:$0xff] %v3108
      %3125 = vst [vmem:[%s285 + $0x18] sm:$0xff] %v3109
      %3126 = vst [vmem:[%s285 + $0x20] sm:$0xff] %v3110
      %3127 = vst [vmem:[%s285 + $0x28] sm:$0xff] %v3111
      %3128 = vst [vmem:[%s285 + $0x30] sm:$0xff] %v3112
      %3129 = vst [vmem:[%s285 + $0x38] sm:$0xff] %v3113
      %3130 = vst [vmem:[%s285 + $0x40] sm:$0xff] %v3114
      %3131 = vst [vmem:[%s285 + $0x48] sm:$0xff] %v3115
      %3132 = vst [vmem:[%s285 + $0x50] sm:$0xff] %v3116
      %3133 = vst [vmem:[%s285 + $0x58] sm:$0xff] %v3117
      %3134 = vst [vmem:[%s285 + $0x60] sm:$0xff] %v3118
      %3135 = vst [vmem:[%s285 + $0x68] sm:$0xff] %v3119
      %3136 = vst [vmem:[%s285 + $0x70] sm:$0xff] %v3120
      %3137 = vst [vmem:[%s285 + $0x78] sm:$0xff] %v3121
      %s3138 = smul.u32 16, %s18
      %p3139 = scmp.lt.s32.totalorder %s3138, 31
      %s3140 = scalar_select %p3139, %s3138, 31
      %s3141 = smul.addr %s3140, 2
      %s3142 = smul.addr %s3141, 4
      %s3143 = scalar_lea.vmem %s7, %s3142
      // Predicated region
      $region49: #{bert_base_uncased_forward.14} parent=47 // pred_check
        %p3144 = pneg %p188
      $region50: #{bert_base_uncased_forward.14} parent=47 // pred_check_branch
        %3146 = sbr.rel (%p3144) target = $region52
      $region51: #{bert_base_uncased_forward.14} parent=47 // pred_region
        %s3147 = smul.u32 16, %s18
      $region52: #{bert_base_uncased_forward.14} parent=47 // pred_fallthru
        _
    $region48: #{bert_base_uncased_forward.14} parent=5 // pred_fallthru
      _
    %p3148 = scmp.le.s32.totalorder 2, %s13
    // Predicated region
    $region53: #{bert_base_uncased_forward.14} parent=5 // pred_check
      %p3149 = pneg %p3148
    $region54: #{bert_base_uncased_forward.14} parent=5 // pred_check_branch
      %3151 = sbr.rel (%p3149) target = $region56
    $region55: #{bert_base_uncased_forward.14} parent=5 // pred_region
      %s3152 = ssub.s32 %s13, 2
      // Predicated region
      $region57: #{bert_base_uncased_forward.14} parent=55 // pred_check
        %p3153 = pneg %p194
      $region58: #{bert_base_uncased_forward.14} parent=55 // pred_check_branch
        %3155 = sbr.rel (%p3153) target = $region60
      $region59: #{bert_base_uncased_forward.14} parent=55 // pred_region
        %s3156 = smul.u32 16, %s19
        %p3157 = scmp.lt.s32.totalorder %s3156, 31
        %s3158 = scalar_select %p3157, %s3156, 31
        %s3159 = smul.addr %s3158, 2
        %s3160 = smul.addr %s3159, 4
        %s3161 = scalar_lea.vmem %s7, %s3160
      $region60: #{bert_base_uncased_forward.14} parent=55 // pred_fallthru
        _
    $region56: #{bert_base_uncased_forward.14} parent=5 // pred_fallthru
      _
  $region6: #{bert_base_uncased_forward.14} parent=0 // loop_footer
    %s17 = sadd.s32 1, %s13
  $region7: #{bert_base_uncased_forward.14} parent=0 // loop_footer_branch
    %12 = sbr.rel target = $region3
  $region8: #{bert_base_uncased_forward.14} parent=0 // loop_exit
    _

</llo_original>
